<compile_context>
chip_gen: v7x
topology: tpu7x:2x2x1
jax: 0.10.0
libtpu: 0.0.40
codegen_flags: <defaults>
</compile_context>

<pallas_src>
import math

import jax
import jax.numpy as jnp
from jax import lax
from jax.experimental import pallas as pl
from jax.experimental.pallas import tpu as pltpu


# ---------------------------------------------------------------------------
# padding helpers (wrapper-side, pure XLA glue)
# ---------------------------------------------------------------------------
def _round_up(x: int, m: int) -> int:
    return ((x + m - 1) // m) * m


def _pad2(a, rows, cols):
    return jnp.pad(a, ((0, rows - a.shape[0]), (0, cols - a.shape[1])))


def _pad_gate_mat(w, in_pad, h, h_pad):
    """w: (in_dim, 4*h) with PyTorch gate order [i, f, g, o]; zero-pad per gate chunk."""
    in_dim = w.shape[0]
    w4 = w.reshape(in_dim, 4, h)
    w4 = jnp.pad(w4, ((0, in_pad - in_dim), (0, 0), (0, h_pad - h)))
    return w4.reshape(in_pad, 4 * h_pad)


def _pad_gate_vec(b, h, h_pad):
    b4 = b.reshape(4, h)
    b4 = jnp.pad(b4, ((0, 0), (0, h_pad - h)))
    return b4.reshape(1, 4 * h_pad)


# ---------------------------------------------------------------------------
# fused encoder + decoder kernel
# ---------------------------------------------------------------------------
def _lstm_ae_kernel(x_ref, w_ih_e_ref, w_hh_e_ref, b_e_ref, h0_ref, c0_ref,
                    w_fc_ref, b_fc_ref, w_ih_d_ref, w_hh_d_ref, b_d_ref,
                    w_out_ref, b_out_ref, out_ref, pre_scr, hdec_scr):
    T, Bblk, G4e = pre_scr.shape
    Hep = w_hh_e_ref.shape[0]
    Hdp = w_hh_d_ref.shape[0]
    Fp = w_out_ref.shape[1]
    f32, bf16 = jnp.float32, jnp.bfloat16
    unroll = True if T <= 32 else 4

    def gates(pre, c_prev, h_dim):
        # Sequenced per-gate-slice consumption keeps live f32 vregs bounded.
        i = jax.nn.sigmoid(pre[:, 0 * h_dim:1 * h_dim])
        g = jnp.tanh(pre[:, 2 * h_dim:3 * h_dim])
        ig = i * g
        f = jax.nn.sigmoid(pre[:, 1 * h_dim:2 * h_dim])
        c_new = f * c_prev + ig                      # cell state kept in f32
        o = jax.nn.sigmoid(pre[:, 3 * h_dim:4 * h_dim])
        h_new = (o * jnp.tanh(c_new)).astype(bf16)   # h carried in bf16
        return h_new, c_new

    # -------- encoder: HOISTED input projection (one M = T*Bblk matmul) ------
    # Gather the timesteps time-major with static, 128-aligned lane slices
    # (cheap vreg moves, no XLU transpose), then one big MXU-friendly matmul
    # with b_e folded in; stash the f32 pre-activations in a VMEM slab.
    x_tm = jnp.concatenate(
        [x_ref[:, t * Fp:(t + 1) * Fp] for t in range(T)], axis=0).astype(bf16)
    pre_all = (jnp.dot(x_tm, w_ih_e_ref[...], preferred_element_type=f32)
               + b_e_ref[...])                                   # (T*Bblk, 4*Hep)
    pre_scr[...] = pre_all.reshape(T, Bblk, G4e)

    # ----------------------------- encoder LSTM -----------------------------
    w_hh_e = w_hh_e_ref[...]

    def enc_step(t, carry):
        h, c = carry
        pre = pre_scr[t] + jnp.dot(h, w_hh_e, preferred_element_type=f32)
        return gates(pre, c, Hep)

    h_e, _ = lax.fori_loop(0, T, enc_step,
                           (h0_ref[...].astype(bf16), c0_ref[...]),
                           unroll=unroll)

    # ----------------- encoder head: Linear + Sigmoid -> embedding ----------
    emb = jax.nn.sigmoid(
        jnp.dot(h_e, w_fc_ref[...], preferred_element_type=f32) + b_fc_ref[...])

    # ----------------------------- decoder LSTM -----------------------------
    # Same embedding fed at every step -> hoist the input projection (+ b_d).
    gz = (jnp.dot(emb.astype(bf16), w_ih_d_ref[...], preferred_element_type=f32)
          + b_d_ref[...])
    w_hh_d = w_hh_d_ref[...]

    def dec_step(t, carry):
        h, c = carry
        pre = gz + jnp.dot(h, w_hh_d, preferred_element_type=f32)
        h_new, c_new = gates(pre, c, Hdp)
        hdec_scr[t] = h_new                 # store only the hidden state (bf16)
        return h_new, c_new

    lax.fori_loop(0, T, dec_step,
                  (jnp.zeros((Bblk, Hdp), bf16), jnp.zeros((Bblk, Hdp), f32)),
                  unroll=unroll)

    # ---- DEFERRED decoder head: one M = T*Bblk matmul, lane-dense stores ----
    h_all = hdec_scr[...].reshape(T * Bblk, Hdp)                 # free collapse
    y = jax.nn.sigmoid(
        jnp.dot(h_all, w_out_ref[...], preferred_element_type=f32) + b_out_ref[...])
    y = y.reshape(T, Bblk, Fp)                                   # free split
    for t in range(T):
        out_ref[:, t * Fp:(t + 1) * Fp] = y[t]                   # 128-wide stores


# ---------------------------------------------------------------------------
# wrapper: pad, build specs, call the kernel, unpad
# ---------------------------------------------------------------------------
def lstm_ae_forward(x_flat, params, seq_len, no_features, embedding_size):
    B = x_flat.shape[0]
    T, F, E = seq_len, no_features, embedding_size
    He, Hd = 2 * F, 2 * E

    # ---- batch tile: up to 64 rows; >=2 tiles when Bp >= 16 (v7x megacore) ----
    B_BLK_MAX = 64
    B8 = _round_up(max(B, 1), 8)
    if B8 >= 16:
        B_BLK = min(B_BLK_MAX, _round_up((B8 + 1) // 2, 8))
    else:
        B_BLK = B8
    Bp = _round_up(B8, B_BLK)

    Fp = _round_up(F, 128)
    Hep = _round_up(He, 128)
    Ep = _round_up(E, 128)
    Hdp = _round_up(Hd, 128)

    f32, bf16 = jnp.float32, jnp.bfloat16

    # input stays batch-first flat: (B, T*F) -> (Bp, T*Fp) (zero pad only)
    x = x_flat.reshape(B, T, F).astype(f32)
    x = jnp.pad(x, ((0, Bp - B), (0, 0), (0, Fp - F))).reshape(Bp, T * Fp)

    # weights -> bf16 (MXU operands); biases / initial states stay f32
    w_ih_e = _pad_gate_mat(params["w_ih_e"], Fp, He, Hep).astype(bf16)
    w_hh_e = _pad_gate_mat(params["w_hh_e"], Hep, He, Hep).astype(bf16)
    b_e = _pad_gate_vec(params["b_e"], He, Hep).astype(f32)
    h0 = _pad2(params["h0"].astype(f32), Bp, Hep)
    c0 = _pad2(params["c0"].astype(f32), Bp, Hep)
    w_fc = _pad2(params["w_fc"], Hep, Ep).astype(bf16)
    b_fc = _pad2(params["b_fc"][None, :], 1, Ep).astype(f32)
    w_ih_d = _pad_gate_mat(params["w_ih_d"], Ep, Hd, Hdp).astype(bf16)
    w_hh_d = _pad_gate_mat(params["w_hh_d"], Hdp, Hd, Hdp).astype(bf16)
    b_d = _pad_gate_vec(params["b_d"], Hd, Hdp).astype(f32)
    w_out = _pad2(params["w_out"], Hdp, Fp).astype(bf16)
    b_out = _pad2(params["b_out"][None, :], 1, Fp).astype(f32)

    const = lambda b: (0, 0)      # weights: same block every grid step -> VMEM resident
    batched = lambda b: (b, 0)    # per-batch-tile blocks

    grid_spec = pltpu.PrefetchScalarGridSpec(
        num_scalar_prefetch=0,
        grid=(Bp // B_BLK,),
        in_specs=[
            pl.BlockSpec((B_BLK, T * Fp), batched),     # x
            pl.BlockSpec((Fp, 4 * Hep), const),         # w_ih_e
            pl.BlockSpec((Hep, 4 * Hep), const),        # w_hh_e
            pl.BlockSpec((1, 4 * Hep), const),          # b_e
            pl.BlockSpec((B_BLK, Hep), batched),        # h0
            pl.BlockSpec((B_BLK, Hep), batched),        # c0
            pl.BlockSpec((Hep, Ep), const),             # w_fc
            pl.BlockSpec((1, Ep), const),               # b_fc
            pl.BlockSpec((Ep, 4 * Hdp), const),         # w_ih_d
            pl.BlockSpec((Hdp, 4 * Hdp), const),        # w_hh_d
            pl.BlockSpec((1, 4 * Hdp), const),          # b_d
            pl.BlockSpec((Hdp, Fp), const),             # w_out
            pl.BlockSpec((1, Fp), const),               # b_out
        ],
        out_specs=pl.BlockSpec((B_BLK, T * Fp), batched),
        scratch_shapes=[
            pltpu.VMEM((T, B_BLK, 4 * Hep), f32),       # encoder pre-activation slab
            pltpu.VMEM((T, B_BLK, Hdp), bf16),          # decoder hidden-state slab
        ],
    )

    # VMEM budget: double-buffered I/O blocks + weights + scratch slabs, 2x headroom,
    # capped at 48 MiB so the same tiling stays inside v7x's 64 MiB physical VMEM.
    io_bytes = 2 * (B_BLK * T * Fp * 4) * 2 + 2 * 2 * (B_BLK * Hep * 4)
    w_bytes = 2 * (Fp * 4 * Hep * 2 + Hep * 4 * Hep * 2 + 4 * Hep * 4
                   + Hep * Ep * 2 + Ep * 4
                   + Ep * 4 * Hdp * 2 + Hdp * 4 * Hdp * 2 + 4 * Hdp * 4
                   + Hdp * Fp * 2 + Fp * 4)
    scr_bytes = T * B_BLK * 4 * Hep * 4 + T * B_BLK * Hdp * 2
    vmem_limit = int(min(48 << 20, max(32 << 20, 2 * (io_bytes + w_bytes + scr_bytes))))

    out = pl.pallas_call(
        _lstm_ae_kernel,
        out_shape=jax.ShapeDtypeStruct((Bp, T * Fp), f32),
        grid_spec=grid_spec,
        compiler_params=pltpu.CompilerParams(
            dimension_semantics=("parallel",),
            vmem_limit_bytes=vmem_limit),
    )(x, w_ih_e, w_hh_e, b_e, h0, c0, w_fc, b_fc,
      w_ih_d, w_hh_d, b_d, w_out, b_out)

    out = out.reshape(Bp, T, Fp)[:B, :, :F]
    return out.reshape(B, T * F)


# ---------------------------------------------------------------------------
# pure-JAX reference (mirrors the kernel math, same bf16 matmul operands)
# ---------------------------------------------------------------------------
def lstm_ae_reference(x_flat, params, seq_len, no_features, embedding_size):
    B = x_flat.shape[0]
    T, F, E = seq_len, no_features, embedding_size
    Hd = 2 * E
    f32, bf16 = jnp.float32, jnp.bfloat16
    x = x_flat.reshape(B, T, F).astype(f32)

    def cell(x_t, h, c, w_ih, w_hh, b):
        n = h.shape[-1]
        pre = (jnp.dot(x_t.astype(bf16), w_ih.astype(bf16), preferred_element_type=f32)
               + jnp.dot(h.astype(bf16), w_hh.astype(bf16), preferred_element_type=f32)
               + b[None, :])
        i = jax.nn.sigmoid(pre[:, :n])
        f = jax.nn.sigmoid(pre[:, n:2 * n])
        g = jnp.tanh(pre[:, 2 * n:3 * n])
        o = jax.nn.sigmoid(pre[:, 3 * n:])
        c = f * c + i * g
        return o * jnp.tanh(c), c

    h, c = params["h0"].astype(f32), params["c0"].astype(f32)
    for t in range(T):
        h, c = cell(x[:, t, :], h, c,
                    params["w_ih_e"], params["w_hh_e"], params["b_e"])
    emb = jax.nn.sigmoid(
        jnp.dot(h.astype(bf16), params["w_fc"].astype(bf16),
                preferred_element_type=f32) + params["b_fc"][None, :])

    hdec = jnp.zeros((B, Hd), f32)
    cdec = jnp.zeros((B, Hd), f32)
    ys = []
    for t in range(T):
        hdec, cdec = cell(emb, hdec, cdec,
                          params["w_ih_d"], params["w_hh_d"], params["b_d"])
        ys.append(jax.nn.sigmoid(
            jnp.dot(hdec.astype(bf16), params["w_out"].astype(bf16),
                    preferred_element_type=f32) + params["b_out"][None, :]))
    return jnp.stack(ys, axis=1).reshape(B, T * F)


# ---------------------------------------------------------------------------
# deterministic parameter construction (shapes follow the PyTorch module)
# ---------------------------------------------------------------------------
def init_params(key, batch, seq_len, no_features, embedding_size):
    F, E = no_features, embedding_size
    He, Hd = 2 * F, 2 * E
    ks = jax.random.split(key, 12)
    u = lambda k, shape, s: jax.random.uniform(k, shape, jnp.float32, -s, s)
    se, sd = He ** -0.5, Hd ** -0.5
    # xavier-normal std for a (1, B, He) tensor (PyTorch init_hidden)
    xavier_std = math.sqrt(2.0 / ((batch + 1) * He))
    return {
        # encoder LSTM (weights stored as (in_dim, 4*hidden) == torch weight.T)
        "w_ih_e": u(ks[0], (F, 4 * He), se),
        "w_hh_e": u(ks[1], (He, 4 * He), se),
        "b_e":    u(ks[2], (4 * He,), se),        # b_ih + b_hh folded together
        # encoder head Linear(2F -> E) + Sigmoid
        "w_fc":   u(ks[3], (He, E), se),
        "b_fc":   u(ks[4], (E,), se),
        # decoder LSTM
        "w_ih_d": u(ks[5], (E, 4 * Hd), sd),
        "w_hh_d": u(ks[6], (Hd, 4 * Hd), sd),
        "b_d":    u(ks[7], (4 * Hd,), sd),
        # decoder head Linear(2E -> F) + Sigmoid
        "w_out":  u(ks[8], (Hd, F), sd),
        "b_out":  u(ks[9], (F,), sd),
        # encoder h0/c0 (PyTorch redraws these every forward; deterministic here)
        "h0": xavier_std * jax.random.normal(ks[10], (batch, He), jnp.float32),
        "c0": xavier_std * jax.random.normal(ks[11], (batch, He), jnp.float32),
    }


if __name__ == "__main__":
    # batch, seq_len, no_features (activity labels), embedding_size
    B, T, F, E = 4, 16, 6, 12
    key = jax.random.PRNGKey(0)
    k_x, k_p = jax.random.split(key)
    x = jax.random.uniform(k_x, (B, T * F), jnp.float32)
    params = init_params(k_p, B, T, F, E)

    out = lstm_ae_forward(x, params, T, F, E)
    out = jax.block_until_ready(out)
    assert out.shape == (B, T * F)

    ref = lstm_ae_reference(x, params, T, F, E)
    max_err = float(jnp.max(jnp.abs(out - ref)))
    assert max_err < 2e-2, f"kernel/reference mismatch: max|diff|={max_err}"
    print("KERNEL_OK")
</pallas_src>

<mosaic_0001>
module attributes {stable_mosaic.version = 11 : i64} {
  func.func @_lstm_ae_kernel(%arg0: i32, %arg1: memref<8x2048xf32, #tpu.memory_space<vmem>>, %arg2: memref<128x512xbf16, #tpu.memory_space<vmem>>, %arg3: memref<128x512xbf16, #tpu.memory_space<vmem>>, %arg4: memref<1x512xf32, #tpu.memory_space<vmem>>, %arg5: memref<8x128xf32, #tpu.memory_space<vmem>>, %arg6: memref<8x128xf32, #tpu.memory_space<vmem>>, %arg7: memref<128x128xbf16, #tpu.memory_space<vmem>>, %arg8: memref<1x128xf32, #tpu.memory_space<vmem>>, %arg9: memref<128x512xbf16, #tpu.memory_space<vmem>>, %arg10: memref<128x512xbf16, #tpu.memory_space<vmem>>, %arg11: memref<1x512xf32, #tpu.memory_space<vmem>>, %arg12: memref<128x128xbf16, #tpu.memory_space<vmem>>, %arg13: memref<1x128xf32, #tpu.memory_space<vmem>>, %arg14: memref<8x2048xf32, #tpu.memory_space<vmem>>, %arg15: memref<16x8x512xf32, #tpu.memory_space<vmem>>, %arg16: memref<16x8x128xbf16, #tpu.memory_space<vmem>>) attributes {dimension_semantics = [#tpu.dimension_semantics<parallel>], iteration_bounds = array<i64: 1>, scalar_prefetch = 0 : i64, scratch_operands = 2 : i64, tpu.core_type = #tpu.core_type<tc>, window_params = [{transform_indices = @transform_0, window_bounds = array<i64: 8, 2048>}, {pipeline_mode = #tpu.pipeline_mode<synchronous>, transform_indices = @transform_1, window_bounds = array<i64: 128, 512>}, {pipeline_mode = #tpu.pipeline_mode<synchronous>, transform_indices = @transform_2, window_bounds = array<i64: 128, 512>}, {pipeline_mode = #tpu.pipeline_mode<synchronous>, transform_indices = @transform_3, window_bounds = array<i64: 1, 512>}, {transform_indices = @transform_4, window_bounds = array<i64: 8, 128>}, {transform_indices = @transform_5, window_bounds = array<i64: 8, 128>}, {pipeline_mode = #tpu.pipeline_mode<synchronous>, transform_indices = @transform_6, window_bounds = array<i64: 128, 128>}, {pipeline_mode = #tpu.pipeline_mode<synchronous>, transform_indices = @transform_7, window_bounds = array<i64: 1, 128>}, {pipeline_mode = #tpu.pipeline_mode<synchronous>, transform_indices = @transform_8, window_bounds = array<i64: 128, 512>}, {pipeline_mode = #tpu.pipeline_mode<synchronous>, transform_indices = @transform_9, window_bounds = array<i64: 128, 512>}, {pipeline_mode = #tpu.pipeline_mode<synchronous>, transform_indices = @transform_10, window_bounds = array<i64: 1, 512>}, {pipeline_mode = #tpu.pipeline_mode<synchronous>, transform_indices = @transform_11, window_bounds = array<i64: 128, 128>}, {pipeline_mode = #tpu.pipeline_mode<synchronous>, transform_indices = @transform_12, window_bounds = array<i64: 1, 128>}, {transform_indices = @transform_13, window_bounds = array<i64: 8, 2048>}]} {
    %c0 = arith.constant 0 : index
    %c0_0 = arith.constant 0 : index
    %0 = vector.load %arg1[%c0, %c0_0] : memref<8x2048xf32, #tpu.memory_space<vmem>>, vector<8x128xf32>
    %c0_1 = arith.constant 0 : index
    %c128 = arith.constant 128 : index
    %1 = vector.load %arg1[%c0_1, %c128] : memref<8x2048xf32, #tpu.memory_space<vmem>>, vector<8x128xf32>
    %c0_2 = arith.constant 0 : index
    %c256 = arith.constant 256 : index
    %2 = vector.load %arg1[%c0_2, %c256] : memref<8x2048xf32, #tpu.memory_space<vmem>>, vector<8x128xf32>
    %c0_3 = arith.constant 0 : index
    %c384 = arith.constant 384 : index
    %3 = vector.load %arg1[%c0_3, %c384] : memref<8x2048xf32, #tpu.memory_space<vmem>>, vector<8x128xf32>
    %c0_4 = arith.constant 0 : index
    %c512 = arith.constant 512 : index
    %4 = vector.load %arg1[%c0_4, %c512] : memref<8x2048xf32, #tpu.memory_space<vmem>>, vector<8x128xf32>
    %c0_5 = arith.constant 0 : index
    %c640 = arith.constant 640 : index
    %5 = vector.load %arg1[%c0_5, %c640] : memref<8x2048xf32, #tpu.memory_space<vmem>>, vector<8x128xf32>
    %c0_6 = arith.constant 0 : index
    %c768 = arith.constant 768 : index
    %6 = vector.load %arg1[%c0_6, %c768] : memref<8x2048xf32, #tpu.memory_space<vmem>>, vector<8x128xf32>
    %c0_7 = arith.constant 0 : index
    %c896 = arith.constant 896 : index
    %7 = vector.load %arg1[%c0_7, %c896] : memref<8x2048xf32, #tpu.memory_space<vmem>>, vector<8x128xf32>
    %c0_8 = arith.constant 0 : index
    %c1024 = arith.constant 1024 : index
    %8 = vector.load %arg1[%c0_8, %c1024] : memref<8x2048xf32, #tpu.memory_space<vmem>>, vector<8x128xf32>
    %c0_9 = arith.constant 0 : index
    %c1152 = arith.constant 1152 : index
    %9 = vector.load %arg1[%c0_9, %c1152] : memref<8x2048xf32, #tpu.memory_space<vmem>>, vector<8x128xf32>
    %c0_10 = arith.constant 0 : index
    %c1280 = arith.constant 1280 : index
    %10 = vector.load %arg1[%c0_10, %c1280] : memref<8x2048xf32, #tpu.memory_space<vmem>>, vector<8x128xf32>
    %c0_11 = arith.constant 0 : index
    %c1408 = arith.constant 1408 : index
    %11 = vector.load %arg1[%c0_11, %c1408] : memref<8x2048xf32, #tpu.memory_space<vmem>>, vector<8x128xf32>
    %c0_12 = arith.constant 0 : index
    %c1536 = arith.constant 1536 : index
    %12 = vector.load %arg1[%c0_12, %c1536] : memref<8x2048xf32, #tpu.memory_space<vmem>>, vector<8x128xf32>
    %c0_13 = arith.constant 0 : index
    %c1664 = arith.constant 1664 : index
    %13 = vector.load %arg1[%c0_13, %c1664] : memref<8x2048xf32, #tpu.memory_space<vmem>>, vector<8x128xf32>
    %c0_14 = arith.constant 0 : index
    %c1792 = arith.constant 1792 : index
    %14 = vector.load %arg1[%c0_14, %c1792] : memref<8x2048xf32, #tpu.memory_space<vmem>>, vector<8x128xf32>
    %c0_15 = arith.constant 0 : index
    %c1920 = arith.constant 1920 : index
    %15 = vector.load %arg1[%c0_15, %c1920] : memref<8x2048xf32, #tpu.memory_space<vmem>>, vector<8x128xf32>
    %16 = tpu.concatenate %0, %1, %2, %3, %4, %5, %6, %7, %8, %9, %10, %11, %12, %13, %14, %15 in 0 : vector<8x128xf32>, vector<8x128xf32>, vector<8x128xf32>, vector<8x128xf32>, vector<8x128xf32>, vector<8x128xf32>, vector<8x128xf32>, vector<8x128xf32>, vector<8x128xf32>, vector<8x128xf32>, vector<8x128xf32>, vector<8x128xf32>, vector<8x128xf32>, vector<8x128xf32>, vector<8x128xf32>, vector<8x128xf32> -> vector<128x128xf32>
    %17 = arith.truncf %16 : vector<128x128xf32> to vector<128x128xbf16>
    %c0_16 = arith.constant 0 : index
    %c0_17 = arith.constant 0 : index
    %18 = vector.load %arg2[%c0_16, %c0_17] : memref<128x512xbf16, #tpu.memory_space<vmem>>, vector<128x512xbf16>
    %cst = arith.constant dense<0.000000e+00> : vector<128x512xf32>
    %19 = tpu.matmul %17, %18, %cst {dimension_numbers = #tpu.dot_dimension_numbers<[1], [0], [0], [1], [0, 0, 1, 1], [], []>} : vector<128x128xbf16>, vector<128x512xbf16>, vector<128x512xf32> -> vector<128x512xf32>
    %c0_18 = arith.constant 0 : index
    %c0_19 = arith.constant 0 : index
    %20 = vector.load %arg4[%c0_18, %c0_19] : memref<1x512xf32, #tpu.memory_space<vmem>>, vector<1x512xf32>
    %21 = vector.broadcast %20 : vector<1x512xf32> to vector<128x512xf32>
    %22 = arith.addf %19, %21 : vector<128x512xf32>
    %23 = vector.shape_cast %22 : vector<128x512xf32> to vector<16x8x512xf32>
    %c0_20 = arith.constant 0 : index
    %c0_21 = arith.constant 0 : index
    %c0_22 = arith.constant 0 : index
    %24 = vector.load %arg15[%c0_20, %c0_21, %c0_22] : memref<16x8x512xf32, #tpu.memory_space<vmem>>, vector<16x8x512xf32>
    tpu.vector_store %arg15[%c0_20, %c0_21, %c0_22], %23 {strides = array<i32>} : memref<16x8x512xf32, #tpu.memory_space<vmem>>, vector<16x8x512xf32>,
    %c0_23 = arith.constant 0 : index
    %c0_24 = arith.constant 0 : index
    %25 = vector.load %arg3[%c0_23, %c0_24] : memref<128x512xbf16, #tpu.memory_space<vmem>>, vector<128x512xbf16>
    %c0_25 = arith.constant 0 : index
    %c0_26 = arith.constant 0 : index
    %26 = vector.load %arg5[%c0_25, %c0_26] : memref<8x128xf32, #tpu.memory_space<vmem>>, vector<8x128xf32>
    %27 = arith.truncf %26 : vector<8x128xf32> to vector<8x128xbf16>
    %c0_27 = arith.constant 0 : index
    %c0_28 = arith.constant 0 : index
    %28 = vector.load %arg6[%c0_27, %c0_28] : memref<8x128xf32, #tpu.memory_space<vmem>>, vector<8x128xf32>
    %c0_i32 = arith.constant 0 : i32
    %29 = arith.index_cast %c0_i32 : i32 to index
    %c0_29 = arith.constant 0 : index
    %c0_30 = arith.constant 0 : index
    %30 = vector.load %arg15[%29, %c0_29, %c0_30] : memref<16x8x512xf32, #tpu.memory_space<vmem>>, vector<1x8x512xf32>
    %31 = vector.shape_cast %30 : vector<1x8x512xf32> to vector<8x512xf32>
    %cst_31 = arith.constant dense<0.000000e+00> : vector<8x512xf32>
    %32 = tpu.matmul %27, %25, %cst_31 {dimension_numbers = #tpu.dot_dimension_numbers<[1], [0], [0], [1], [0, 0, 1, 1], [], []>} : vector<8x128xbf16>, vector<128x512xbf16>, vector<8x512xf32> -> vector<8x512xf32>
    %33 = arith.addf %31, %32 : vector<8x512xf32>
    %34 = vector.extract_strided_slice %33 {offsets = [0, 0], sizes = [8, 128], strides = [1, 1]} : vector<8x512xf32> to vector<8x128xf32>
    %35 = arith.negf %34 : vector<8x128xf32>
    %36 = math.exp %35 : vector<8x128xf32>
    %cst_32 = arith.constant 1.000000e+00 : f32
    %37 = vector.broadcast %cst_32 : f32 to vector<8x128xf32>
    %38 = arith.addf %37, %36 : vector<8x128xf32>
    %39 = arith.divf %37, %38 : vector<8x128xf32>
    %40 = vector.extract_strided_slice %33 {offsets = [0, 256], sizes = [8, 128], strides = [1, 1]} : vector<8x512xf32> to vector<8x128xf32>
    %41 = math.tanh %40 : vector<8x128xf32>
    %42 = arith.mulf %39, %41 : vector<8x128xf32>
    %43 = vector.extract_strided_slice %33 {offsets = [0, 128], sizes = [8, 128], strides = [1, 1]} : vector<8x512xf32> to vector<8x128xf32>
    %44 = arith.negf %43 : vector<8x128xf32>
    %45 = math.exp %44 : vector<8x128xf32>
    %cst_33 = arith.constant 1.000000e+00 : f32
    %46 = vector.broadcast %cst_33 : f32 to vector<8x128xf32>
    %47 = arith.addf %46, %45 : vector<8x128xf32>
    %48 = arith.divf %46, %47 : vector<8x128xf32>
    %49 = arith.mulf %48, %28 : vector<8x128xf32>
    %50 = arith.addf %49, %42 : vector<8x128xf32>
    %51 = vector.extract_strided_slice %33 {offsets = [0, 384], sizes = [8, 128], strides = [1, 1]} : vector<8x512xf32> to vector<8x128xf32>
    %52 = arith.negf %51 : vector<8x128xf32>
    %53 = math.exp %52 : vector<8x128xf32>
    %cst_34 = arith.constant 1.000000e+00 : f32
    %54 = vector.broadcast %cst_34 : f32 to vector<8x128xf32>
    %55 = arith.addf %54, %53 : vector<8x128xf32>
    %56 = arith.divf %54, %55 : vector<8x128xf32>
    %57 = math.tanh %50 : vector<8x128xf32>
    %58 = arith.mulf %56, %57 : vector<8x128xf32>
    %59 = arith.truncf %58 : vector<8x128xf32> to vector<8x128xbf16>
    %c1_i32 = arith.constant 1 : i32
    %60 = arith.index_cast %c1_i32 : i32 to index
    %c0_35 = arith.constant 0 : index
    %c0_36 = arith.constant 0 : index
    %61 = vector.load %arg15[%60, %c0_35, %c0_36] : memref<16x8x512xf32, #tpu.memory_space<vmem>>, vector<1x8x512xf32>
    %62 = vector.shape_cast %61 : vector<1x8x512xf32> to vector<8x512xf32>
    %cst_37 = arith.constant dense<0.000000e+00> : vector<8x512xf32>
    %63 = tpu.matmul %59, %25, %cst_37 {dimension_numbers = #tpu.dot_dimension_numbers<[1], [0], [0], [1], [0, 0, 1, 1], [], []>} : vector<8x128xbf16>, vector<128x512xbf16>, vector<8x512xf32> -> vector<8x512xf32>
    %64 = arith.addf %62, %63 : vector<8x512xf32>
    %65 = vector.extract_strided_slice %64 {offsets = [0, 0], sizes = [8, 128], strides = [1, 1]} : vector<8x512xf32> to vector<8x128xf32>
    %66 = arith.negf %65 : vector<8x128xf32>
    %67 = math.exp %66 : vector<8x128xf32>
    %cst_38 = arith.constant 1.000000e+00 : f32
    %68 = vector.broadcast %cst_38 : f32 to vector<8x128xf32>
    %69 = arith.addf %68, %67 : vector<8x128xf32>
    %70 = arith.divf %68, %69 : vector<8x128xf32>
    %71 = vector.extract_strided_slice %64 {offsets = [0, 256], sizes = [8, 128], strides = [1, 1]} : vector<8x512xf32> to vector<8x128xf32>
    %72 = math.tanh %71 : vector<8x128xf32>
    %73 = arith.mulf %70, %72 : vector<8x128xf32>
    %74 = vector.extract_strided_slice %64 {offsets = [0, 128], sizes = [8, 128], strides = [1, 1]} : vector<8x512xf32> to vector<8x128xf32>
    %75 = arith.negf %74 : vector<8x128xf32>
    %76 = math.exp %75 : vector<8x128xf32>
    %cst_39 = arith.constant 1.000000e+00 : f32
    %77 = vector.broadcast %cst_39 : f32 to vector<8x128xf32>
    %78 = arith.addf %77, %76 : vector<8x128xf32>
    %79 = arith.divf %77, %78 : vector<8x128xf32>
    %80 = arith.mulf %79, %50 : vector<8x128xf32>
    %81 = arith.addf %80, %73 : vector<8x128xf32>
    %82 = vector.extract_strided_slice %64 {offsets = [0, 384], sizes = [8, 128], strides = [1, 1]} : vector<8x512xf32> to vector<8x128xf32>
    %83 = arith.negf %82 : vector<8x128xf32>
    %84 = math.exp %83 : vector<8x128xf32>
    %cst_40 = arith.constant 1.000000e+00 : f32
    %85 = vector.broadcast %cst_40 : f32 to vector<8x128xf32>
    %86 = arith.addf %85, %84 : vector<8x128xf32>
    %87 = arith.divf %85, %86 : vector<8x128xf32>
    %88 = math.tanh %81 : vector<8x128xf32>
    %89 = arith.mulf %87, %88 : vector<8x128xf32>
    %90 = arith.truncf %89 : vector<8x128xf32> to vector<8x128xbf16>
    %c2_i32 = arith.constant 2 : i32
    %91 = arith.index_cast %c2_i32 : i32 to index
    %c0_41 = arith.constant 0 : index
    %c0_42 = arith.constant 0 : index
    %92 = vector.load %arg15[%91, %c0_41, %c0_42] : memref<16x8x512xf32, #tpu.memory_space<vmem>>, vector<1x8x512xf32>
    %93 = vector.shape_cast %92 : vector<1x8x512xf32> to vector<8x512xf32>
    %cst_43 = arith.constant dense<0.000000e+00> : vector<8x512xf32>
    %94 = tpu.matmul %90, %25, %cst_43 {dimension_numbers = #tpu.dot_dimension_numbers<[1], [0], [0], [1], [0, 0, 1, 1], [], []>} : vector<8x128xbf16>, vector<128x512xbf16>, vector<8x512xf32> -> vector<8x512xf32>
    %95 = arith.addf %93, %94 : vector<8x512xf32>
    %96 = vector.extract_strided_slice %95 {offsets = [0, 0], sizes = [8, 128], strides = [1, 1]} : vector<8x512xf32> to vector<8x128xf32>
    %97 = arith.negf %96 : vector<8x128xf32>
    %98 = math.exp %97 : vector<8x128xf32>
    %cst_44 = arith.constant 1.000000e+00 : f32
    %99 = vector.broadcast %cst_44 : f32 to vector<8x128xf32>
    %100 = arith.addf %99, %98 : vector<8x128xf32>
    %101 = arith.divf %99, %100 : vector<8x128xf32>
    %102 = vector.extract_strided_slice %95 {offsets = [0, 256], sizes = [8, 128], strides = [1, 1]} : vector<8x512xf32> to vector<8x128xf32>
    %103 = math.tanh %102 : vector<8x128xf32>
    %104 = arith.mulf %101, %103 : vector<8x128xf32>
    %105 = vector.extract_strided_slice %95 {offsets = [0, 128], sizes = [8, 128], strides = [1, 1]} : vector<8x512xf32> to vector<8x128xf32>
    %106 = arith.negf %105 : vector<8x128xf32>
    %107 = math.exp %106 : vector<8x128xf32>
    %cst_45 = arith.constant 1.000000e+00 : f32
    %108 = vector.broadcast %cst_45 : f32 to vector<8x128xf32>
    %109 = arith.addf %108, %107 : vector<8x128xf32>
    %110 = arith.divf %108, %109 : vector<8x128xf32>
    %111 = arith.mulf %110, %81 : vector<8x128xf32>
    %112 = arith.addf %111, %104 : vector<8x128xf32>
    %113 = vector.extract_strided_slice %95 {offsets = [0, 384], sizes = [8, 128], strides = [1, 1]} : vector<8x512xf32> to vector<8x128xf32>
    %114 = arith.negf %113 : vector<8x128xf32>
    %115 = math.exp %114 : vector<8x128xf32>
    %cst_46 = arith.constant 1.000000e+00 : f32
    %116 = vector.broadcast %cst_46 : f32 to vector<8x128xf32>
    %117 = arith.addf %116, %115 : vector<8x128xf32>
    %118 = arith.divf %116, %117 : vector<8x128xf32>
    %119 = math.tanh %112 : vector<8x128xf32>
    %120 = arith.mulf %118, %119 : vector<8x128xf32>
    %121 = arith.truncf %120 : vector<8x128xf32> to vector<8x128xbf16>
    %c3_i32 = arith.constant 3 : i32
    %122 = arith.index_cast %c3_i32 : i32 to index
    %c0_47 = arith.constant 0 : index
    %c0_48 = arith.constant 0 : index
    %123 = vector.load %arg15[%122, %c0_47, %c0_48] : memref<16x8x512xf32, #tpu.memory_space<vmem>>, vector<1x8x512xf32>
    %124 = vector.shape_cast %123 : vector<1x8x512xf32> to vector<8x512xf32>
    %cst_49 = arith.constant dense<0.000000e+00> : vector<8x512xf32>
    %125 = tpu.matmul %121, %25, %cst_49 {dimension_numbers = #tpu.dot_dimension_numbers<[1], [0], [0], [1], [0, 0, 1, 1], [], []>} : vector<8x128xbf16>, vector<128x512xbf16>, vector<8x512xf32> -> vector<8x512xf32>
    %126 = arith.addf %124, %125 : vector<8x512xf32>
    %127 = vector.extract_strided_slice %126 {offsets = [0, 0], sizes = [8, 128], strides = [1, 1]} : vector<8x512xf32> to vector<8x128xf32>
    %128 = arith.negf %127 : vector<8x128xf32>
    %129 = math.exp %128 : vector<8x128xf32>
    %cst_50 = arith.constant 1.000000e+00 : f32
    %130 = vector.broadcast %cst_50 : f32 to vector<8x128xf32>
    %131 = arith.addf %130, %129 : vector<8x128xf32>
    %132 = arith.divf %130, %131 : vector<8x128xf32>
    %133 = vector.extract_strided_slice %126 {offsets = [0, 256], sizes = [8, 128], strides = [1, 1]} : vector<8x512xf32> to vector<8x128xf32>
    %134 = math.tanh %133 : vector<8x128xf32>
    %135 = arith.mulf %132, %134 : vector<8x128xf32>
    %136 = vector.extract_strided_slice %126 {offsets = [0, 128], sizes = [8, 128], strides = [1, 1]} : vector<8x512xf32> to vector<8x128xf32>
    %137 = arith.negf %136 : vector<8x128xf32>
    %138 = math.exp %137 : vector<8x128xf32>
    %cst_51 = arith.constant 1.000000e+00 : f32
    %139 = vector.broadcast %cst_51 : f32 to vector<8x128xf32>
    %140 = arith.addf %139, %138 : vector<8x128xf32>
    %141 = arith.divf %139, %140 : vector<8x128xf32>
    %142 = arith.mulf %141, %112 : vector<8x128xf32>
    %143 = arith.addf %142, %135 : vector<8x128xf32>
    %144 = vector.extract_strided_slice %126 {offsets = [0, 384], sizes = [8, 128], strides = [1, 1]} : vector<8x512xf32> to vector<8x128xf32>
    %145 = arith.negf %144 : vector<8x128xf32>
    %146 = math.exp %145 : vector<8x128xf32>
    %cst_52 = arith.constant 1.000000e+00 : f32
    %147 = vector.broadcast %cst_52 : f32 to vector<8x128xf32>
    %148 = arith.addf %147, %146 : vector<8x128xf32>
    %149 = arith.divf %147, %148 : vector<8x128xf32>
    %150 = math.tanh %143 : vector<8x128xf32>
    %151 = arith.mulf %149, %150 : vector<8x128xf32>
    %152 = arith.truncf %151 : vector<8x128xf32> to vector<8x128xbf16>
    %c4_i32 = arith.constant 4 : i32
    %153 = arith.index_cast %c4_i32 : i32 to index
    %c0_53 = arith.constant 0 : index
    %c0_54 = arith.constant 0 : index
    %154 = vector.load %arg15[%153, %c0_53, %c0_54] : memref<16x8x512xf32, #tpu.memory_space<vmem>>, vector<1x8x512xf32>
    %155 = vector.shape_cast %154 : vector<1x8x512xf32> to vector<8x512xf32>
    %cst_55 = arith.constant dense<0.000000e+00> : vector<8x512xf32>
    %156 = tpu.matmul %152, %25, %cst_55 {dimension_numbers = #tpu.dot_dimension_numbers<[1], [0], [0], [1], [0, 0, 1, 1], [], []>} : vector<8x128xbf16>, vector<128x512xbf16>, vector<8x512xf32> -> vector<8x512xf32>
    %157 = arith.addf %155, %156 : vector<8x512xf32>
    %158 = vector.extract_strided_slice %157 {offsets = [0, 0], sizes = [8, 128], strides = [1, 1]} : vector<8x512xf32> to vector<8x128xf32>
    %159 = arith.negf %158 : vector<8x128xf32>
    %160 = math.exp %159 : vector<8x128xf32>
    %cst_56 = arith.constant 1.000000e+00 : f32
    %161 = vector.broadcast %cst_56 : f32 to vector<8x128xf32>
    %162 = arith.addf %161, %160 : vector<8x128xf32>
    %163 = arith.divf %161, %162 : vector<8x128xf32>
    %164 = vector.extract_strided_slice %157 {offsets = [0, 256], sizes = [8, 128], strides = [1, 1]} : vector<8x512xf32> to vector<8x128xf32>
    %165 = math.tanh %164 : vector<8x128xf32>
    %166 = arith.mulf %163, %165 : vector<8x128xf32>
    %167 = vector.extract_strided_slice %157 {offsets = [0, 128], sizes = [8, 128], strides = [1, 1]} : vector<8x512xf32> to vector<8x128xf32>
    %168 = arith.negf %167 : vector<8x128xf32>
    %169 = math.exp %168 : vector<8x128xf32>
    %cst_57 = arith.constant 1.000000e+00 : f32
    %170 = vector.broadcast %cst_57 : f32 to vector<8x128xf32>
    %171 = arith.addf %170, %169 : vector<8x128xf32>
    %172 = arith.divf %170, %171 : vector<8x128xf32>
    %173 = arith.mulf %172, %143 : vector<8x128xf32>
    %174 = arith.addf %173, %166 : vector<8x128xf32>
    %175 = vector.extract_strided_slice %157 {offsets = [0, 384], sizes = [8, 128], strides = [1, 1]} : vector<8x512xf32> to vector<8x128xf32>
    %176 = arith.negf %175 : vector<8x128xf32>
    %177 = math.exp %176 : vector<8x128xf32>
    %cst_58 = arith.constant 1.000000e+00 : f32
    %178 = vector.broadcast %cst_58 : f32 to vector<8x128xf32>
    %179 = arith.addf %178, %177 : vector<8x128xf32>
    %180 = arith.divf %178, %179 : vector<8x128xf32>
    %181 = math.tanh %174 : vector<8x128xf32>
    %182 = arith.mulf %180, %181 : vector<8x128xf32>
    %183 = arith.truncf %182 : vector<8x128xf32> to vector<8x128xbf16>
    %c5_i32 = arith.constant 5 : i32
    %184 = arith.index_cast %c5_i32 : i32 to index
    %c0_59 = arith.constant 0 : index
    %c0_60 = arith.constant 0 : index
    %185 = vector.load %arg15[%184, %c0_59, %c0_60] : memref<16x8x512xf32, #tpu.memory_space<vmem>>, vector<1x8x512xf32>
    %186 = vector.shape_cast %185 : vector<1x8x512xf32> to vector<8x512xf32>
    %cst_61 = arith.constant dense<0.000000e+00> : vector<8x512xf32>
    %187 = tpu.matmul %183, %25, %cst_61 {dimension_numbers = #tpu.dot_dimension_numbers<[1], [0], [0], [1], [0, 0, 1, 1], [], []>} : vector<8x128xbf16>, vector<128x512xbf16>, vector<8x512xf32> -> vector<8x512xf32>
    %188 = arith.addf %186, %187 : vector<8x512xf32>
    %189 = vector.extract_strided_slice %188 {offsets = [0, 0], sizes = [8, 128], strides = [1, 1]} : vector<8x512xf32> to vector<8x128xf32>
    %190 = arith.negf %189 : vector<8x128xf32>
    %191 = math.exp %190 : vector<8x128xf32>
    %cst_62 = arith.constant 1.000000e+00 : f32
    %192 = vector.broadcast %cst_62 : f32 to vector<8x128xf32>
    %193 = arith.addf %192, %191 : vector<8x128xf32>
    %194 = arith.divf %192, %193 : vector<8x128xf32>
    %195 = vector.extract_strided_slice %188 {offsets = [0, 256], sizes = [8, 128], strides = [1, 1]} : vector<8x512xf32> to vector<8x128xf32>
    %196 = math.tanh %195 : vector<8x128xf32>
    %197 = arith.mulf %194, %196 : vector<8x128xf32>
    %198 = vector.extract_strided_slice %188 {offsets = [0, 128], sizes = [8, 128], strides = [1, 1]} : vector<8x512xf32> to vector<8x128xf32>
    %199 = arith.negf %198 : vector<8x128xf32>
    %200 = math.exp %199 : vector<8x128xf32>
    %cst_63 = arith.constant 1.000000e+00 : f32
    %201 = vector.broadcast %cst_63 : f32 to vector<8x128xf32>
    %202 = arith.addf %201, %200 : vector<8x128xf32>
    %203 = arith.divf %201, %202 : vector<8x128xf32>
    %204 = arith.mulf %203, %174 : vector<8x128xf32>
    %205 = arith.addf %204, %197 : vector<8x128xf32>
    %206 = vector.extract_strided_slice %188 {offsets = [0, 384], sizes = [8, 128], strides = [1, 1]} : vector<8x512xf32> to vector<8x128xf32>
    %207 = arith.negf %206 : vector<8x128xf32>
    %208 = math.exp %207 : vector<8x128xf32>
    %cst_64 = arith.constant 1.000000e+00 : f32
    %209 = vector.broadcast %cst_64 : f32 to vector<8x128xf32>
    %210 = arith.addf %209, %208 : vector<8x128xf32>
    %211 = arith.divf %209, %210 : vector<8x128xf32>
    %212 = math.tanh %205 : vector<8x128xf32>
    %213 = arith.mulf %211, %212 : vector<8x128xf32>
    %214 = arith.truncf %213 : vector<8x128xf32> to vector<8x128xbf16>
    %c6_i32 = arith.constant 6 : i32
    %215 = arith.index_cast %c6_i32 : i32 to index
    %c0_65 = arith.constant 0 : index
    %c0_66 = arith.constant 0 : index
    %216 = vector.load %arg15[%215, %c0_65, %c0_66] : memref<16x8x512xf32, #tpu.memory_space<vmem>>, vector<1x8x512xf32>
    %217 = vector.shape_cast %216 : vector<1x8x512xf32> to vector<8x512xf32>
    %cst_67 = arith.constant dense<0.000000e+00> : vector<8x512xf32>
    %218 = tpu.matmul %214, %25, %cst_67 {dimension_numbers = #tpu.dot_dimension_numbers<[1], [0], [0], [1], [0, 0, 1, 1], [], []>} : vector<8x128xbf16>, vector<128x512xbf16>, vector<8x512xf32> -> vector<8x512xf32>
    %219 = arith.addf %217, %218 : vector<8x512xf32>
    %220 = vector.extract_strided_slice %219 {offsets = [0, 0], sizes = [8, 128], strides = [1, 1]} : vector<8x512xf32> to vector<8x128xf32>
    %221 = arith.negf %220 : vector<8x128xf32>
    %222 = math.exp %221 : vector<8x128xf32>
    %cst_68 = arith.constant 1.000000e+00 : f32
    %223 = vector.broadcast %cst_68 : f32 to vector<8x128xf32>
    %224 = arith.addf %223, %222 : vector<8x128xf32>
    %225 = arith.divf %223, %224 : vector<8x128xf32>
    %226 = vector.extract_strided_slice %219 {offsets = [0, 256], sizes = [8, 128], strides = [1, 1]} : vector<8x512xf32> to vector<8x128xf32>
    %227 = math.tanh %226 : vector<8x128xf32>
    %228 = arith.mulf %225, %227 : vector<8x128xf32>
    %229 = vector.extract_strided_slice %219 {offsets = [0, 128], sizes = [8, 128], strides = [1, 1]} : vector<8x512xf32> to vector<8x128xf32>
    %230 = arith.negf %229 : vector<8x128xf32>
    %231 = math.exp %230 : vector<8x128xf32>
    %cst_69 = arith.constant 1.000000e+00 : f32
    %232 = vector.broadcast %cst_69 : f32 to vector<8x128xf32>
    %233 = arith.addf %232, %231 : vector<8x128xf32>
    %234 = arith.divf %232, %233 : vector<8x128xf32>
    %235 = arith.mulf %234, %205 : vector<8x128xf32>
    %236 = arith.addf %235, %228 : vector<8x128xf32>
    %237 = vector.extract_strided_slice %219 {offsets = [0, 384], sizes = [8, 128], strides = [1, 1]} : vector<8x512xf32> to vector<8x128xf32>
    %238 = arith.negf %237 : vector<8x128xf32>
    %239 = math.exp %238 : vector<8x128xf32>
    %cst_70 = arith.constant 1.000000e+00 : f32
    %240 = vector.broadcast %cst_70 : f32 to vector<8x128xf32>
    %241 = arith.addf %240, %239 : vector<8x128xf32>
    %242 = arith.divf %240, %241 : vector<8x128xf32>
    %243 = math.tanh %236 : vector<8x128xf32>
    %244 = arith.mulf %242, %243 : vector<8x128xf32>
    %245 = arith.truncf %244 : vector<8x128xf32> to vector<8x128xbf16>
    %c7_i32 = arith.constant 7 : i32
    %246 = arith.index_cast %c7_i32 : i32 to index
    %c0_71 = arith.constant 0 : index
    %c0_72 = arith.constant 0 : index
    %247 = vector.load %arg15[%246, %c0_71, %c0_72] : memref<16x8x512xf32, #tpu.memory_space<vmem>>, vector<1x8x512xf32>
    %248 = vector.shape_cast %247 : vector<1x8x512xf32> to vector<8x512xf32>
    %cst_73 = arith.constant dense<0.000000e+00> : vector<8x512xf32>
    %249 = tpu.matmul %245, %25, %cst_73 {dimension_numbers = #tpu.dot_dimension_numbers<[1], [0], [0], [1], [0, 0, 1, 1], [], []>} : vector<8x128xbf16>, vector<128x512xbf16>, vector<8x512xf32> -> vector<8x512xf32>
    %250 = arith.addf %248, %249 : vector<8x512xf32>
    %251 = vector.extract_strided_slice %250 {offsets = [0, 0], sizes = [8, 128], strides = [1, 1]} : vector<8x512xf32> to vector<8x128xf32>
    %252 = arith.negf %251 : vector<8x128xf32>
    %253 = math.exp %252 : vector<8x128xf32>
    %cst_74 = arith.constant 1.000000e+00 : f32
    %254 = vector.broadcast %cst_74 : f32 to vector<8x128xf32>
    %255 = arith.addf %254, %253 : vector<8x128xf32>
    %256 = arith.divf %254, %255 : vector<8x128xf32>
    %257 = vector.extract_strided_slice %250 {offsets = [0, 256], sizes = [8, 128], strides = [1, 1]} : vector<8x512xf32> to vector<8x128xf32>
    %258 = math.tanh %257 : vector<8x128xf32>
    %259 = arith.mulf %256, %258 : vector<8x128xf32>
    %260 = vector.extract_strided_slice %250 {offsets = [0, 128], sizes = [8, 128], strides = [1, 1]} : vector<8x512xf32> to vector<8x128xf32>
    %261 = arith.negf %260 : vector<8x128xf32>
    %262 = math.exp %261 : vector<8x128xf32>
    %cst_75 = arith.constant 1.000000e+00 : f32
    %263 = vector.broadcast %cst_75 : f32 to vector<8x128xf32>
    %264 = arith.addf %263, %262 : vector<8x128xf32>
    %265 = arith.divf %263, %264 : vector<8x128xf32>
    %266 = arith.mulf %265, %236 : vector<8x128xf32>
    %267 = arith.addf %266, %259 : vector<8x128xf32>
    %268 = vector.extract_strided_slice %250 {offsets = [0, 384], sizes = [8, 128], strides = [1, 1]} : vector<8x512xf32> to vector<8x128xf32>
    %269 = arith.negf %268 : vector<8x128xf32>
    %270 = math.exp %269 : vector<8x128xf32>
    %cst_76 = arith.constant 1.000000e+00 : f32
    %271 = vector.broadcast %cst_76 : f32 to vector<8x128xf32>
    %272 = arith.addf %271, %270 : vector<8x128xf32>
    %273 = arith.divf %271, %272 : vector<8x128xf32>
    %274 = math.tanh %267 : vector<8x128xf32>
    %275 = arith.mulf %273, %274 : vector<8x128xf32>
    %276 = arith.truncf %275 : vector<8x128xf32> to vector<8x128xbf16>
    %c8_i32 = arith.constant 8 : i32
    %277 = arith.index_cast %c8_i32 : i32 to index
    %c0_77 = arith.constant 0 : index
    %c0_78 = arith.constant 0 : index
    %278 = vector.load %arg15[%277, %c0_77, %c0_78] : memref<16x8x512xf32, #tpu.memory_space<vmem>>, vector<1x8x512xf32>
    %279 = vector.shape_cast %278 : vector<1x8x512xf32> to vector<8x512xf32>
    %cst_79 = arith.constant dense<0.000000e+00> : vector<8x512xf32>
    %280 = tpu.matmul %276, %25, %cst_79 {dimension_numbers = #tpu.dot_dimension_numbers<[1], [0], [0], [1], [0, 0, 1, 1], [], []>} : vector<8x128xbf16>, vector<128x512xbf16>, vector<8x512xf32> -> vector<8x512xf32>
    %281 = arith.addf %279, %280 : vector<8x512xf32>
    %282 = vector.extract_strided_slice %281 {offsets = [0, 0], sizes = [8, 128], strides = [1, 1]} : vector<8x512xf32> to vector<8x128xf32>
    %283 = arith.negf %282 : vector<8x128xf32>
    %284 = math.exp %283 : vector<8x128xf32>
    %cst_80 = arith.constant 1.000000e+00 : f32
    %285 = vector.broadcast %cst_80 : f32 to vector<8x128xf32>
    %286 = arith.addf %285, %284 : vector<8x128xf32>
    %287 = arith.divf %285, %286 : vector<8x128xf32>
    %288 = vector.extract_strided_slice %281 {offsets = [0, 256], sizes = [8, 128], strides = [1, 1]} : vector<8x512xf32> to vector<8x128xf32>
    %289 = math.tanh %288 : vector<8x128xf32>
    %290 = arith.mulf %287, %289 : vector<8x128xf32>
    %291 = vector.extract_strided_slice %281 {offsets = [0, 128], sizes = [8, 128], strides = [1, 1]} : vector<8x512xf32> to vector<8x128xf32>
    %292 = arith.negf %291 : vector<8x128xf32>
    %293 = math.exp %292 : vector<8x128xf32>
    %cst_81 = arith.constant 1.000000e+00 : f32
    %294 = vector.broadcast %cst_81 : f32 to vector<8x128xf32>
    %295 = arith.addf %294, %293 : vector<8x128xf32>
    %296 = arith.divf %294, %295 : vector<8x128xf32>
    %297 = arith.mulf %296, %267 : vector<8x128xf32>
    %298 = arith.addf %297, %290 : vector<8x128xf32>
    %299 = vector.extract_strided_slice %281 {offsets = [0, 384], sizes = [8, 128], strides = [1, 1]} : vector<8x512xf32> to vector<8x128xf32>
    %300 = arith.negf %299 : vector<8x128xf32>
    %301 = math.exp %300 : vector<8x128xf32>
    %cst_82 = arith.constant 1.000000e+00 : f32
    %302 = vector.broadcast %cst_82 : f32 to vector<8x128xf32>
    %303 = arith.addf %302, %301 : vector<8x128xf32>
    %304 = arith.divf %302, %303 : vector<8x128xf32>
    %305 = math.tanh %298 : vector<8x128xf32>
    %306 = arith.mulf %304, %305 : vector<8x128xf32>
    %307 = arith.truncf %306 : vector<8x128xf32> to vector<8x128xbf16>
    %c9_i32 = arith.constant 9 : i32
    %308 = arith.index_cast %c9_i32 : i32 to index
    %c0_83 = arith.constant 0 : index
    %c0_84 = arith.constant 0 : index
    %309 = vector.load %arg15[%308, %c0_83, %c0_84] : memref<16x8x512xf32, #tpu.memory_space<vmem>>, vector<1x8x512xf32>
    %310 = vector.shape_cast %309 : vector<1x8x512xf32> to vector<8x512xf32>
    %cst_85 = arith.constant dense<0.000000e+00> : vector<8x512xf32>
    %311 = tpu.matmul %307, %25, %cst_85 {dimension_numbers = #tpu.dot_dimension_numbers<[1], [0], [0], [1], [0, 0, 1, 1], [], []>} : vector<8x128xbf16>, vector<128x512xbf16>, vector<8x512xf32> -> vector<8x512xf32>
    %312 = arith.addf %310, %311 : vector<8x512xf32>
    %313 = vector.extract_strided_slice %312 {offsets = [0, 0], sizes = [8, 128], strides = [1, 1]} : vector<8x512xf32> to vector<8x128xf32>
    %314 = arith.negf %313 : vector<8x128xf32>
    %315 = math.exp %314 : vector<8x128xf32>
    %cst_86 = arith.constant 1.000000e+00 : f32
    %316 = vector.broadcast %cst_86 : f32 to vector<8x128xf32>
    %317 = arith.addf %316, %315 : vector<8x128xf32>
    %318 = arith.divf %316, %317 : vector<8x128xf32>
    %319 = vector.extract_strided_slice %312 {offsets = [0, 256], sizes = [8, 128], strides = [1, 1]} : vector<8x512xf32> to vector<8x128xf32>
    %320 = math.tanh %319 : vector<8x128xf32>
    %321 = arith.mulf %318, %320 : vector<8x128xf32>
    %322 = vector.extract_strided_slice %312 {offsets = [0, 128], sizes = [8, 128], strides = [1, 1]} : vector<8x512xf32> to vector<8x128xf32>
    %323 = arith.negf %322 : vector<8x128xf32>
    %324 = math.exp %323 : vector<8x128xf32>
    %cst_87 = arith.constant 1.000000e+00 : f32
    %325 = vector.broadcast %cst_87 : f32 to vector<8x128xf32>
    %326 = arith.addf %325, %324 : vector<8x128xf32>
    %327 = arith.divf %325, %326 : vector<8x128xf32>
    %328 = arith.mulf %327, %298 : vector<8x128xf32>
    %329 = arith.addf %328, %321 : vector<8x128xf32>
    %330 = vector.extract_strided_slice %312 {offsets = [0, 384], sizes = [8, 128], strides = [1, 1]} : vector<8x512xf32> to vector<8x128xf32>
    %331 = arith.negf %330 : vector<8x128xf32>
    %332 = math.exp %331 : vector<8x128xf32>
    %cst_88 = arith.constant 1.000000e+00 : f32
    %333 = vector.broadcast %cst_88 : f32 to vector<8x128xf32>
    %334 = arith.addf %333, %332 : vector<8x128xf32>
    %335 = arith.divf %333, %334 : vector<8x128xf32>
    %336 = math.tanh %329 : vector<8x128xf32>
    %337 = arith.mulf %335, %336 : vector<8x128xf32>
    %338 = arith.truncf %337 : vector<8x128xf32> to vector<8x128xbf16>
    %c10_i32 = arith.constant 10 : i32
    %339 = arith.index_cast %c10_i32 : i32 to index
    %c0_89 = arith.constant 0 : index
    %c0_90 = arith.constant 0 : index
    %340 = vector.load %arg15[%339, %c0_89, %c0_90] : memref<16x8x512xf32, #tpu.memory_space<vmem>>, vector<1x8x512xf32>
    %341 = vector.shape_cast %340 : vector<1x8x512xf32> to vector<8x512xf32>
    %cst_91 = arith.constant dense<0.000000e+00> : vector<8x512xf32>
    %342 = tpu.matmul %338, %25, %cst_91 {dimension_numbers = #tpu.dot_dimension_numbers<[1], [0], [0], [1], [0, 0, 1, 1], [], []>} : vector<8x128xbf16>, vector<128x512xbf16>, vector<8x512xf32> -> vector<8x512xf32>
    %343 = arith.addf %341, %342 : vector<8x512xf32>
    %344 = vector.extract_strided_slice %343 {offsets = [0, 0], sizes = [8, 128], strides = [1, 1]} : vector<8x512xf32> to vector<8x128xf32>
    %345 = arith.negf %344 : vector<8x128xf32>
    %346 = math.exp %345 : vector<8x128xf32>
    %cst_92 = arith.constant 1.000000e+00 : f32
    %347 = vector.broadcast %cst_92 : f32 to vector<8x128xf32>
    %348 = arith.addf %347, %346 : vector<8x128xf32>
    %349 = arith.divf %347, %348 : vector<8x128xf32>
    %350 = vector.extract_strided_slice %343 {offsets = [0, 256], sizes = [8, 128], strides = [1, 1]} : vector<8x512xf32> to vector<8x128xf32>
    %351 = math.tanh %350 : vector<8x128xf32>
    %352 = arith.mulf %349, %351 : vector<8x128xf32>
    %353 = vector.extract_strided_slice %343 {offsets = [0, 128], sizes = [8, 128], strides = [1, 1]} : vector<8x512xf32> to vector<8x128xf32>
    %354 = arith.negf %353 : vector<8x128xf32>
    %355 = math.exp %354 : vector<8x128xf32>
    %cst_93 = arith.constant 1.000000e+00 : f32
    %356 = vector.broadcast %cst_93 : f32 to vector<8x128xf32>
    %357 = arith.addf %356, %355 : vector<8x128xf32>
    %358 = arith.divf %356, %357 : vector<8x128xf32>
    %359 = arith.mulf %358, %329 : vector<8x128xf32>
    %360 = arith.addf %359, %352 : vector<8x128xf32>
    %361 = vector.extract_strided_slice %343 {offsets = [0, 384], sizes = [8, 128], strides = [1, 1]} : vector<8x512xf32> to vector<8x128xf32>
    %362 = arith.negf %361 : vector<8x128xf32>
    %363 = math.exp %362 : vector<8x128xf32>
    %cst_94 = arith.constant 1.000000e+00 : f32
    %364 = vector.broadcast %cst_94 : f32 to vector<8x128xf32>
    %365 = arith.addf %364, %363 : vector<8x128xf32>
    %366 = arith.divf %364, %365 : vector<8x128xf32>
    %367 = math.tanh %360 : vector<8x128xf32>
    %368 = arith.mulf %366, %367 : vector<8x128xf32>
    %369 = arith.truncf %368 : vector<8x128xf32> to vector<8x128xbf16>
    %c11_i32 = arith.constant 11 : i32
    %370 = arith.index_cast %c11_i32 : i32 to index
    %c0_95 = arith.constant 0 : index
    %c0_96 = arith.constant 0 : index
    %371 = vector.load %arg15[%370, %c0_95, %c0_96] : memref<16x8x512xf32, #tpu.memory_space<vmem>>, vector<1x8x512xf32>
    %372 = vector.shape_cast %371 : vector<1x8x512xf32> to vector<8x512xf32>
    %cst_97 = arith.constant dense<0.000000e+00> : vector<8x512xf32>
    %373 = tpu.matmul %369, %25, %cst_97 {dimension_numbers = #tpu.dot_dimension_numbers<[1], [0], [0], [1], [0, 0, 1, 1], [], []>} : vector<8x128xbf16>, vector<128x512xbf16>, vector<8x512xf32> -> vector<8x512xf32>
    %374 = arith.addf %372, %373 : vector<8x512xf32>
    %375 = vector.extract_strided_slice %374 {offsets = [0, 0], sizes = [8, 128], strides = [1, 1]} : vector<8x512xf32> to vector<8x128xf32>
    %376 = arith.negf %375 : vector<8x128xf32>
    %377 = math.exp %376 : vector<8x128xf32>
    %cst_98 = arith.constant 1.000000e+00 : f32
    %378 = vector.broadcast %cst_98 : f32 to vector<8x128xf32>
    %379 = arith.addf %378, %377 : vector<8x128xf32>
    %380 = arith.divf %378, %379 : vector<8x128xf32>
    %381 = vector.extract_strided_slice %374 {offsets = [0, 256], sizes = [8, 128], strides = [1, 1]} : vector<8x512xf32> to vector<8x128xf32>
    %382 = math.tanh %381 : vector<8x128xf32>
    %383 = arith.mulf %380, %382 : vector<8x128xf32>
    %384 = vector.extract_strided_slice %374 {offsets = [0, 128], sizes = [8, 128], strides = [1, 1]} : vector<8x512xf32> to vector<8x128xf32>
    %385 = arith.negf %384 : vector<8x128xf32>
    %386 = math.exp %385 : vector<8x128xf32>
    %cst_99 = arith.constant 1.000000e+00 : f32
    %387 = vector.broadcast %cst_99 : f32 to vector<8x128xf32>
    %388 = arith.addf %387, %386 : vector<8x128xf32>
    %389 = arith.divf %387, %388 : vector<8x128xf32>
    %390 = arith.mulf %389, %360 : vector<8x128xf32>
    %391 = arith.addf %390, %383 : vector<8x128xf32>
    %392 = vector.extract_strided_slice %374 {offsets = [0, 384], sizes = [8, 128], strides = [1, 1]} : vector<8x512xf32> to vector<8x128xf32>
    %393 = arith.negf %392 : vector<8x128xf32>
    %394 = math.exp %393 : vector<8x128xf32>
    %cst_100 = arith.constant 1.000000e+00 : f32
    %395 = vector.broadcast %cst_100 : f32 to vector<8x128xf32>
    %396 = arith.addf %395, %394 : vector<8x128xf32>
    %397 = arith.divf %395, %396 : vector<8x128xf32>
    %398 = math.tanh %391 : vector<8x128xf32>
    %399 = arith.mulf %397, %398 : vector<8x128xf32>
    %400 = arith.truncf %399 : vector<8x128xf32> to vector<8x128xbf16>
    %c12_i32 = arith.constant 12 : i32
    %401 = arith.index_cast %c12_i32 : i32 to index
    %c0_101 = arith.constant 0 : index
    %c0_102 = arith.constant 0 : index
    %402 = vector.load %arg15[%401, %c0_101, %c0_102] : memref<16x8x512xf32, #tpu.memory_space<vmem>>, vector<1x8x512xf32>
    %403 = vector.shape_cast %402 : vector<1x8x512xf32> to vector<8x512xf32>
    %cst_103 = arith.constant dense<0.000000e+00> : vector<8x512xf32>
    %404 = tpu.matmul %400, %25, %cst_103 {dimension_numbers = #tpu.dot_dimension_numbers<[1], [0], [0], [1], [0, 0, 1, 1], [], []>} : vector<8x128xbf16>, vector<128x512xbf16>, vector<8x512xf32> -> vector<8x512xf32>
    %405 = arith.addf %403, %404 : vector<8x512xf32>
    %406 = vector.extract_strided_slice %405 {offsets = [0, 0], sizes = [8, 128], strides = [1, 1]} : vector<8x512xf32> to vector<8x128xf32>
    %407 = arith.negf %406 : vector<8x128xf32>
    %408 = math.exp %407 : vector<8x128xf32>
    %cst_104 = arith.constant 1.000000e+00 : f32
    %409 = vector.broadcast %cst_104 : f32 to vector<8x128xf32>
    %410 = arith.addf %409, %408 : vector<8x128xf32>
    %411 = arith.divf %409, %410 : vector<8x128xf32>
    %412 = vector.extract_strided_slice %405 {offsets = [0, 256], sizes = [8, 128], strides = [1, 1]} : vector<8x512xf32> to vector<8x128xf32>
    %413 = math.tanh %412 : vector<8x128xf32>
    %414 = arith.mulf %411, %413 : vector<8x128xf32>
    %415 = vector.extract_strided_slice %405 {offsets = [0, 128], sizes = [8, 128], strides = [1, 1]} : vector<8x512xf32> to vector<8x128xf32>
    %416 = arith.negf %415 : vector<8x128xf32>
    %417 = math.exp %416 : vector<8x128xf32>
    %cst_105 = arith.constant 1.000000e+00 : f32
    %418 = vector.broadcast %cst_105 : f32 to vector<8x128xf32>
    %419 = arith.addf %418, %417 : vector<8x128xf32>
    %420 = arith.divf %418, %419 : vector<8x128xf32>
    %421 = arith.mulf %420, %391 : vector<8x128xf32>
    %422 = arith.addf %421, %414 : vector<8x128xf32>
    %423 = vector.extract_strided_slice %405 {offsets = [0, 384], sizes = [8, 128], strides = [1, 1]} : vector<8x512xf32> to vector<8x128xf32>
    %424 = arith.negf %423 : vector<8x128xf32>
    %425 = math.exp %424 : vector<8x128xf32>
    %cst_106 = arith.constant 1.000000e+00 : f32
    %426 = vector.broadcast %cst_106 : f32 to vector<8x128xf32>
    %427 = arith.addf %426, %425 : vector<8x128xf32>
    %428 = arith.divf %426, %427 : vector<8x128xf32>
    %429 = math.tanh %422 : vector<8x128xf32>
    %430 = arith.mulf %428, %429 : vector<8x128xf32>
    %431 = arith.truncf %430 : vector<8x128xf32> to vector<8x128xbf16>
    %c13_i32 = arith.constant 13 : i32
    %432 = arith.index_cast %c13_i32 : i32 to index
    %c0_107 = arith.constant 0 : index
    %c0_108 = arith.constant 0 : index
    %433 = vector.load %arg15[%432, %c0_107, %c0_108] : memref<16x8x512xf32, #tpu.memory_space<vmem>>, vector<1x8x512xf32>
    %434 = vector.shape_cast %433 : vector<1x8x512xf32> to vector<8x512xf32>
    %cst_109 = arith.constant dense<0.000000e+00> : vector<8x512xf32>
    %435 = tpu.matmul %431, %25, %cst_109 {dimension_numbers = #tpu.dot_dimension_numbers<[1], [0], [0], [1], [0, 0, 1, 1], [], []>} : vector<8x128xbf16>, vector<128x512xbf16>, vector<8x512xf32> -> vector<8x512xf32>
    %436 = arith.addf %434, %435 : vector<8x512xf32>
    %437 = vector.extract_strided_slice %436 {offsets = [0, 0], sizes = [8, 128], strides = [1, 1]} : vector<8x512xf32> to vector<8x128xf32>
    %438 = arith.negf %437 : vector<8x128xf32>
    %439 = math.exp %438 : vector<8x128xf32>
    %cst_110 = arith.constant 1.000000e+00 : f32
    %440 = vector.broadcast %cst_110 : f32 to vector<8x128xf32>
    %441 = arith.addf %440, %439 : vector<8x128xf32>
    %442 = arith.divf %440, %441 : vector<8x128xf32>
    %443 = vector.extract_strided_slice %436 {offsets = [0, 256], sizes = [8, 128], strides = [1, 1]} : vector<8x512xf32> to vector<8x128xf32>
    %444 = math.tanh %443 : vector<8x128xf32>
    %445 = arith.mulf %442, %444 : vector<8x128xf32>
    %446 = vector.extract_strided_slice %436 {offsets = [0, 128], sizes = [8, 128], strides = [1, 1]} : vector<8x512xf32> to vector<8x128xf32>
    %447 = arith.negf %446 : vector<8x128xf32>
    %448 = math.exp %447 : vector<8x128xf32>
    %cst_111 = arith.constant 1.000000e+00 : f32
    %449 = vector.broadcast %cst_111 : f32 to vector<8x128xf32>
    %450 = arith.addf %449, %448 : vector<8x128xf32>
    %451 = arith.divf %449, %450 : vector<8x128xf32>
    %452 = arith.mulf %451, %422 : vector<8x128xf32>
    %453 = arith.addf %452, %445 : vector<8x128xf32>
    %454 = vector.extract_strided_slice %436 {offsets = [0, 384], sizes = [8, 128], strides = [1, 1]} : vector<8x512xf32> to vector<8x128xf32>
    %455 = arith.negf %454 : vector<8x128xf32>
    %456 = math.exp %455 : vector<8x128xf32>
    %cst_112 = arith.constant 1.000000e+00 : f32
    %457 = vector.broadcast %cst_112 : f32 to vector<8x128xf32>
    %458 = arith.addf %457, %456 : vector<8x128xf32>
    %459 = arith.divf %457, %458 : vector<8x128xf32>
    %460 = math.tanh %453 : vector<8x128xf32>
    %461 = arith.mulf %459, %460 : vector<8x128xf32>
    %462 = arith.truncf %461 : vector<8x128xf32> to vector<8x128xbf16>
    %c14_i32 = arith.constant 14 : i32
    %463 = arith.index_cast %c14_i32 : i32 to index
    %c0_113 = arith.constant 0 : index
    %c0_114 = arith.constant 0 : index
    %464 = vector.load %arg15[%463, %c0_113, %c0_114] : memref<16x8x512xf32, #tpu.memory_space<vmem>>, vector<1x8x512xf32>
    %465 = vector.shape_cast %464 : vector<1x8x512xf32> to vector<8x512xf32>
    %cst_115 = arith.constant dense<0.000000e+00> : vector<8x512xf32>
    %466 = tpu.matmul %462, %25, %cst_115 {dimension_numbers = #tpu.dot_dimension_numbers<[1], [0], [0], [1], [0, 0, 1, 1], [], []>} : vector<8x128xbf16>, vector<128x512xbf16>, vector<8x512xf32> -> vector<8x512xf32>
    %467 = arith.addf %465, %466 : vector<8x512xf32>
    %468 = vector.extract_strided_slice %467 {offsets = [0, 0], sizes = [8, 128], strides = [1, 1]} : vector<8x512xf32> to vector<8x128xf32>
    %469 = arith.negf %468 : vector<8x128xf32>
    %470 = math.exp %469 : vector<8x128xf32>
    %cst_116 = arith.constant 1.000000e+00 : f32
    %471 = vector.broadcast %cst_116 : f32 to vector<8x128xf32>
    %472 = arith.addf %471, %470 : vector<8x128xf32>
    %473 = arith.divf %471, %472 : vector<8x128xf32>
    %474 = vector.extract_strided_slice %467 {offsets = [0, 256], sizes = [8, 128], strides = [1, 1]} : vector<8x512xf32> to vector<8x128xf32>
    %475 = math.tanh %474 : vector<8x128xf32>
    %476 = arith.mulf %473, %475 : vector<8x128xf32>
    %477 = vector.extract_strided_slice %467 {offsets = [0, 128], sizes = [8, 128], strides = [1, 1]} : vector<8x512xf32> to vector<8x128xf32>
    %478 = arith.negf %477 : vector<8x128xf32>
    %479 = math.exp %478 : vector<8x128xf32>
    %cst_117 = arith.constant 1.000000e+00 : f32
    %480 = vector.broadcast %cst_117 : f32 to vector<8x128xf32>
    %481 = arith.addf %480, %479 : vector<8x128xf32>
    %482 = arith.divf %480, %481 : vector<8x128xf32>
    %483 = arith.mulf %482, %453 : vector<8x128xf32>
    %484 = arith.addf %483, %476 : vector<8x128xf32>
    %485 = vector.extract_strided_slice %467 {offsets = [0, 384], sizes = [8, 128], strides = [1, 1]} : vector<8x512xf32> to vector<8x128xf32>
    %486 = arith.negf %485 : vector<8x128xf32>
    %487 = math.exp %486 : vector<8x128xf32>
    %cst_118 = arith.constant 1.000000e+00 : f32
    %488 = vector.broadcast %cst_118 : f32 to vector<8x128xf32>
    %489 = arith.addf %488, %487 : vector<8x128xf32>
    %490 = arith.divf %488, %489 : vector<8x128xf32>
    %491 = math.tanh %484 : vector<8x128xf32>
    %492 = arith.mulf %490, %491 : vector<8x128xf32>
    %493 = arith.truncf %492 : vector<8x128xf32> to vector<8x128xbf16>
    %c15_i32 = arith.constant 15 : i32
    %494 = arith.index_cast %c15_i32 : i32 to index
    %c0_119 = arith.constant 0 : index
    %c0_120 = arith.constant 0 : index
    %495 = vector.load %arg15[%494, %c0_119, %c0_120] : memref<16x8x512xf32, #tpu.memory_space<vmem>>, vector<1x8x512xf32>
    %496 = vector.shape_cast %495 : vector<1x8x512xf32> to vector<8x512xf32>
    %cst_121 = arith.constant dense<0.000000e+00> : vector<8x512xf32>
    %497 = tpu.matmul %493, %25, %cst_121 {dimension_numbers = #tpu.dot_dimension_numbers<[1], [0], [0], [1], [0, 0, 1, 1], [], []>} : vector<8x128xbf16>, vector<128x512xbf16>, vector<8x512xf32> -> vector<8x512xf32>
    %498 = arith.addf %496, %497 : vector<8x512xf32>
    %499 = vector.extract_strided_slice %498 {offsets = [0, 0], sizes = [8, 128], strides = [1, 1]} : vector<8x512xf32> to vector<8x128xf32>
    %500 = arith.negf %499 : vector<8x128xf32>
    %501 = math.exp %500 : vector<8x128xf32>
    %cst_122 = arith.constant 1.000000e+00 : f32
    %502 = vector.broadcast %cst_122 : f32 to vector<8x128xf32>
    %503 = arith.addf %502, %501 : vector<8x128xf32>
    %504 = arith.divf %502, %503 : vector<8x128xf32>
    %505 = vector.extract_strided_slice %498 {offsets = [0, 256], sizes = [8, 128], strides = [1, 1]} : vector<8x512xf32> to vector<8x128xf32>
    %506 = math.tanh %505 : vector<8x128xf32>
    %507 = arith.mulf %504, %506 : vector<8x128xf32>
    %508 = vector.extract_strided_slice %498 {offsets = [0, 128], sizes = [8, 128], strides = [1, 1]} : vector<8x512xf32> to vector<8x128xf32>
    %509 = arith.negf %508 : vector<8x128xf32>
    %510 = math.exp %509 : vector<8x128xf32>
    %cst_123 = arith.constant 1.000000e+00 : f32
    %511 = vector.broadcast %cst_123 : f32 to vector<8x128xf32>
    %512 = arith.addf %511, %510 : vector<8x128xf32>
    %513 = arith.divf %511, %512 : vector<8x128xf32>
    %514 = arith.mulf %513, %484 : vector<8x128xf32>
    %515 = arith.addf %514, %507 : vector<8x128xf32>
    %516 = vector.extract_strided_slice %498 {offsets = [0, 384], sizes = [8, 128], strides = [1, 1]} : vector<8x512xf32> to vector<8x128xf32>
    %517 = arith.negf %516 : vector<8x128xf32>
    %518 = math.exp %517 : vector<8x128xf32>
    %cst_124 = arith.constant 1.000000e+00 : f32
    %519 = vector.broadcast %cst_124 : f32 to vector<8x128xf32>
    %520 = arith.addf %519, %518 : vector<8x128xf32>
    %521 = arith.divf %519, %520 : vector<8x128xf32>
    %522 = math.tanh %515 : vector<8x128xf32>
    %523 = arith.mulf %521, %522 : vector<8x128xf32>
    %524 = arith.truncf %523 : vector<8x128xf32> to vector<8x128xbf16>
    %c16_i32 = arith.constant 16 : i32
    %c0_125 = arith.constant 0 : index
    %c0_126 = arith.constant 0 : index
    %525 = vector.load %arg7[%c0_125, %c0_126] : memref<128x128xbf16, #tpu.memory_space<vmem>>, vector<128x128xbf16>
    %cst_127 = arith.constant dense<0.000000e+00> : vector<8x128xf32>
    %526 = tpu.matmul %524, %525, %cst_127 {dimension_numbers = #tpu.dot_dimension_numbers<[1], [0], [0], [1], [0, 0, 1, 1], [], []>} : vector<8x128xbf16>, vector<128x128xbf16>, vector<8x128xf32> -> vector<8x128xf32>
    %c0_128 = arith.constant 0 : index
    %c0_129 = arith.constant 0 : index
    %527 = vector.load %arg8[%c0_128, %c0_129] : memref<1x128xf32, #tpu.memory_space<vmem>>, vector<1x128xf32>
    %528 = vector.broadcast %527 : vector<1x128xf32> to vector<8x128xf32>
    %529 = arith.addf %526, %528 : vector<8x128xf32>
    %530 = arith.negf %529 : vector<8x128xf32>
    %531 = math.exp %530 : vector<8x128xf32>
    %cst_130 = arith.constant 1.000000e+00 : f32
    %532 = vector.broadcast %cst_130 : f32 to vector<8x128xf32>
    %533 = arith.addf %532, %531 : vector<8x128xf32>
    %534 = arith.divf %532, %533 : vector<8x128xf32>
    %535 = arith.truncf %534 : vector<8x128xf32> to vector<8x128xbf16>
    %c0_131 = arith.constant 0 : index
    %c0_132 = arith.constant 0 : index
    %536 = vector.load %arg9[%c0_131, %c0_132] : memref<128x512xbf16, #tpu.memory_space<vmem>>, vector<128x512xbf16>
    %cst_133 = arith.constant dense<0.000000e+00> : vector<8x512xf32>
    %537 = tpu.matmul %535, %536, %cst_133 {dimension_numbers = #tpu.dot_dimension_numbers<[1], [0], [0], [1], [0, 0, 1, 1], [], []>} : vector<8x128xbf16>, vector<128x512xbf16>, vector<8x512xf32> -> vector<8x512xf32>
    %c0_134 = arith.constant 0 : index
    %c0_135 = arith.constant 0 : index
    %538 = vector.load %arg11[%c0_134, %c0_135] : memref<1x512xf32, #tpu.memory_space<vmem>>, vector<1x512xf32>
    %539 = vector.broadcast %538 : vector<1x512xf32> to vector<8x512xf32>
    %540 = arith.addf %537, %539 : vector<8x512xf32>
    %c0_136 = arith.constant 0 : index
    %c0_137 = arith.constant 0 : index
    %541 = vector.load %arg10[%c0_136, %c0_137] : memref<128x512xbf16, #tpu.memory_space<vmem>>, vector<128x512xbf16>
    %cst_138 = arith.constant 0.000000e+00 : bf16
    %542 = vector.broadcast %cst_138 : bf16 to vector<8x128xbf16>
    %cst_139 = arith.constant 0.000000e+00 : f32
    %543 = vector.broadcast %cst_139 : f32 to vector<8x128xf32>
    %c0_i32_140 = arith.constant 0 : i32
    %cst_141 = arith.constant dense<0.000000e+00> : vector<8x512xf32>
    %544 = tpu.matmul %542, %541, %cst_141 {dimension_numbers = #tpu.dot_dimension_numbers<[1], [0], [0], [1], [0, 0, 1, 1], [], []>} : vector<8x128xbf16>, vector<128x512xbf16>, vector<8x512xf32> -> vector<8x512xf32>
    %545 = arith.addf %540, %544 : vector<8x512xf32>
    %546 = vector.extract_strided_slice %545 {offsets = [0, 0], sizes = [8, 128], strides = [1, 1]} : vector<8x512xf32> to vector<8x128xf32>
    %547 = arith.negf %546 : vector<8x128xf32>
    %548 = math.exp %547 : vector<8x128xf32>
    %cst_142 = arith.constant 1.000000e+00 : f32
    %549 = vector.broadcast %cst_142 : f32 to vector<8x128xf32>
    %550 = arith.addf %549, %548 : vector<8x128xf32>
    %551 = arith.divf %549, %550 : vector<8x128xf32>
    %552 = vector.extract_strided_slice %545 {offsets = [0, 256], sizes = [8, 128], strides = [1, 1]} : vector<8x512xf32> to vector<8x128xf32>
    %553 = math.tanh %552 : vector<8x128xf32>
    %554 = arith.mulf %551, %553 : vector<8x128xf32>
    %555 = vector.extract_strided_slice %545 {offsets = [0, 128], sizes = [8, 128], strides = [1, 1]} : vector<8x512xf32> to vector<8x128xf32>
    %556 = arith.negf %555 : vector<8x128xf32>
    %557 = math.exp %556 : vector<8x128xf32>
    %cst_143 = arith.constant 1.000000e+00 : f32
    %558 = vector.broadcast %cst_143 : f32 to vector<8x128xf32>
    %559 = arith.addf %558, %557 : vector<8x128xf32>
    %560 = arith.divf %558, %559 : vector<8x128xf32>
    %561 = arith.mulf %560, %543 : vector<8x128xf32>
    %562 = arith.addf %561, %554 : vector<8x128xf32>
    %563 = vector.extract_strided_slice %545 {offsets = [0, 384], sizes = [8, 128], strides = [1, 1]} : vector<8x512xf32> to vector<8x128xf32>
    %564 = arith.negf %563 : vector<8x128xf32>
    %565 = math.exp %564 : vector<8x128xf32>
    %cst_144 = arith.constant 1.000000e+00 : f32
    %566 = vector.broadcast %cst_144 : f32 to vector<8x128xf32>
    %567 = arith.addf %566, %565 : vector<8x128xf32>
    %568 = arith.divf %566, %567 : vector<8x128xf32>
    %569 = math.tanh %562 : vector<8x128xf32>
    %570 = arith.mulf %568, %569 : vector<8x128xf32>
    %571 = arith.truncf %570 : vector<8x128xf32> to vector<8x128xbf16>
    %572 = arith.index_cast %c0_i32_140 : i32 to index
    %c0_145 = arith.constant 0 : index
    %c0_146 = arith.constant 0 : index
    %573 = vector.load %arg16[%572, %c0_145, %c0_146] : memref<16x8x128xbf16, #tpu.memory_space<vmem>>, vector<1x8x128xbf16>
    %574 = vector.shape_cast %573 : vector<1x8x128xbf16> to vector<8x128xbf16>
    %575 = vector.shape_cast %571 : vector<8x128xbf16> to vector<1x8x128xbf16>
    tpu.vector_store %arg16[%572, %c0_145, %c0_146], %575 {strides = array<i32>} : memref<16x8x128xbf16, #tpu.memory_space<vmem>>, vector<1x8x128xbf16>,
    %c1_i32_147 = arith.constant 1 : i32
    %cst_148 = arith.constant dense<0.000000e+00> : vector<8x512xf32>
    %576 = tpu.matmul %571, %541, %cst_148 {dimension_numbers = #tpu.dot_dimension_numbers<[1], [0], [0], [1], [0, 0, 1, 1], [], []>} : vector<8x128xbf16>, vector<128x512xbf16>, vector<8x512xf32> -> vector<8x512xf32>
    %577 = arith.addf %540, %576 : vector<8x512xf32>
    %578 = vector.extract_strided_slice %577 {offsets = [0, 0], sizes = [8, 128], strides = [1, 1]} : vector<8x512xf32> to vector<8x128xf32>
    %579 = arith.negf %578 : vector<8x128xf32>
    %580 = math.exp %579 : vector<8x128xf32>
    %cst_149 = arith.constant 1.000000e+00 : f32
    %581 = vector.broadcast %cst_149 : f32 to vector<8x128xf32>
    %582 = arith.addf %581, %580 : vector<8x128xf32>
    %583 = arith.divf %581, %582 : vector<8x128xf32>
    %584 = vector.extract_strided_slice %577 {offsets = [0, 256], sizes = [8, 128], strides = [1, 1]} : vector<8x512xf32> to vector<8x128xf32>
    %585 = math.tanh %584 : vector<8x128xf32>
    %586 = arith.mulf %583, %585 : vector<8x128xf32>
    %587 = vector.extract_strided_slice %577 {offsets = [0, 128], sizes = [8, 128], strides = [1, 1]} : vector<8x512xf32> to vector<8x128xf32>
    %588 = arith.negf %587 : vector<8x128xf32>
    %589 = math.exp %588 : vector<8x128xf32>
    %cst_150 = arith.constant 1.000000e+00 : f32
    %590 = vector.broadcast %cst_150 : f32 to vector<8x128xf32>
    %591 = arith.addf %590, %589 : vector<8x128xf32>
    %592 = arith.divf %590, %591 : vector<8x128xf32>
    %593 = arith.mulf %592, %562 : vector<8x128xf32>
    %594 = arith.addf %593, %586 : vector<8x128xf32>
    %595 = vector.extract_strided_slice %577 {offsets = [0, 384], sizes = [8, 128], strides = [1, 1]} : vector<8x512xf32> to vector<8x128xf32>
    %596 = arith.negf %595 : vector<8x128xf32>
    %597 = math.exp %596 : vector<8x128xf32>
    %cst_151 = arith.constant 1.000000e+00 : f32
    %598 = vector.broadcast %cst_151 : f32 to vector<8x128xf32>
    %599 = arith.addf %598, %597 : vector<8x128xf32>
    %600 = arith.divf %598, %599 : vector<8x128xf32>
    %601 = math.tanh %594 : vector<8x128xf32>
    %602 = arith.mulf %600, %601 : vector<8x128xf32>
    %603 = arith.truncf %602 : vector<8x128xf32> to vector<8x128xbf16>
    %604 = arith.index_cast %c1_i32_147 : i32 to index
    %c0_152 = arith.constant 0 : index
    %c0_153 = arith.constant 0 : index
    %605 = vector.load %arg16[%604, %c0_152, %c0_153] : memref<16x8x128xbf16, #tpu.memory_space<vmem>>, vector<1x8x128xbf16>
    %606 = vector.shape_cast %605 : vector<1x8x128xbf16> to vector<8x128xbf16>
    %607 = vector.shape_cast %603 : vector<8x128xbf16> to vector<1x8x128xbf16>
    tpu.vector_store %arg16[%604, %c0_152, %c0_153], %607 {strides = array<i32>} : memref<16x8x128xbf16, #tpu.memory_space<vmem>>, vector<1x8x128xbf16>,
    %c2_i32_154 = arith.constant 2 : i32
    %cst_155 = arith.constant dense<0.000000e+00> : vector<8x512xf32>
    %608 = tpu.matmul %603, %541, %cst_155 {dimension_numbers = #tpu.dot_dimension_numbers<[1], [0], [0], [1], [0, 0, 1, 1], [], []>} : vector<8x128xbf16>, vector<128x512xbf16>, vector<8x512xf32> -> vector<8x512xf32>
    %609 = arith.addf %540, %608 : vector<8x512xf32>
    %610 = vector.extract_strided_slice %609 {offsets = [0, 0], sizes = [8, 128], strides = [1, 1]} : vector<8x512xf32> to vector<8x128xf32>
    %611 = arith.negf %610 : vector<8x128xf32>
    %612 = math.exp %611 : vector<8x128xf32>
    %cst_156 = arith.constant 1.000000e+00 : f32
    %613 = vector.broadcast %cst_156 : f32 to vector<8x128xf32>
    %614 = arith.addf %613, %612 : vector<8x128xf32>
    %615 = arith.divf %613, %614 : vector<8x128xf32>
    %616 = vector.extract_strided_slice %609 {offsets = [0, 256], sizes = [8, 128], strides = [1, 1]} : vector<8x512xf32> to vector<8x128xf32>
    %617 = math.tanh %616 : vector<8x128xf32>
    %618 = arith.mulf %615, %617 : vector<8x128xf32>
    %619 = vector.extract_strided_slice %609 {offsets = [0, 128], sizes = [8, 128], strides = [1, 1]} : vector<8x512xf32> to vector<8x128xf32>
    %620 = arith.negf %619 : vector<8x128xf32>
    %621 = math.exp %620 : vector<8x128xf32>
    %cst_157 = arith.constant 1.000000e+00 : f32
    %622 = vector.broadcast %cst_157 : f32 to vector<8x128xf32>
    %623 = arith.addf %622, %621 : vector<8x128xf32>
    %624 = arith.divf %622, %623 : vector<8x128xf32>
    %625 = arith.mulf %624, %594 : vector<8x128xf32>
    %626 = arith.addf %625, %618 : vector<8x128xf32>
    %627 = vector.extract_strided_slice %609 {offsets = [0, 384], sizes = [8, 128], strides = [1, 1]} : vector<8x512xf32> to vector<8x128xf32>
    %628 = arith.negf %627 : vector<8x128xf32>
    %629 = math.exp %628 : vector<8x128xf32>
    %cst_158 = arith.constant 1.000000e+00 : f32
    %630 = vector.broadcast %cst_158 : f32 to vector<8x128xf32>
    %631 = arith.addf %630, %629 : vector<8x128xf32>
    %632 = arith.divf %630, %631 : vector<8x128xf32>
    %633 = math.tanh %626 : vector<8x128xf32>
    %634 = arith.mulf %632, %633 : vector<8x128xf32>
    %635 = arith.truncf %634 : vector<8x128xf32> to vector<8x128xbf16>
    %636 = arith.index_cast %c2_i32_154 : i32 to index
    %c0_159 = arith.constant 0 : index
    %c0_160 = arith.constant 0 : index
    %637 = vector.load %arg16[%636, %c0_159, %c0_160] : memref<16x8x128xbf16, #tpu.memory_space<vmem>>, vector<1x8x128xbf16>
    %638 = vector.shape_cast %637 : vector<1x8x128xbf16> to vector<8x128xbf16>
    %639 = vector.shape_cast %635 : vector<8x128xbf16> to vector<1x8x128xbf16>
    tpu.vector_store %arg16[%636, %c0_159, %c0_160], %639 {strides = array<i32>} : memref<16x8x128xbf16, #tpu.memory_space<vmem>>, vector<1x8x128xbf16>,
    %c3_i32_161 = arith.constant 3 : i32
    %cst_162 = arith.constant dense<0.000000e+00> : vector<8x512xf32>
    %640 = tpu.matmul %635, %541, %cst_162 {dimension_numbers = #tpu.dot_dimension_numbers<[1], [0], [0], [1], [0, 0, 1, 1], [], []>} : vector<8x128xbf16>, vector<128x512xbf16>, vector<8x512xf32> -> vector<8x512xf32>
    %641 = arith.addf %540, %640 : vector<8x512xf32>
    %642 = vector.extract_strided_slice %641 {offsets = [0, 0], sizes = [8, 128], strides = [1, 1]} : vector<8x512xf32> to vector<8x128xf32>
    %643 = arith.negf %642 : vector<8x128xf32>
    %644 = math.exp %643 : vector<8x128xf32>
    %cst_163 = arith.constant 1.000000e+00 : f32
    %645 = vector.broadcast %cst_163 : f32 to vector<8x128xf32>
    %646 = arith.addf %645, %644 : vector<8x128xf32>
    %647 = arith.divf %645, %646 : vector<8x128xf32>
    %648 = vector.extract_strided_slice %641 {offsets = [0, 256], sizes = [8, 128], strides = [1, 1]} : vector<8x512xf32> to vector<8x128xf32>
    %649 = math.tanh %648 : vector<8x128xf32>
    %650 = arith.mulf %647, %649 : vector<8x128xf32>
    %651 = vector.extract_strided_slice %641 {offsets = [0, 128], sizes = [8, 128], strides = [1, 1]} : vector<8x512xf32> to vector<8x128xf32>
    %652 = arith.negf %651 : vector<8x128xf32>
    %653 = math.exp %652 : vector<8x128xf32>
    %cst_164 = arith.constant 1.000000e+00 : f32
    %654 = vector.broadcast %cst_164 : f32 to vector<8x128xf32>
    %655 = arith.addf %654, %653 : vector<8x128xf32>
    %656 = arith.divf %654, %655 : vector<8x128xf32>
    %657 = arith.mulf %656, %626 : vector<8x128xf32>
    %658 = arith.addf %657, %650 : vector<8x128xf32>
    %659 = vector.extract_strided_slice %641 {offsets = [0, 384], sizes = [8, 128], strides = [1, 1]} : vector<8x512xf32> to vector<8x128xf32>
    %660 = arith.negf %659 : vector<8x128xf32>
    %661 = math.exp %660 : vector<8x128xf32>
    %cst_165 = arith.constant 1.000000e+00 : f32
    %662 = vector.broadcast %cst_165 : f32 to vector<8x128xf32>
    %663 = arith.addf %662, %661 : vector<8x128xf32>
    %664 = arith.divf %662, %663 : vector<8x128xf32>
    %665 = math.tanh %658 : vector<8x128xf32>
    %666 = arith.mulf %664, %665 : vector<8x128xf32>
    %667 = arith.truncf %666 : vector<8x128xf32> to vector<8x128xbf16>
    %668 = arith.index_cast %c3_i32_161 : i32 to index
    %c0_166 = arith.constant 0 : index
    %c0_167 = arith.constant 0 : index
    %669 = vector.load %arg16[%668, %c0_166, %c0_167] : memref<16x8x128xbf16, #tpu.memory_space<vmem>>, vector<1x8x128xbf16>
    %670 = vector.shape_cast %669 : vector<1x8x128xbf16> to vector<8x128xbf16>
    %671 = vector.shape_cast %667 : vector<8x128xbf16> to vector<1x8x128xbf16>
    tpu.vector_store %arg16[%668, %c0_166, %c0_167], %671 {strides = array<i32>} : memref<16x8x128xbf16, #tpu.memory_space<vmem>>, vector<1x8x128xbf16>,
    %c4_i32_168 = arith.constant 4 : i32
    %cst_169 = arith.constant dense<0.000000e+00> : vector<8x512xf32>
    %672 = tpu.matmul %667, %541, %cst_169 {dimension_numbers = #tpu.dot_dimension_numbers<[1], [0], [0], [1], [0, 0, 1, 1], [], []>} : vector<8x128xbf16>, vector<128x512xbf16>, vector<8x512xf32> -> vector<8x512xf32>
    %673 = arith.addf %540, %672 : vector<8x512xf32>
    %674 = vector.extract_strided_slice %673 {offsets = [0, 0], sizes = [8, 128], strides = [1, 1]} : vector<8x512xf32> to vector<8x128xf32>
    %675 = arith.negf %674 : vector<8x128xf32>
    %676 = math.exp %675 : vector<8x128xf32>
    %cst_170 = arith.constant 1.000000e+00 : f32
    %677 = vector.broadcast %cst_170 : f32 to vector<8x128xf32>
    %678 = arith.addf %677, %676 : vector<8x128xf32>
    %679 = arith.divf %677, %678 : vector<8x128xf32>
    %680 = vector.extract_strided_slice %673 {offsets = [0, 256], sizes = [8, 128], strides = [1, 1]} : vector<8x512xf32> to vector<8x128xf32>
    %681 = math.tanh %680 : vector<8x128xf32>
    %682 = arith.mulf %679, %681 : vector<8x128xf32>
    %683 = vector.extract_strided_slice %673 {offsets = [0, 128], sizes = [8, 128], strides = [1, 1]} : vector<8x512xf32> to vector<8x128xf32>
    %684 = arith.negf %683 : vector<8x128xf32>
    %685 = math.exp %684 : vector<8x128xf32>
    %cst_171 = arith.constant 1.000000e+00 : f32
    %686 = vector.broadcast %cst_171 : f32 to vector<8x128xf32>
    %687 = arith.addf %686, %685 : vector<8x128xf32>
    %688 = arith.divf %686, %687 : vector<8x128xf32>
    %689 = arith.mulf %688, %658 : vector<8x128xf32>
    %690 = arith.addf %689, %682 : vector<8x128xf32>
    %691 = vector.extract_strided_slice %673 {offsets = [0, 384], sizes = [8, 128], strides = [1, 1]} : vector<8x512xf32> to vector<8x128xf32>
    %692 = arith.negf %691 : vector<8x128xf32>
    %693 = math.exp %692 : vector<8x128xf32>
    %cst_172 = arith.constant 1.000000e+00 : f32
    %694 = vector.broadcast %cst_172 : f32 to vector<8x128xf32>
    %695 = arith.addf %694, %693 : vector<8x128xf32>
    %696 = arith.divf %694, %695 : vector<8x128xf32>
    %697 = math.tanh %690 : vector<8x128xf32>
    %698 = arith.mulf %696, %697 : vector<8x128xf32>
    %699 = arith.truncf %698 : vector<8x128xf32> to vector<8x128xbf16>
    %700 = arith.index_cast %c4_i32_168 : i32 to index
    %c0_173 = arith.constant 0 : index
    %c0_174 = arith.constant 0 : index
    %701 = vector.load %arg16[%700, %c0_173, %c0_174] : memref<16x8x128xbf16, #tpu.memory_space<vmem>>, vector<1x8x128xbf16>
    %702 = vector.shape_cast %701 : vector<1x8x128xbf16> to vector<8x128xbf16>
    %703 = vector.shape_cast %699 : vector<8x128xbf16> to vector<1x8x128xbf16>
    tpu.vector_store %arg16[%700, %c0_173, %c0_174], %703 {strides = array<i32>} : memref<16x8x128xbf16, #tpu.memory_space<vmem>>, vector<1x8x128xbf16>,
    %c5_i32_175 = arith.constant 5 : i32
    %cst_176 = arith.constant dense<0.000000e+00> : vector<8x512xf32>
    %704 = tpu.matmul %699, %541, %cst_176 {dimension_numbers = #tpu.dot_dimension_numbers<[1], [0], [0], [1], [0, 0, 1, 1], [], []>} : vector<8x128xbf16>, vector<128x512xbf16>, vector<8x512xf32> -> vector<8x512xf32>
    %705 = arith.addf %540, %704 : vector<8x512xf32>
    %706 = vector.extract_strided_slice %705 {offsets = [0, 0], sizes = [8, 128], strides = [1, 1]} : vector<8x512xf32> to vector<8x128xf32>
    %707 = arith.negf %706 : vector<8x128xf32>
    %708 = math.exp %707 : vector<8x128xf32>
    %cst_177 = arith.constant 1.000000e+00 : f32
    %709 = vector.broadcast %cst_177 : f32 to vector<8x128xf32>
    %710 = arith.addf %709, %708 : vector<8x128xf32>
    %711 = arith.divf %709, %710 : vector<8x128xf32>
    %712 = vector.extract_strided_slice %705 {offsets = [0, 256], sizes = [8, 128], strides = [1, 1]} : vector<8x512xf32> to vector<8x128xf32>
    %713 = math.tanh %712 : vector<8x128xf32>
    %714 = arith.mulf %711, %713 : vector<8x128xf32>
    %715 = vector.extract_strided_slice %705 {offsets = [0, 128], sizes = [8, 128], strides = [1, 1]} : vector<8x512xf32> to vector<8x128xf32>
    %716 = arith.negf %715 : vector<8x128xf32>
    %717 = math.exp %716 : vector<8x128xf32>
    %cst_178 = arith.constant 1.000000e+00 : f32
    %718 = vector.broadcast %cst_178 : f32 to vector<8x128xf32>
    %719 = arith.addf %718, %717 : vector<8x128xf32>
    %720 = arith.divf %718, %719 : vector<8x128xf32>
    %721 = arith.mulf %720, %690 : vector<8x128xf32>
    %722 = arith.addf %721, %714 : vector<8x128xf32>
    %723 = vector.extract_strided_slice %705 {offsets = [0, 384], sizes = [8, 128], strides = [1, 1]} : vector<8x512xf32> to vector<8x128xf32>
    %724 = arith.negf %723 : vector<8x128xf32>
    %725 = math.exp %724 : vector<8x128xf32>
    %cst_179 = arith.constant 1.000000e+00 : f32
    %726 = vector.broadcast %cst_179 : f32 to vector<8x128xf32>
    %727 = arith.addf %726, %725 : vector<8x128xf32>
    %728 = arith.divf %726, %727 : vector<8x128xf32>
    %729 = math.tanh %722 : vector<8x128xf32>
    %730 = arith.mulf %728, %729 : vector<8x128xf32>
    %731 = arith.truncf %730 : vector<8x128xf32> to vector<8x128xbf16>
    %732 = arith.index_cast %c5_i32_175 : i32 to index
    %c0_180 = arith.constant 0 : index
    %c0_181 = arith.constant 0 : index
    %733 = vector.load %arg16[%732, %c0_180, %c0_181] : memref<16x8x128xbf16, #tpu.memory_space<vmem>>, vector<1x8x128xbf16>
    %734 = vector.shape_cast %733 : vector<1x8x128xbf16> to vector<8x128xbf16>
    %735 = vector.shape_cast %731 : vector<8x128xbf16> to vector<1x8x128xbf16>
    tpu.vector_store %arg16[%732, %c0_180, %c0_181], %735 {strides = array<i32>} : memref<16x8x128xbf16, #tpu.memory_space<vmem>>, vector<1x8x128xbf16>,
    %c6_i32_182 = arith.constant 6 : i32
    %cst_183 = arith.constant dense<0.000000e+00> : vector<8x512xf32>
    %736 = tpu.matmul %731, %541, %cst_183 {dimension_numbers = #tpu.dot_dimension_numbers<[1], [0], [0], [1], [0, 0, 1, 1], [], []>} : vector<8x128xbf16>, vector<128x512xbf16>, vector<8x512xf32> -> vector<8x512xf32>
    %737 = arith.addf %540, %736 : vector<8x512xf32>
    %738 = vector.extract_strided_slice %737 {offsets = [0, 0], sizes = [8, 128], strides = [1, 1]} : vector<8x512xf32> to vector<8x128xf32>
    %739 = arith.negf %738 : vector<8x128xf32>
    %740 = math.exp %739 : vector<8x128xf32>
    %cst_184 = arith.constant 1.000000e+00 : f32
    %741 = vector.broadcast %cst_184 : f32 to vector<8x128xf32>
    %742 = arith.addf %741, %740 : vector<8x128xf32>
    %743 = arith.divf %741, %742 : vector<8x128xf32>
    %744 = vector.extract_strided_slice %737 {offsets = [0, 256], sizes = [8, 128], strides = [1, 1]} : vector<8x512xf32> to vector<8x128xf32>
    %745 = math.tanh %744 : vector<8x128xf32>
    %746 = arith.mulf %743, %745 : vector<8x128xf32>
    %747 = vector.extract_strided_slice %737 {offsets = [0, 128], sizes = [8, 128], strides = [1, 1]} : vector<8x512xf32> to vector<8x128xf32>
    %748 = arith.negf %747 : vector<8x128xf32>
    %749 = math.exp %748 : vector<8x128xf32>
    %cst_185 = arith.constant 1.000000e+00 : f32
    %750 = vector.broadcast %cst_185 : f32 to vector<8x128xf32>
    %751 = arith.addf %750, %749 : vector<8x128xf32>
    %752 = arith.divf %750, %751 : vector<8x128xf32>
    %753 = arith.mulf %752, %722 : vector<8x128xf32>
    %754 = arith.addf %753, %746 : vector<8x128xf32>
    %755 = vector.extract_strided_slice %737 {offsets = [0, 384], sizes = [8, 128], strides = [1, 1]} : vector<8x512xf32> to vector<8x128xf32>
    %756 = arith.negf %755 : vector<8x128xf32>
    %757 = math.exp %756 : vector<8x128xf32>
    %cst_186 = arith.constant 1.000000e+00 : f32
    %758 = vector.broadcast %cst_186 : f32 to vector<8x128xf32>
    %759 = arith.addf %758, %757 : vector<8x128xf32>
    %760 = arith.divf %758, %759 : vector<8x128xf32>
    %761 = math.tanh %754 : vector<8x128xf32>
    %762 = arith.mulf %760, %761 : vector<8x128xf32>
    %763 = arith.truncf %762 : vector<8x128xf32> to vector<8x128xbf16>
    %764 = arith.index_cast %c6_i32_182 : i32 to index
    %c0_187 = arith.constant 0 : index
    %c0_188 = arith.constant 0 : index
    %765 = vector.load %arg16[%764, %c0_187, %c0_188] : memref<16x8x128xbf16, #tpu.memory_space<vmem>>, vector<1x8x128xbf16>
    %766 = vector.shape_cast %765 : vector<1x8x128xbf16> to vector<8x128xbf16>
    %767 = vector.shape_cast %763 : vector<8x128xbf16> to vector<1x8x128xbf16>
    tpu.vector_store %arg16[%764, %c0_187, %c0_188], %767 {strides = array<i32>} : memref<16x8x128xbf16, #tpu.memory_space<vmem>>, vector<1x8x128xbf16>,
    %c7_i32_189 = arith.constant 7 : i32
    %cst_190 = arith.constant dense<0.000000e+00> : vector<8x512xf32>
    %768 = tpu.matmul %763, %541, %cst_190 {dimension_numbers = #tpu.dot_dimension_numbers<[1], [0], [0], [1], [0, 0, 1, 1], [], []>} : vector<8x128xbf16>, vector<128x512xbf16>, vector<8x512xf32> -> vector<8x512xf32>
    %769 = arith.addf %540, %768 : vector<8x512xf32>
    %770 = vector.extract_strided_slice %769 {offsets = [0, 0], sizes = [8, 128], strides = [1, 1]} : vector<8x512xf32> to vector<8x128xf32>
    %771 = arith.negf %770 : vector<8x128xf32>
    %772 = math.exp %771 : vector<8x128xf32>
    %cst_191 = arith.constant 1.000000e+00 : f32
    %773 = vector.broadcast %cst_191 : f32 to vector<8x128xf32>
    %774 = arith.addf %773, %772 : vector<8x128xf32>
    %775 = arith.divf %773, %774 : vector<8x128xf32>
    %776 = vector.extract_strided_slice %769 {offsets = [0, 256], sizes = [8, 128], strides = [1, 1]} : vector<8x512xf32> to vector<8x128xf32>
    %777 = math.tanh %776 : vector<8x128xf32>
    %778 = arith.mulf %775, %777 : vector<8x128xf32>
    %779 = vector.extract_strided_slice %769 {offsets = [0, 128], sizes = [8, 128], strides = [1, 1]} : vector<8x512xf32> to vector<8x128xf32>
    %780 = arith.negf %779 : vector<8x128xf32>
    %781 = math.exp %780 : vector<8x128xf32>
    %cst_192 = arith.constant 1.000000e+00 : f32
    %782 = vector.broadcast %cst_192 : f32 to vector<8x128xf32>
    %783 = arith.addf %782, %781 : vector<8x128xf32>
    %784 = arith.divf %782, %783 : vector<8x128xf32>
    %785 = arith.mulf %784, %754 : vector<8x128xf32>
    %786 = arith.addf %785, %778 : vector<8x128xf32>
    %787 = vector.extract_strided_slice %769 {offsets = [0, 384], sizes = [8, 128], strides = [1, 1]} : vector<8x512xf32> to vector<8x128xf32>
    %788 = arith.negf %787 : vector<8x128xf32>
    %789 = math.exp %788 : vector<8x128xf32>
    %cst_193 = arith.constant 1.000000e+00 : f32
    %790 = vector.broadcast %cst_193 : f32 to vector<8x128xf32>
    %791 = arith.addf %790, %789 : vector<8x128xf32>
    %792 = arith.divf %790, %791 : vector<8x128xf32>
    %793 = math.tanh %786 : vector<8x128xf32>
    %794 = arith.mulf %792, %793 : vector<8x128xf32>
    %795 = arith.truncf %794 : vector<8x128xf32> to vector<8x128xbf16>
    %796 = arith.index_cast %c7_i32_189 : i32 to index
    %c0_194 = arith.constant 0 : index
    %c0_195 = arith.constant 0 : index
    %797 = vector.load %arg16[%796, %c0_194, %c0_195] : memref<16x8x128xbf16, #tpu.memory_space<vmem>>, vector<1x8x128xbf16>
    %798 = vector.shape_cast %797 : vector<1x8x128xbf16> to vector<8x128xbf16>
    %799 = vector.shape_cast %795 : vector<8x128xbf16> to vector<1x8x128xbf16>
    tpu.vector_store %arg16[%796, %c0_194, %c0_195], %799 {strides = array<i32>} : memref<16x8x128xbf16, #tpu.memory_space<vmem>>, vector<1x8x128xbf16>,
    %c8_i32_196 = arith.constant 8 : i32
    %cst_197 = arith.constant dense<0.000000e+00> : vector<8x512xf32>
    %800 = tpu.matmul %795, %541, %cst_197 {dimension_numbers = #tpu.dot_dimension_numbers<[1], [0], [0], [1], [0, 0, 1, 1], [], []>} : vector<8x128xbf16>, vector<128x512xbf16>, vector<8x512xf32> -> vector<8x512xf32>
    %801 = arith.addf %540, %800 : vector<8x512xf32>
    %802 = vector.extract_strided_slice %801 {offsets = [0, 0], sizes = [8, 128], strides = [1, 1]} : vector<8x512xf32> to vector<8x128xf32>
    %803 = arith.negf %802 : vector<8x128xf32>
    %804 = math.exp %803 : vector<8x128xf32>
    %cst_198 = arith.constant 1.000000e+00 : f32
    %805 = vector.broadcast %cst_198 : f32 to vector<8x128xf32>
    %806 = arith.addf %805, %804 : vector<8x128xf32>
    %807 = arith.divf %805, %806 : vector<8x128xf32>
    %808 = vector.extract_strided_slice %801 {offsets = [0, 256], sizes = [8, 128], strides = [1, 1]} : vector<8x512xf32> to vector<8x128xf32>
    %809 = math.tanh %808 : vector<8x128xf32>
    %810 = arith.mulf %807, %809 : vector<8x128xf32>
    %811 = vector.extract_strided_slice %801 {offsets = [0, 128], sizes = [8, 128], strides = [1, 1]} : vector<8x512xf32> to vector<8x128xf32>
    %812 = arith.negf %811 : vector<8x128xf32>
    %813 = math.exp %812 : vector<8x128xf32>
    %cst_199 = arith.constant 1.000000e+00 : f32
    %814 = vector.broadcast %cst_199 : f32 to vector<8x128xf32>
    %815 = arith.addf %814, %813 : vector<8x128xf32>
    %816 = arith.divf %814, %815 : vector<8x128xf32>
    %817 = arith.mulf %816, %786 : vector<8x128xf32>
    %818 = arith.addf %817, %810 : vector<8x128xf32>
    %819 = vector.extract_strided_slice %801 {offsets = [0, 384], sizes = [8, 128], strides = [1, 1]} : vector<8x512xf32> to vector<8x128xf32>
    %820 = arith.negf %819 : vector<8x128xf32>
    %821 = math.exp %820 : vector<8x128xf32>
    %cst_200 = arith.constant 1.000000e+00 : f32
    %822 = vector.broadcast %cst_200 : f32 to vector<8x128xf32>
    %823 = arith.addf %822, %821 : vector<8x128xf32>
    %824 = arith.divf %822, %823 : vector<8x128xf32>
    %825 = math.tanh %818 : vector<8x128xf32>
    %826 = arith.mulf %824, %825 : vector<8x128xf32>
    %827 = arith.truncf %826 : vector<8x128xf32> to vector<8x128xbf16>
    %828 = arith.index_cast %c8_i32_196 : i32 to index
    %c0_201 = arith.constant 0 : index
    %c0_202 = arith.constant 0 : index
    %829 = vector.load %arg16[%828, %c0_201, %c0_202] : memref<16x8x128xbf16, #tpu.memory_space<vmem>>, vector<1x8x128xbf16>
    %830 = vector.shape_cast %829 : vector<1x8x128xbf16> to vector<8x128xbf16>
    %831 = vector.shape_cast %827 : vector<8x128xbf16> to vector<1x8x128xbf16>
    tpu.vector_store %arg16[%828, %c0_201, %c0_202], %831 {strides = array<i32>} : memref<16x8x128xbf16, #tpu.memory_space<vmem>>, vector<1x8x128xbf16>,
    %c9_i32_203 = arith.constant 9 : i32
    %cst_204 = arith.constant dense<0.000000e+00> : vector<8x512xf32>
    %832 = tpu.matmul %827, %541, %cst_204 {dimension_numbers = #tpu.dot_dimension_numbers<[1], [0], [0], [1], [0, 0, 1, 1], [], []>} : vector<8x128xbf16>, vector<128x512xbf16>, vector<8x512xf32> -> vector<8x512xf32>
    %833 = arith.addf %540, %832 : vector<8x512xf32>
    %834 = vector.extract_strided_slice %833 {offsets = [0, 0], sizes = [8, 128], strides = [1, 1]} : vector<8x512xf32> to vector<8x128xf32>
    %835 = arith.negf %834 : vector<8x128xf32>
    %836 = math.exp %835 : vector<8x128xf32>
    %cst_205 = arith.constant 1.000000e+00 : f32
    %837 = vector.broadcast %cst_205 : f32 to vector<8x128xf32>
    %838 = arith.addf %837, %836 : vector<8x128xf32>
    %839 = arith.divf %837, %838 : vector<8x128xf32>
    %840 = vector.extract_strided_slice %833 {offsets = [0, 256], sizes = [8, 128], strides = [1, 1]} : vector<8x512xf32> to vector<8x128xf32>
    %841 = math.tanh %840 : vector<8x128xf32>
    %842 = arith.mulf %839, %841 : vector<8x128xf32>
    %843 = vector.extract_strided_slice %833 {offsets = [0, 128], sizes = [8, 128], strides = [1, 1]} : vector<8x512xf32> to vector<8x128xf32>
    %844 = arith.negf %843 : vector<8x128xf32>
    %845 = math.exp %844 : vector<8x128xf32>
    %cst_206 = arith.constant 1.000000e+00 : f32
    %846 = vector.broadcast %cst_206 : f32 to vector<8x128xf32>
    %847 = arith.addf %846, %845 : vector<8x128xf32>
    %848 = arith.divf %846, %847 : vector<8x128xf32>
    %849 = arith.mulf %848, %818 : vector<8x128xf32>
    %850 = arith.addf %849, %842 : vector<8x128xf32>
    %851 = vector.extract_strided_slice %833 {offsets = [0, 384], sizes = [8, 128], strides = [1, 1]} : vector<8x512xf32> to vector<8x128xf32>
    %852 = arith.negf %851 : vector<8x128xf32>
    %853 = math.exp %852 : vector<8x128xf32>
    %cst_207 = arith.constant 1.000000e+00 : f32
    %854 = vector.broadcast %cst_207 : f32 to vector<8x128xf32>
    %855 = arith.addf %854, %853 : vector<8x128xf32>
    %856 = arith.divf %854, %855 : vector<8x128xf32>
    %857 = math.tanh %850 : vector<8x128xf32>
    %858 = arith.mulf %856, %857 : vector<8x128xf32>
    %859 = arith.truncf %858 : vector<8x128xf32> to vector<8x128xbf16>
    %860 = arith.index_cast %c9_i32_203 : i32 to index
    %c0_208 = arith.constant 0 : index
    %c0_209 = arith.constant 0 : index
    %861 = vector.load %arg16[%860, %c0_208, %c0_209] : memref<16x8x128xbf16, #tpu.memory_space<vmem>>, vector<1x8x128xbf16>
    %862 = vector.shape_cast %861 : vector<1x8x128xbf16> to vector<8x128xbf16>
    %863 = vector.shape_cast %859 : vector<8x128xbf16> to vector<1x8x128xbf16>
    tpu.vector_store %arg16[%860, %c0_208, %c0_209], %863 {strides = array<i32>} : memref<16x8x128xbf16, #tpu.memory_space<vmem>>, vector<1x8x128xbf16>,
    %c10_i32_210 = arith.constant 10 : i32
    %cst_211 = arith.constant dense<0.000000e+00> : vector<8x512xf32>
    %864 = tpu.matmul %859, %541, %cst_211 {dimension_numbers = #tpu.dot_dimension_numbers<[1], [0], [0], [1], [0, 0, 1, 1], [], []>} : vector<8x128xbf16>, vector<128x512xbf16>, vector<8x512xf32> -> vector<8x512xf32>
    %865 = arith.addf %540, %864 : vector<8x512xf32>
    %866 = vector.extract_strided_slice %865 {offsets = [0, 0], sizes = [8, 128], strides = [1, 1]} : vector<8x512xf32> to vector<8x128xf32>
    %867 = arith.negf %866 : vector<8x128xf32>
    %868 = math.exp %867 : vector<8x128xf32>
    %cst_212 = arith.constant 1.000000e+00 : f32
    %869 = vector.broadcast %cst_212 : f32 to vector<8x128xf32>
    %870 = arith.addf %869, %868 : vector<8x128xf32>
    %871 = arith.divf %869, %870 : vector<8x128xf32>
    %872 = vector.extract_strided_slice %865 {offsets = [0, 256], sizes = [8, 128], strides = [1, 1]} : vector<8x512xf32> to vector<8x128xf32>
    %873 = math.tanh %872 : vector<8x128xf32>
    %874 = arith.mulf %871, %873 : vector<8x128xf32>
    %875 = vector.extract_strided_slice %865 {offsets = [0, 128], sizes = [8, 128], strides = [1, 1]} : vector<8x512xf32> to vector<8x128xf32>
    %876 = arith.negf %875 : vector<8x128xf32>
    %877 = math.exp %876 : vector<8x128xf32>
    %cst_213 = arith.constant 1.000000e+00 : f32
    %878 = vector.broadcast %cst_213 : f32 to vector<8x128xf32>
    %879 = arith.addf %878, %877 : vector<8x128xf32>
    %880 = arith.divf %878, %879 : vector<8x128xf32>
    %881 = arith.mulf %880, %850 : vector<8x128xf32>
    %882 = arith.addf %881, %874 : vector<8x128xf32>
    %883 = vector.extract_strided_slice %865 {offsets = [0, 384], sizes = [8, 128], strides = [1, 1]} : vector<8x512xf32> to vector<8x128xf32>
    %884 = arith.negf %883 : vector<8x128xf32>
    %885 = math.exp %884 : vector<8x128xf32>
    %cst_214 = arith.constant 1.000000e+00 : f32
    %886 = vector.broadcast %cst_214 : f32 to vector<8x128xf32>
    %887 = arith.addf %886, %885 : vector<8x128xf32>
    %888 = arith.divf %886, %887 : vector<8x128xf32>
    %889 = math.tanh %882 : vector<8x128xf32>
    %890 = arith.mulf %888, %889 : vector<8x128xf32>
    %891 = arith.truncf %890 : vector<8x128xf32> to vector<8x128xbf16>
    %892 = arith.index_cast %c10_i32_210 : i32 to index
    %c0_215 = arith.constant 0 : index
    %c0_216 = arith.constant 0 : index
    %893 = vector.load %arg16[%892, %c0_215, %c0_216] : memref<16x8x128xbf16, #tpu.memory_space<vmem>>, vector<1x8x128xbf16>
    %894 = vector.shape_cast %893 : vector<1x8x128xbf16> to vector<8x128xbf16>
    %895 = vector.shape_cast %891 : vector<8x128xbf16> to vector<1x8x128xbf16>
    tpu.vector_store %arg16[%892, %c0_215, %c0_216], %895 {strides = array<i32>} : memref<16x8x128xbf16, #tpu.memory_space<vmem>>, vector<1x8x128xbf16>,
    %c11_i32_217 = arith.constant 11 : i32
    %cst_218 = arith.constant dense<0.000000e+00> : vector<8x512xf32>
    %896 = tpu.matmul %891, %541, %cst_218 {dimension_numbers = #tpu.dot_dimension_numbers<[1], [0], [0], [1], [0, 0, 1, 1], [], []>} : vector<8x128xbf16>, vector<128x512xbf16>, vector<8x512xf32> -> vector<8x512xf32>
    %897 = arith.addf %540, %896 : vector<8x512xf32>
    %898 = vector.extract_strided_slice %897 {offsets = [0, 0], sizes = [8, 128], strides = [1, 1]} : vector<8x512xf32> to vector<8x128xf32>
    %899 = arith.negf %898 : vector<8x128xf32>
    %900 = math.exp %899 : vector<8x128xf32>
    %cst_219 = arith.constant 1.000000e+00 : f32
    %901 = vector.broadcast %cst_219 : f32 to vector<8x128xf32>
    %902 = arith.addf %901, %900 : vector<8x128xf32>
    %903 = arith.divf %901, %902 : vector<8x128xf32>
    %904 = vector.extract_strided_slice %897 {offsets = [0, 256], sizes = [8, 128], strides = [1, 1]} : vector<8x512xf32> to vector<8x128xf32>
    %905 = math.tanh %904 : vector<8x128xf32>
    %906 = arith.mulf %903, %905 : vector<8x128xf32>
    %907 = vector.extract_strided_slice %897 {offsets = [0, 128], sizes = [8, 128], strides = [1, 1]} : vector<8x512xf32> to vector<8x128xf32>
    %908 = arith.negf %907 : vector<8x128xf32>
    %909 = math.exp %908 : vector<8x128xf32>
    %cst_220 = arith.constant 1.000000e+00 : f32
    %910 = vector.broadcast %cst_220 : f32 to vector<8x128xf32>
    %911 = arith.addf %910, %909 : vector<8x128xf32>
    %912 = arith.divf %910, %911 : vector<8x128xf32>
    %913 = arith.mulf %912, %882 : vector<8x128xf32>
    %914 = arith.addf %913, %906 : vector<8x128xf32>
    %915 = vector.extract_strided_slice %897 {offsets = [0, 384], sizes = [8, 128], strides = [1, 1]} : vector<8x512xf32> to vector<8x128xf32>
    %916 = arith.negf %915 : vector<8x128xf32>
    %917 = math.exp %916 : vector<8x128xf32>
    %cst_221 = arith.constant 1.000000e+00 : f32
    %918 = vector.broadcast %cst_221 : f32 to vector<8x128xf32>
    %919 = arith.addf %918, %917 : vector<8x128xf32>
    %920 = arith.divf %918, %919 : vector<8x128xf32>
    %921 = math.tanh %914 : vector<8x128xf32>
    %922 = arith.mulf %920, %921 : vector<8x128xf32>
    %923 = arith.truncf %922 : vector<8x128xf32> to vector<8x128xbf16>
    %924 = arith.index_cast %c11_i32_217 : i32 to index
    %c0_222 = arith.constant 0 : index
    %c0_223 = arith.constant 0 : index
    %925 = vector.load %arg16[%924, %c0_222, %c0_223] : memref<16x8x128xbf16, #tpu.memory_space<vmem>>, vector<1x8x128xbf16>
    %926 = vector.shape_cast %925 : vector<1x8x128xbf16> to vector<8x128xbf16>
    %927 = vector.shape_cast %923 : vector<8x128xbf16> to vector<1x8x128xbf16>
    tpu.vector_store %arg16[%924, %c0_222, %c0_223], %927 {strides = array<i32>} : memref<16x8x128xbf16, #tpu.memory_space<vmem>>, vector<1x8x128xbf16>,
    %c12_i32_224 = arith.constant 12 : i32
    %cst_225 = arith.constant dense<0.000000e+00> : vector<8x512xf32>
    %928 = tpu.matmul %923, %541, %cst_225 {dimension_numbers = #tpu.dot_dimension_numbers<[1], [0], [0], [1], [0, 0, 1, 1], [], []>} : vector<8x128xbf16>, vector<128x512xbf16>, vector<8x512xf32> -> vector<8x512xf32>
    %929 = arith.addf %540, %928 : vector<8x512xf32>
    %930 = vector.extract_strided_slice %929 {offsets = [0, 0], sizes = [8, 128], strides = [1, 1]} : vector<8x512xf32> to vector<8x128xf32>
    %931 = arith.negf %930 : vector<8x128xf32>
    %932 = math.exp %931 : vector<8x128xf32>
    %cst_226 = arith.constant 1.000000e+00 : f32
    %933 = vector.broadcast %cst_226 : f32 to vector<8x128xf32>
    %934 = arith.addf %933, %932 : vector<8x128xf32>
    %935 = arith.divf %933, %934 : vector<8x128xf32>
    %936 = vector.extract_strided_slice %929 {offsets = [0, 256], sizes = [8, 128], strides = [1, 1]} : vector<8x512xf32> to vector<8x128xf32>
    %937 = math.tanh %936 : vector<8x128xf32>
    %938 = arith.mulf %935, %937 : vector<8x128xf32>
    %939 = vector.extract_strided_slice %929 {offsets = [0, 128], sizes = [8, 128], strides = [1, 1]} : vector<8x512xf32> to vector<8x128xf32>
    %940 = arith.negf %939 : vector<8x128xf32>
    %941 = math.exp %940 : vector<8x128xf32>
    %cst_227 = arith.constant 1.000000e+00 : f32
    %942 = vector.broadcast %cst_227 : f32 to vector<8x128xf32>
    %943 = arith.addf %942, %941 : vector<8x128xf32>
    %944 = arith.divf %942, %943 : vector<8x128xf32>
    %945 = arith.mulf %944, %914 : vector<8x128xf32>
    %946 = arith.addf %945, %938 : vector<8x128xf32>
    %947 = vector.extract_strided_slice %929 {offsets = [0, 384], sizes = [8, 128], strides = [1, 1]} : vector<8x512xf32> to vector<8x128xf32>
    %948 = arith.negf %947 : vector<8x128xf32>
    %949 = math.exp %948 : vector<8x128xf32>
    %cst_228 = arith.constant 1.000000e+00 : f32
    %950 = vector.broadcast %cst_228 : f32 to vector<8x128xf32>
    %951 = arith.addf %950, %949 : vector<8x128xf32>
    %952 = arith.divf %950, %951 : vector<8x128xf32>
    %953 = math.tanh %946 : vector<8x128xf32>
    %954 = arith.mulf %952, %953 : vector<8x128xf32>
    %955 = arith.truncf %954 : vector<8x128xf32> to vector<8x128xbf16>
    %956 = arith.index_cast %c12_i32_224 : i32 to index
    %c0_229 = arith.constant 0 : index
    %c0_230 = arith.constant 0 : index
    %957 = vector.load %arg16[%956, %c0_229, %c0_230] : memref<16x8x128xbf16, #tpu.memory_space<vmem>>, vector<1x8x128xbf16>
    %958 = vector.shape_cast %957 : vector<1x8x128xbf16> to vector<8x128xbf16>
    %959 = vector.shape_cast %955 : vector<8x128xbf16> to vector<1x8x128xbf16>
    tpu.vector_store %arg16[%956, %c0_229, %c0_230], %959 {strides = array<i32>} : memref<16x8x128xbf16, #tpu.memory_space<vmem>>, vector<1x8x128xbf16>,
    %c13_i32_231 = arith.constant 13 : i32
    %cst_232 = arith.constant dense<0.000000e+00> : vector<8x512xf32>
    %960 = tpu.matmul %955, %541, %cst_232 {dimension_numbers = #tpu.dot_dimension_numbers<[1], [0], [0], [1], [0, 0, 1, 1], [], []>} : vector<8x128xbf16>, vector<128x512xbf16>, vector<8x512xf32> -> vector<8x512xf32>
    %961 = arith.addf %540, %960 : vector<8x512xf32>
    %962 = vector.extract_strided_slice %961 {offsets = [0, 0], sizes = [8, 128], strides = [1, 1]} : vector<8x512xf32> to vector<8x128xf32>
    %963 = arith.negf %962 : vector<8x128xf32>
    %964 = math.exp %963 : vector<8x128xf32>
    %cst_233 = arith.constant 1.000000e+00 : f32
    %965 = vector.broadcast %cst_233 : f32 to vector<8x128xf32>
    %966 = arith.addf %965, %964 : vector<8x128xf32>
    %967 = arith.divf %965, %966 : vector<8x128xf32>
    %968 = vector.extract_strided_slice %961 {offsets = [0, 256], sizes = [8, 128], strides = [1, 1]} : vector<8x512xf32> to vector<8x128xf32>
    %969 = math.tanh %968 : vector<8x128xf32>
    %970 = arith.mulf %967, %969 : vector<8x128xf32>
    %971 = vector.extract_strided_slice %961 {offsets = [0, 128], sizes = [8, 128], strides = [1, 1]} : vector<8x512xf32> to vector<8x128xf32>
    %972 = arith.negf %971 : vector<8x128xf32>
    %973 = math.exp %972 : vector<8x128xf32>
    %cst_234 = arith.constant 1.000000e+00 : f32
    %974 = vector.broadcast %cst_234 : f32 to vector<8x128xf32>
    %975 = arith.addf %974, %973 : vector<8x128xf32>
    %976 = arith.divf %974, %975 : vector<8x128xf32>
    %977 = arith.mulf %976, %946 : vector<8x128xf32>
    %978 = arith.addf %977, %970 : vector<8x128xf32>
    %979 = vector.extract_strided_slice %961 {offsets = [0, 384], sizes = [8, 128], strides = [1, 1]} : vector<8x512xf32> to vector<8x128xf32>
    %980 = arith.negf %979 : vector<8x128xf32>
    %981 = math.exp %980 : vector<8x128xf32>
    %cst_235 = arith.constant 1.000000e+00 : f32
    %982 = vector.broadcast %cst_235 : f32 to vector<8x128xf32>
    %983 = arith.addf %982, %981 : vector<8x128xf32>
    %984 = arith.divf %982, %983 : vector<8x128xf32>
    %985 = math.tanh %978 : vector<8x128xf32>
    %986 = arith.mulf %984, %985 : vector<8x128xf32>
    %987 = arith.truncf %986 : vector<8x128xf32> to vector<8x128xbf16>
    %988 = arith.index_cast %c13_i32_231 : i32 to index
    %c0_236 = arith.constant 0 : index
    %c0_237 = arith.constant 0 : index
    %989 = vector.load %arg16[%988, %c0_236, %c0_237] : memref<16x8x128xbf16, #tpu.memory_space<vmem>>, vector<1x8x128xbf16>
    %990 = vector.shape_cast %989 : vector<1x8x128xbf16> to vector<8x128xbf16>
    %991 = vector.shape_cast %987 : vector<8x128xbf16> to vector<1x8x128xbf16>
    tpu.vector_store %arg16[%988, %c0_236, %c0_237], %991 {strides = array<i32>} : memref<16x8x128xbf16, #tpu.memory_space<vmem>>, vector<1x8x128xbf16>,
    %c14_i32_238 = arith.constant 14 : i32
    %cst_239 = arith.constant dense<0.000000e+00> : vector<8x512xf32>
    %992 = tpu.matmul %987, %541, %cst_239 {dimension_numbers = #tpu.dot_dimension_numbers<[1], [0], [0], [1], [0, 0, 1, 1], [], []>} : vector<8x128xbf16>, vector<128x512xbf16>, vector<8x512xf32> -> vector<8x512xf32>
    %993 = arith.addf %540, %992 : vector<8x512xf32>
    %994 = vector.extract_strided_slice %993 {offsets = [0, 0], sizes = [8, 128], strides = [1, 1]} : vector<8x512xf32> to vector<8x128xf32>
    %995 = arith.negf %994 : vector<8x128xf32>
    %996 = math.exp %995 : vector<8x128xf32>
    %cst_240 = arith.constant 1.000000e+00 : f32
    %997 = vector.broadcast %cst_240 : f32 to vector<8x128xf32>
    %998 = arith.addf %997, %996 : vector<8x128xf32>
    %999 = arith.divf %997, %998 : vector<8x128xf32>
    %1000 = vector.extract_strided_slice %993 {offsets = [0, 256], sizes = [8, 128], strides = [1, 1]} : vector<8x512xf32> to vector<8x128xf32>
    %1001 = math.tanh %1000 : vector<8x128xf32>
    %1002 = arith.mulf %999, %1001 : vector<8x128xf32>
    %1003 = vector.extract_strided_slice %993 {offsets = [0, 128], sizes = [8, 128], strides = [1, 1]} : vector<8x512xf32> to vector<8x128xf32>
    %1004 = arith.negf %1003 : vector<8x128xf32>
    %1005 = math.exp %1004 : vector<8x128xf32>
    %cst_241 = arith.constant 1.000000e+00 : f32
    %1006 = vector.broadcast %cst_241 : f32 to vector<8x128xf32>
    %1007 = arith.addf %1006, %1005 : vector<8x128xf32>
    %1008 = arith.divf %1006, %1007 : vector<8x128xf32>
    %1009 = arith.mulf %1008, %978 : vector<8x128xf32>
    %1010 = arith.addf %1009, %1002 : vector<8x128xf32>
    %1011 = vector.extract_strided_slice %993 {offsets = [0, 384], sizes = [8, 128], strides = [1, 1]} : vector<8x512xf32> to vector<8x128xf32>
    %1012 = arith.negf %1011 : vector<8x128xf32>
    %1013 = math.exp %1012 : vector<8x128xf32>
    %cst_242 = arith.constant 1.000000e+00 : f32
    %1014 = vector.broadcast %cst_242 : f32 to vector<8x128xf32>
    %1015 = arith.addf %1014, %1013 : vector<8x128xf32>
    %1016 = arith.divf %1014, %1015 : vector<8x128xf32>
    %1017 = math.tanh %1010 : vector<8x128xf32>
    %1018 = arith.mulf %1016, %1017 : vector<8x128xf32>
    %1019 = arith.truncf %1018 : vector<8x128xf32> to vector<8x128xbf16>
    %1020 = arith.index_cast %c14_i32_238 : i32 to index
    %c0_243 = arith.constant 0 : index
    %c0_244 = arith.constant 0 : index
    %1021 = vector.load %arg16[%1020, %c0_243, %c0_244] : memref<16x8x128xbf16, #tpu.memory_space<vmem>>, vector<1x8x128xbf16>
    %1022 = vector.shape_cast %1021 : vector<1x8x128xbf16> to vector<8x128xbf16>
    %1023 = vector.shape_cast %1019 : vector<8x128xbf16> to vector<1x8x128xbf16>
    tpu.vector_store %arg16[%1020, %c0_243, %c0_244], %1023 {strides = array<i32>} : memref<16x8x128xbf16, #tpu.memory_space<vmem>>, vector<1x8x128xbf16>,
    %c15_i32_245 = arith.constant 15 : i32
    %cst_246 = arith.constant dense<0.000000e+00> : vector<8x512xf32>
    %1024 = tpu.matmul %1019, %541, %cst_246 {dimension_numbers = #tpu.dot_dimension_numbers<[1], [0], [0], [1], [0, 0, 1, 1], [], []>} : vector<8x128xbf16>, vector<128x512xbf16>, vector<8x512xf32> -> vector<8x512xf32>
    %1025 = arith.addf %540, %1024 : vector<8x512xf32>
    %1026 = vector.extract_strided_slice %1025 {offsets = [0, 0], sizes = [8, 128], strides = [1, 1]} : vector<8x512xf32> to vector<8x128xf32>
    %1027 = arith.negf %1026 : vector<8x128xf32>
    %1028 = math.exp %1027 : vector<8x128xf32>
    %cst_247 = arith.constant 1.000000e+00 : f32
    %1029 = vector.broadcast %cst_247 : f32 to vector<8x128xf32>
    %1030 = arith.addf %1029, %1028 : vector<8x128xf32>
    %1031 = arith.divf %1029, %1030 : vector<8x128xf32>
    %1032 = vector.extract_strided_slice %1025 {offsets = [0, 256], sizes = [8, 128], strides = [1, 1]} : vector<8x512xf32> to vector<8x128xf32>
    %1033 = math.tanh %1032 : vector<8x128xf32>
    %1034 = arith.mulf %1031, %1033 : vector<8x128xf32>
    %1035 = vector.extract_strided_slice %1025 {offsets = [0, 128], sizes = [8, 128], strides = [1, 1]} : vector<8x512xf32> to vector<8x128xf32>
    %1036 = arith.negf %1035 : vector<8x128xf32>
    %1037 = math.exp %1036 : vector<8x128xf32>
    %cst_248 = arith.constant 1.000000e+00 : f32
    %1038 = vector.broadcast %cst_248 : f32 to vector<8x128xf32>
    %1039 = arith.addf %1038, %1037 : vector<8x128xf32>
    %1040 = arith.divf %1038, %1039 : vector<8x128xf32>
    %1041 = arith.mulf %1040, %1010 : vector<8x128xf32>
    %1042 = arith.addf %1041, %1034 : vector<8x128xf32>
    %1043 = vector.extract_strided_slice %1025 {offsets = [0, 384], sizes = [8, 128], strides = [1, 1]} : vector<8x512xf32> to vector<8x128xf32>
    %1044 = arith.negf %1043 : vector<8x128xf32>
    %1045 = math.exp %1044 : vector<8x128xf32>
    %cst_249 = arith.constant 1.000000e+00 : f32
    %1046 = vector.broadcast %cst_249 : f32 to vector<8x128xf32>
    %1047 = arith.addf %1046, %1045 : vector<8x128xf32>
    %1048 = arith.divf %1046, %1047 : vector<8x128xf32>
    %1049 = math.tanh %1042 : vector<8x128xf32>
    %1050 = arith.mulf %1048, %1049 : vector<8x128xf32>
    %1051 = arith.truncf %1050 : vector<8x128xf32> to vector<8x128xbf16>
    %1052 = arith.index_cast %c15_i32_245 : i32 to index
    %c0_250 = arith.constant 0 : index
    %c0_251 = arith.constant 0 : index
    %1053 = vector.load %arg16[%1052, %c0_250, %c0_251] : memref<16x8x128xbf16, #tpu.memory_space<vmem>>, vector<1x8x128xbf16>
    %1054 = vector.shape_cast %1053 : vector<1x8x128xbf16> to vector<8x128xbf16>
    %1055 = vector.shape_cast %1051 : vector<8x128xbf16> to vector<1x8x128xbf16>
    tpu.vector_store %arg16[%1052, %c0_250, %c0_251], %1055 {strides = array<i32>} : memref<16x8x128xbf16, #tpu.memory_space<vmem>>, vector<1x8x128xbf16>,
    %c16_i32_252 = arith.constant 16 : i32
    %c0_253 = arith.constant 0 : index
    %c0_254 = arith.constant 0 : index
    %c0_255 = arith.constant 0 : index
    %1056 = vector.load %arg16[%c0_253, %c0_254, %c0_255] : memref<16x8x128xbf16, #tpu.memory_space<vmem>>, vector<16x8x128xbf16>
    %1057 = vector.shape_cast %1056 : vector<16x8x128xbf16> to vector<128x128xbf16>
    %c0_256 = arith.constant 0 : index
    %c0_257 = arith.constant 0 : index
    %1058 = vector.load %arg12[%c0_256, %c0_257] : memref<128x128xbf16, #tpu.memory_space<vmem>>, vector<128x128xbf16>
    %cst_258 = arith.constant dense<0.000000e+00> : vector<128x128xf32>
    %1059 = tpu.matmul %1057, %1058, %cst_258 {dimension_numbers = #tpu.dot_dimension_numbers<[1], [0], [0], [1], [0, 0, 1, 1], [], []>} : vector<128x128xbf16>, vector<128x128xbf16>, vector<128x128xf32> -> vector<128x128xf32>
    %c0_259 = arith.constant 0 : index
    %c0_260 = arith.constant 0 : index
    %1060 = vector.load %arg13[%c0_259, %c0_260] : memref<1x128xf32, #tpu.memory_space<vmem>>, vector<1x128xf32>
    %1061 = vector.broadcast %1060 : vector<1x128xf32> to vector<128x128xf32>
    %1062 = arith.addf %1059, %1061 : vector<128x128xf32>
    %1063 = arith.negf %1062 : vector<128x128xf32>
    %1064 = math.exp %1063 : vector<128x128xf32>
    %cst_261 = arith.constant 1.000000e+00 : f32
    %1065 = vector.broadcast %cst_261 : f32 to vector<128x128xf32>
    %1066 = arith.addf %1065, %1064 : vector<128x128xf32>
    %1067 = arith.divf %1065, %1066 : vector<128x128xf32>
    %1068 = vector.shape_cast %1067 : vector<128x128xf32> to vector<16x8x128xf32>
    %1069 = vector.extract_strided_slice %1068 {offsets = [0, 0, 0], sizes = [1, 8, 128], strides = [1, 1, 1]} : vector<16x8x128xf32> to vector<1x8x128xf32>
    %1070 = vector.shape_cast %1069 : vector<1x8x128xf32> to vector<8x128xf32>
    %c0_262 = arith.constant 0 : index
    %c0_263 = arith.constant 0 : index
    %1071 = vector.load %arg14[%c0_262, %c0_263] : memref<8x2048xf32, #tpu.memory_space<vmem>>, vector<8x128xf32>
    tpu.vector_store %arg14[%c0_262, %c0_263], %1070 {strides = array<i32>} : memref<8x2048xf32, #tpu.memory_space<vmem>>, vector<8x128xf32>,
    %1072 = vector.extract_strided_slice %1068 {offsets = [1, 0, 0], sizes = [1, 8, 128], strides = [1, 1, 1]} : vector<16x8x128xf32> to vector<1x8x128xf32>
    %1073 = vector.shape_cast %1072 : vector<1x8x128xf32> to vector<8x128xf32>
    %c0_264 = arith.constant 0 : index
    %c128_265 = arith.constant 128 : index
    %1074 = vector.load %arg14[%c0_264, %c128_265] : memref<8x2048xf32, #tpu.memory_space<vmem>>, vector<8x128xf32>
    tpu.vector_store %arg14[%c0_264, %c128_265], %1073 {strides = array<i32>} : memref<8x2048xf32, #tpu.memory_space<vmem>>, vector<8x128xf32>,
    %1075 = vector.extract_strided_slice %1068 {offsets = [2, 0, 0], sizes = [1, 8, 128], strides = [1, 1, 1]} : vector<16x8x128xf32> to vector<1x8x128xf32>
    %1076 = vector.shape_cast %1075 : vector<1x8x128xf32> to vector<8x128xf32>
    %c0_266 = arith.constant 0 : index
    %c256_267 = arith.constant 256 : index
    %1077 = vector.load %arg14[%c0_266, %c256_267] : memref<8x2048xf32, #tpu.memory_space<vmem>>, vector<8x128xf32>
    tpu.vector_store %arg14[%c0_266, %c256_267], %1076 {strides = array<i32>} : memref<8x2048xf32, #tpu.memory_space<vmem>>, vector<8x128xf32>,
    %1078 = vector.extract_strided_slice %1068 {offsets = [3, 0, 0], sizes = [1, 8, 128], strides = [1, 1, 1]} : vector<16x8x128xf32> to vector<1x8x128xf32>
    %1079 = vector.shape_cast %1078 : vector<1x8x128xf32> to vector<8x128xf32>
    %c0_268 = arith.constant 0 : index
    %c384_269 = arith.constant 384 : index
    %1080 = vector.load %arg14[%c0_268, %c384_269] : memref<8x2048xf32, #tpu.memory_space<vmem>>, vector<8x128xf32>
    tpu.vector_store %arg14[%c0_268, %c384_269], %1079 {strides = array<i32>} : memref<8x2048xf32, #tpu.memory_space<vmem>>, vector<8x128xf32>,
    %1081 = vector.extract_strided_slice %1068 {offsets = [4, 0, 0], sizes = [1, 8, 128], strides = [1, 1, 1]} : vector<16x8x128xf32> to vector<1x8x128xf32>
    %1082 = vector.shape_cast %1081 : vector<1x8x128xf32> to vector<8x128xf32>
    %c0_270 = arith.constant 0 : index
    %c512_271 = arith.constant 512 : index
    %1083 = vector.load %arg14[%c0_270, %c512_271] : memref<8x2048xf32, #tpu.memory_space<vmem>>, vector<8x128xf32>
    tpu.vector_store %arg14[%c0_270, %c512_271], %1082 {strides = array<i32>} : memref<8x2048xf32, #tpu.memory_space<vmem>>, vector<8x128xf32>,
    %1084 = vector.extract_strided_slice %1068 {offsets = [5, 0, 0], sizes = [1, 8, 128], strides = [1, 1, 1]} : vector<16x8x128xf32> to vector<1x8x128xf32>
    %1085 = vector.shape_cast %1084 : vector<1x8x128xf32> to vector<8x128xf32>
    %c0_272 = arith.constant 0 : index
    %c640_273 = arith.constant 640 : index
    %1086 = vector.load %arg14[%c0_272, %c640_273] : memref<8x2048xf32, #tpu.memory_space<vmem>>, vector<8x128xf32>
    tpu.vector_store %arg14[%c0_272, %c640_273], %1085 {strides = array<i32>} : memref<8x2048xf32, #tpu.memory_space<vmem>>, vector<8x128xf32>,
    %1087 = vector.extract_strided_slice %1068 {offsets = [6, 0, 0], sizes = [1, 8, 128], strides = [1, 1, 1]} : vector<16x8x128xf32> to vector<1x8x128xf32>
    %1088 = vector.shape_cast %1087 : vector<1x8x128xf32> to vector<8x128xf32>
    %c0_274 = arith.constant 0 : index
    %c768_275 = arith.constant 768 : index
    %1089 = vector.load %arg14[%c0_274, %c768_275] : memref<8x2048xf32, #tpu.memory_space<vmem>>, vector<8x128xf32>
    tpu.vector_store %arg14[%c0_274, %c768_275], %1088 {strides = array<i32>} : memref<8x2048xf32, #tpu.memory_space<vmem>>, vector<8x128xf32>,
    %1090 = vector.extract_strided_slice %1068 {offsets = [7, 0, 0], sizes = [1, 8, 128], strides = [1, 1, 1]} : vector<16x8x128xf32> to vector<1x8x128xf32>
    %1091 = vector.shape_cast %1090 : vector<1x8x128xf32> to vector<8x128xf32>
    %c0_276 = arith.constant 0 : index
    %c896_277 = arith.constant 896 : index
    %1092 = vector.load %arg14[%c0_276, %c896_277] : memref<8x2048xf32, #tpu.memory_space<vmem>>, vector<8x128xf32>
    tpu.vector_store %arg14[%c0_276, %c896_277], %1091 {strides = array<i32>} : memref<8x2048xf32, #tpu.memory_space<vmem>>, vector<8x128xf32>,
    %1093 = vector.extract_strided_slice %1068 {offsets = [8, 0, 0], sizes = [1, 8, 128], strides = [1, 1, 1]} : vector<16x8x128xf32> to vector<1x8x128xf32>
    %1094 = vector.shape_cast %1093 : vector<1x8x128xf32> to vector<8x128xf32>
    %c0_278 = arith.constant 0 : index
    %c1024_279 = arith.constant 1024 : index
    %1095 = vector.load %arg14[%c0_278, %c1024_279] : memref<8x2048xf32, #tpu.memory_space<vmem>>, vector<8x128xf32>
    tpu.vector_store %arg14[%c0_278, %c1024_279], %1094 {strides = array<i32>} : memref<8x2048xf32, #tpu.memory_space<vmem>>, vector<8x128xf32>,
    %1096 = vector.extract_strided_slice %1068 {offsets = [9, 0, 0], sizes = [1, 8, 128], strides = [1, 1, 1]} : vector<16x8x128xf32> to vector<1x8x128xf32>
    %1097 = vector.shape_cast %1096 : vector<1x8x128xf32> to vector<8x128xf32>
    %c0_280 = arith.constant 0 : index
    %c1152_281 = arith.constant 1152 : index
    %1098 = vector.load %arg14[%c0_280, %c1152_281] : memref<8x2048xf32, #tpu.memory_space<vmem>>, vector<8x128xf32>
    tpu.vector_store %arg14[%c0_280, %c1152_281], %1097 {strides = array<i32>} : memref<8x2048xf32, #tpu.memory_space<vmem>>, vector<8x128xf32>,
    %1099 = vector.extract_strided_slice %1068 {offsets = [10, 0, 0], sizes = [1, 8, 128], strides = [1, 1, 1]} : vector<16x8x128xf32> to vector<1x8x128xf32>
    %1100 = vector.shape_cast %1099 : vector<1x8x128xf32> to vector<8x128xf32>
    %c0_282 = arith.constant 0 : index
    %c1280_283 = arith.constant 1280 : index
    %1101 = vector.load %arg14[%c0_282, %c1280_283] : memref<8x2048xf32, #tpu.memory_space<vmem>>, vector<8x128xf32>
    tpu.vector_store %arg14[%c0_282, %c1280_283], %1100 {strides = array<i32>} : memref<8x2048xf32, #tpu.memory_space<vmem>>, vector<8x128xf32>,
    %1102 = vector.extract_strided_slice %1068 {offsets = [11, 0, 0], sizes = [1, 8, 128], strides = [1, 1, 1]} : vector<16x8x128xf32> to vector<1x8x128xf32>
    %1103 = vector.shape_cast %1102 : vector<1x8x128xf32> to vector<8x128xf32>
    %c0_284 = arith.constant 0 : index
    %c1408_285 = arith.constant 1408 : index
    %1104 = vector.load %arg14[%c0_284, %c1408_285] : memref<8x2048xf32, #tpu.memory_space<vmem>>, vector<8x128xf32>
    tpu.vector_store %arg14[%c0_284, %c1408_285], %1103 {strides = array<i32>} : memref<8x2048xf32, #tpu.memory_space<vmem>>, vector<8x128xf32>,
    %1105 = vector.extract_strided_slice %1068 {offsets = [12, 0, 0], sizes = [1, 8, 128], strides = [1, 1, 1]} : vector<16x8x128xf32> to vector<1x8x128xf32>
    %1106 = vector.shape_cast %1105 : vector<1x8x128xf32> to vector<8x128xf32>
    %c0_286 = arith.constant 0 : index
    %c1536_287 = arith.constant 1536 : index
    %1107 = vector.load %arg14[%c0_286, %c1536_287] : memref<8x2048xf32, #tpu.memory_space<vmem>>, vector<8x128xf32>
    tpu.vector_store %arg14[%c0_286, %c1536_287], %1106 {strides = array<i32>} : memref<8x2048xf32, #tpu.memory_space<vmem>>, vector<8x128xf32>,
    %1108 = vector.extract_strided_slice %1068 {offsets = [13, 0, 0], sizes = [1, 8, 128], strides = [1, 1, 1]} : vector<16x8x128xf32> to vector<1x8x128xf32>
    %1109 = vector.shape_cast %1108 : vector<1x8x128xf32> to vector<8x128xf32>
    %c0_288 = arith.constant 0 : index
    %c1664_289 = arith.constant 1664 : index
    %1110 = vector.load %arg14[%c0_288, %c1664_289] : memref<8x2048xf32, #tpu.memory_space<vmem>>, vector<8x128xf32>
    tpu.vector_store %arg14[%c0_288, %c1664_289], %1109 {strides = array<i32>} : memref<8x2048xf32, #tpu.memory_space<vmem>>, vector<8x128xf32>,
    %1111 = vector.extract_strided_slice %1068 {offsets = [14, 0, 0], sizes = [1, 8, 128], strides = [1, 1, 1]} : vector<16x8x128xf32> to vector<1x8x128xf32>
    %1112 = vector.shape_cast %1111 : vector<1x8x128xf32> to vector<8x128xf32>
    %c0_290 = arith.constant 0 : index
    %c1792_291 = arith.constant 1792 : index
    %1113 = vector.load %arg14[%c0_290, %c1792_291] : memref<8x2048xf32, #tpu.memory_space<vmem>>, vector<8x128xf32>
    tpu.vector_store %arg14[%c0_290, %c1792_291], %1112 {strides = array<i32>} : memref<8x2048xf32, #tpu.memory_space<vmem>>, vector<8x128xf32>,
    %1114 = vector.extract_strided_slice %1068 {offsets = [15, 0, 0], sizes = [1, 8, 128], strides = [1, 1, 1]} : vector<16x8x128xf32> to vector<1x8x128xf32>
    %1115 = vector.shape_cast %1114 : vector<1x8x128xf32> to vector<8x128xf32>
    %c0_292 = arith.constant 0 : index
    %c1920_293 = arith.constant 1920 : index
    %1116 = vector.load %arg14[%c0_292, %c1920_293] : memref<8x2048xf32, #tpu.memory_space<vmem>>, vector<8x128xf32>
    tpu.vector_store %arg14[%c0_292, %c1920_293], %1115 {strides = array<i32>} : memref<8x2048xf32, #tpu.memory_space<vmem>>, vector<8x128xf32>,
    return
  }
  func.func @transform_0(%arg0: i32) -> (i32, i32) {
    %c0_i32 = arith.constant 0 : i32
    %c0_i32_0 = arith.constant 0 : i32
    return %arg0, %c0_i32 : i32, i32
  }
  func.func @transform_1(%arg0: i32) -> (i32, i32) {
    %c0_i32 = arith.constant 0 : i32
    %c0_i32_0 = arith.constant 0 : i32
    %c0_i32_1 = arith.constant 0 : i32
    return %c0_i32, %c0_i32_0 : i32, i32
  }
  func.func @transform_2(%arg0: i32) -> (i32, i32) {
    %c0_i32 = arith.constant 0 : i32
    %c0_i32_0 = arith.constant 0 : i32
    %c0_i32_1 = arith.constant 0 : i32
    return %c0_i32, %c0_i32_0 : i32, i32
  }
  func.func @transform_3(%arg0: i32) -> (i32, i32) {
    %c0_i32 = arith.constant 0 : i32
    %c0_i32_0 = arith.constant 0 : i32
    %c0_i32_1 = arith.constant 0 : i32
    return %c0_i32, %c0_i32_0 : i32, i32
  }
  func.func @transform_4(%arg0: i32) -> (i32, i32) {
    %c0_i32 = arith.constant 0 : i32
    %c0_i32_0 = arith.constant 0 : i32
    return %arg0, %c0_i32 : i32, i32
  }
  func.func @transform_5(%arg0: i32) -> (i32, i32) {
    %c0_i32 = arith.constant 0 : i32
    %c0_i32_0 = arith.constant 0 : i32
    return %arg0, %c0_i32 : i32, i32
  }
  func.func @transform_6(%arg0: i32) -> (i32, i32) {
    %c0_i32 = arith.constant 0 : i32
    %c0_i32_0 = arith.constant 0 : i32
    %c0_i32_1 = arith.constant 0 : i32
    return %c0_i32, %c0_i32_0 : i32, i32
  }
  func.func @transform_7(%arg0: i32) -> (i32, i32) {
    %c0_i32 = arith.constant 0 : i32
    %c0_i32_0 = arith.constant 0 : i32
    %c0_i32_1 = arith.constant 0 : i32
    return %c0_i32, %c0_i32_0 : i32, i32
  }
  func.func @transform_8(%arg0: i32) -> (i32, i32) {
    %c0_i32 = arith.constant 0 : i32
    %c0_i32_0 = arith.constant 0 : i32
    %c0_i32_1 = arith.constant 0 : i32
    return %c0_i32, %c0_i32_0 : i32, i32
  }
  func.func @transform_9(%arg0: i32) -> (i32, i32) {
    %c0_i32 = arith.constant 0 : i32
    %c0_i32_0 = arith.constant 0 : i32
    %c0_i32_1 = arith.constant 0 : i32
    return %c0_i32, %c0_i32_0 : i32, i32
  }
  func.func @transform_10(%arg0: i32) -> (i32, i32) {
    %c0_i32 = arith.constant 0 : i32
    %c0_i32_0 = arith.constant 0 : i32
    %c0_i32_1 = arith.constant 0 : i32
    return %c0_i32, %c0_i32_0 : i32, i32
  }
  func.func @transform_11(%arg0: i32) -> (i32, i32) {
    %c0_i32 = arith.constant 0 : i32
    %c0_i32_0 = arith.constant 0 : i32
    %c0_i32_1 = arith.constant 0 : i32
    return %c0_i32, %c0_i32_0 : i32, i32
  }
  func.func @transform_12(%arg0: i32) -> (i32, i32) {
    %c0_i32 = arith.constant 0 : i32
    %c0_i32_0 = arith.constant 0 : i32
    %c0_i32_1 = arith.constant 0 : i32
    return %c0_i32, %c0_i32_0 : i32, i32
  }
  func.func @transform_13(%arg0: i32) -> (i32, i32) {
    %c0_i32 = arith.constant 0 : i32
    %c0_i32_0 = arith.constant 0 : i32
    return %arg0, %c0_i32 : i32, i32
  }
}

</mosaic_0001>

<llo_original>
// kernel: tpu_custom_call.1
$region0: #{tpu_custom_call.1}
  #allocation0 [shape = 'u32[]', space=smem, size = 0x4, offset = 0x4, fixed_abs, tag = 'smem constant byte address 0x4 - core index']
  #allocation1 [shape = 'u32[144,128]{1,0:T(1,128)}', space=vmem, size = 0x12000, scoped, tag = 'internal scratch']
  #allocation2 [shape = 'f32[16,8,512]{2,1,0:T(8,128)}', space=vmem, size = 0x40000, scoped, tag = 'scratch operand']
  #allocation3 [shape = 'bf16[16,8,128]{2,1,0:T(8,128)(2,1)}', space=vmem, size = 0x8000, scoped, tag = 'scratch operand']
  %s0 = inlined_call_operand.hbm [shape: f32[8,2048], index: 0, kind: input, shape index: {}]
  %s1 = inlined_call_operand.hbm [shape: bf16[128,512], index: 1, kind: input, shape index: {}]
  %s2 = inlined_call_operand.hbm [shape: bf16[128,512], index: 2, kind: input, shape index: {}]
  %s3 = inlined_call_operand.hbm [shape: f32[1,512], index: 3, kind: input, shape index: {}]
  %s4 = inlined_call_operand.vmem [shape: f32[8,128], index: 4, kind: input, shape index: {}]
  %s5 = inlined_call_operand.vmem [shape: f32[8,128], index: 5, kind: input, shape index: {}]
  %s6 = inlined_call_operand.hbm [shape: bf16[128,128], index: 6, kind: input, shape index: {}]
  %s7 = inlined_call_operand.vmem [shape: f32[1,128], index: 7, kind: input, shape index: {}]
  %s8 = inlined_call_operand.hbm [shape: bf16[128,512], index: 8, kind: input, shape index: {}]
  %s9 = inlined_call_operand.hbm [shape: bf16[128,512], index: 9, kind: input, shape index: {}]
  %s10 = inlined_call_operand.vmem [shape: f32[1,512], index: 10, kind: input, shape index: {}]
  %s11 = inlined_call_operand.hbm [shape: bf16[128,128], index: 11, kind: input, shape index: {}]
  %s12 = inlined_call_operand.vmem [shape: f32[1,128], index: 12, kind: input, shape index: {}]
  %s13 = inlined_call_operand.hbm [shape: f32[8,2048], index: 13, kind: output, shape index: {}]
  %s14 = sld [smem:[#allocation0]]
  $region94: #{tpu_custom_call.1} parent=0
    _
  %s16 = ssub.s32 1, %s14
  %s17 = scalar_select 0, %s16, %s14
  $region1: #{tpu_custom_call.1} parent=0
    #allocation4 [shape = 'u8[65536]{0}', space=vmem, size = 0x10000, scoped, tag = 'input window, operand 0, single buffered']
    #allocation5 [shape = 's32[1]{0}', space=sflag, size = 0x4, scoped, tag = 'scoped memory for tpu_custom_call.1']
    #allocation6 [shape = 's32[1]{0}', space=sflag, size = 0x4, scoped, tag = 'scoped memory for tpu_custom_call.1']
    #allocation7 [shape = 'u8[131072]{0}', space=vmem, size = 0x20000, scoped, tag = 'input window, operand 1, single buffered']
    #allocation8 [shape = 's32[1]{0}', space=sflag, size = 0x4, scoped, tag = 'scoped memory for tpu_custom_call.1']
    #allocation9 [shape = 'u8[131072]{0}', space=vmem, size = 0x20000, scoped, tag = 'input window, operand 2, single buffered']
    #allocation10 [shape = 'u8[2048]{0}', space=vmem, size = 0x800, scoped, tag = 'input window, operand 3, single buffered']
    #allocation11 [shape = 's32[1]{0}', space=sflag, size = 0x4, scoped, tag = 'scoped memory for tpu_custom_call.1']
    #allocation12 [shape = 'u8[32768]{0}', space=vmem, size = 0x8000, scoped, tag = 'input window, operand 6, single buffered']
    #allocation13 [shape = 'u8[131072]{0}', space=vmem, size = 0x20000, scoped, tag = 'input window, operand 8, single buffered']
    #allocation14 [shape = 's32[1]{0}', space=sflag, size = 0x4, scoped, tag = 'scoped memory for tpu_custom_call.1']
    #allocation15 [shape = 'u8[131072]{0}', space=vmem, size = 0x20000, scoped, tag = 'input window, operand 9, single buffered']
    #allocation16 [shape = 'u8[32768]{0}', space=vmem, size = 0x8000, scoped, tag = 'input window, operand 11, single buffered']
    #allocation17 [shape = 's32[1]{0}', space=sflag, size = 0x4, scoped, tag = 'scoped memory for tpu_custom_call.1']
    #allocation18 [shape = 'u8[65536]{0}', space=vmem, size = 0x10000, scoped, tag = 'output window, operand 0, single buffered']
    %18 = vsyncpa [#allocation5], 0
    %19 = vsyncpa [#allocation8], 0
    %20 = vsyncpa [#allocation11], 0
    %21 = vsyncpa [#allocation14], 0
    %22 = vsyncpa [#allocation17], 0
    %23 = vsyncpa [#allocation6], 0
    // Predicated region
    $region2: #{tpu_custom_call.1} parent=1 // pred_check
      _
    $region3: #{tpu_custom_call.1} parent=1 // pred_check_branch
      %25 = sbr.rel (0) target = $region5
    $region4: #{tpu_custom_call.1} parent=1 // pred_region
      %s27 = ssub.s32 2048, 2048
      %28 = vsyncadd [#allocation5], %s27
      %s30 = sshll.u32 [#allocation4], 4
      %s31 = int_to_ptr.vmem [resolvable:$true] %s30
      %33 = dma.hbm_to_vmem [thread:$0]  %s0, 2048, %s31, [#allocation5]
    $region5: #{tpu_custom_call.1} parent=1 // pred_fallthru
      _
    // Predicated region
    $region6: #{tpu_custom_call.1} parent=1 // pred_check
      _
    $region7: #{tpu_custom_call.1} parent=1 // pred_check_branch
      %35 = sbr.rel (0) target = $region9
    $region8: #{tpu_custom_call.1} parent=1 // pred_region
      %s37 = ssub.s32 4096, 4096
      %38 = vsyncadd [#allocation8], %s37
      %s39 = sshll.u32 [#allocation7], 4
      %s40 = int_to_ptr.vmem [resolvable:$true] %s39
      %45 = dma.hbm_to_vmem [thread:$0]  %s1, 4096, %s40, [#allocation8], 256, 256, 16
    $region9: #{tpu_custom_call.1} parent=1 // pred_fallthru
      _
    // Predicated region
    $region10: #{tpu_custom_call.1} parent=1 // pred_check
      _
    $region11: #{tpu_custom_call.1} parent=1 // pred_check_branch
      %47 = sbr.rel (0) target = $region13
    $region12: #{tpu_custom_call.1} parent=1 // pred_region
      %s49 = ssub.s32 4096, 4096
      %50 = vsyncadd [#allocation8], %s49
      %s51 = sshll.u32 [#allocation9], 4
      %s52 = int_to_ptr.vmem [resolvable:$true] %s51
      %57 = dma.hbm_to_vmem [thread:$0]  %s2, 4096, %s52, [#allocation8], 256, 256, 16
    $region13: #{tpu_custom_call.1} parent=1 // pred_fallthru
      _
    // Predicated region
    $region14: #{tpu_custom_call.1} parent=1 // pred_check
      _
    $region15: #{tpu_custom_call.1} parent=1 // pred_check_branch
      %59 = sbr.rel (0) target = $region17
    $region16: #{tpu_custom_call.1} parent=1 // pred_region
      %s61 = ssub.s32 64, 64
      %62 = vsyncadd [#allocation11], %s61
      %s64 = sshll.u32 [#allocation10], 4
      %s65 = int_to_ptr.vmem [resolvable:$true] %s64
      %67 = dma.hbm_to_vmem [thread:$0]  %s3, 64, %s65, [#allocation11]
    $region17: #{tpu_custom_call.1} parent=1 // pred_fallthru
      _
    // Predicated region
    $region18: #{tpu_custom_call.1} parent=1 // pred_check
      _
    $region19: #{tpu_custom_call.1} parent=1 // pred_check_branch
      %69 = sbr.rel (0) target = $region21
    $region20: #{tpu_custom_call.1} parent=1 // pred_region
      _
    $region21: #{tpu_custom_call.1} parent=1 // pred_fallthru
      _
    // Predicated region
    $region22: #{tpu_custom_call.1} parent=1 // pred_check
      _
    $region23: #{tpu_custom_call.1} parent=1 // pred_check_branch
      %71 = sbr.rel (0) target = $region25
    $region24: #{tpu_custom_call.1} parent=1 // pred_region
      _
    $region25: #{tpu_custom_call.1} parent=1 // pred_fallthru
      _
    // Predicated region
    $region26: #{tpu_custom_call.1} parent=1 // pred_check
      _
    $region27: #{tpu_custom_call.1} parent=1 // pred_check_branch
      %73 = sbr.rel (0) target = $region29
    $region28: #{tpu_custom_call.1} parent=1 // pred_region
      %s75 = ssub.s32 1024, 1024
      %76 = vsyncadd [#allocation11], %s75
      %s77 = sshll.u32 [#allocation12], 4
      %s78 = int_to_ptr.vmem [resolvable:$true] %s77
      %83 = dma.hbm_to_vmem [thread:$0]  %s6, 1024, %s78, [#allocation11], 64, 64, 4
    $region29: #{tpu_custom_call.1} parent=1 // pred_fallthru
      _
    // Predicated region
    $region30: #{tpu_custom_call.1} parent=1 // pred_check
      _
    $region31: #{tpu_custom_call.1} parent=1 // pred_check_branch
      %85 = sbr.rel (0) target = $region33
    $region32: #{tpu_custom_call.1} parent=1 // pred_region
      _
    $region33: #{tpu_custom_call.1} parent=1 // pred_fallthru
      _
    // Predicated region
    $region34: #{tpu_custom_call.1} parent=1 // pred_check
      _
    $region35: #{tpu_custom_call.1} parent=1 // pred_check_branch
      %87 = sbr.rel (0) target = $region37
    $region36: #{tpu_custom_call.1} parent=1 // pred_region
      %s89 = ssub.s32 4096, 4096
      %90 = vsyncadd [#allocation14], %s89
      %s91 = sshll.u32 [#allocation13], 4
      %s92 = int_to_ptr.vmem [resolvable:$true] %s91
      %97 = dma.hbm_to_vmem [thread:$0]  %s8, 4096, %s92, [#allocation14], 256, 256, 16
    $region37: #{tpu_custom_call.1} parent=1 // pred_fallthru
      _
    // Predicated region
    $region38: #{tpu_custom_call.1} parent=1 // pred_check
      _
    $region39: #{tpu_custom_call.1} parent=1 // pred_check_branch
      %99 = sbr.rel (0) target = $region41
    $region40: #{tpu_custom_call.1} parent=1 // pred_region
      %s101 = ssub.s32 4096, 4096
      %102 = vsyncadd [#allocation14], %s101
      %s103 = sshll.u32 [#allocation15], 4
      %s104 = int_to_ptr.vmem [resolvable:$true] %s103
      %109 = dma.hbm_to_vmem [thread:$0]  %s9, 4096, %s104, [#allocation14], 256, 256, 16
    $region41: #{tpu_custom_call.1} parent=1 // pred_fallthru
      _
    // Predicated region
    $region42: #{tpu_custom_call.1} parent=1 // pred_check
      _
    $region43: #{tpu_custom_call.1} parent=1 // pred_check_branch
      %111 = sbr.rel (0) target = $region45
    $region44: #{tpu_custom_call.1} parent=1 // pred_region
      _
    $region45: #{tpu_custom_call.1} parent=1 // pred_fallthru
      _
    // Predicated region
    $region46: #{tpu_custom_call.1} parent=1 // pred_check
      _
    $region47: #{tpu_custom_call.1} parent=1 // pred_check_branch
      %113 = sbr.rel (0) target = $region49
    $region48: #{tpu_custom_call.1} parent=1 // pred_region
      %s115 = ssub.s32 1024, 1024
      %116 = vsyncadd [#allocation17], %s115
      %s117 = sshll.u32 [#allocation16], 4
      %s118 = int_to_ptr.vmem [resolvable:$true] %s117
      %123 = dma.hbm_to_vmem [thread:$0]  %s11, 1024, %s118, [#allocation17], 64, 64, 4
    $region49: #{tpu_custom_call.1} parent=1 // pred_fallthru
      _
    // Predicated region
    $region50: #{tpu_custom_call.1} parent=1 // pred_check
      _
    $region51: #{tpu_custom_call.1} parent=1 // pred_check_branch
      %125 = sbr.rel (0) target = $region53
    $region52: #{tpu_custom_call.1} parent=1 // pred_region
      _
    $region53: #{tpu_custom_call.1} parent=1 // pred_fallthru
      _
    // Predicated region
    $region54: #{tpu_custom_call.1} parent=1 // pred_check
      _
    $region55: #{tpu_custom_call.1} parent=1 // pred_check_branch
      %127 = sbr.rel (0) target = $region57
    $region56: #{tpu_custom_call.1} parent=1 // pred_region
      %128 = dma.done [#allocation5], 2048
    $region57: #{tpu_custom_call.1} parent=1 // pred_fallthru
      _
    // Predicated region
    $region58: #{tpu_custom_call.1} parent=1 // pred_check
      _
    $region59: #{tpu_custom_call.1} parent=1 // pred_check_branch
      %130 = sbr.rel (0) target = $region61
    $region60: #{tpu_custom_call.1} parent=1 // pred_region
      %131 = dma.done [#allocation8], 4096
    $region61: #{tpu_custom_call.1} parent=1 // pred_fallthru
      _
    // Predicated region
    $region62: #{tpu_custom_call.1} parent=1 // pred_check
      _
    $region63: #{tpu_custom_call.1} parent=1 // pred_check_branch
      %133 = sbr.rel (0) target = $region65
    $region64: #{tpu_custom_call.1} parent=1 // pred_region
      %134 = dma.done [#allocation8], 4096
    $region65: #{tpu_custom_call.1} parent=1 // pred_fallthru
      _
    // Predicated region
    $region66: #{tpu_custom_call.1} parent=1 // pred_check
      _
    $region67: #{tpu_custom_call.1} parent=1 // pred_check_branch
      %136 = sbr.rel (0) target = $region69
    $region68: #{tpu_custom_call.1} parent=1 // pred_region
      %137 = dma.done [#allocation11], 64
    $region69: #{tpu_custom_call.1} parent=1 // pred_fallthru
      _
    // Predicated region
    $region70: #{tpu_custom_call.1} parent=1 // pred_check
      _
    $region71: #{tpu_custom_call.1} parent=1 // pred_check_branch
      %139 = sbr.rel (0) target = $region73
    $region72: #{tpu_custom_call.1} parent=1 // pred_region
      %140 = dma.done [#allocation11], 1024
    $region73: #{tpu_custom_call.1} parent=1 // pred_fallthru
      _
    // Predicated region
    $region74: #{tpu_custom_call.1} parent=1 // pred_check
      _
    $region75: #{tpu_custom_call.1} parent=1 // pred_check_branch
      %142 = sbr.rel (0) target = $region77
    $region76: #{tpu_custom_call.1} parent=1 // pred_region
      %143 = dma.done [#allocation14], 4096
    $region77: #{tpu_custom_call.1} parent=1 // pred_fallthru
      _
    // Predicated region
    $region78: #{tpu_custom_call.1} parent=1 // pred_check
      _
    $region79: #{tpu_custom_call.1} parent=1 // pred_check_branch
      %145 = sbr.rel (0) target = $region81
    $region80: #{tpu_custom_call.1} parent=1 // pred_region
      %146 = dma.done [#allocation14], 4096
    $region81: #{tpu_custom_call.1} parent=1 // pred_fallthru
      _
    // Predicated region
    $region82: #{tpu_custom_call.1} parent=1 // pred_check
      _
    $region83: #{tpu_custom_call.1} parent=1 // pred_check_branch
      %148 = sbr.rel (0) target = $region85
    $region84: #{tpu_custom_call.1} parent=1 // pred_region
      %149 = dma.done [#allocation17], 1024
    $region85: #{tpu_custom_call.1} parent=1 // pred_fallthru
      _
    %v151 = vld [vmem:[#allocation4] sm:$0xff]
    %v152 = vld [vmem:[#allocation4 + $0x8] sm:$0xff]
    %v153 = vld [vmem:[#allocation4 + $0x10] sm:$0xff]
    %v154 = vld [vmem:[#allocation4 + $0x18] sm:$0xff]
    %v155 = vld [vmem:[#allocation4 + $0x20] sm:$0xff]
    %v156 = vld [vmem:[#allocation4 + $0x28] sm:$0xff]
    %v157 = vld [vmem:[#allocation4 + $0x30] sm:$0xff]
    %v158 = vld [vmem:[#allocation4 + $0x38] sm:$0xff]
    %v159 = vld [vmem:[#allocation4 + $0x40] sm:$0xff]
    %v160 = vld [vmem:[#allocation4 + $0x48] sm:$0xff]
    %v161 = vld [vmem:[#allocation4 + $0x50] sm:$0xff]
    %v162 = vld [vmem:[#allocation4 + $0x58] sm:$0xff]
    %v163 = vld [vmem:[#allocation4 + $0x60] sm:$0xff]
    %v164 = vld [vmem:[#allocation4 + $0x68] sm:$0xff]
    %v165 = vld [vmem:[#allocation4 + $0x70] sm:$0xff]
    %v166 = vld [vmem:[#allocation4 + $0x78] sm:$0xff]
    %v167 = vpack.c.bf16 %v152, %v151
    %v168 = vpack.c.bf16 %v154, %v153
    %v169 = vpack.c.bf16 %v156, %v155
    %v170 = vpack.c.bf16 %v158, %v157
    %v171 = vpack.c.bf16 %v160, %v159
    %v172 = vpack.c.bf16 %v162, %v161
    %v173 = vpack.c.bf16 %v164, %v163
    %v174 = vpack.c.bf16 %v166, %v165
    %v175 = vld [vmem:[#allocation7] sm:$0xff]
    %v176 = vld [vmem:[#allocation7 + $0x8] sm:$0xff]
    %v177 = vld [vmem:[#allocation7 + $0x10] sm:$0xff]
    %v178 = vld [vmem:[#allocation7 + $0x18] sm:$0xff]
    %v179 = vld [vmem:[#allocation7 + $0x20] sm:$0xff]
    %v180 = vld [vmem:[#allocation7 + $0x28] sm:$0xff]
    %v181 = vld [vmem:[#allocation7 + $0x30] sm:$0xff]
    %v182 = vld [vmem:[#allocation7 + $0x38] sm:$0xff]
    %v183 = vld [vmem:[#allocation7 + $0x40] sm:$0xff]
    %v184 = vld [vmem:[#allocation7 + $0x48] sm:$0xff]
    %v185 = vld [vmem:[#allocation7 + $0x50] sm:$0xff]
    %v186 = vld [vmem:[#allocation7 + $0x58] sm:$0xff]
    %v187 = vld [vmem:[#allocation7 + $0x60] sm:$0xff]
    %v188 = vld [vmem:[#allocation7 + $0x68] sm:$0xff]
    %v189 = vld [vmem:[#allocation7 + $0x70] sm:$0xff]
    %v190 = vld [vmem:[#allocation7 + $0x78] sm:$0xff]
    %v191 = vld [vmem:[#allocation7 + $0x80] sm:$0xff]
    %v192 = vld [vmem:[#allocation7 + $0x88] sm:$0xff]
    %v193 = vld [vmem:[#allocation7 + $0x90] sm:$0xff]
    %v194 = vld [vmem:[#allocation7 + $0x98] sm:$0xff]
    %v195 = vld [vmem:[#allocation7 + $0xa0] sm:$0xff]
    %v196 = vld [vmem:[#allocation7 + $0xa8] sm:$0xff]
    %v197 = vld [vmem:[#allocation7 + $0xb0] sm:$0xff]
    %v198 = vld [vmem:[#allocation7 + $0xb8] sm:$0xff]
    %v199 = vld [vmem:[#allocation7 + $0xc0] sm:$0xff]
    %v200 = vld [vmem:[#allocation7 + $0xc8] sm:$0xff]
    %v201 = vld [vmem:[#allocation7 + $0xd0] sm:$0xff]
    %v202 = vld [vmem:[#allocation7 + $0xd8] sm:$0xff]
    %v203 = vld [vmem:[#allocation7 + $0xe0] sm:$0xff]
    %v204 = vld [vmem:[#allocation7 + $0xe8] sm:$0xff]
    %v205 = vld [vmem:[#allocation7 + $0xf0] sm:$0xff]
    %v206 = vld [vmem:[#allocation7 + $0xf8] sm:$0xff]
    %v207 = vld [vmem:[#allocation10] sm:$0xf]
    %v209 = vlaneseq
    %v210 = vshrl.u32 %v209, 7
    %v211 = vsub.s32 0, %v210
    %v212 = vrot.slane %v207, %v211
    %v213 = vlaneseq
    %v214 = vshrl.u32 %v213, 7
    %v215 = vsub.s32 1, %v214
    %v216 = vrot.slane %v207, %v215
    %v217 = vlaneseq
    %v218 = vshrl.u32 %v217, 7
    %v219 = vsub.s32 2, %v218
    %v220 = vrot.slane %v207, %v219
    %v221 = vlaneseq
    %v222 = vshrl.u32 %v221, 7
    %v223 = vsub.s32 3, %v222
    %v224 = vrot.slane %v207, %v223
    %v261 = vunpack.c.l.b16 %v175
    %v262 = vunpack.c.h.b16 %v175
    %v263 = vunpack.c.l.b16 %v176
    %v264 = vunpack.c.h.b16 %v176
    %v265 = vunpack.c.l.b16 %v177
    %v266 = vunpack.c.h.b16 %v177
    %v267 = vunpack.c.l.b16 %v178
    %v268 = vunpack.c.h.b16 %v178
    %v269 = vunpack.c.l.b16 %v179
    %v270 = vunpack.c.h.b16 %v179
    %v271 = vunpack.c.l.b16 %v180
    %v272 = vunpack.c.h.b16 %v180
    %v273 = vunpack.c.l.b16 %v181
    %v274 = vunpack.c.h.b16 %v181
    %v275 = vunpack.c.l.b16 %v182
    %v276 = vunpack.c.h.b16 %v182
    %v277 = vunpack.c.l.b16 %v183
    %v278 = vunpack.c.h.b16 %v183
    %v279 = vunpack.c.l.b16 %v184
    %v280 = vunpack.c.h.b16 %v184
    %v281 = vunpack.c.l.b16 %v185
    %v282 = vunpack.c.h.b16 %v185
    %v283 = vunpack.c.l.b16 %v186
    %v284 = vunpack.c.h.b16 %v186
    %v285 = vunpack.c.l.b16 %v187
    %v286 = vunpack.c.h.b16 %v187
    %v287 = vunpack.c.l.b16 %v188
    %v288 = vunpack.c.h.b16 %v188
    %v289 = vunpack.c.l.b16 %v189
    %v290 = vunpack.c.h.b16 %v189
    %v291 = vunpack.c.l.b16 %v190
    %v292 = vunpack.c.h.b16 %v190
    %v293 = vunpack.c.l.b16 %v191
    %v294 = vunpack.c.h.b16 %v191
    %v295 = vunpack.c.l.b16 %v192
    %v296 = vunpack.c.h.b16 %v192
    %v297 = vunpack.c.l.b16 %v193
    %v298 = vunpack.c.h.b16 %v193
    %v299 = vunpack.c.l.b16 %v194
    %v300 = vunpack.c.h.b16 %v194
    %v301 = vunpack.c.l.b16 %v195
    %v302 = vunpack.c.h.b16 %v195
    %v303 = vunpack.c.l.b16 %v196
    %v304 = vunpack.c.h.b16 %v196
    %v305 = vunpack.c.l.b16 %v197
    %v306 = vunpack.c.h.b16 %v197
    %v307 = vunpack.c.l.b16 %v198
    %v308 = vunpack.c.h.b16 %v198
    %v309 = vunpack.c.l.b16 %v199
    %v310 = vunpack.c.h.b16 %v199
    %v311 = vunpack.c.l.b16 %v200
    %v312 = vunpack.c.h.b16 %v200
    %v313 = vunpack.c.l.b16 %v201
    %v314 = vunpack.c.h.b16 %v201
    %v315 = vunpack.c.l.b16 %v202
    %v316 = vunpack.c.h.b16 %v202
    %v317 = vunpack.c.l.b16 %v203
    %v318 = vunpack.c.h.b16 %v203
    %v319 = vunpack.c.l.b16 %v204
    %v320 = vunpack.c.h.b16 %v204
    %v321 = vunpack.c.l.b16 %v205
    %v322 = vunpack.c.h.b16 %v205
    %v323 = vunpack.c.l.b16 %v206
    %v324 = vunpack.c.h.b16 %v206
    %v325 = vpack.c.b16 %v265, %v261
    %v326 = vpack.c.b16 %v266, %v262
    %v327 = vpack.c.b16 %v267, %v263
    %v328 = vpack.c.b16 %v268, %v264
    %v329 = vpack.c.b16 %v273, %v269
    %v330 = vpack.c.b16 %v274, %v270
    %v331 = vpack.c.b16 %v275, %v271
    %v332 = vpack.c.b16 %v276, %v272
    %v333 = vpack.c.b16 %v281, %v277
    %v334 = vpack.c.b16 %v282, %v278
    %v335 = vpack.c.b16 %v283, %v279
    %v336 = vpack.c.b16 %v284, %v280
    %v337 = vpack.c.b16 %v289, %v285
    %v338 = vpack.c.b16 %v290, %v286
    %v339 = vpack.c.b16 %v291, %v287
    %v340 = vpack.c.b16 %v292, %v288
    %v341 = vpack.c.b16 %v297, %v293
    %v342 = vpack.c.b16 %v298, %v294
    %v343 = vpack.c.b16 %v299, %v295
    %v344 = vpack.c.b16 %v300, %v296
    %v345 = vpack.c.b16 %v305, %v301
    %v346 = vpack.c.b16 %v306, %v302
    %v347 = vpack.c.b16 %v307, %v303
    %v348 = vpack.c.b16 %v308, %v304
    %v349 = vpack.c.b16 %v313, %v309
    %v350 = vpack.c.b16 %v314, %v310
    %v351 = vpack.c.b16 %v315, %v311
    %v352 = vpack.c.b16 %v316, %v312
    %v353 = vpack.c.b16 %v321, %v317
    %v354 = vpack.c.b16 %v322, %v318
    %v355 = vpack.c.b16 %v323, %v319
    %v356 = vpack.c.b16 %v324, %v320
    %389 = vmatprep.subr.bf16.mxu0 %v326
    %390 = vmatpush1.bf16.msra.mxu0 %v325
    %391 = vmatprep.subr.bf16.mxu0 %v330
    %392 = vmatpush1.bf16.msra.mxu0 %v329
    %393 = vmatprep.subr.bf16.mxu0 %v334
    %394 = vmatpush1.bf16.msra.mxu0 %v333
    %395 = vmatprep.subr.bf16.mxu0 %v338
    %396 = vmatpush1.bf16.msra.mxu0 %v337
    %397 = vmatprep.subr.bf16.mxu0 %v342
    %398 = vmatpush1.bf16.msra.mxu0 %v341
    %399 = vmatprep.subr.bf16.mxu0 %v346
    %400 = vmatpush1.bf16.msra.mxu0 %v345
    %401 = vmatprep.subr.bf16.mxu0 %v350
    %402 = vmatpush1.bf16.msra.mxu0 %v349
    %403 = vmatprep.subr.bf16.mxu0 %v354
    %404 = vmatpush1.bf16.msra.mxu0 %v353
    %405 = vmatprep.subr.bf16.mxu0 0
    %406 = vmatpush1.bf16.msra.mxu0 0
    %407 = vmatprep.subr.bf16.mxu0 0
    %408 = vmatpush1.bf16.msra.mxu0 0
    %409 = vmatprep.subr.bf16.mxu0 0
    %410 = vmatpush1.bf16.msra.mxu0 0
    %411 = vmatprep.subr.bf16.mxu0 0
    %412 = vmatpush1.bf16.msra.mxu0 0
    %413 = vmatprep.subr.bf16.mxu0 0
    %414 = vmatpush1.bf16.msra.mxu0 0
    %415 = vmatprep.subr.bf16.mxu0 0
    %416 = vmatpush1.bf16.msra.mxu0 0
    %417 = vmatprep.subr.bf16.mxu0 0
    %418 = vmatpush1.bf16.msra.mxu0 0
    %419 = vmatprep.subr.bf16.mxu0 0
    %420 = vmatpush1.bf16.msra.mxu0 0
    %421 = vmatprep.mubr.bf16.mxu0 0
    %422 = vmatmul.mubr.bf16.gmra.mrb[0].mxu0 %v167
    %v423 = vpop.f32.mrb[0].mxu0
    %v424 = vadd.f32 %v212, %v423
    %v425 = vpop.f32.mrb[0].mxu0
    %v426 = vadd.f32 %v216, %v425
    %v427 = vpop.f32.mrb[0].mxu0
    %v428 = vadd.f32 %v212, %v427
    %v429 = vpop.f32.mrb[0].mxu0
    %v430 = vadd.f32 %v216, %v429
    %431 = vmatprep.mubr.bf16.mxu0 0
    %432 = vmatmul.mubr.bf16.gmra.mrb[0].mxu0 %v168
    %v433 = vpop.f32.mrb[0].mxu0
    %v434 = vadd.f32 %v212, %v433
    %v435 = vpop.f32.mrb[0].mxu0
    %v436 = vadd.f32 %v216, %v435
    %v437 = vpop.f32.mrb[0].mxu0
    %v438 = vadd.f32 %v212, %v437
    %v439 = vpop.f32.mrb[0].mxu0
    %v440 = vadd.f32 %v216, %v439
    %441 = vmatprep.mubr.bf16.mxu0 0
    %442 = vmatmul.mubr.bf16.gmra.mrb[0].mxu0 %v169
    %v443 = vpop.f32.mrb[0].mxu0
    %v444 = vadd.f32 %v212, %v443
    %v445 = vpop.f32.mrb[0].mxu0
    %v446 = vadd.f32 %v216, %v445
    %v447 = vpop.f32.mrb[0].mxu0
    %v448 = vadd.f32 %v212, %v447
    %v449 = vpop.f32.mrb[0].mxu0
    %v450 = vadd.f32 %v216, %v449
    %451 = vmatprep.mubr.bf16.mxu0 0
    %452 = vmatmul.mubr.bf16.gmra.mrb[0].mxu0 %v170
    %v453 = vpop.f32.mrb[0].mxu0
    %v454 = vadd.f32 %v212, %v453
    %v455 = vpop.f32.mrb[0].mxu0
    %v456 = vadd.f32 %v216, %v455
    %v457 = vpop.f32.mrb[0].mxu0
    %v458 = vadd.f32 %v212, %v457
    %v459 = vpop.f32.mrb[0].mxu0
    %v460 = vadd.f32 %v216, %v459
    %461 = vmatprep.mubr.bf16.mxu0 0
    %462 = vmatmul.mubr.bf16.gmra.mrb[0].mxu0 %v171
    %v463 = vpop.f32.mrb[0].mxu0
    %v464 = vadd.f32 %v212, %v463
    %v465 = vpop.f32.mrb[0].mxu0
    %v466 = vadd.f32 %v216, %v465
    %v467 = vpop.f32.mrb[0].mxu0
    %v468 = vadd.f32 %v212, %v467
    %v469 = vpop.f32.mrb[0].mxu0
    %v470 = vadd.f32 %v216, %v469
    %471 = vmatprep.mubr.bf16.mxu0 0
    %472 = vmatmul.mubr.bf16.gmra.mrb[0].mxu0 %v172
    %v473 = vpop.f32.mrb[0].mxu0
    %v474 = vadd.f32 %v212, %v473
    %v475 = vpop.f32.mrb[0].mxu0
    %v476 = vadd.f32 %v216, %v475
    %v477 = vpop.f32.mrb[0].mxu0
    %v478 = vadd.f32 %v212, %v477
    %v479 = vpop.f32.mrb[0].mxu0
    %v480 = vadd.f32 %v216, %v479
    %481 = vmatprep.mubr.bf16.mxu0 0
    %482 = vmatmul.mubr.bf16.gmra.mrb[0].mxu0 %v173
    %v483 = vpop.f32.mrb[0].mxu0
    %v484 = vadd.f32 %v212, %v483
    %v485 = vpop.f32.mrb[0].mxu0
    %v486 = vadd.f32 %v216, %v485
    %v487 = vpop.f32.mrb[0].mxu0
    %v488 = vadd.f32 %v212, %v487
    %v489 = vpop.f32.mrb[0].mxu0
    %v490 = vadd.f32 %v216, %v489
    %491 = vmatprep.mubr.bf16.mxu0 0
    %492 = vmatmul.mubr.bf16.gmra.mrb[0].mxu0 %v174
    %v493 = vpop.f32.mrb[0].mxu0
    %v494 = vadd.f32 %v212, %v493
    %v495 = vpop.f32.mrb[0].mxu0
    %v496 = vadd.f32 %v216, %v495
    %v497 = vpop.f32.mrb[0].mxu0
    %v498 = vadd.f32 %v212, %v497
    %v499 = vpop.f32.mrb[0].mxu0
    %v500 = vadd.f32 %v216, %v499
    %501 = vdwg.mxu0
    %502 = vmatprep.subr.bf16.mxu0 %v328
    %503 = vmatpush1.bf16.msra.mxu0 %v327
    %504 = vmatprep.subr.bf16.mxu0 %v332
    %505 = vmatpush1.bf16.msra.mxu0 %v331
    %506 = vmatprep.subr.bf16.mxu0 %v336
    %507 = vmatpush1.bf16.msra.mxu0 %v335
    %508 = vmatprep.subr.bf16.mxu0 %v340
    %509 = vmatpush1.bf16.msra.mxu0 %v339
    %510 = vmatprep.subr.bf16.mxu0 %v344
    %511 = vmatpush1.bf16.msra.mxu0 %v343
    %512 = vmatprep.subr.bf16.mxu0 %v348
    %513 = vmatpush1.bf16.msra.mxu0 %v347
    %514 = vmatprep.subr.bf16.mxu0 %v352
    %515 = vmatpush1.bf16.msra.mxu0 %v351
    %516 = vmatprep.subr.bf16.mxu0 %v356
    %517 = vmatpush1.bf16.msra.mxu0 %v355
    %518 = vmatprep.subr.bf16.mxu0 0
    %519 = vmatpush1.bf16.msra.mxu0 0
    %520 = vmatprep.subr.bf16.mxu0 0
    %521 = vmatpush1.bf16.msra.mxu0 0
    %522 = vmatprep.subr.bf16.mxu0 0
    %523 = vmatpush1.bf16.msra.mxu0 0
    %524 = vmatprep.subr.bf16.mxu0 0
    %525 = vmatpush1.bf16.msra.mxu0 0
    %526 = vmatprep.subr.bf16.mxu0 0
    %527 = vmatpush1.bf16.msra.mxu0 0
    %528 = vmatprep.subr.bf16.mxu0 0
    %529 = vmatpush1.bf16.msra.mxu0 0
    %530 = vmatprep.subr.bf16.mxu0 0
    %531 = vmatpush1.bf16.msra.mxu0 0
    %532 = vmatprep.subr.bf16.mxu0 0
    %533 = vmatpush1.bf16.msra.mxu0 0
    %534 = vmatprep.mubr.bf16.mxu0 0
    %535 = vmatmul.mubr.bf16.gmra.mrb[0].mxu0 %v167
    %v536 = vpop.f32.mrb[0].mxu0
    %v537 = vadd.f32 %v220, %v536
    %v538 = vpop.f32.mrb[0].mxu0
    %v539 = vadd.f32 %v224, %v538
    %v540 = vpop.f32.mrb[0].mxu0
    %v541 = vadd.f32 %v220, %v540
    %v542 = vpop.f32.mrb[0].mxu0
    %v543 = vadd.f32 %v224, %v542
    %544 = vmatprep.mubr.bf16.mxu0 0
    %545 = vmatmul.mubr.bf16.gmra.mrb[0].mxu0 %v168
    %v546 = vpop.f32.mrb[0].mxu0
    %v547 = vadd.f32 %v220, %v546
    %v548 = vpop.f32.mrb[0].mxu0
    %v549 = vadd.f32 %v224, %v548
    %v550 = vpop.f32.mrb[0].mxu0
    %v551 = vadd.f32 %v220, %v550
    %v552 = vpop.f32.mrb[0].mxu0
    %v553 = vadd.f32 %v224, %v552
    %554 = vmatprep.mubr.bf16.mxu0 0
    %555 = vmatmul.mubr.bf16.gmra.mrb[0].mxu0 %v169
    %v556 = vpop.f32.mrb[0].mxu0
    %v557 = vadd.f32 %v220, %v556
    %v558 = vpop.f32.mrb[0].mxu0
    %v559 = vadd.f32 %v224, %v558
    %v560 = vpop.f32.mrb[0].mxu0
    %v561 = vadd.f32 %v220, %v560
    %v562 = vpop.f32.mrb[0].mxu0
    %v563 = vadd.f32 %v224, %v562
    %564 = vmatprep.mubr.bf16.mxu0 0
    %565 = vmatmul.mubr.bf16.gmra.mrb[0].mxu0 %v170
    %v566 = vpop.f32.mrb[0].mxu0
    %v567 = vadd.f32 %v220, %v566
    %v568 = vpop.f32.mrb[0].mxu0
    %v569 = vadd.f32 %v224, %v568
    %v570 = vpop.f32.mrb[0].mxu0
    %v571 = vadd.f32 %v220, %v570
    %v572 = vpop.f32.mrb[0].mxu0
    %v573 = vadd.f32 %v224, %v572
    %574 = vmatprep.mubr.bf16.mxu0 0
    %575 = vmatmul.mubr.bf16.gmra.mrb[0].mxu0 %v171
    %v576 = vpop.f32.mrb[0].mxu0
    %v577 = vadd.f32 %v220, %v576
    %v578 = vpop.f32.mrb[0].mxu0
    %v579 = vadd.f32 %v224, %v578
    %v580 = vpop.f32.mrb[0].mxu0
    %v581 = vadd.f32 %v220, %v580
    %v582 = vpop.f32.mrb[0].mxu0
    %v583 = vadd.f32 %v224, %v582
    %584 = vmatprep.mubr.bf16.mxu0 0
    %585 = vmatmul.mubr.bf16.gmra.mrb[0].mxu0 %v172
    %v586 = vpop.f32.mrb[0].mxu0
    %v587 = vadd.f32 %v220, %v586
    %v588 = vpop.f32.mrb[0].mxu0
    %v589 = vadd.f32 %v224, %v588
    %v590 = vpop.f32.mrb[0].mxu0
    %v591 = vadd.f32 %v220, %v590
    %v592 = vpop.f32.mrb[0].mxu0
    %v593 = vadd.f32 %v224, %v592
    %594 = vmatprep.mubr.bf16.mxu0 0
    %595 = vmatmul.mubr.bf16.gmra.mrb[0].mxu0 %v173
    %v596 = vpop.f32.mrb[0].mxu0
    %v597 = vadd.f32 %v220, %v596
    %v598 = vpop.f32.mrb[0].mxu0
    %v599 = vadd.f32 %v224, %v598
    %v600 = vpop.f32.mrb[0].mxu0
    %v601 = vadd.f32 %v220, %v600
    %v602 = vpop.f32.mrb[0].mxu0
    %v603 = vadd.f32 %v224, %v602
    %604 = vmatprep.mubr.bf16.mxu0 0
    %605 = vmatmul.mubr.bf16.gmra.mrb[0].mxu0 %v174
    %v606 = vpop.f32.mrb[0].mxu0
    %v607 = vadd.f32 %v220, %v606
    %v608 = vpop.f32.mrb[0].mxu0
    %v609 = vadd.f32 %v224, %v608
    %v610 = vpop.f32.mrb[0].mxu0
    %v611 = vadd.f32 %v220, %v610
    %v612 = vpop.f32.mrb[0].mxu0
    %v613 = vadd.f32 %v224, %v612
    %614 = vdwg.mxu0
    %615 = vst [vmem:[#allocation2] sm:$0xff] %v424
    %616 = vst [vmem:[#allocation2 + $0x8] sm:$0xff] %v426
    %617 = vst [vmem:[#allocation2 + $0x10] sm:$0xff] %v537
    %618 = vst [vmem:[#allocation2 + $0x18] sm:$0xff] %v539
    %619 = vst [vmem:[#allocation2 + $0x20] sm:$0xff] %v428
    %620 = vst [vmem:[#allocation2 + $0x28] sm:$0xff] %v430
    %621 = vst [vmem:[#allocation2 + $0x30] sm:$0xff] %v541
    %622 = vst [vmem:[#allocation2 + $0x38] sm:$0xff] %v543
    %623 = vst [vmem:[#allocation2 + $0x40] sm:$0xff] %v434
    %624 = vst [vmem:[#allocation2 + $0x48] sm:$0xff] %v436
    %625 = vst [vmem:[#allocation2 + $0x50] sm:$0xff] %v547
    %626 = vst [vmem:[#allocation2 + $0x58] sm:$0xff] %v549
    %627 = vst [vmem:[#allocation2 + $0x60] sm:$0xff] %v438
    %628 = vst [vmem:[#allocation2 + $0x68] sm:$0xff] %v440
    %629 = vst [vmem:[#allocation2 + $0x70] sm:$0xff] %v551
    %630 = vst [vmem:[#allocation2 + $0x78] sm:$0xff] %v553
    %631 = vst [vmem:[#allocation2 + $0x80] sm:$0xff] %v444
    %632 = vst [vmem:[#allocation2 + $0x88] sm:$0xff] %v446
    %633 = vst [vmem:[#allocation2 + $0x90] sm:$0xff] %v557
    %634 = vst [vmem:[#allocation2 + $0x98] sm:$0xff] %v559
    %635 = vst [vmem:[#allocation2 + $0xa0] sm:$0xff] %v448
    %636 = vst [vmem:[#allocation2 + $0xa8] sm:$0xff] %v450
    %637 = vst [vmem:[#allocation2 + $0xb0] sm:$0xff] %v561
    %638 = vst [vmem:[#allocation2 + $0xb8] sm:$0xff] %v563
    %639 = vst [vmem:[#allocation2 + $0xc0] sm:$0xff] %v454
    %640 = vst [vmem:[#allocation2 + $0xc8] sm:$0xff] %v456
    %641 = vst [vmem:[#allocation2 + $0xd0] sm:$0xff] %v567
    %642 = vst [vmem:[#allocation2 + $0xd8] sm:$0xff] %v569
    %643 = vst [vmem:[#allocation2 + $0xe0] sm:$0xff] %v458
    %644 = vst [vmem:[#allocation2 + $0xe8] sm:$0xff] %v460
    %645 = vst [vmem:[#allocation2 + $0xf0] sm:$0xff] %v571
    %646 = vst [vmem:[#allocation2 + $0xf8] sm:$0xff] %v573
    %647 = vst [vmem:[#allocation2 + $0x100] sm:$0xff] %v464
    %648 = vst [vmem:[#allocation2 + $0x108] sm:$0xff] %v466
    %649 = vst [vmem:[#allocation2 + $0x110] sm:$0xff] %v577
    %650 = vst [vmem:[#allocation2 + $0x118] sm:$0xff] %v579
    %651 = vst [vmem:[#allocation2 + $0x120] sm:$0xff] %v468
    %652 = vst [vmem:[#allocation2 + $0x128] sm:$0xff] %v470
    %653 = vst [vmem:[#allocation2 + $0x130] sm:$0xff] %v581
    %654 = vst [vmem:[#allocation2 + $0x138] sm:$0xff] %v583
    %655 = vst [vmem:[#allocation2 + $0x140] sm:$0xff] %v474
    %656 = vst [vmem:[#allocation2 + $0x148] sm:$0xff] %v476
    %657 = vst [vmem:[#allocation2 + $0x150] sm:$0xff] %v587
    %658 = vst [vmem:[#allocation2 + $0x158] sm:$0xff] %v589
    %659 = vst [vmem:[#allocation2 + $0x160] sm:$0xff] %v478
    %660 = vst [vmem:[#allocation2 + $0x168] sm:$0xff] %v480
    %661 = vst [vmem:[#allocation2 + $0x170] sm:$0xff] %v591
    %662 = vst [vmem:[#allocation2 + $0x178] sm:$0xff] %v593
    %663 = vst [vmem:[#allocation2 + $0x180] sm:$0xff] %v484
    %664 = vst [vmem:[#allocation2 + $0x188] sm:$0xff] %v486
    %665 = vst [vmem:[#allocation2 + $0x190] sm:$0xff] %v597
    %666 = vst [vmem:[#allocation2 + $0x198] sm:$0xff] %v599
    %667 = vst [vmem:[#allocation2 + $0x1a0] sm:$0xff] %v488
    %668 = vst [vmem:[#allocation2 + $0x1a8] sm:$0xff] %v490
    %669 = vst [vmem:[#allocation2 + $0x1b0] sm:$0xff] %v601
    %670 = vst [vmem:[#allocation2 + $0x1b8] sm:$0xff] %v603
    %671 = vst [vmem:[#allocation2 + $0x1c0] sm:$0xff] %v494
    %672 = vst [vmem:[#allocation2 + $0x1c8] sm:$0xff] %v496
    %673 = vst [vmem:[#allocation2 + $0x1d0] sm:$0xff] %v607
    %674 = vst [vmem:[#allocation2 + $0x1d8] sm:$0xff] %v609
    %675 = vst [vmem:[#allocation2 + $0x1e0] sm:$0xff] %v498
    %676 = vst [vmem:[#allocation2 + $0x1e8] sm:$0xff] %v500
    %677 = vst [vmem:[#allocation2 + $0x1f0] sm:$0xff] %v611
    %678 = vst [vmem:[#allocation2 + $0x1f8] sm:$0xff] %v613
    %v679 = vld [vmem:[#allocation9] sm:$0xff]
    %v680 = vld [vmem:[#allocation9 + $0x8] sm:$0xff]
    %v681 = vld [vmem:[#allocation9 + $0x10] sm:$0xff]
    %v682 = vld [vmem:[#allocation9 + $0x18] sm:$0xff]
    %v683 = vld [vmem:[#allocation9 + $0x20] sm:$0xff]
    %v684 = vld [vmem:[#allocation9 + $0x28] sm:$0xff]
    %v685 = vld [vmem:[#allocation9 + $0x30] sm:$0xff]
    %v686 = vld [vmem:[#allocation9 + $0x38] sm:$0xff]
    %v687 = vld [vmem:[#allocation9 + $0x40] sm:$0xff]
    %v688 = vld [vmem:[#allocation9 + $0x48] sm:$0xff]
    %v689 = vld [vmem:[#allocation9 + $0x50] sm:$0xff]
    %v690 = vld [vmem:[#allocation9 + $0x58] sm:$0xff]
    %v691 = vld [vmem:[#allocation9 + $0x60] sm:$0xff]
    %v692 = vld [vmem:[#allocation9 + $0x68] sm:$0xff]
    %v693 = vld [vmem:[#allocation9 + $0x70] sm:$0xff]
    %v694 = vld [vmem:[#allocation9 + $0x78] sm:$0xff]
    %v695 = vld [vmem:[#allocation9 + $0x80] sm:$0xff]
    %v696 = vld [vmem:[#allocation9 + $0x88] sm:$0xff]
    %v697 = vld [vmem:[#allocation9 + $0x90] sm:$0xff]
    %v698 = vld [vmem:[#allocation9 + $0x98] sm:$0xff]
    %v699 = vld [vmem:[#allocation9 + $0xa0] sm:$0xff]
    %v700 = vld [vmem:[#allocation9 + $0xa8] sm:$0xff]
    %v701 = vld [vmem:[#allocation9 + $0xb0] sm:$0xff]
    %v702 = vld [vmem:[#allocation9 + $0xb8] sm:$0xff]
    %v703 = vld [vmem:[#allocation9 + $0xc0] sm:$0xff]
    %v704 = vld [vmem:[#allocation9 + $0xc8] sm:$0xff]
    %v705 = vld [vmem:[#allocation9 + $0xd0] sm:$0xff]
    %v706 = vld [vmem:[#allocation9 + $0xd8] sm:$0xff]
    %v707 = vld [vmem:[#allocation9 + $0xe0] sm:$0xff]
    %v708 = vld [vmem:[#allocation9 + $0xe8] sm:$0xff]
    %v709 = vld [vmem:[#allocation9 + $0xf0] sm:$0xff]
    %v710 = vld [vmem:[#allocation9 + $0xf8] sm:$0xff]
    %v711 = vld [vmem:[%s4] sm:$0xff]
    %v712 = vpack.c.bf16 %v711, %v711
    %v713 = vld [vmem:[%s5] sm:$0xff]
    %v714 = vld [vmem:[#allocation2] sm:$0xff]
    %v715 = vld [vmem:[#allocation2 + $0x8] sm:$0xff]
    %v716 = vld [vmem:[#allocation2 + $0x10] sm:$0xff]
    %v717 = vld [vmem:[#allocation2 + $0x18] sm:$0xff]
    %v750 = vunpack.c.l.b16 %v679
    %v751 = vunpack.c.h.b16 %v679
    %v752 = vunpack.c.l.b16 %v680
    %v753 = vunpack.c.h.b16 %v680
    %v754 = vunpack.c.l.b16 %v681
    %v755 = vunpack.c.h.b16 %v681
    %v756 = vunpack.c.l.b16 %v682
    %v757 = vunpack.c.h.b16 %v682
    %v758 = vunpack.c.l.b16 %v683
    %v759 = vunpack.c.h.b16 %v683
    %v760 = vunpack.c.l.b16 %v684
    %v761 = vunpack.c.h.b16 %v684
    %v762 = vunpack.c.l.b16 %v685
    %v763 = vunpack.c.h.b16 %v685
    %v764 = vunpack.c.l.b16 %v686
    %v765 = vunpack.c.h.b16 %v686
    %v766 = vunpack.c.l.b16 %v687
    %v767 = vunpack.c.h.b16 %v687
    %v768 = vunpack.c.l.b16 %v688
    %v769 = vunpack.c.h.b16 %v688
    %v770 = vunpack.c.l.b16 %v689
    %v771 = vunpack.c.h.b16 %v689
    %v772 = vunpack.c.l.b16 %v690
    %v773 = vunpack.c.h.b16 %v690
    %v774 = vunpack.c.l.b16 %v691
    %v775 = vunpack.c.h.b16 %v691
    %v776 = vunpack.c.l.b16 %v692
    %v777 = vunpack.c.h.b16 %v692
    %v778 = vunpack.c.l.b16 %v693
    %v779 = vunpack.c.h.b16 %v693
    %v780 = vunpack.c.l.b16 %v694
    %v781 = vunpack.c.h.b16 %v694
    %v782 = vunpack.c.l.b16 %v695
    %v783 = vunpack.c.h.b16 %v695
    %v784 = vunpack.c.l.b16 %v696
    %v785 = vunpack.c.h.b16 %v696
    %v786 = vunpack.c.l.b16 %v697
    %v787 = vunpack.c.h.b16 %v697
    %v788 = vunpack.c.l.b16 %v698
    %v789 = vunpack.c.h.b16 %v698
    %v790 = vunpack.c.l.b16 %v699
    %v791 = vunpack.c.h.b16 %v699
    %v792 = vunpack.c.l.b16 %v700
    %v793 = vunpack.c.h.b16 %v700
    %v794 = vunpack.c.l.b16 %v701
    %v795 = vunpack.c.h.b16 %v701
    %v796 = vunpack.c.l.b16 %v702
    %v797 = vunpack.c.h.b16 %v702
    %v798 = vunpack.c.l.b16 %v703
    %v799 = vunpack.c.h.b16 %v703
    %v800 = vunpack.c.l.b16 %v704
    %v801 = vunpack.c.h.b16 %v704
    %v802 = vunpack.c.l.b16 %v705
    %v803 = vunpack.c.h.b16 %v705
    %v804 = vunpack.c.l.b16 %v706
    %v805 = vunpack.c.h.b16 %v706
    %v806 = vunpack.c.l.b16 %v707
    %v807 = vunpack.c.h.b16 %v707
    %v808 = vunpack.c.l.b16 %v708
    %v809 = vunpack.c.h.b16 %v708
    %v810 = vunpack.c.l.b16 %v709
    %v811 = vunpack.c.h.b16 %v709
    %v812 = vunpack.c.l.b16 %v710
    %v813 = vunpack.c.h.b16 %v710
    %v814 = vpack.c.b16 %v754, %v750
    %v815 = vpack.c.b16 %v755, %v751
    %v816 = vpack.c.b16 %v756, %v752
    %v817 = vpack.c.b16 %v757, %v753
    %v818 = vpack.c.b16 %v762, %v758
    %v819 = vpack.c.b16 %v763, %v759
    %v820 = vpack.c.b16 %v764, %v760
    %v821 = vpack.c.b16 %v765, %v761
    %v822 = vpack.c.b16 %v770, %v766
    %v823 = vpack.c.b16 %v771, %v767
    %v824 = vpack.c.b16 %v772, %v768
    %v825 = vpack.c.b16 %v773, %v769
    %v826 = vpack.c.b16 %v778, %v774
    %v827 = vpack.c.b16 %v779, %v775
    %v828 = vpack.c.b16 %v780, %v776
    %v829 = vpack.c.b16 %v781, %v777
    %v830 = vpack.c.b16 %v786, %v782
    %v831 = vpack.c.b16 %v787, %v783
    %v832 = vpack.c.b16 %v788, %v784
    %v833 = vpack.c.b16 %v789, %v785
    %v834 = vpack.c.b16 %v794, %v790
    %v835 = vpack.c.b16 %v795, %v791
    %v836 = vpack.c.b16 %v796, %v792
    %v837 = vpack.c.b16 %v797, %v793
    %v838 = vpack.c.b16 %v802, %v798
    %v839 = vpack.c.b16 %v803, %v799
    %v840 = vpack.c.b16 %v804, %v800
    %v841 = vpack.c.b16 %v805, %v801
    %v842 = vpack.c.b16 %v810, %v806
    %v843 = vpack.c.b16 %v811, %v807
    %v844 = vpack.c.b16 %v812, %v808
    %v845 = vpack.c.b16 %v813, %v809
    %878 = vmatprep.subr.bf16.mxu0 %v815
    %879 = vmatpush1.bf16.msra.mxu0 %v814
    %880 = vmatprep.subr.bf16.mxu0 %v819
    %881 = vmatpush1.bf16.msra.mxu0 %v818
    %882 = vmatprep.subr.bf16.mxu0 %v823
    %883 = vmatpush1.bf16.msra.mxu0 %v822
    %884 = vmatprep.subr.bf16.mxu0 %v827
    %885 = vmatpush1.bf16.msra.mxu0 %v826
    %886 = vmatprep.subr.bf16.mxu0 %v831
    %887 = vmatpush1.bf16.msra.mxu0 %v830
    %888 = vmatprep.subr.bf16.mxu0 %v835
    %889 = vmatpush1.bf16.msra.mxu0 %v834
    %890 = vmatprep.subr.bf16.mxu0 %v839
    %891 = vmatpush1.bf16.msra.mxu0 %v838
    %892 = vmatprep.subr.bf16.mxu0 %v843
    %893 = vmatpush1.bf16.msra.mxu0 %v842
    %894 = vmatprep.subr.bf16.mxu0 0
    %895 = vmatpush1.bf16.msra.mxu0 0
    %896 = vmatprep.subr.bf16.mxu0 0
    %897 = vmatpush1.bf16.msra.mxu0 0
    %898 = vmatprep.subr.bf16.mxu0 0
    %899 = vmatpush1.bf16.msra.mxu0 0
    %900 = vmatprep.subr.bf16.mxu0 0
    %901 = vmatpush1.bf16.msra.mxu0 0
    %902 = vmatprep.subr.bf16.mxu0 0
    %903 = vmatpush1.bf16.msra.mxu0 0
    %904 = vmatprep.subr.bf16.mxu0 0
    %905 = vmatpush1.bf16.msra.mxu0 0
    %906 = vmatprep.subr.bf16.mxu0 0
    %907 = vmatpush1.bf16.msra.mxu0 0
    %908 = vmatprep.subr.bf16.mxu0 0
    %909 = vmatpush1.bf16.msra.mxu0 0
    %910 = vmatprep.mubr.bf16.mxu0 0
    %911 = vmatmul.mubr.bf16.gmra.mrb[0].mxu0 %v712
    %v912 = vpop.f32.mrb[0].mxu0
    %v913 = vadd.f32 0.0, %v912
    %v914 = vpop.f32.mrb[0].mxu0
    %v915 = vadd.f32 0.0, %v914
    %v916 = vpop.f32.mrb[0].mxu0
    %v917 = vpop.f32.mrb[0].mxu0
    %918 = vdwg.mxu0
    %919 = vmatprep.subr.bf16.mxu0 %v817
    %920 = vmatpush1.bf16.msra.mxu0 %v816
    %921 = vmatprep.subr.bf16.mxu0 %v821
    %922 = vmatpush1.bf16.msra.mxu0 %v820
    %923 = vmatprep.subr.bf16.mxu0 %v825
    %924 = vmatpush1.bf16.msra.mxu0 %v824
    %925 = vmatprep.subr.bf16.mxu0 %v829
    %926 = vmatpush1.bf16.msra.mxu0 %v828
    %927 = vmatprep.subr.bf16.mxu0 %v833
    %928 = vmatpush1.bf16.msra.mxu0 %v832
    %929 = vmatprep.subr.bf16.mxu0 %v837
    %930 = vmatpush1.bf16.msra.mxu0 %v836
    %931 = vmatprep.subr.bf16.mxu0 %v841
    %932 = vmatpush1.bf16.msra.mxu0 %v840
    %933 = vmatprep.subr.bf16.mxu0 %v845
    %934 = vmatpush1.bf16.msra.mxu0 %v844
    %935 = vmatprep.subr.bf16.mxu0 0
    %936 = vmatpush1.bf16.msra.mxu0 0
    %937 = vmatprep.subr.bf16.mxu0 0
    %938 = vmatpush1.bf16.msra.mxu0 0
    %939 = vmatprep.subr.bf16.mxu0 0
    %940 = vmatpush1.bf16.msra.mxu0 0
    %941 = vmatprep.subr.bf16.mxu0 0
    %942 = vmatpush1.bf16.msra.mxu0 0
    %943 = vmatprep.subr.bf16.mxu0 0
    %944 = vmatpush1.bf16.msra.mxu0 0
    %945 = vmatprep.subr.bf16.mxu0 0
    %946 = vmatpush1.bf16.msra.mxu0 0
    %947 = vmatprep.subr.bf16.mxu0 0
    %948 = vmatpush1.bf16.msra.mxu0 0
    %949 = vmatprep.subr.bf16.mxu0 0
    %950 = vmatpush1.bf16.msra.mxu0 0
    %951 = vmatprep.mubr.bf16.mxu0 0
    %952 = vmatmul.mubr.bf16.gmra.mrb[0].mxu0 %v712
    %v953 = vpop.f32.mrb[0].mxu0
    %v954 = vadd.f32 0.0, %v953
    %v955 = vpop.f32.mrb[0].mxu0
    %v956 = vadd.f32 0.0, %v955
    %v957 = vpop.f32.mrb[0].mxu0
    %v958 = vpop.f32.mrb[0].mxu0
    %959 = vdwg.mxu0
    %v960 = vadd.f32 %v714, %v913
    %v961 = vadd.f32 %v715, %v915
    %v962 = vadd.f32 %v716, %v954
    %v963 = vadd.f32 %v717, %v956
    %v964 = vxor.u32 %v960, 2147483648
    %v965 = vmul.f32 %v964, 1.442695
    %v966 = vpow.pop %v965
    %v967 = vadd.f32 %v966, 1.0
    %v968 = vrcp.pop %v967
    %v969 = vmul.f32 1.0, %v968
    %v970 = vtanh.pop %v962
    %v971 = vmul.f32 %v969, %v970
    %v972 = vxor.u32 %v961, 2147483648
    %v973 = vmul.f32 %v972, 1.442695
    %v974 = vpow.pop %v973
    %v975 = vadd.f32 %v974, 1.0
    %v976 = vrcp.pop %v975
    %v977 = vmul.f32 1.0, %v976
    %v978 = vmul.f32 %v977, %v713
    %v979 = vadd.f32 %v978, %v971
    %v980 = vxor.u32 %v963, 2147483648
    %v981 = vmul.f32 %v980, 1.442695
    %v982 = vpow.pop %v981
    %v983 = vadd.f32 %v982, 1.0
    %v984 = vrcp.pop %v983
    %v985 = vmul.f32 1.0, %v984
    %v986 = vtanh.pop %v979
    %v987 = vmul.f32 %v985, %v986
    %v988 = vpack.c.bf16 %v987, %v987
    %s989 = scalar_lea.vmem [#allocation2], 32
    %v990 = vld [vmem:[%s989] sm:$0xff]
    %v991 = vld [vmem:[%s989 + $0x8] sm:$0xff]
    %v992 = vld [vmem:[%s989 + $0x10] sm:$0xff]
    %v993 = vld [vmem:[%s989 + $0x18] sm:$0xff]
    %994 = vmatprep.subr.bf16.mxu0 %v815
    %995 = vmatpush1.bf16.msra.mxu0 %v814
    %996 = vmatprep.subr.bf16.mxu0 %v819
    %997 = vmatpush1.bf16.msra.mxu0 %v818
    %998 = vmatprep.subr.bf16.mxu0 %v823
    %999 = vmatpush1.bf16.msra.mxu0 %v822
    %1000 = vmatprep.subr.bf16.mxu0 %v827
    %1001 = vmatpush1.bf16.msra.mxu0 %v826
    %1002 = vmatprep.subr.bf16.mxu0 %v831
    %1003 = vmatpush1.bf16.msra.mxu0 %v830
    %1004 = vmatprep.subr.bf16.mxu0 %v835
    %1005 = vmatpush1.bf16.msra.mxu0 %v834
    %1006 = vmatprep.subr.bf16.mxu0 %v839
    %1007 = vmatpush1.bf16.msra.mxu0 %v838
    %1008 = vmatprep.subr.bf16.mxu0 %v843
    %1009 = vmatpush1.bf16.msra.mxu0 %v842
    %1010 = vmatprep.subr.bf16.mxu0 0
    %1011 = vmatpush1.bf16.msra.mxu0 0
    %1012 = vmatprep.subr.bf16.mxu0 0
    %1013 = vmatpush1.bf16.msra.mxu0 0
    %1014 = vmatprep.subr.bf16.mxu0 0
    %1015 = vmatpush1.bf16.msra.mxu0 0
    %1016 = vmatprep.subr.bf16.mxu0 0
    %1017 = vmatpush1.bf16.msra.mxu0 0
    %1018 = vmatprep.subr.bf16.mxu0 0
    %1019 = vmatpush1.bf16.msra.mxu0 0
    %1020 = vmatprep.subr.bf16.mxu0 0
    %1021 = vmatpush1.bf16.msra.mxu0 0
    %1022 = vmatprep.subr.bf16.mxu0 0
    %1023 = vmatpush1.bf16.msra.mxu0 0
    %1024 = vmatprep.subr.bf16.mxu0 0
    %1025 = vmatpush1.bf16.msra.mxu0 0
    %1026 = vmatprep.mubr.bf16.mxu0 0
    %1027 = vmatmul.mubr.bf16.gmra.mrb[0].mxu0 %v988
    %v1028 = vpop.f32.mrb[0].mxu0
    %v1029 = vadd.f32 0.0, %v1028
    %v1030 = vpop.f32.mrb[0].mxu0
    %v1031 = vadd.f32 0.0, %v1030
    %v1032 = vpop.f32.mrb[0].mxu0
    %v1033 = vpop.f32.mrb[0].mxu0
    %1034 = vdwg.mxu0
    %1035 = vmatprep.subr.bf16.mxu0 %v817
    %1036 = vmatpush1.bf16.msra.mxu0 %v816
    %1037 = vmatprep.subr.bf16.mxu0 %v821
    %1038 = vmatpush1.bf16.msra.mxu0 %v820
    %1039 = vmatprep.subr.bf16.mxu0 %v825
    %1040 = vmatpush1.bf16.msra.mxu0 %v824
    %1041 = vmatprep.subr.bf16.mxu0 %v829
    %1042 = vmatpush1.bf16.msra.mxu0 %v828
    %1043 = vmatprep.subr.bf16.mxu0 %v833
    %1044 = vmatpush1.bf16.msra.mxu0 %v832
    %1045 = vmatprep.subr.bf16.mxu0 %v837
    %1046 = vmatpush1.bf16.msra.mxu0 %v836
    %1047 = vmatprep.subr.bf16.mxu0 %v841
    %1048 = vmatpush1.bf16.msra.mxu0 %v840
    %1049 = vmatprep.subr.bf16.mxu0 %v845
    %1050 = vmatpush1.bf16.msra.mxu0 %v844
    %1051 = vmatprep.subr.bf16.mxu0 0
    %1052 = vmatpush1.bf16.msra.mxu0 0
    %1053 = vmatprep.subr.bf16.mxu0 0
    %1054 = vmatpush1.bf16.msra.mxu0 0
    %1055 = vmatprep.subr.bf16.mxu0 0
    %1056 = vmatpush1.bf16.msra.mxu0 0
    %1057 = vmatprep.subr.bf16.mxu0 0
    %1058 = vmatpush1.bf16.msra.mxu0 0
    %1059 = vmatprep.subr.bf16.mxu0 0
    %1060 = vmatpush1.bf16.msra.mxu0 0
    %1061 = vmatprep.subr.bf16.mxu0 0
    %1062 = vmatpush1.bf16.msra.mxu0 0
    %1063 = vmatprep.subr.bf16.mxu0 0
    %1064 = vmatpush1.bf16.msra.mxu0 0
    %1065 = vmatprep.subr.bf16.mxu0 0
    %1066 = vmatpush1.bf16.msra.mxu0 0
    %1067 = vmatprep.mubr.bf16.mxu0 0
    %1068 = vmatmul.mubr.bf16.gmra.mrb[0].mxu0 %v988
    %v1069 = vpop.f32.mrb[0].mxu0
    %v1070 = vadd.f32 0.0, %v1069
    %v1071 = vpop.f32.mrb[0].mxu0
    %v1072 = vadd.f32 0.0, %v1071
    %v1073 = vpop.f32.mrb[0].mxu0
    %v1074 = vpop.f32.mrb[0].mxu0
    %1075 = vdwg.mxu0
    %v1076 = vadd.f32 %v990, %v1029
    %v1077 = vadd.f32 %v991, %v1031
    %v1078 = vadd.f32 %v992, %v1070
    %v1079 = vadd.f32 %v993, %v1072
    %v1080 = vxor.u32 %v1076, 2147483648
    %v1081 = vmul.f32 %v1080, 1.442695
    %v1082 = vpow.pop %v1081
    %v1083 = vadd.f32 %v1082, 1.0
    %v1084 = vrcp.pop %v1083
    %v1085 = vmul.f32 1.0, %v1084
    %v1086 = vtanh.pop %v1078
    %v1087 = vmul.f32 %v1085, %v1086
    %v1088 = vxor.u32 %v1077, 2147483648
    %v1089 = vmul.f32 %v1088, 1.442695
    %v1090 = vpow.pop %v1089
    %v1091 = vadd.f32 %v1090, 1.0
    %v1092 = vrcp.pop %v1091
    %v1093 = vmul.f32 1.0, %v1092
    %v1094 = vmul.f32 %v1093, %v979
    %v1095 = vadd.f32 %v1094, %v1087
    %v1096 = vxor.u32 %v1079, 2147483648
    %v1097 = vmul.f32 %v1096, 1.442695
    %v1098 = vpow.pop %v1097
    %v1099 = vadd.f32 %v1098, 1.0
    %v1100 = vrcp.pop %v1099
    %v1101 = vmul.f32 1.0, %v1100
    %v1102 = vtanh.pop %v1095
    %v1103 = vmul.f32 %v1101, %v1102
    %v1104 = vpack.c.bf16 %v1103, %v1103
    %s1105 = scalar_lea.vmem [#allocation2], 64
    %v1106 = vld [vmem:[%s1105] sm:$0xff]
    %v1107 = vld [vmem:[%s1105 + $0x8] sm:$0xff]
    %v1108 = vld [vmem:[%s1105 + $0x10] sm:$0xff]
    %v1109 = vld [vmem:[%s1105 + $0x18] sm:$0xff]
    %1110 = vmatprep.subr.bf16.mxu0 %v815
    %1111 = vmatpush1.bf16.msra.mxu0 %v814
    %1112 = vmatprep.subr.bf16.mxu0 %v819
    %1113 = vmatpush1.bf16.msra.mxu0 %v818
    %1114 = vmatprep.subr.bf16.mxu0 %v823
    %1115 = vmatpush1.bf16.msra.mxu0 %v822
    %1116 = vmatprep.subr.bf16.mxu0 %v827
    %1117 = vmatpush1.bf16.msra.mxu0 %v826
    %1118 = vmatprep.subr.bf16.mxu0 %v831
    %1119 = vmatpush1.bf16.msra.mxu0 %v830
    %1120 = vmatprep.subr.bf16.mxu0 %v835
    %1121 = vmatpush1.bf16.msra.mxu0 %v834
    %1122 = vmatprep.subr.bf16.mxu0 %v839
    %1123 = vmatpush1.bf16.msra.mxu0 %v838
    %1124 = vmatprep.subr.bf16.mxu0 %v843
    %1125 = vmatpush1.bf16.msra.mxu0 %v842
    %1126 = vmatprep.subr.bf16.mxu0 0
    %1127 = vmatpush1.bf16.msra.mxu0 0
    %1128 = vmatprep.subr.bf16.mxu0 0
    %1129 = vmatpush1.bf16.msra.mxu0 0
    %1130 = vmatprep.subr.bf16.mxu0 0
    %1131 = vmatpush1.bf16.msra.mxu0 0
    %1132 = vmatprep.subr.bf16.mxu0 0
    %1133 = vmatpush1.bf16.msra.mxu0 0
    %1134 = vmatprep.subr.bf16.mxu0 0
    %1135 = vmatpush1.bf16.msra.mxu0 0
    %1136 = vmatprep.subr.bf16.mxu0 0
    %1137 = vmatpush1.bf16.msra.mxu0 0
    %1138 = vmatprep.subr.bf16.mxu0 0
    %1139 = vmatpush1.bf16.msra.mxu0 0
    %1140 = vmatprep.subr.bf16.mxu0 0
    %1141 = vmatpush1.bf16.msra.mxu0 0
    %1142 = vmatprep.mubr.bf16.mxu0 0
    %1143 = vmatmul.mubr.bf16.gmra.mrb[0].mxu0 %v1104
    %v1144 = vpop.f32.mrb[0].mxu0
    %v1145 = vadd.f32 0.0, %v1144
    %v1146 = vpop.f32.mrb[0].mxu0
    %v1147 = vadd.f32 0.0, %v1146
    %v1148 = vpop.f32.mrb[0].mxu0
    %v1149 = vpop.f32.mrb[0].mxu0
    %1150 = vdwg.mxu0
    %1151 = vmatprep.subr.bf16.mxu0 %v817
    %1152 = vmatpush1.bf16.msra.mxu0 %v816
    %1153 = vmatprep.subr.bf16.mxu0 %v821
    %1154 = vmatpush1.bf16.msra.mxu0 %v820
    %1155 = vmatprep.subr.bf16.mxu0 %v825
    %1156 = vmatpush1.bf16.msra.mxu0 %v824
    %1157 = vmatprep.subr.bf16.mxu0 %v829
    %1158 = vmatpush1.bf16.msra.mxu0 %v828
    %1159 = vmatprep.subr.bf16.mxu0 %v833
    %1160 = vmatpush1.bf16.msra.mxu0 %v832
    %1161 = vmatprep.subr.bf16.mxu0 %v837
    %1162 = vmatpush1.bf16.msra.mxu0 %v836
    %1163 = vmatprep.subr.bf16.mxu0 %v841
    %1164 = vmatpush1.bf16.msra.mxu0 %v840
    %1165 = vmatprep.subr.bf16.mxu0 %v845
    %1166 = vmatpush1.bf16.msra.mxu0 %v844
    %1167 = vmatprep.subr.bf16.mxu0 0
    %1168 = vmatpush1.bf16.msra.mxu0 0
    %1169 = vmatprep.subr.bf16.mxu0 0
    %1170 = vmatpush1.bf16.msra.mxu0 0
    %1171 = vmatprep.subr.bf16.mxu0 0
    %1172 = vmatpush1.bf16.msra.mxu0 0
    %1173 = vmatprep.subr.bf16.mxu0 0
    %1174 = vmatpush1.bf16.msra.mxu0 0
    %1175 = vmatprep.subr.bf16.mxu0 0
    %1176 = vmatpush1.bf16.msra.mxu0 0
    %1177 = vmatprep.subr.bf16.mxu0 0
    %1178 = vmatpush1.bf16.msra.mxu0 0
    %1179 = vmatprep.subr.bf16.mxu0 0
    %1180 = vmatpush1.bf16.msra.mxu0 0
    %1181 = vmatprep.subr.bf16.mxu0 0
    %1182 = vmatpush1.bf16.msra.mxu0 0
    %1183 = vmatprep.mubr.bf16.mxu0 0
    %1184 = vmatmul.mubr.bf16.gmra.mrb[0].mxu0 %v1104
    %v1185 = vpop.f32.mrb[0].mxu0
    %v1186 = vadd.f32 0.0, %v1185
    %v1187 = vpop.f32.mrb[0].mxu0
    %v1188 = vadd.f32 0.0, %v1187
    %v1189 = vpop.f32.mrb[0].mxu0
    %v1190 = vpop.f32.mrb[0].mxu0
    %1191 = vdwg.mxu0
    %v1192 = vadd.f32 %v1106, %v1145
    %v1193 = vadd.f32 %v1107, %v1147
    %v1194 = vadd.f32 %v1108, %v1186
    %v1195 = vadd.f32 %v1109, %v1188
    %v1196 = vxor.u32 %v1192, 2147483648
    %v1197 = vmul.f32 %v1196, 1.442695
    %v1198 = vpow.pop %v1197
    %v1199 = vadd.f32 %v1198, 1.0
    %v1200 = vrcp.pop %v1199
    %v1201 = vmul.f32 1.0, %v1200
    %v1202 = vtanh.pop %v1194
    %v1203 = vmul.f32 %v1201, %v1202
    %v1204 = vxor.u32 %v1193, 2147483648
    %v1205 = vmul.f32 %v1204, 1.442695
    %v1206 = vpow.pop %v1205
    %v1207 = vadd.f32 %v1206, 1.0
    %v1208 = vrcp.pop %v1207
    %v1209 = vmul.f32 1.0, %v1208
    %v1210 = vmul.f32 %v1209, %v1095
    %v1211 = vadd.f32 %v1210, %v1203
    %v1212 = vxor.u32 %v1195, 2147483648
    %v1213 = vmul.f32 %v1212, 1.442695
    %v1214 = vpow.pop %v1213
    %v1215 = vadd.f32 %v1214, 1.0
    %v1216 = vrcp.pop %v1215
    %v1217 = vmul.f32 1.0, %v1216
    %v1218 = vtanh.pop %v1211
    %v1219 = vmul.f32 %v1217, %v1218
    %v1220 = vpack.c.bf16 %v1219, %v1219
    %s1221 = scalar_lea.vmem [#allocation2], 96
    %v1222 = vld [vmem:[%s1221] sm:$0xff]
    %v1223 = vld [vmem:[%s1221 + $0x8] sm:$0xff]
    %v1224 = vld [vmem:[%s1221 + $0x10] sm:$0xff]
    %v1225 = vld [vmem:[%s1221 + $0x18] sm:$0xff]
    %1226 = vmatprep.subr.bf16.mxu0 %v815
    %1227 = vmatpush1.bf16.msra.mxu0 %v814
    %1228 = vmatprep.subr.bf16.mxu0 %v819
    %1229 = vmatpush1.bf16.msra.mxu0 %v818
    %1230 = vmatprep.subr.bf16.mxu0 %v823
    %1231 = vmatpush1.bf16.msra.mxu0 %v822
    %1232 = vmatprep.subr.bf16.mxu0 %v827
    %1233 = vmatpush1.bf16.msra.mxu0 %v826
    %1234 = vmatprep.subr.bf16.mxu0 %v831
    %1235 = vmatpush1.bf16.msra.mxu0 %v830
    %1236 = vmatprep.subr.bf16.mxu0 %v835
    %1237 = vmatpush1.bf16.msra.mxu0 %v834
    %1238 = vmatprep.subr.bf16.mxu0 %v839
    %1239 = vmatpush1.bf16.msra.mxu0 %v838
    %1240 = vmatprep.subr.bf16.mxu0 %v843
    %1241 = vmatpush1.bf16.msra.mxu0 %v842
    %1242 = vmatprep.subr.bf16.mxu0 0
    %1243 = vmatpush1.bf16.msra.mxu0 0
    %1244 = vmatprep.subr.bf16.mxu0 0
    %1245 = vmatpush1.bf16.msra.mxu0 0
    %1246 = vmatprep.subr.bf16.mxu0 0
    %1247 = vmatpush1.bf16.msra.mxu0 0
    %1248 = vmatprep.subr.bf16.mxu0 0
    %1249 = vmatpush1.bf16.msra.mxu0 0
    %1250 = vmatprep.subr.bf16.mxu0 0
    %1251 = vmatpush1.bf16.msra.mxu0 0
    %1252 = vmatprep.subr.bf16.mxu0 0
    %1253 = vmatpush1.bf16.msra.mxu0 0
    %1254 = vmatprep.subr.bf16.mxu0 0
    %1255 = vmatpush1.bf16.msra.mxu0 0
    %1256 = vmatprep.subr.bf16.mxu0 0
    %1257 = vmatpush1.bf16.msra.mxu0 0
    %1258 = vmatprep.mubr.bf16.mxu0 0
    %1259 = vmatmul.mubr.bf16.gmra.mrb[0].mxu0 %v1220
    %v1260 = vpop.f32.mrb[0].mxu0
    %v1261 = vadd.f32 0.0, %v1260
    %v1262 = vpop.f32.mrb[0].mxu0
    %v1263 = vadd.f32 0.0, %v1262
    %v1264 = vpop.f32.mrb[0].mxu0
    %v1265 = vpop.f32.mrb[0].mxu0
    %1266 = vdwg.mxu0
    %1267 = vmatprep.subr.bf16.mxu0 %v817
    %1268 = vmatpush1.bf16.msra.mxu0 %v816
    %1269 = vmatprep.subr.bf16.mxu0 %v821
    %1270 = vmatpush1.bf16.msra.mxu0 %v820
    %1271 = vmatprep.subr.bf16.mxu0 %v825
    %1272 = vmatpush1.bf16.msra.mxu0 %v824
    %1273 = vmatprep.subr.bf16.mxu0 %v829
    %1274 = vmatpush1.bf16.msra.mxu0 %v828
    %1275 = vmatprep.subr.bf16.mxu0 %v833
    %1276 = vmatpush1.bf16.msra.mxu0 %v832
    %1277 = vmatprep.subr.bf16.mxu0 %v837
    %1278 = vmatpush1.bf16.msra.mxu0 %v836
    %1279 = vmatprep.subr.bf16.mxu0 %v841
    %1280 = vmatpush1.bf16.msra.mxu0 %v840
    %1281 = vmatprep.subr.bf16.mxu0 %v845
    %1282 = vmatpush1.bf16.msra.mxu0 %v844
    %1283 = vmatprep.subr.bf16.mxu0 0
    %1284 = vmatpush1.bf16.msra.mxu0 0
    %1285 = vmatprep.subr.bf16.mxu0 0
    %1286 = vmatpush1.bf16.msra.mxu0 0
    %1287 = vmatprep.subr.bf16.mxu0 0
    %1288 = vmatpush1.bf16.msra.mxu0 0
    %1289 = vmatprep.subr.bf16.mxu0 0
    %1290 = vmatpush1.bf16.msra.mxu0 0
    %1291 = vmatprep.subr.bf16.mxu0 0
    %1292 = vmatpush1.bf16.msra.mxu0 0
    %1293 = vmatprep.subr.bf16.mxu0 0
    %1294 = vmatpush1.bf16.msra.mxu0 0
    %1295 = vmatprep.subr.bf16.mxu0 0
    %1296 = vmatpush1.bf16.msra.mxu0 0
    %1297 = vmatprep.subr.bf16.mxu0 0
    %1298 = vmatpush1.bf16.msra.mxu0 0
    %1299 = vmatprep.mubr.bf16.mxu0 0
    %1300 = vmatmul.mubr.bf16.gmra.mrb[0].mxu0 %v1220
    %v1301 = vpop.f32.mrb[0].mxu0
    %v1302 = vadd.f32 0.0, %v1301
    %v1303 = vpop.f32.mrb[0].mxu0
    %v1304 = vadd.f32 0.0, %v1303
    %v1305 = vpop.f32.mrb[0].mxu0
    %v1306 = vpop.f32.mrb[0].mxu0
    %1307 = vdwg.mxu0
    %v1308 = vadd.f32 %v1222, %v1261
    %v1309 = vadd.f32 %v1223, %v1263
    %v1310 = vadd.f32 %v1224, %v1302
    %v1311 = vadd.f32 %v1225, %v1304
    %v1312 = vxor.u32 %v1308, 2147483648
    %v1313 = vmul.f32 %v1312, 1.442695
    %v1314 = vpow.pop %v1313
    %v1315 = vadd.f32 %v1314, 1.0
    %v1316 = vrcp.pop %v1315
    %v1317 = vmul.f32 1.0, %v1316
    %v1318 = vtanh.pop %v1310
    %v1319 = vmul.f32 %v1317, %v1318
    %v1320 = vxor.u32 %v1309, 2147483648
    %v1321 = vmul.f32 %v1320, 1.442695
    %v1322 = vpow.pop %v1321
    %v1323 = vadd.f32 %v1322, 1.0
    %v1324 = vrcp.pop %v1323
    %v1325 = vmul.f32 1.0, %v1324
    %v1326 = vmul.f32 %v1325, %v1211
    %v1327 = vadd.f32 %v1326, %v1319
    %v1328 = vxor.u32 %v1311, 2147483648
    %v1329 = vmul.f32 %v1328, 1.442695
    %v1330 = vpow.pop %v1329
    %v1331 = vadd.f32 %v1330, 1.0
    %v1332 = vrcp.pop %v1331
    %v1333 = vmul.f32 1.0, %v1332
    %v1334 = vtanh.pop %v1327
    %v1335 = vmul.f32 %v1333, %v1334
    %v1336 = vpack.c.bf16 %v1335, %v1335
    %s1337 = scalar_lea.vmem [#allocation2], 128
    %v1338 = vld [vmem:[%s1337] sm:$0xff]
    %v1339 = vld [vmem:[%s1337 + $0x8] sm:$0xff]
    %v1340 = vld [vmem:[%s1337 + $0x10] sm:$0xff]
    %v1341 = vld [vmem:[%s1337 + $0x18] sm:$0xff]
    %1342 = vmatprep.subr.bf16.mxu0 %v815
    %1343 = vmatpush1.bf16.msra.mxu0 %v814
    %1344 = vmatprep.subr.bf16.mxu0 %v819
    %1345 = vmatpush1.bf16.msra.mxu0 %v818
    %1346 = vmatprep.subr.bf16.mxu0 %v823
    %1347 = vmatpush1.bf16.msra.mxu0 %v822
    %1348 = vmatprep.subr.bf16.mxu0 %v827
    %1349 = vmatpush1.bf16.msra.mxu0 %v826
    %1350 = vmatprep.subr.bf16.mxu0 %v831
    %1351 = vmatpush1.bf16.msra.mxu0 %v830
    %1352 = vmatprep.subr.bf16.mxu0 %v835
    %1353 = vmatpush1.bf16.msra.mxu0 %v834
    %1354 = vmatprep.subr.bf16.mxu0 %v839
    %1355 = vmatpush1.bf16.msra.mxu0 %v838
    %1356 = vmatprep.subr.bf16.mxu0 %v843
    %1357 = vmatpush1.bf16.msra.mxu0 %v842
    %1358 = vmatprep.subr.bf16.mxu0 0
    %1359 = vmatpush1.bf16.msra.mxu0 0
    %1360 = vmatprep.subr.bf16.mxu0 0
    %1361 = vmatpush1.bf16.msra.mxu0 0
    %1362 = vmatprep.subr.bf16.mxu0 0
    %1363 = vmatpush1.bf16.msra.mxu0 0
    %1364 = vmatprep.subr.bf16.mxu0 0
    %1365 = vmatpush1.bf16.msra.mxu0 0
    %1366 = vmatprep.subr.bf16.mxu0 0
    %1367 = vmatpush1.bf16.msra.mxu0 0
    %1368 = vmatprep.subr.bf16.mxu0 0
    %1369 = vmatpush1.bf16.msra.mxu0 0
    %1370 = vmatprep.subr.bf16.mxu0 0
    %1371 = vmatpush1.bf16.msra.mxu0 0
    %1372 = vmatprep.subr.bf16.mxu0 0
    %1373 = vmatpush1.bf16.msra.mxu0 0
    %1374 = vmatprep.mubr.bf16.mxu0 0
    %1375 = vmatmul.mubr.bf16.gmra.mrb[0].mxu0 %v1336
    %v1376 = vpop.f32.mrb[0].mxu0
    %v1377 = vadd.f32 0.0, %v1376
    %v1378 = vpop.f32.mrb[0].mxu0
    %v1379 = vadd.f32 0.0, %v1378
    %v1380 = vpop.f32.mrb[0].mxu0
    %v1381 = vpop.f32.mrb[0].mxu0
    %1382 = vdwg.mxu0
    %1383 = vmatprep.subr.bf16.mxu0 %v817
    %1384 = vmatpush1.bf16.msra.mxu0 %v816
    %1385 = vmatprep.subr.bf16.mxu0 %v821
    %1386 = vmatpush1.bf16.msra.mxu0 %v820
    %1387 = vmatprep.subr.bf16.mxu0 %v825
    %1388 = vmatpush1.bf16.msra.mxu0 %v824
    %1389 = vmatprep.subr.bf16.mxu0 %v829
    %1390 = vmatpush1.bf16.msra.mxu0 %v828
    %1391 = vmatprep.subr.bf16.mxu0 %v833
    %1392 = vmatpush1.bf16.msra.mxu0 %v832
    %1393 = vmatprep.subr.bf16.mxu0 %v837
    %1394 = vmatpush1.bf16.msra.mxu0 %v836
    %1395 = vmatprep.subr.bf16.mxu0 %v841
    %1396 = vmatpush1.bf16.msra.mxu0 %v840
    %1397 = vmatprep.subr.bf16.mxu0 %v845
    %1398 = vmatpush1.bf16.msra.mxu0 %v844
    %1399 = vmatprep.subr.bf16.mxu0 0
    %1400 = vmatpush1.bf16.msra.mxu0 0
    %1401 = vmatprep.subr.bf16.mxu0 0
    %1402 = vmatpush1.bf16.msra.mxu0 0
    %1403 = vmatprep.subr.bf16.mxu0 0
    %1404 = vmatpush1.bf16.msra.mxu0 0
    %1405 = vmatprep.subr.bf16.mxu0 0
    %1406 = vmatpush1.bf16.msra.mxu0 0
    %1407 = vmatprep.subr.bf16.mxu0 0
    %1408 = vmatpush1.bf16.msra.mxu0 0
    %1409 = vmatprep.subr.bf16.mxu0 0
    %1410 = vmatpush1.bf16.msra.mxu0 0
    %1411 = vmatprep.subr.bf16.mxu0 0
    %1412 = vmatpush1.bf16.msra.mxu0 0
    %1413 = vmatprep.subr.bf16.mxu0 0
    %1414 = vmatpush1.bf16.msra.mxu0 0
    %1415 = vmatprep.mubr.bf16.mxu0 0
    %1416 = vmatmul.mubr.bf16.gmra.mrb[0].mxu0 %v1336
    %v1417 = vpop.f32.mrb[0].mxu0
    %v1418 = vadd.f32 0.0, %v1417
    %v1419 = vpop.f32.mrb[0].mxu0
    %v1420 = vadd.f32 0.0, %v1419
    %v1421 = vpop.f32.mrb[0].mxu0
    %v1422 = vpop.f32.mrb[0].mxu0
    %1423 = vdwg.mxu0
    %v1424 = vadd.f32 %v1338, %v1377
    %v1425 = vadd.f32 %v1339, %v1379
    %v1426 = vadd.f32 %v1340, %v1418
    %v1427 = vadd.f32 %v1341, %v1420
    %v1428 = vxor.u32 %v1424, 2147483648
    %v1429 = vmul.f32 %v1428, 1.442695
    %v1430 = vpow.pop %v1429
    %v1431 = vadd.f32 %v1430, 1.0
    %v1432 = vrcp.pop %v1431
    %v1433 = vmul.f32 1.0, %v1432
    %v1434 = vtanh.pop %v1426
    %v1435 = vmul.f32 %v1433, %v1434
    %v1436 = vxor.u32 %v1425, 2147483648
    %v1437 = vmul.f32 %v1436, 1.442695
    %v1438 = vpow.pop %v1437
    %v1439 = vadd.f32 %v1438, 1.0
    %v1440 = vrcp.pop %v1439
    %v1441 = vmul.f32 1.0, %v1440
    %v1442 = vmul.f32 %v1441, %v1327
    %v1443 = vadd.f32 %v1442, %v1435
    %v1444 = vxor.u32 %v1427, 2147483648
    %v1445 = vmul.f32 %v1444, 1.442695
    %v1446 = vpow.pop %v1445
    %v1447 = vadd.f32 %v1446, 1.0
    %v1448 = vrcp.pop %v1447
    %v1449 = vmul.f32 1.0, %v1448
    %v1450 = vtanh.pop %v1443
    %v1451 = vmul.f32 %v1449, %v1450
    %v1452 = vpack.c.bf16 %v1451, %v1451
    %s1453 = scalar_lea.vmem [#allocation2], 160
    %v1454 = vld [vmem:[%s1453] sm:$0xff]
    %v1455 = vld [vmem:[%s1453 + $0x8] sm:$0xff]
    %v1456 = vld [vmem:[%s1453 + $0x10] sm:$0xff]
    %v1457 = vld [vmem:[%s1453 + $0x18] sm:$0xff]
    %1458 = vmatprep.subr.bf16.mxu0 %v815
    %1459 = vmatpush1.bf16.msra.mxu0 %v814
    %1460 = vmatprep.subr.bf16.mxu0 %v819
    %1461 = vmatpush1.bf16.msra.mxu0 %v818
    %1462 = vmatprep.subr.bf16.mxu0 %v823
    %1463 = vmatpush1.bf16.msra.mxu0 %v822
    %1464 = vmatprep.subr.bf16.mxu0 %v827
    %1465 = vmatpush1.bf16.msra.mxu0 %v826
    %1466 = vmatprep.subr.bf16.mxu0 %v831
    %1467 = vmatpush1.bf16.msra.mxu0 %v830
    %1468 = vmatprep.subr.bf16.mxu0 %v835
    %1469 = vmatpush1.bf16.msra.mxu0 %v834
    %1470 = vmatprep.subr.bf16.mxu0 %v839
    %1471 = vmatpush1.bf16.msra.mxu0 %v838
    %1472 = vmatprep.subr.bf16.mxu0 %v843
    %1473 = vmatpush1.bf16.msra.mxu0 %v842
    %1474 = vmatprep.subr.bf16.mxu0 0
    %1475 = vmatpush1.bf16.msra.mxu0 0
    %1476 = vmatprep.subr.bf16.mxu0 0
    %1477 = vmatpush1.bf16.msra.mxu0 0
    %1478 = vmatprep.subr.bf16.mxu0 0
    %1479 = vmatpush1.bf16.msra.mxu0 0
    %1480 = vmatprep.subr.bf16.mxu0 0
    %1481 = vmatpush1.bf16.msra.mxu0 0
    %1482 = vmatprep.subr.bf16.mxu0 0
    %1483 = vmatpush1.bf16.msra.mxu0 0
    %1484 = vmatprep.subr.bf16.mxu0 0
    %1485 = vmatpush1.bf16.msra.mxu0 0
    %1486 = vmatprep.subr.bf16.mxu0 0
    %1487 = vmatpush1.bf16.msra.mxu0 0
    %1488 = vmatprep.subr.bf16.mxu0 0
    %1489 = vmatpush1.bf16.msra.mxu0 0
    %1490 = vmatprep.mubr.bf16.mxu0 0
    %1491 = vmatmul.mubr.bf16.gmra.mrb[0].mxu0 %v1452
    %v1492 = vpop.f32.mrb[0].mxu0
    %v1493 = vadd.f32 0.0, %v1492
    %v1494 = vpop.f32.mrb[0].mxu0
    %v1495 = vadd.f32 0.0, %v1494
    %v1496 = vpop.f32.mrb[0].mxu0
    %v1497 = vpop.f32.mrb[0].mxu0
    %1498 = vdwg.mxu0
    %1499 = vmatprep.subr.bf16.mxu0 %v817
    %1500 = vmatpush1.bf16.msra.mxu0 %v816
    %1501 = vmatprep.subr.bf16.mxu0 %v821
    %1502 = vmatpush1.bf16.msra.mxu0 %v820
    %1503 = vmatprep.subr.bf16.mxu0 %v825
    %1504 = vmatpush1.bf16.msra.mxu0 %v824
    %1505 = vmatprep.subr.bf16.mxu0 %v829
    %1506 = vmatpush1.bf16.msra.mxu0 %v828
    %1507 = vmatprep.subr.bf16.mxu0 %v833
    %1508 = vmatpush1.bf16.msra.mxu0 %v832
    %1509 = vmatprep.subr.bf16.mxu0 %v837
    %1510 = vmatpush1.bf16.msra.mxu0 %v836
    %1511 = vmatprep.subr.bf16.mxu0 %v841
    %1512 = vmatpush1.bf16.msra.mxu0 %v840
    %1513 = vmatprep.subr.bf16.mxu0 %v845
    %1514 = vmatpush1.bf16.msra.mxu0 %v844
    %1515 = vmatprep.subr.bf16.mxu0 0
    %1516 = vmatpush1.bf16.msra.mxu0 0
    %1517 = vmatprep.subr.bf16.mxu0 0
    %1518 = vmatpush1.bf16.msra.mxu0 0
    %1519 = vmatprep.subr.bf16.mxu0 0
    %1520 = vmatpush1.bf16.msra.mxu0 0
    %1521 = vmatprep.subr.bf16.mxu0 0
    %1522 = vmatpush1.bf16.msra.mxu0 0
    %1523 = vmatprep.subr.bf16.mxu0 0
    %1524 = vmatpush1.bf16.msra.mxu0 0
    %1525 = vmatprep.subr.bf16.mxu0 0
    %1526 = vmatpush1.bf16.msra.mxu0 0
    %1527 = vmatprep.subr.bf16.mxu0 0
    %1528 = vmatpush1.bf16.msra.mxu0 0
    %1529 = vmatprep.subr.bf16.mxu0 0
    %1530 = vmatpush1.bf16.msra.mxu0 0
    %1531 = vmatprep.mubr.bf16.mxu0 0
    %1532 = vmatmul.mubr.bf16.gmra.mrb[0].mxu0 %v1452
    %v1533 = vpop.f32.mrb[0].mxu0
    %v1534 = vadd.f32 0.0, %v1533
    %v1535 = vpop.f32.mrb[0].mxu0
    %v1536 = vadd.f32 0.0, %v1535
    %v1537 = vpop.f32.mrb[0].mxu0
    %v1538 = vpop.f32.mrb[0].mxu0
    %1539 = vdwg.mxu0
    %v1540 = vadd.f32 %v1454, %v1493
    %v1541 = vadd.f32 %v1455, %v1495
    %v1542 = vadd.f32 %v1456, %v1534
    %v1543 = vadd.f32 %v1457, %v1536
    %v1544 = vxor.u32 %v1540, 2147483648
    %v1545 = vmul.f32 %v1544, 1.442695
    %v1546 = vpow.pop %v1545
    %v1547 = vadd.f32 %v1546, 1.0
    %v1548 = vrcp.pop %v1547
    %v1549 = vmul.f32 1.0, %v1548
    %v1550 = vtanh.pop %v1542
    %v1551 = vmul.f32 %v1549, %v1550
    %v1552 = vxor.u32 %v1541, 2147483648
    %v1553 = vmul.f32 %v1552, 1.442695
    %v1554 = vpow.pop %v1553
    %v1555 = vadd.f32 %v1554, 1.0
    %v1556 = vrcp.pop %v1555
    %v1557 = vmul.f32 1.0, %v1556
    %v1558 = vmul.f32 %v1557, %v1443
    %v1559 = vadd.f32 %v1558, %v1551
    %v1560 = vxor.u32 %v1543, 2147483648
    %v1561 = vmul.f32 %v1560, 1.442695
    %v1562 = vpow.pop %v1561
    %v1563 = vadd.f32 %v1562, 1.0
    %v1564 = vrcp.pop %v1563
    %v1565 = vmul.f32 1.0, %v1564
    %v1566 = vtanh.pop %v1559
    %v1567 = vmul.f32 %v1565, %v1566
    %v1568 = vpack.c.bf16 %v1567, %v1567
    %s1569 = scalar_lea.vmem [#allocation2], 192
    %v1570 = vld [vmem:[%s1569] sm:$0xff]
    %v1571 = vld [vmem:[%s1569 + $0x8] sm:$0xff]
    %v1572 = vld [vmem:[%s1569 + $0x10] sm:$0xff]
    %v1573 = vld [vmem:[%s1569 + $0x18] sm:$0xff]
    %1574 = vmatprep.subr.bf16.mxu0 %v815
    %1575 = vmatpush1.bf16.msra.mxu0 %v814
    %1576 = vmatprep.subr.bf16.mxu0 %v819
    %1577 = vmatpush1.bf16.msra.mxu0 %v818
    %1578 = vmatprep.subr.bf16.mxu0 %v823
    %1579 = vmatpush1.bf16.msra.mxu0 %v822
    %1580 = vmatprep.subr.bf16.mxu0 %v827
    %1581 = vmatpush1.bf16.msra.mxu0 %v826
    %1582 = vmatprep.subr.bf16.mxu0 %v831
    %1583 = vmatpush1.bf16.msra.mxu0 %v830
    %1584 = vmatprep.subr.bf16.mxu0 %v835
    %1585 = vmatpush1.bf16.msra.mxu0 %v834
    %1586 = vmatprep.subr.bf16.mxu0 %v839
    %1587 = vmatpush1.bf16.msra.mxu0 %v838
    %1588 = vmatprep.subr.bf16.mxu0 %v843
    %1589 = vmatpush1.bf16.msra.mxu0 %v842
    %1590 = vmatprep.subr.bf16.mxu0 0
    %1591 = vmatpush1.bf16.msra.mxu0 0
    %1592 = vmatprep.subr.bf16.mxu0 0
    %1593 = vmatpush1.bf16.msra.mxu0 0
    %1594 = vmatprep.subr.bf16.mxu0 0
    %1595 = vmatpush1.bf16.msra.mxu0 0
    %1596 = vmatprep.subr.bf16.mxu0 0
    %1597 = vmatpush1.bf16.msra.mxu0 0
    %1598 = vmatprep.subr.bf16.mxu0 0
    %1599 = vmatpush1.bf16.msra.mxu0 0
    %1600 = vmatprep.subr.bf16.mxu0 0
    %1601 = vmatpush1.bf16.msra.mxu0 0
    %1602 = vmatprep.subr.bf16.mxu0 0
    %1603 = vmatpush1.bf16.msra.mxu0 0
    %1604 = vmatprep.subr.bf16.mxu0 0
    %1605 = vmatpush1.bf16.msra.mxu0 0
    %1606 = vmatprep.mubr.bf16.mxu0 0
    %1607 = vmatmul.mubr.bf16.gmra.mrb[0].mxu0 %v1568
    %v1608 = vpop.f32.mrb[0].mxu0
    %v1609 = vadd.f32 0.0, %v1608
    %v1610 = vpop.f32.mrb[0].mxu0
    %v1611 = vadd.f32 0.0, %v1610
    %v1612 = vpop.f32.mrb[0].mxu0
    %v1613 = vpop.f32.mrb[0].mxu0
    %1614 = vdwg.mxu0
    %1615 = vmatprep.subr.bf16.mxu0 %v817
    %1616 = vmatpush1.bf16.msra.mxu0 %v816
    %1617 = vmatprep.subr.bf16.mxu0 %v821
    %1618 = vmatpush1.bf16.msra.mxu0 %v820
    %1619 = vmatprep.subr.bf16.mxu0 %v825
    %1620 = vmatpush1.bf16.msra.mxu0 %v824
    %1621 = vmatprep.subr.bf16.mxu0 %v829
    %1622 = vmatpush1.bf16.msra.mxu0 %v828
    %1623 = vmatprep.subr.bf16.mxu0 %v833
    %1624 = vmatpush1.bf16.msra.mxu0 %v832
    %1625 = vmatprep.subr.bf16.mxu0 %v837
    %1626 = vmatpush1.bf16.msra.mxu0 %v836
    %1627 = vmatprep.subr.bf16.mxu0 %v841
    %1628 = vmatpush1.bf16.msra.mxu0 %v840
    %1629 = vmatprep.subr.bf16.mxu0 %v845
    %1630 = vmatpush1.bf16.msra.mxu0 %v844
    %1631 = vmatprep.subr.bf16.mxu0 0
    %1632 = vmatpush1.bf16.msra.mxu0 0
    %1633 = vmatprep.subr.bf16.mxu0 0
    %1634 = vmatpush1.bf16.msra.mxu0 0
    %1635 = vmatprep.subr.bf16.mxu0 0
    %1636 = vmatpush1.bf16.msra.mxu0 0
    %1637 = vmatprep.subr.bf16.mxu0 0
    %1638 = vmatpush1.bf16.msra.mxu0 0
    %1639 = vmatprep.subr.bf16.mxu0 0
    %1640 = vmatpush1.bf16.msra.mxu0 0
    %1641 = vmatprep.subr.bf16.mxu0 0
    %1642 = vmatpush1.bf16.msra.mxu0 0
    %1643 = vmatprep.subr.bf16.mxu0 0
    %1644 = vmatpush1.bf16.msra.mxu0 0
    %1645 = vmatprep.subr.bf16.mxu0 0
    %1646 = vmatpush1.bf16.msra.mxu0 0
    %1647 = vmatprep.mubr.bf16.mxu0 0
    %1648 = vmatmul.mubr.bf16.gmra.mrb[0].mxu0 %v1568
    %v1649 = vpop.f32.mrb[0].mxu0
    %v1650 = vadd.f32 0.0, %v1649
    %v1651 = vpop.f32.mrb[0].mxu0
    %v1652 = vadd.f32 0.0, %v1651
    %v1653 = vpop.f32.mrb[0].mxu0
    %v1654 = vpop.f32.mrb[0].mxu0
    %1655 = vdwg.mxu0
    %v1656 = vadd.f32 %v1570, %v1609
    %v1657 = vadd.f32 %v1571, %v1611
    %v1658 = vadd.f32 %v1572, %v1650
    %v1659 = vadd.f32 %v1573, %v1652
    %v1660 = vxor.u32 %v1656, 2147483648
    %v1661 = vmul.f32 %v1660, 1.442695
    %v1662 = vpow.pop %v1661
    %v1663 = vadd.f32 %v1662, 1.0
    %v1664 = vrcp.pop %v1663
    %v1665 = vmul.f32 1.0, %v1664
    %v1666 = vtanh.pop %v1658
    %v1667 = vmul.f32 %v1665, %v1666
    %v1668 = vxor.u32 %v1657, 2147483648
    %v1669 = vmul.f32 %v1668, 1.442695
    %v1670 = vpow.pop %v1669
    %v1671 = vadd.f32 %v1670, 1.0
    %v1672 = vrcp.pop %v1671
    %v1673 = vmul.f32 1.0, %v1672
    %v1674 = vmul.f32 %v1673, %v1559
    %v1675 = vadd.f32 %v1674, %v1667
    %v1676 = vxor.u32 %v1659, 2147483648
    %v1677 = vmul.f32 %v1676, 1.442695
    %v1678 = vpow.pop %v1677
    %v1679 = vadd.f32 %v1678, 1.0
    %v1680 = vrcp.pop %v1679
    %v1681 = vmul.f32 1.0, %v1680
    %v1682 = vtanh.pop %v1675
    %v1683 = vmul.f32 %v1681, %v1682
    %v1684 = vpack.c.bf16 %v1683, %v1683
    %s1685 = scalar_lea.vmem [#allocation2], 224
    %v1686 = vld [vmem:[%s1685] sm:$0xff]
    %v1687 = vld [vmem:[%s1685 + $0x8] sm:$0xff]
    %v1688 = vld [vmem:[%s1685 + $0x10] sm:$0xff]
    %v1689 = vld [vmem:[%s1685 + $0x18] sm:$0xff]
    %1690 = vmatprep.subr.bf16.mxu0 %v815
    %1691 = vmatpush1.bf16.msra.mxu0 %v814
    %1692 = vmatprep.subr.bf16.mxu0 %v819
    %1693 = vmatpush1.bf16.msra.mxu0 %v818
    %1694 = vmatprep.subr.bf16.mxu0 %v823
    %1695 = vmatpush1.bf16.msra.mxu0 %v822
    %1696 = vmatprep.subr.bf16.mxu0 %v827
    %1697 = vmatpush1.bf16.msra.mxu0 %v826
    %1698 = vmatprep.subr.bf16.mxu0 %v831
    %1699 = vmatpush1.bf16.msra.mxu0 %v830
    %1700 = vmatprep.subr.bf16.mxu0 %v835
    %1701 = vmatpush1.bf16.msra.mxu0 %v834
    %1702 = vmatprep.subr.bf16.mxu0 %v839
    %1703 = vmatpush1.bf16.msra.mxu0 %v838
    %1704 = vmatprep.subr.bf16.mxu0 %v843
    %1705 = vmatpush1.bf16.msra.mxu0 %v842
    %1706 = vmatprep.subr.bf16.mxu0 0
    %1707 = vmatpush1.bf16.msra.mxu0 0
    %1708 = vmatprep.subr.bf16.mxu0 0
    %1709 = vmatpush1.bf16.msra.mxu0 0
    %1710 = vmatprep.subr.bf16.mxu0 0
    %1711 = vmatpush1.bf16.msra.mxu0 0
    %1712 = vmatprep.subr.bf16.mxu0 0
    %1713 = vmatpush1.bf16.msra.mxu0 0
    %1714 = vmatprep.subr.bf16.mxu0 0
    %1715 = vmatpush1.bf16.msra.mxu0 0
    %1716 = vmatprep.subr.bf16.mxu0 0
    %1717 = vmatpush1.bf16.msra.mxu0 0
    %1718 = vmatprep.subr.bf16.mxu0 0
    %1719 = vmatpush1.bf16.msra.mxu0 0
    %1720 = vmatprep.subr.bf16.mxu0 0
    %1721 = vmatpush1.bf16.msra.mxu0 0
    %1722 = vmatprep.mubr.bf16.mxu0 0
    %1723 = vmatmul.mubr.bf16.gmra.mrb[0].mxu0 %v1684
    %v1724 = vpop.f32.mrb[0].mxu0
    %v1725 = vadd.f32 0.0, %v1724
    %v1726 = vpop.f32.mrb[0].mxu0
    %v1727 = vadd.f32 0.0, %v1726
    %v1728 = vpop.f32.mrb[0].mxu0
    %v1729 = vpop.f32.mrb[0].mxu0
    %1730 = vdwg.mxu0
    %1731 = vmatprep.subr.bf16.mxu0 %v817
    %1732 = vmatpush1.bf16.msra.mxu0 %v816
    %1733 = vmatprep.subr.bf16.mxu0 %v821
    %1734 = vmatpush1.bf16.msra.mxu0 %v820
    %1735 = vmatprep.subr.bf16.mxu0 %v825
    %1736 = vmatpush1.bf16.msra.mxu0 %v824
    %1737 = vmatprep.subr.bf16.mxu0 %v829
    %1738 = vmatpush1.bf16.msra.mxu0 %v828
    %1739 = vmatprep.subr.bf16.mxu0 %v833
    %1740 = vmatpush1.bf16.msra.mxu0 %v832
    %1741 = vmatprep.subr.bf16.mxu0 %v837
    %1742 = vmatpush1.bf16.msra.mxu0 %v836
    %1743 = vmatprep.subr.bf16.mxu0 %v841
    %1744 = vmatpush1.bf16.msra.mxu0 %v840
    %1745 = vmatprep.subr.bf16.mxu0 %v845
    %1746 = vmatpush1.bf16.msra.mxu0 %v844
    %1747 = vmatprep.subr.bf16.mxu0 0
    %1748 = vmatpush1.bf16.msra.mxu0 0
    %1749 = vmatprep.subr.bf16.mxu0 0
    %1750 = vmatpush1.bf16.msra.mxu0 0
    %1751 = vmatprep.subr.bf16.mxu0 0
    %1752 = vmatpush1.bf16.msra.mxu0 0
    %1753 = vmatprep.subr.bf16.mxu0 0
    %1754 = vmatpush1.bf16.msra.mxu0 0
    %1755 = vmatprep.subr.bf16.mxu0 0
    %1756 = vmatpush1.bf16.msra.mxu0 0
    %1757 = vmatprep.subr.bf16.mxu0 0
    %1758 = vmatpush1.bf16.msra.mxu0 0
    %1759 = vmatprep.subr.bf16.mxu0 0
    %1760 = vmatpush1.bf16.msra.mxu0 0
    %1761 = vmatprep.subr.bf16.mxu0 0
    %1762 = vmatpush1.bf16.msra.mxu0 0
    %1763 = vmatprep.mubr.bf16.mxu0 0
    %1764 = vmatmul.mubr.bf16.gmra.mrb[0].mxu0 %v1684
    %v1765 = vpop.f32.mrb[0].mxu0
    %v1766 = vadd.f32 0.0, %v1765
    %v1767 = vpop.f32.mrb[0].mxu0
    %v1768 = vadd.f32 0.0, %v1767
    %v1769 = vpop.f32.mrb[0].mxu0
    %v1770 = vpop.f32.mrb[0].mxu0
    %1771 = vdwg.mxu0
    %v1772 = vadd.f32 %v1686, %v1725
    %v1773 = vadd.f32 %v1687, %v1727
    %v1774 = vadd.f32 %v1688, %v1766
    %v1775 = vadd.f32 %v1689, %v1768
    %v1776 = vxor.u32 %v1772, 2147483648
    %v1777 = vmul.f32 %v1776, 1.442695
    %v1778 = vpow.pop %v1777
    %v1779 = vadd.f32 %v1778, 1.0
    %v1780 = vrcp.pop %v1779
    %v1781 = vmul.f32 1.0, %v1780
    %v1782 = vtanh.pop %v1774
    %v1783 = vmul.f32 %v1781, %v1782
    %v1784 = vxor.u32 %v1773, 2147483648
    %v1785 = vmul.f32 %v1784, 1.442695
    %v1786 = vpow.pop %v1785
    %v1787 = vadd.f32 %v1786, 1.0
    %v1788 = vrcp.pop %v1787
    %v1789 = vmul.f32 1.0, %v1788
    %v1790 = vmul.f32 %v1789, %v1675
    %v1791 = vadd.f32 %v1790, %v1783
    %v1792 = vxor.u32 %v1775, 2147483648
    %v1793 = vmul.f32 %v1792, 1.442695
    %v1794 = vpow.pop %v1793
    %v1795 = vadd.f32 %v1794, 1.0
    %v1796 = vrcp.pop %v1795
    %v1797 = vmul.f32 1.0, %v1796
    %v1798 = vtanh.pop %v1791
    %v1799 = vmul.f32 %v1797, %v1798
    %v1800 = vpack.c.bf16 %v1799, %v1799
    %s1801 = scalar_lea.vmem [#allocation2], 256
    %v1802 = vld [vmem:[%s1801] sm:$0xff]
    %v1803 = vld [vmem:[%s1801 + $0x8] sm:$0xff]
    %v1804 = vld [vmem:[%s1801 + $0x10] sm:$0xff]
    %v1805 = vld [vmem:[%s1801 + $0x18] sm:$0xff]
    %1806 = vmatprep.subr.bf16.mxu0 %v815
    %1807 = vmatpush1.bf16.msra.mxu0 %v814
    %1808 = vmatprep.subr.bf16.mxu0 %v819
    %1809 = vmatpush1.bf16.msra.mxu0 %v818
    %1810 = vmatprep.subr.bf16.mxu0 %v823
    %1811 = vmatpush1.bf16.msra.mxu0 %v822
    %1812 = vmatprep.subr.bf16.mxu0 %v827
    %1813 = vmatpush1.bf16.msra.mxu0 %v826
    %1814 = vmatprep.subr.bf16.mxu0 %v831
    %1815 = vmatpush1.bf16.msra.mxu0 %v830
    %1816 = vmatprep.subr.bf16.mxu0 %v835
    %1817 = vmatpush1.bf16.msra.mxu0 %v834
    %1818 = vmatprep.subr.bf16.mxu0 %v839
    %1819 = vmatpush1.bf16.msra.mxu0 %v838
    %1820 = vmatprep.subr.bf16.mxu0 %v843
    %1821 = vmatpush1.bf16.msra.mxu0 %v842
    %1822 = vmatprep.subr.bf16.mxu0 0
    %1823 = vmatpush1.bf16.msra.mxu0 0
    %1824 = vmatprep.subr.bf16.mxu0 0
    %1825 = vmatpush1.bf16.msra.mxu0 0
    %1826 = vmatprep.subr.bf16.mxu0 0
    %1827 = vmatpush1.bf16.msra.mxu0 0
    %1828 = vmatprep.subr.bf16.mxu0 0
    %1829 = vmatpush1.bf16.msra.mxu0 0
    %1830 = vmatprep.subr.bf16.mxu0 0
    %1831 = vmatpush1.bf16.msra.mxu0 0
    %1832 = vmatprep.subr.bf16.mxu0 0
    %1833 = vmatpush1.bf16.msra.mxu0 0
    %1834 = vmatprep.subr.bf16.mxu0 0
    %1835 = vmatpush1.bf16.msra.mxu0 0
    %1836 = vmatprep.subr.bf16.mxu0 0
    %1837 = vmatpush1.bf16.msra.mxu0 0
    %1838 = vmatprep.mubr.bf16.mxu0 0
    %1839 = vmatmul.mubr.bf16.gmra.mrb[0].mxu0 %v1800
    %v1840 = vpop.f32.mrb[0].mxu0
    %v1841 = vadd.f32 0.0, %v1840
    %v1842 = vpop.f32.mrb[0].mxu0
    %v1843 = vadd.f32 0.0, %v1842
    %v1844 = vpop.f32.mrb[0].mxu0
    %v1845 = vpop.f32.mrb[0].mxu0
    %1846 = vdwg.mxu0
    %1847 = vmatprep.subr.bf16.mxu0 %v817
    %1848 = vmatpush1.bf16.msra.mxu0 %v816
    %1849 = vmatprep.subr.bf16.mxu0 %v821
    %1850 = vmatpush1.bf16.msra.mxu0 %v820
    %1851 = vmatprep.subr.bf16.mxu0 %v825
    %1852 = vmatpush1.bf16.msra.mxu0 %v824
    %1853 = vmatprep.subr.bf16.mxu0 %v829
    %1854 = vmatpush1.bf16.msra.mxu0 %v828
    %1855 = vmatprep.subr.bf16.mxu0 %v833
    %1856 = vmatpush1.bf16.msra.mxu0 %v832
    %1857 = vmatprep.subr.bf16.mxu0 %v837
    %1858 = vmatpush1.bf16.msra.mxu0 %v836
    %1859 = vmatprep.subr.bf16.mxu0 %v841
    %1860 = vmatpush1.bf16.msra.mxu0 %v840
    %1861 = vmatprep.subr.bf16.mxu0 %v845
    %1862 = vmatpush1.bf16.msra.mxu0 %v844
    %1863 = vmatprep.subr.bf16.mxu0 0
    %1864 = vmatpush1.bf16.msra.mxu0 0
    %1865 = vmatprep.subr.bf16.mxu0 0
    %1866 = vmatpush1.bf16.msra.mxu0 0
    %1867 = vmatprep.subr.bf16.mxu0 0
    %1868 = vmatpush1.bf16.msra.mxu0 0
    %1869 = vmatprep.subr.bf16.mxu0 0
    %1870 = vmatpush1.bf16.msra.mxu0 0
    %1871 = vmatprep.subr.bf16.mxu0 0
    %1872 = vmatpush1.bf16.msra.mxu0 0
    %1873 = vmatprep.subr.bf16.mxu0 0
    %1874 = vmatpush1.bf16.msra.mxu0 0
    %1875 = vmatprep.subr.bf16.mxu0 0
    %1876 = vmatpush1.bf16.msra.mxu0 0
    %1877 = vmatprep.subr.bf16.mxu0 0
    %1878 = vmatpush1.bf16.msra.mxu0 0
    %1879 = vmatprep.mubr.bf16.mxu0 0
    %1880 = vmatmul.mubr.bf16.gmra.mrb[0].mxu0 %v1800
    %v1881 = vpop.f32.mrb[0].mxu0
    %v1882 = vadd.f32 0.0, %v1881
    %v1883 = vpop.f32.mrb[0].mxu0
    %v1884 = vadd.f32 0.0, %v1883
    %v1885 = vpop.f32.mrb[0].mxu0
    %v1886 = vpop.f32.mrb[0].mxu0
    %1887 = vdwg.mxu0
    %v1888 = vadd.f32 %v1802, %v1841
    %v1889 = vadd.f32 %v1803, %v1843
    %v1890 = vadd.f32 %v1804, %v1882
    %v1891 = vadd.f32 %v1805, %v1884
    %v1892 = vxor.u32 %v1888, 2147483648
    %v1893 = vmul.f32 %v1892, 1.442695
    %v1894 = vpow.pop %v1893
    %v1895 = vadd.f32 %v1894, 1.0
    %v1896 = vrcp.pop %v1895
    %v1897 = vmul.f32 1.0, %v1896
    %v1898 = vtanh.pop %v1890
    %v1899 = vmul.f32 %v1897, %v1898
    %v1900 = vxor.u32 %v1889, 2147483648
    %v1901 = vmul.f32 %v1900, 1.442695
    %v1902 = vpow.pop %v1901
    %v1903 = vadd.f32 %v1902, 1.0
    %v1904 = vrcp.pop %v1903
    %v1905 = vmul.f32 1.0, %v1904
    %v1906 = vmul.f32 %v1905, %v1791
    %v1907 = vadd.f32 %v1906, %v1899
    %v1908 = vxor.u32 %v1891, 2147483648
    %v1909 = vmul.f32 %v1908, 1.442695
    %v1910 = vpow.pop %v1909
    %v1911 = vadd.f32 %v1910, 1.0
    %v1912 = vrcp.pop %v1911
    %v1913 = vmul.f32 1.0, %v1912
    %v1914 = vtanh.pop %v1907
    %v1915 = vmul.f32 %v1913, %v1914
    %v1916 = vpack.c.bf16 %v1915, %v1915
    %s1917 = scalar_lea.vmem [#allocation2], 288
    %v1918 = vld [vmem:[%s1917] sm:$0xff]
    %v1919 = vld [vmem:[%s1917 + $0x8] sm:$0xff]
    %v1920 = vld [vmem:[%s1917 + $0x10] sm:$0xff]
    %v1921 = vld [vmem:[%s1917 + $0x18] sm:$0xff]
    %1922 = vmatprep.subr.bf16.mxu0 %v815
    %1923 = vmatpush1.bf16.msra.mxu0 %v814
    %1924 = vmatprep.subr.bf16.mxu0 %v819
    %1925 = vmatpush1.bf16.msra.mxu0 %v818
    %1926 = vmatprep.subr.bf16.mxu0 %v823
    %1927 = vmatpush1.bf16.msra.mxu0 %v822
    %1928 = vmatprep.subr.bf16.mxu0 %v827
    %1929 = vmatpush1.bf16.msra.mxu0 %v826
    %1930 = vmatprep.subr.bf16.mxu0 %v831
    %1931 = vmatpush1.bf16.msra.mxu0 %v830
    %1932 = vmatprep.subr.bf16.mxu0 %v835
    %1933 = vmatpush1.bf16.msra.mxu0 %v834
    %1934 = vmatprep.subr.bf16.mxu0 %v839
    %1935 = vmatpush1.bf16.msra.mxu0 %v838
    %1936 = vmatprep.subr.bf16.mxu0 %v843
    %1937 = vmatpush1.bf16.msra.mxu0 %v842
    %1938 = vmatprep.subr.bf16.mxu0 0
    %1939 = vmatpush1.bf16.msra.mxu0 0
    %1940 = vmatprep.subr.bf16.mxu0 0
    %1941 = vmatpush1.bf16.msra.mxu0 0
    %1942 = vmatprep.subr.bf16.mxu0 0
    %1943 = vmatpush1.bf16.msra.mxu0 0
    %1944 = vmatprep.subr.bf16.mxu0 0
    %1945 = vmatpush1.bf16.msra.mxu0 0
    %1946 = vmatprep.subr.bf16.mxu0 0
    %1947 = vmatpush1.bf16.msra.mxu0 0
    %1948 = vmatprep.subr.bf16.mxu0 0
    %1949 = vmatpush1.bf16.msra.mxu0 0
    %1950 = vmatprep.subr.bf16.mxu0 0
    %1951 = vmatpush1.bf16.msra.mxu0 0
    %1952 = vmatprep.subr.bf16.mxu0 0
    %1953 = vmatpush1.bf16.msra.mxu0 0
    %1954 = vmatprep.mubr.bf16.mxu0 0
    %1955 = vmatmul.mubr.bf16.gmra.mrb[0].mxu0 %v1916
    %v1956 = vpop.f32.mrb[0].mxu0
    %v1957 = vadd.f32 0.0, %v1956
    %v1958 = vpop.f32.mrb[0].mxu0
    %v1959 = vadd.f32 0.0, %v1958
    %v1960 = vpop.f32.mrb[0].mxu0
    %v1961 = vpop.f32.mrb[0].mxu0
    %1962 = vdwg.mxu0
    %1963 = vmatprep.subr.bf16.mxu0 %v817
    %1964 = vmatpush1.bf16.msra.mxu0 %v816
    %1965 = vmatprep.subr.bf16.mxu0 %v821
    %1966 = vmatpush1.bf16.msra.mxu0 %v820
    %1967 = vmatprep.subr.bf16.mxu0 %v825
    %1968 = vmatpush1.bf16.msra.mxu0 %v824
    %1969 = vmatprep.subr.bf16.mxu0 %v829
    %1970 = vmatpush1.bf16.msra.mxu0 %v828
    %1971 = vmatprep.subr.bf16.mxu0 %v833
    %1972 = vmatpush1.bf16.msra.mxu0 %v832
    %1973 = vmatprep.subr.bf16.mxu0 %v837
    %1974 = vmatpush1.bf16.msra.mxu0 %v836
    %1975 = vmatprep.subr.bf16.mxu0 %v841
    %1976 = vmatpush1.bf16.msra.mxu0 %v840
    %1977 = vmatprep.subr.bf16.mxu0 %v845
    %1978 = vmatpush1.bf16.msra.mxu0 %v844
    %1979 = vmatprep.subr.bf16.mxu0 0
    %1980 = vmatpush1.bf16.msra.mxu0 0
    %1981 = vmatprep.subr.bf16.mxu0 0
    %1982 = vmatpush1.bf16.msra.mxu0 0
    %1983 = vmatprep.subr.bf16.mxu0 0
    %1984 = vmatpush1.bf16.msra.mxu0 0
    %1985 = vmatprep.subr.bf16.mxu0 0
    %1986 = vmatpush1.bf16.msra.mxu0 0
    %1987 = vmatprep.subr.bf16.mxu0 0
    %1988 = vmatpush1.bf16.msra.mxu0 0
    %1989 = vmatprep.subr.bf16.mxu0 0
    %1990 = vmatpush1.bf16.msra.mxu0 0
    %1991 = vmatprep.subr.bf16.mxu0 0
    %1992 = vmatpush1.bf16.msra.mxu0 0
    %1993 = vmatprep.subr.bf16.mxu0 0
    %1994 = vmatpush1.bf16.msra.mxu0 0
    %1995 = vmatprep.mubr.bf16.mxu0 0
    %1996 = vmatmul.mubr.bf16.gmra.mrb[0].mxu0 %v1916
    %v1997 = vpop.f32.mrb[0].mxu0
    %v1998 = vadd.f32 0.0, %v1997
    %v1999 = vpop.f32.mrb[0].mxu0
    %v2000 = vadd.f32 0.0, %v1999
    %v2001 = vpop.f32.mrb[0].mxu0
    %v2002 = vpop.f32.mrb[0].mxu0
    %2003 = vdwg.mxu0
    %v2004 = vadd.f32 %v1918, %v1957
    %v2005 = vadd.f32 %v1919, %v1959
    %v2006 = vadd.f32 %v1920, %v1998
    %v2007 = vadd.f32 %v1921, %v2000
    %v2008 = vxor.u32 %v2004, 2147483648
    %v2009 = vmul.f32 %v2008, 1.442695
    %v2010 = vpow.pop %v2009
    %v2011 = vadd.f32 %v2010, 1.0
    %v2012 = vrcp.pop %v2011
    %v2013 = vmul.f32 1.0, %v2012
    %v2014 = vtanh.pop %v2006
    %v2015 = vmul.f32 %v2013, %v2014
    %v2016 = vxor.u32 %v2005, 2147483648
    %v2017 = vmul.f32 %v2016, 1.442695
    %v2018 = vpow.pop %v2017
    %v2019 = vadd.f32 %v2018, 1.0
    %v2020 = vrcp.pop %v2019
    %v2021 = vmul.f32 1.0, %v2020
    %v2022 = vmul.f32 %v2021, %v1907
    %v2023 = vadd.f32 %v2022, %v2015
    %v2024 = vxor.u32 %v2007, 2147483648
    %v2025 = vmul.f32 %v2024, 1.442695
    %v2026 = vpow.pop %v2025
    %v2027 = vadd.f32 %v2026, 1.0
    %v2028 = vrcp.pop %v2027
    %v2029 = vmul.f32 1.0, %v2028
    %v2030 = vtanh.pop %v2023
    %v2031 = vmul.f32 %v2029, %v2030
    %v2032 = vpack.c.bf16 %v2031, %v2031
    %s2033 = scalar_lea.vmem [#allocation2], 320
    %v2034 = vld [vmem:[%s2033] sm:$0xff]
    %v2035 = vld [vmem:[%s2033 + $0x8] sm:$0xff]
    %v2036 = vld [vmem:[%s2033 + $0x10] sm:$0xff]
    %v2037 = vld [vmem:[%s2033 + $0x18] sm:$0xff]
    %2038 = vmatprep.subr.bf16.mxu0 %v815
    %2039 = vmatpush1.bf16.msra.mxu0 %v814
    %2040 = vmatprep.subr.bf16.mxu0 %v819
    %2041 = vmatpush1.bf16.msra.mxu0 %v818
    %2042 = vmatprep.subr.bf16.mxu0 %v823
    %2043 = vmatpush1.bf16.msra.mxu0 %v822
    %2044 = vmatprep.subr.bf16.mxu0 %v827
    %2045 = vmatpush1.bf16.msra.mxu0 %v826
    %2046 = vmatprep.subr.bf16.mxu0 %v831
    %2047 = vmatpush1.bf16.msra.mxu0 %v830
    %2048 = vmatprep.subr.bf16.mxu0 %v835
    %2049 = vmatpush1.bf16.msra.mxu0 %v834
    %2050 = vmatprep.subr.bf16.mxu0 %v839
    %2051 = vmatpush1.bf16.msra.mxu0 %v838
    %2052 = vmatprep.subr.bf16.mxu0 %v843
    %2053 = vmatpush1.bf16.msra.mxu0 %v842
    %2054 = vmatprep.subr.bf16.mxu0 0
    %2055 = vmatpush1.bf16.msra.mxu0 0
    %2056 = vmatprep.subr.bf16.mxu0 0
    %2057 = vmatpush1.bf16.msra.mxu0 0
    %2058 = vmatprep.subr.bf16.mxu0 0
    %2059 = vmatpush1.bf16.msra.mxu0 0
    %2060 = vmatprep.subr.bf16.mxu0 0
    %2061 = vmatpush1.bf16.msra.mxu0 0
    %2062 = vmatprep.subr.bf16.mxu0 0
    %2063 = vmatpush1.bf16.msra.mxu0 0
    %2064 = vmatprep.subr.bf16.mxu0 0
    %2065 = vmatpush1.bf16.msra.mxu0 0
    %2066 = vmatprep.subr.bf16.mxu0 0
    %2067 = vmatpush1.bf16.msra.mxu0 0
    %2068 = vmatprep.subr.bf16.mxu0 0
    %2069 = vmatpush1.bf16.msra.mxu0 0
    %2070 = vmatprep.mubr.bf16.mxu0 0
    %2071 = vmatmul.mubr.bf16.gmra.mrb[0].mxu0 %v2032
    %v2072 = vpop.f32.mrb[0].mxu0
    %v2073 = vadd.f32 0.0, %v2072
    %v2074 = vpop.f32.mrb[0].mxu0
    %v2075 = vadd.f32 0.0, %v2074
    %v2076 = vpop.f32.mrb[0].mxu0
    %v2077 = vpop.f32.mrb[0].mxu0
    %2078 = vdwg.mxu0
    %2079 = vmatprep.subr.bf16.mxu0 %v817
    %2080 = vmatpush1.bf16.msra.mxu0 %v816
    %2081 = vmatprep.subr.bf16.mxu0 %v821
    %2082 = vmatpush1.bf16.msra.mxu0 %v820
    %2083 = vmatprep.subr.bf16.mxu0 %v825
    %2084 = vmatpush1.bf16.msra.mxu0 %v824
    %2085 = vmatprep.subr.bf16.mxu0 %v829
    %2086 = vmatpush1.bf16.msra.mxu0 %v828
    %2087 = vmatprep.subr.bf16.mxu0 %v833
    %2088 = vmatpush1.bf16.msra.mxu0 %v832
    %2089 = vmatprep.subr.bf16.mxu0 %v837
    %2090 = vmatpush1.bf16.msra.mxu0 %v836
    %2091 = vmatprep.subr.bf16.mxu0 %v841
    %2092 = vmatpush1.bf16.msra.mxu0 %v840
    %2093 = vmatprep.subr.bf16.mxu0 %v845
    %2094 = vmatpush1.bf16.msra.mxu0 %v844
    %2095 = vmatprep.subr.bf16.mxu0 0
    %2096 = vmatpush1.bf16.msra.mxu0 0
    %2097 = vmatprep.subr.bf16.mxu0 0
    %2098 = vmatpush1.bf16.msra.mxu0 0
    %2099 = vmatprep.subr.bf16.mxu0 0
    %2100 = vmatpush1.bf16.msra.mxu0 0
    %2101 = vmatprep.subr.bf16.mxu0 0
    %2102 = vmatpush1.bf16.msra.mxu0 0
    %2103 = vmatprep.subr.bf16.mxu0 0
    %2104 = vmatpush1.bf16.msra.mxu0 0
    %2105 = vmatprep.subr.bf16.mxu0 0
    %2106 = vmatpush1.bf16.msra.mxu0 0
    %2107 = vmatprep.subr.bf16.mxu0 0
    %2108 = vmatpush1.bf16.msra.mxu0 0
    %2109 = vmatprep.subr.bf16.mxu0 0
    %2110 = vmatpush1.bf16.msra.mxu0 0
    %2111 = vmatprep.mubr.bf16.mxu0 0
    %2112 = vmatmul.mubr.bf16.gmra.mrb[0].mxu0 %v2032
    %v2113 = vpop.f32.mrb[0].mxu0
    %v2114 = vadd.f32 0.0, %v2113
    %v2115 = vpop.f32.mrb[0].mxu0
    %v2116 = vadd.f32 0.0, %v2115
    %v2117 = vpop.f32.mrb[0].mxu0
    %v2118 = vpop.f32.mrb[0].mxu0
    %2119 = vdwg.mxu0
    %v2120 = vadd.f32 %v2034, %v2073
    %v2121 = vadd.f32 %v2035, %v2075
    %v2122 = vadd.f32 %v2036, %v2114
    %v2123 = vadd.f32 %v2037, %v2116
    %v2124 = vxor.u32 %v2120, 2147483648
    %v2125 = vmul.f32 %v2124, 1.442695
    %v2126 = vpow.pop %v2125
    %v2127 = vadd.f32 %v2126, 1.0
    %v2128 = vrcp.pop %v2127
    %v2129 = vmul.f32 1.0, %v2128
    %v2130 = vtanh.pop %v2122
    %v2131 = vmul.f32 %v2129, %v2130
    %v2132 = vxor.u32 %v2121, 2147483648
    %v2133 = vmul.f32 %v2132, 1.442695
    %v2134 = vpow.pop %v2133
    %v2135 = vadd.f32 %v2134, 1.0
    %v2136 = vrcp.pop %v2135
    %v2137 = vmul.f32 1.0, %v2136
    %v2138 = vmul.f32 %v2137, %v2023
    %v2139 = vadd.f32 %v2138, %v2131
    %v2140 = vxor.u32 %v2123, 2147483648
    %v2141 = vmul.f32 %v2140, 1.442695
    %v2142 = vpow.pop %v2141
    %v2143 = vadd.f32 %v2142, 1.0
    %v2144 = vrcp.pop %v2143
    %v2145 = vmul.f32 1.0, %v2144
    %v2146 = vtanh.pop %v2139
    %v2147 = vmul.f32 %v2145, %v2146
    %v2148 = vpack.c.bf16 %v2147, %v2147
    %s2149 = scalar_lea.vmem [#allocation2], 352
    %v2150 = vld [vmem:[%s2149] sm:$0xff]
    %v2151 = vld [vmem:[%s2149 + $0x8] sm:$0xff]
    %v2152 = vld [vmem:[%s2149 + $0x10] sm:$0xff]
    %v2153 = vld [vmem:[%s2149 + $0x18] sm:$0xff]
    %2154 = vmatprep.subr.bf16.mxu0 %v815
    %2155 = vmatpush1.bf16.msra.mxu0 %v814
    %2156 = vmatprep.subr.bf16.mxu0 %v819
    %2157 = vmatpush1.bf16.msra.mxu0 %v818
    %2158 = vmatprep.subr.bf16.mxu0 %v823
    %2159 = vmatpush1.bf16.msra.mxu0 %v822
    %2160 = vmatprep.subr.bf16.mxu0 %v827
    %2161 = vmatpush1.bf16.msra.mxu0 %v826
    %2162 = vmatprep.subr.bf16.mxu0 %v831
    %2163 = vmatpush1.bf16.msra.mxu0 %v830
    %2164 = vmatprep.subr.bf16.mxu0 %v835
    %2165 = vmatpush1.bf16.msra.mxu0 %v834
    %2166 = vmatprep.subr.bf16.mxu0 %v839
    %2167 = vmatpush1.bf16.msra.mxu0 %v838
    %2168 = vmatprep.subr.bf16.mxu0 %v843
    %2169 = vmatpush1.bf16.msra.mxu0 %v842
    %2170 = vmatprep.subr.bf16.mxu0 0
    %2171 = vmatpush1.bf16.msra.mxu0 0
    %2172 = vmatprep.subr.bf16.mxu0 0
    %2173 = vmatpush1.bf16.msra.mxu0 0
    %2174 = vmatprep.subr.bf16.mxu0 0
    %2175 = vmatpush1.bf16.msra.mxu0 0
    %2176 = vmatprep.subr.bf16.mxu0 0
    %2177 = vmatpush1.bf16.msra.mxu0 0
    %2178 = vmatprep.subr.bf16.mxu0 0
    %2179 = vmatpush1.bf16.msra.mxu0 0
    %2180 = vmatprep.subr.bf16.mxu0 0
    %2181 = vmatpush1.bf16.msra.mxu0 0
    %2182 = vmatprep.subr.bf16.mxu0 0
    %2183 = vmatpush1.bf16.msra.mxu0 0
    %2184 = vmatprep.subr.bf16.mxu0 0
    %2185 = vmatpush1.bf16.msra.mxu0 0
    %2186 = vmatprep.mubr.bf16.mxu0 0
    %2187 = vmatmul.mubr.bf16.gmra.mrb[0].mxu0 %v2148
    %v2188 = vpop.f32.mrb[0].mxu0
    %v2189 = vadd.f32 0.0, %v2188
    %v2190 = vpop.f32.mrb[0].mxu0
    %v2191 = vadd.f32 0.0, %v2190
    %v2192 = vpop.f32.mrb[0].mxu0
    %v2193 = vpop.f32.mrb[0].mxu0
    %2194 = vdwg.mxu0
    %2195 = vmatprep.subr.bf16.mxu0 %v817
    %2196 = vmatpush1.bf16.msra.mxu0 %v816
    %2197 = vmatprep.subr.bf16.mxu0 %v821
    %2198 = vmatpush1.bf16.msra.mxu0 %v820
    %2199 = vmatprep.subr.bf16.mxu0 %v825
    %2200 = vmatpush1.bf16.msra.mxu0 %v824
    %2201 = vmatprep.subr.bf16.mxu0 %v829
    %2202 = vmatpush1.bf16.msra.mxu0 %v828
    %2203 = vmatprep.subr.bf16.mxu0 %v833
    %2204 = vmatpush1.bf16.msra.mxu0 %v832
    %2205 = vmatprep.subr.bf16.mxu0 %v837
    %2206 = vmatpush1.bf16.msra.mxu0 %v836
    %2207 = vmatprep.subr.bf16.mxu0 %v841
    %2208 = vmatpush1.bf16.msra.mxu0 %v840
    %2209 = vmatprep.subr.bf16.mxu0 %v845
    %2210 = vmatpush1.bf16.msra.mxu0 %v844
    %2211 = vmatprep.subr.bf16.mxu0 0
    %2212 = vmatpush1.bf16.msra.mxu0 0
    %2213 = vmatprep.subr.bf16.mxu0 0
    %2214 = vmatpush1.bf16.msra.mxu0 0
    %2215 = vmatprep.subr.bf16.mxu0 0
    %2216 = vmatpush1.bf16.msra.mxu0 0
    %2217 = vmatprep.subr.bf16.mxu0 0
    %2218 = vmatpush1.bf16.msra.mxu0 0
    %2219 = vmatprep.subr.bf16.mxu0 0
    %2220 = vmatpush1.bf16.msra.mxu0 0
    %2221 = vmatprep.subr.bf16.mxu0 0
    %2222 = vmatpush1.bf16.msra.mxu0 0
    %2223 = vmatprep.subr.bf16.mxu0 0
    %2224 = vmatpush1.bf16.msra.mxu0 0
    %2225 = vmatprep.subr.bf16.mxu0 0
    %2226 = vmatpush1.bf16.msra.mxu0 0
    %2227 = vmatprep.mubr.bf16.mxu0 0
    %2228 = vmatmul.mubr.bf16.gmra.mrb[0].mxu0 %v2148
    %v2229 = vpop.f32.mrb[0].mxu0
    %v2230 = vadd.f32 0.0, %v2229
    %v2231 = vpop.f32.mrb[0].mxu0
    %v2232 = vadd.f32 0.0, %v2231
    %v2233 = vpop.f32.mrb[0].mxu0
    %v2234 = vpop.f32.mrb[0].mxu0
    %2235 = vdwg.mxu0
    %v2236 = vadd.f32 %v2150, %v2189
    %v2237 = vadd.f32 %v2151, %v2191
    %v2238 = vadd.f32 %v2152, %v2230
    %v2239 = vadd.f32 %v2153, %v2232
    %v2240 = vxor.u32 %v2236, 2147483648
    %v2241 = vmul.f32 %v2240, 1.442695
    %v2242 = vpow.pop %v2241
    %v2243 = vadd.f32 %v2242, 1.0
    %v2244 = vrcp.pop %v2243
    %v2245 = vmul.f32 1.0, %v2244
    %v2246 = vtanh.pop %v2238
    %v2247 = vmul.f32 %v2245, %v2246
    %v2248 = vxor.u32 %v2237, 2147483648
    %v2249 = vmul.f32 %v2248, 1.442695
    %v2250 = vpow.pop %v2249
    %v2251 = vadd.f32 %v2250, 1.0
    %v2252 = vrcp.pop %v2251
    %v2253 = vmul.f32 1.0, %v2252
    %v2254 = vmul.f32 %v2253, %v2139
    %v2255 = vadd.f32 %v2254, %v2247
    %v2256 = vxor.u32 %v2239, 2147483648
    %v2257 = vmul.f32 %v2256, 1.442695
    %v2258 = vpow.pop %v2257
    %v2259 = vadd.f32 %v2258, 1.0
    %v2260 = vrcp.pop %v2259
    %v2261 = vmul.f32 1.0, %v2260
    %v2262 = vtanh.pop %v2255
    %v2263 = vmul.f32 %v2261, %v2262
    %v2264 = vpack.c.bf16 %v2263, %v2263
    %s2265 = scalar_lea.vmem [#allocation2], 384
    %v2266 = vld [vmem:[%s2265] sm:$0xff]
    %v2267 = vld [vmem:[%s2265 + $0x8] sm:$0xff]
    %v2268 = vld [vmem:[%s2265 + $0x10] sm:$0xff]
    %v2269 = vld [vmem:[%s2265 + $0x18] sm:$0xff]
    %2270 = vmatprep.subr.bf16.mxu0 %v815
    %2271 = vmatpush1.bf16.msra.mxu0 %v814
    %2272 = vmatprep.subr.bf16.mxu0 %v819
    %2273 = vmatpush1.bf16.msra.mxu0 %v818
    %2274 = vmatprep.subr.bf16.mxu0 %v823
    %2275 = vmatpush1.bf16.msra.mxu0 %v822
    %2276 = vmatprep.subr.bf16.mxu0 %v827
    %2277 = vmatpush1.bf16.msra.mxu0 %v826
    %2278 = vmatprep.subr.bf16.mxu0 %v831
    %2279 = vmatpush1.bf16.msra.mxu0 %v830
    %2280 = vmatprep.subr.bf16.mxu0 %v835
    %2281 = vmatpush1.bf16.msra.mxu0 %v834
    %2282 = vmatprep.subr.bf16.mxu0 %v839
    %2283 = vmatpush1.bf16.msra.mxu0 %v838
    %2284 = vmatprep.subr.bf16.mxu0 %v843
    %2285 = vmatpush1.bf16.msra.mxu0 %v842
    %2286 = vmatprep.subr.bf16.mxu0 0
    %2287 = vmatpush1.bf16.msra.mxu0 0
    %2288 = vmatprep.subr.bf16.mxu0 0
    %2289 = vmatpush1.bf16.msra.mxu0 0
    %2290 = vmatprep.subr.bf16.mxu0 0
    %2291 = vmatpush1.bf16.msra.mxu0 0
    %2292 = vmatprep.subr.bf16.mxu0 0
    %2293 = vmatpush1.bf16.msra.mxu0 0
    %2294 = vmatprep.subr.bf16.mxu0 0
    %2295 = vmatpush1.bf16.msra.mxu0 0
    %2296 = vmatprep.subr.bf16.mxu0 0
    %2297 = vmatpush1.bf16.msra.mxu0 0
    %2298 = vmatprep.subr.bf16.mxu0 0
    %2299 = vmatpush1.bf16.msra.mxu0 0
    %2300 = vmatprep.subr.bf16.mxu0 0
    %2301 = vmatpush1.bf16.msra.mxu0 0
    %2302 = vmatprep.mubr.bf16.mxu0 0
    %2303 = vmatmul.mubr.bf16.gmra.mrb[0].mxu0 %v2264
    %v2304 = vpop.f32.mrb[0].mxu0
    %v2305 = vadd.f32 0.0, %v2304
    %v2306 = vpop.f32.mrb[0].mxu0
    %v2307 = vadd.f32 0.0, %v2306
    %v2308 = vpop.f32.mrb[0].mxu0
    %v2309 = vpop.f32.mrb[0].mxu0
    %2310 = vdwg.mxu0
    %2311 = vmatprep.subr.bf16.mxu0 %v817
    %2312 = vmatpush1.bf16.msra.mxu0 %v816
    %2313 = vmatprep.subr.bf16.mxu0 %v821
    %2314 = vmatpush1.bf16.msra.mxu0 %v820
    %2315 = vmatprep.subr.bf16.mxu0 %v825
    %2316 = vmatpush1.bf16.msra.mxu0 %v824
    %2317 = vmatprep.subr.bf16.mxu0 %v829
    %2318 = vmatpush1.bf16.msra.mxu0 %v828
    %2319 = vmatprep.subr.bf16.mxu0 %v833
    %2320 = vmatpush1.bf16.msra.mxu0 %v832
    %2321 = vmatprep.subr.bf16.mxu0 %v837
    %2322 = vmatpush1.bf16.msra.mxu0 %v836
    %2323 = vmatprep.subr.bf16.mxu0 %v841
    %2324 = vmatpush1.bf16.msra.mxu0 %v840
    %2325 = vmatprep.subr.bf16.mxu0 %v845
    %2326 = vmatpush1.bf16.msra.mxu0 %v844
    %2327 = vmatprep.subr.bf16.mxu0 0
    %2328 = vmatpush1.bf16.msra.mxu0 0
    %2329 = vmatprep.subr.bf16.mxu0 0
    %2330 = vmatpush1.bf16.msra.mxu0 0
    %2331 = vmatprep.subr.bf16.mxu0 0
    %2332 = vmatpush1.bf16.msra.mxu0 0
    %2333 = vmatprep.subr.bf16.mxu0 0
    %2334 = vmatpush1.bf16.msra.mxu0 0
    %2335 = vmatprep.subr.bf16.mxu0 0
    %2336 = vmatpush1.bf16.msra.mxu0 0
    %2337 = vmatprep.subr.bf16.mxu0 0
    %2338 = vmatpush1.bf16.msra.mxu0 0
    %2339 = vmatprep.subr.bf16.mxu0 0
    %2340 = vmatpush1.bf16.msra.mxu0 0
    %2341 = vmatprep.subr.bf16.mxu0 0
    %2342 = vmatpush1.bf16.msra.mxu0 0
    %2343 = vmatprep.mubr.bf16.mxu0 0
    %2344 = vmatmul.mubr.bf16.gmra.mrb[0].mxu0 %v2264
    %v2345 = vpop.f32.mrb[0].mxu0
    %v2346 = vadd.f32 0.0, %v2345
    %v2347 = vpop.f32.mrb[0].mxu0
    %v2348 = vadd.f32 0.0, %v2347
    %v2349 = vpop.f32.mrb[0].mxu0
    %v2350 = vpop.f32.mrb[0].mxu0
    %2351 = vdwg.mxu0
    %v2352 = vadd.f32 %v2266, %v2305
    %v2353 = vadd.f32 %v2267, %v2307
    %v2354 = vadd.f32 %v2268, %v2346
    %v2355 = vadd.f32 %v2269, %v2348
    %v2356 = vxor.u32 %v2352, 2147483648
    %v2357 = vmul.f32 %v2356, 1.442695
    %v2358 = vpow.pop %v2357
    %v2359 = vadd.f32 %v2358, 1.0
    %v2360 = vrcp.pop %v2359
    %v2361 = vmul.f32 1.0, %v2360
    %v2362 = vtanh.pop %v2354
    %v2363 = vmul.f32 %v2361, %v2362
    %v2364 = vxor.u32 %v2353, 2147483648
    %v2365 = vmul.f32 %v2364, 1.442695
    %v2366 = vpow.pop %v2365
    %v2367 = vadd.f32 %v2366, 1.0
    %v2368 = vrcp.pop %v2367
    %v2369 = vmul.f32 1.0, %v2368
    %v2370 = vmul.f32 %v2369, %v2255
    %v2371 = vadd.f32 %v2370, %v2363
    %v2372 = vxor.u32 %v2355, 2147483648
    %v2373 = vmul.f32 %v2372, 1.442695
    %v2374 = vpow.pop %v2373
    %v2375 = vadd.f32 %v2374, 1.0
    %v2376 = vrcp.pop %v2375
    %v2377 = vmul.f32 1.0, %v2376
    %v2378 = vtanh.pop %v2371
    %v2379 = vmul.f32 %v2377, %v2378
    %v2380 = vpack.c.bf16 %v2379, %v2379
    %s2381 = scalar_lea.vmem [#allocation2], 416
    %v2382 = vld [vmem:[%s2381] sm:$0xff]
    %v2383 = vld [vmem:[%s2381 + $0x8] sm:$0xff]
    %v2384 = vld [vmem:[%s2381 + $0x10] sm:$0xff]
    %v2385 = vld [vmem:[%s2381 + $0x18] sm:$0xff]
    %2386 = vmatprep.subr.bf16.mxu0 %v815
    %2387 = vmatpush1.bf16.msra.mxu0 %v814
    %2388 = vmatprep.subr.bf16.mxu0 %v819
    %2389 = vmatpush1.bf16.msra.mxu0 %v818
    %2390 = vmatprep.subr.bf16.mxu0 %v823
    %2391 = vmatpush1.bf16.msra.mxu0 %v822
    %2392 = vmatprep.subr.bf16.mxu0 %v827
    %2393 = vmatpush1.bf16.msra.mxu0 %v826
    %2394 = vmatprep.subr.bf16.mxu0 %v831
    %2395 = vmatpush1.bf16.msra.mxu0 %v830
    %2396 = vmatprep.subr.bf16.mxu0 %v835
    %2397 = vmatpush1.bf16.msra.mxu0 %v834
    %2398 = vmatprep.subr.bf16.mxu0 %v839
    %2399 = vmatpush1.bf16.msra.mxu0 %v838
    %2400 = vmatprep.subr.bf16.mxu0 %v843
    %2401 = vmatpush1.bf16.msra.mxu0 %v842
    %2402 = vmatprep.subr.bf16.mxu0 0
    %2403 = vmatpush1.bf16.msra.mxu0 0
    %2404 = vmatprep.subr.bf16.mxu0 0
    %2405 = vmatpush1.bf16.msra.mxu0 0
    %2406 = vmatprep.subr.bf16.mxu0 0
    %2407 = vmatpush1.bf16.msra.mxu0 0
    %2408 = vmatprep.subr.bf16.mxu0 0
    %2409 = vmatpush1.bf16.msra.mxu0 0
    %2410 = vmatprep.subr.bf16.mxu0 0
    %2411 = vmatpush1.bf16.msra.mxu0 0
    %2412 = vmatprep.subr.bf16.mxu0 0
    %2413 = vmatpush1.bf16.msra.mxu0 0
    %2414 = vmatprep.subr.bf16.mxu0 0
    %2415 = vmatpush1.bf16.msra.mxu0 0
    %2416 = vmatprep.subr.bf16.mxu0 0
    %2417 = vmatpush1.bf16.msra.mxu0 0
    %2418 = vmatprep.mubr.bf16.mxu0 0
    %2419 = vmatmul.mubr.bf16.gmra.mrb[0].mxu0 %v2380
    %v2420 = vpop.f32.mrb[0].mxu0
    %v2421 = vadd.f32 0.0, %v2420
    %v2422 = vpop.f32.mrb[0].mxu0
    %v2423 = vadd.f32 0.0, %v2422
    %v2424 = vpop.f32.mrb[0].mxu0
    %v2425 = vpop.f32.mrb[0].mxu0
    %2426 = vdwg.mxu0
    %2427 = vmatprep.subr.bf16.mxu0 %v817
    %2428 = vmatpush1.bf16.msra.mxu0 %v816
    %2429 = vmatprep.subr.bf16.mxu0 %v821
    %2430 = vmatpush1.bf16.msra.mxu0 %v820
    %2431 = vmatprep.subr.bf16.mxu0 %v825
    %2432 = vmatpush1.bf16.msra.mxu0 %v824
    %2433 = vmatprep.subr.bf16.mxu0 %v829
    %2434 = vmatpush1.bf16.msra.mxu0 %v828
    %2435 = vmatprep.subr.bf16.mxu0 %v833
    %2436 = vmatpush1.bf16.msra.mxu0 %v832
    %2437 = vmatprep.subr.bf16.mxu0 %v837
    %2438 = vmatpush1.bf16.msra.mxu0 %v836
    %2439 = vmatprep.subr.bf16.mxu0 %v841
    %2440 = vmatpush1.bf16.msra.mxu0 %v840
    %2441 = vmatprep.subr.bf16.mxu0 %v845
    %2442 = vmatpush1.bf16.msra.mxu0 %v844
    %2443 = vmatprep.subr.bf16.mxu0 0
    %2444 = vmatpush1.bf16.msra.mxu0 0
    %2445 = vmatprep.subr.bf16.mxu0 0
    %2446 = vmatpush1.bf16.msra.mxu0 0
    %2447 = vmatprep.subr.bf16.mxu0 0
    %2448 = vmatpush1.bf16.msra.mxu0 0
    %2449 = vmatprep.subr.bf16.mxu0 0
    %2450 = vmatpush1.bf16.msra.mxu0 0
    %2451 = vmatprep.subr.bf16.mxu0 0
    %2452 = vmatpush1.bf16.msra.mxu0 0
    %2453 = vmatprep.subr.bf16.mxu0 0
    %2454 = vmatpush1.bf16.msra.mxu0 0
    %2455 = vmatprep.subr.bf16.mxu0 0
    %2456 = vmatpush1.bf16.msra.mxu0 0
    %2457 = vmatprep.subr.bf16.mxu0 0
    %2458 = vmatpush1.bf16.msra.mxu0 0
    %2459 = vmatprep.mubr.bf16.mxu0 0
    %2460 = vmatmul.mubr.bf16.gmra.mrb[0].mxu0 %v2380
    %v2461 = vpop.f32.mrb[0].mxu0
    %v2462 = vadd.f32 0.0, %v2461
    %v2463 = vpop.f32.mrb[0].mxu0
    %v2464 = vadd.f32 0.0, %v2463
    %v2465 = vpop.f32.mrb[0].mxu0
    %v2466 = vpop.f32.mrb[0].mxu0
    %2467 = vdwg.mxu0
    %v2468 = vadd.f32 %v2382, %v2421
    %v2469 = vadd.f32 %v2383, %v2423
    %v2470 = vadd.f32 %v2384, %v2462
    %v2471 = vadd.f32 %v2385, %v2464
    %v2472 = vxor.u32 %v2468, 2147483648
    %v2473 = vmul.f32 %v2472, 1.442695
    %v2474 = vpow.pop %v2473
    %v2475 = vadd.f32 %v2474, 1.0
    %v2476 = vrcp.pop %v2475
    %v2477 = vmul.f32 1.0, %v2476
    %v2478 = vtanh.pop %v2470
    %v2479 = vmul.f32 %v2477, %v2478
    %v2480 = vxor.u32 %v2469, 2147483648
    %v2481 = vmul.f32 %v2480, 1.442695
    %v2482 = vpow.pop %v2481
    %v2483 = vadd.f32 %v2482, 1.0
    %v2484 = vrcp.pop %v2483
    %v2485 = vmul.f32 1.0, %v2484
    %v2486 = vmul.f32 %v2485, %v2371
    %v2487 = vadd.f32 %v2486, %v2479
    %v2488 = vxor.u32 %v2471, 2147483648
    %v2489 = vmul.f32 %v2488, 1.442695
    %v2490 = vpow.pop %v2489
    %v2491 = vadd.f32 %v2490, 1.0
    %v2492 = vrcp.pop %v2491
    %v2493 = vmul.f32 1.0, %v2492
    %v2494 = vtanh.pop %v2487
    %v2495 = vmul.f32 %v2493, %v2494
    %v2496 = vpack.c.bf16 %v2495, %v2495
    %s2497 = scalar_lea.vmem [#allocation2], 448
    %v2498 = vld [vmem:[%s2497] sm:$0xff]
    %v2499 = vld [vmem:[%s2497 + $0x8] sm:$0xff]
    %v2500 = vld [vmem:[%s2497 + $0x10] sm:$0xff]
    %v2501 = vld [vmem:[%s2497 + $0x18] sm:$0xff]
    %2502 = vmatprep.subr.bf16.mxu0 %v815
    %2503 = vmatpush1.bf16.msra.mxu0 %v814
    %2504 = vmatprep.subr.bf16.mxu0 %v819
    %2505 = vmatpush1.bf16.msra.mxu0 %v818
    %2506 = vmatprep.subr.bf16.mxu0 %v823
    %2507 = vmatpush1.bf16.msra.mxu0 %v822
    %2508 = vmatprep.subr.bf16.mxu0 %v827
    %2509 = vmatpush1.bf16.msra.mxu0 %v826
    %2510 = vmatprep.subr.bf16.mxu0 %v831
    %2511 = vmatpush1.bf16.msra.mxu0 %v830
    %2512 = vmatprep.subr.bf16.mxu0 %v835
    %2513 = vmatpush1.bf16.msra.mxu0 %v834
    %2514 = vmatprep.subr.bf16.mxu0 %v839
    %2515 = vmatpush1.bf16.msra.mxu0 %v838
    %2516 = vmatprep.subr.bf16.mxu0 %v843
    %2517 = vmatpush1.bf16.msra.mxu0 %v842
    %2518 = vmatprep.subr.bf16.mxu0 0
    %2519 = vmatpush1.bf16.msra.mxu0 0
    %2520 = vmatprep.subr.bf16.mxu0 0
    %2521 = vmatpush1.bf16.msra.mxu0 0
    %2522 = vmatprep.subr.bf16.mxu0 0
    %2523 = vmatpush1.bf16.msra.mxu0 0
    %2524 = vmatprep.subr.bf16.mxu0 0
    %2525 = vmatpush1.bf16.msra.mxu0 0
    %2526 = vmatprep.subr.bf16.mxu0 0
    %2527 = vmatpush1.bf16.msra.mxu0 0
    %2528 = vmatprep.subr.bf16.mxu0 0
    %2529 = vmatpush1.bf16.msra.mxu0 0
    %2530 = vmatprep.subr.bf16.mxu0 0
    %2531 = vmatpush1.bf16.msra.mxu0 0
    %2532 = vmatprep.subr.bf16.mxu0 0
    %2533 = vmatpush1.bf16.msra.mxu0 0
    %2534 = vmatprep.mubr.bf16.mxu0 0
    %2535 = vmatmul.mubr.bf16.gmra.mrb[0].mxu0 %v2496
    %v2536 = vpop.f32.mrb[0].mxu0
    %v2537 = vadd.f32 0.0, %v2536
    %v2538 = vpop.f32.mrb[0].mxu0
    %v2539 = vadd.f32 0.0, %v2538
    %v2540 = vpop.f32.mrb[0].mxu0
    %v2541 = vpop.f32.mrb[0].mxu0
    %2542 = vdwg.mxu0
    %2543 = vmatprep.subr.bf16.mxu0 %v817
    %2544 = vmatpush1.bf16.msra.mxu0 %v816
    %2545 = vmatprep.subr.bf16.mxu0 %v821
    %2546 = vmatpush1.bf16.msra.mxu0 %v820
    %2547 = vmatprep.subr.bf16.mxu0 %v825
    %2548 = vmatpush1.bf16.msra.mxu0 %v824
    %2549 = vmatprep.subr.bf16.mxu0 %v829
    %2550 = vmatpush1.bf16.msra.mxu0 %v828
    %2551 = vmatprep.subr.bf16.mxu0 %v833
    %2552 = vmatpush1.bf16.msra.mxu0 %v832
    %2553 = vmatprep.subr.bf16.mxu0 %v837
    %2554 = vmatpush1.bf16.msra.mxu0 %v836
    %2555 = vmatprep.subr.bf16.mxu0 %v841
    %2556 = vmatpush1.bf16.msra.mxu0 %v840
    %2557 = vmatprep.subr.bf16.mxu0 %v845
    %2558 = vmatpush1.bf16.msra.mxu0 %v844
    %2559 = vmatprep.subr.bf16.mxu0 0
    %2560 = vmatpush1.bf16.msra.mxu0 0
    %2561 = vmatprep.subr.bf16.mxu0 0
    %2562 = vmatpush1.bf16.msra.mxu0 0
    %2563 = vmatprep.subr.bf16.mxu0 0
    %2564 = vmatpush1.bf16.msra.mxu0 0
    %2565 = vmatprep.subr.bf16.mxu0 0
    %2566 = vmatpush1.bf16.msra.mxu0 0
    %2567 = vmatprep.subr.bf16.mxu0 0
    %2568 = vmatpush1.bf16.msra.mxu0 0
    %2569 = vmatprep.subr.bf16.mxu0 0
    %2570 = vmatpush1.bf16.msra.mxu0 0
    %2571 = vmatprep.subr.bf16.mxu0 0
    %2572 = vmatpush1.bf16.msra.mxu0 0
    %2573 = vmatprep.subr.bf16.mxu0 0
    %2574 = vmatpush1.bf16.msra.mxu0 0
    %2575 = vmatprep.mubr.bf16.mxu0 0
    %2576 = vmatmul.mubr.bf16.gmra.mrb[0].mxu0 %v2496
    %v2577 = vpop.f32.mrb[0].mxu0
    %v2578 = vadd.f32 0.0, %v2577
    %v2579 = vpop.f32.mrb[0].mxu0
    %v2580 = vadd.f32 0.0, %v2579
    %v2581 = vpop.f32.mrb[0].mxu0
    %v2582 = vpop.f32.mrb[0].mxu0
    %2583 = vdwg.mxu0
    %v2584 = vadd.f32 %v2498, %v2537
    %v2585 = vadd.f32 %v2499, %v2539
    %v2586 = vadd.f32 %v2500, %v2578
    %v2587 = vadd.f32 %v2501, %v2580
    %v2588 = vxor.u32 %v2584, 2147483648
    %v2589 = vmul.f32 %v2588, 1.442695
    %v2590 = vpow.pop %v2589
    %v2591 = vadd.f32 %v2590, 1.0
    %v2592 = vrcp.pop %v2591
    %v2593 = vmul.f32 1.0, %v2592
    %v2594 = vtanh.pop %v2586
    %v2595 = vmul.f32 %v2593, %v2594
    %v2596 = vxor.u32 %v2585, 2147483648
    %v2597 = vmul.f32 %v2596, 1.442695
    %v2598 = vpow.pop %v2597
    %v2599 = vadd.f32 %v2598, 1.0
    %v2600 = vrcp.pop %v2599
    %v2601 = vmul.f32 1.0, %v2600
    %v2602 = vmul.f32 %v2601, %v2487
    %v2603 = vadd.f32 %v2602, %v2595
    %v2604 = vxor.u32 %v2587, 2147483648
    %v2605 = vmul.f32 %v2604, 1.442695
    %v2606 = vpow.pop %v2605
    %v2607 = vadd.f32 %v2606, 1.0
    %v2608 = vrcp.pop %v2607
    %v2609 = vmul.f32 1.0, %v2608
    %v2610 = vtanh.pop %v2603
    %v2611 = vmul.f32 %v2609, %v2610
    %v2612 = vpack.c.bf16 %v2611, %v2611
    %s2613 = scalar_lea.vmem [#allocation2], 480
    %v2614 = vld [vmem:[%s2613] sm:$0xff]
    %v2615 = vld [vmem:[%s2613 + $0x8] sm:$0xff]
    %v2616 = vld [vmem:[%s2613 + $0x10] sm:$0xff]
    %v2617 = vld [vmem:[%s2613 + $0x18] sm:$0xff]
    %2618 = vmatprep.subr.bf16.mxu0 %v815
    %2619 = vmatpush1.bf16.msra.mxu0 %v814
    %2620 = vmatprep.subr.bf16.mxu0 %v819
    %2621 = vmatpush1.bf16.msra.mxu0 %v818
    %2622 = vmatprep.subr.bf16.mxu0 %v823
    %2623 = vmatpush1.bf16.msra.mxu0 %v822
    %2624 = vmatprep.subr.bf16.mxu0 %v827
    %2625 = vmatpush1.bf16.msra.mxu0 %v826
    %2626 = vmatprep.subr.bf16.mxu0 %v831
    %2627 = vmatpush1.bf16.msra.mxu0 %v830
    %2628 = vmatprep.subr.bf16.mxu0 %v835
    %2629 = vmatpush1.bf16.msra.mxu0 %v834
    %2630 = vmatprep.subr.bf16.mxu0 %v839
    %2631 = vmatpush1.bf16.msra.mxu0 %v838
    %2632 = vmatprep.subr.bf16.mxu0 %v843
    %2633 = vmatpush1.bf16.msra.mxu0 %v842
    %2634 = vmatprep.subr.bf16.mxu0 0
    %2635 = vmatpush1.bf16.msra.mxu0 0
    %2636 = vmatprep.subr.bf16.mxu0 0
    %2637 = vmatpush1.bf16.msra.mxu0 0
    %2638 = vmatprep.subr.bf16.mxu0 0
    %2639 = vmatpush1.bf16.msra.mxu0 0
    %2640 = vmatprep.subr.bf16.mxu0 0
    %2641 = vmatpush1.bf16.msra.mxu0 0
    %2642 = vmatprep.subr.bf16.mxu0 0
    %2643 = vmatpush1.bf16.msra.mxu0 0
    %2644 = vmatprep.subr.bf16.mxu0 0
    %2645 = vmatpush1.bf16.msra.mxu0 0
    %2646 = vmatprep.subr.bf16.mxu0 0
    %2647 = vmatpush1.bf16.msra.mxu0 0
    %2648 = vmatprep.subr.bf16.mxu0 0
    %2649 = vmatpush1.bf16.msra.mxu0 0
    %2650 = vmatprep.mubr.bf16.mxu0 0
    %2651 = vmatmul.mubr.bf16.gmra.mrb[0].mxu0 %v2612
    %v2652 = vpop.f32.mrb[0].mxu0
    %v2653 = vadd.f32 0.0, %v2652
    %v2654 = vpop.f32.mrb[0].mxu0
    %v2655 = vadd.f32 0.0, %v2654
    %v2656 = vpop.f32.mrb[0].mxu0
    %v2657 = vpop.f32.mrb[0].mxu0
    %2658 = vdwg.mxu0
    %2659 = vmatprep.subr.bf16.mxu0 %v817
    %2660 = vmatpush1.bf16.msra.mxu0 %v816
    %2661 = vmatprep.subr.bf16.mxu0 %v821
    %2662 = vmatpush1.bf16.msra.mxu0 %v820
    %2663 = vmatprep.subr.bf16.mxu0 %v825
    %2664 = vmatpush1.bf16.msra.mxu0 %v824
    %2665 = vmatprep.subr.bf16.mxu0 %v829
    %2666 = vmatpush1.bf16.msra.mxu0 %v828
    %2667 = vmatprep.subr.bf16.mxu0 %v833
    %2668 = vmatpush1.bf16.msra.mxu0 %v832
    %2669 = vmatprep.subr.bf16.mxu0 %v837
    %2670 = vmatpush1.bf16.msra.mxu0 %v836
    %2671 = vmatprep.subr.bf16.mxu0 %v841
    %2672 = vmatpush1.bf16.msra.mxu0 %v840
    %2673 = vmatprep.subr.bf16.mxu0 %v845
    %2674 = vmatpush1.bf16.msra.mxu0 %v844
    %2675 = vmatprep.subr.bf16.mxu0 0
    %2676 = vmatpush1.bf16.msra.mxu0 0
    %2677 = vmatprep.subr.bf16.mxu0 0
    %2678 = vmatpush1.bf16.msra.mxu0 0
    %2679 = vmatprep.subr.bf16.mxu0 0
    %2680 = vmatpush1.bf16.msra.mxu0 0
    %2681 = vmatprep.subr.bf16.mxu0 0
    %2682 = vmatpush1.bf16.msra.mxu0 0
    %2683 = vmatprep.subr.bf16.mxu0 0
    %2684 = vmatpush1.bf16.msra.mxu0 0
    %2685 = vmatprep.subr.bf16.mxu0 0
    %2686 = vmatpush1.bf16.msra.mxu0 0
    %2687 = vmatprep.subr.bf16.mxu0 0
    %2688 = vmatpush1.bf16.msra.mxu0 0
    %2689 = vmatprep.subr.bf16.mxu0 0
    %2690 = vmatpush1.bf16.msra.mxu0 0
    %2691 = vmatprep.mubr.bf16.mxu0 0
    %2692 = vmatmul.mubr.bf16.gmra.mrb[0].mxu0 %v2612
    %v2693 = vpop.f32.mrb[0].mxu0
    %v2694 = vadd.f32 0.0, %v2693
    %v2695 = vpop.f32.mrb[0].mxu0
    %v2696 = vadd.f32 0.0, %v2695
    %v2697 = vpop.f32.mrb[0].mxu0
    %v2698 = vpop.f32.mrb[0].mxu0
    %2699 = vdwg.mxu0
    %v2700 = vadd.f32 %v2614, %v2653
    %v2701 = vadd.f32 %v2615, %v2655
    %v2702 = vadd.f32 %v2616, %v2694
    %v2703 = vadd.f32 %v2617, %v2696
    %v2704 = vxor.u32 %v2700, 2147483648
    %v2705 = vmul.f32 %v2704, 1.442695
    %v2706 = vpow.pop %v2705
    %v2707 = vadd.f32 %v2706, 1.0
    %v2708 = vrcp.pop %v2707
    %v2709 = vmul.f32 1.0, %v2708
    %v2710 = vtanh.pop %v2702
    %v2711 = vmul.f32 %v2709, %v2710
    %v2712 = vxor.u32 %v2701, 2147483648
    %v2713 = vmul.f32 %v2712, 1.442695
    %v2714 = vpow.pop %v2713
    %v2715 = vadd.f32 %v2714, 1.0
    %v2716 = vrcp.pop %v2715
    %v2717 = vmul.f32 1.0, %v2716
    %v2718 = vmul.f32 %v2717, %v2603
    %v2719 = vadd.f32 %v2718, %v2711
    %v2720 = vxor.u32 %v2703, 2147483648
    %v2721 = vmul.f32 %v2720, 1.442695
    %v2722 = vpow.pop %v2721
    %v2723 = vadd.f32 %v2722, 1.0
    %v2724 = vrcp.pop %v2723
    %v2725 = vmul.f32 1.0, %v2724
    %v2726 = vtanh.pop %v2719
    %v2727 = vmul.f32 %v2725, %v2726
    %v2728 = vpack.c.bf16 %v2727, %v2727
    %v2729 = vld [vmem:[#allocation12] sm:$0xf]
    %v2730 = vld [vmem:[#allocation12 + $0x4] sm:$0xf]
    %v2731 = vld [vmem:[#allocation12 + $0x8] sm:$0xf]
    %v2732 = vld [vmem:[#allocation12 + $0xc] sm:$0xf]
    %v2733 = vld [vmem:[#allocation12 + $0x10] sm:$0xf]
    %v2734 = vld [vmem:[#allocation12 + $0x14] sm:$0xf]
    %v2735 = vld [vmem:[#allocation12 + $0x18] sm:$0xf]
    %v2736 = vld [vmem:[#allocation12 + $0x1c] sm:$0xf]
    %v2737 = vld [vmem:[#allocation12 + $0x20] sm:$0xf]
    %v2738 = vld [vmem:[#allocation12 + $0x24] sm:$0xf]
    %v2739 = vld [vmem:[#allocation12 + $0x28] sm:$0xf]
    %v2740 = vld [vmem:[#allocation12 + $0x2c] sm:$0xf]
    %v2741 = vld [vmem:[#allocation12 + $0x30] sm:$0xf]
    %v2742 = vld [vmem:[#allocation12 + $0x34] sm:$0xf]
    %v2743 = vld [vmem:[#allocation12 + $0x38] sm:$0xf]
    %v2744 = vld [vmem:[#allocation12 + $0x3c] sm:$0xf]
    %v2745 = vld [vmem:[%s7] sm:$0x1]
    %v2747 = vlaneseq
    %v2748 = vshrl.u32 %v2747, 7
    %v2749 = vsub.s32 0, %v2748
    %v2750 = vrot.slane %v2745, %v2749
    %v2768 = vunpack.c.l.b16 %v2729
    %v2769 = vunpack.c.l.b16 %v2730
    %v2770 = vunpack.c.l.b16 %v2731
    %v2771 = vunpack.c.l.b16 %v2732
    %v2772 = vunpack.c.l.b16 %v2733
    %v2773 = vunpack.c.l.b16 %v2734
    %v2774 = vunpack.c.l.b16 %v2735
    %v2775 = vunpack.c.l.b16 %v2736
    %v2776 = vunpack.c.l.b16 %v2737
    %v2777 = vunpack.c.l.b16 %v2738
    %v2778 = vunpack.c.l.b16 %v2739
    %v2779 = vunpack.c.l.b16 %v2740
    %v2780 = vunpack.c.l.b16 %v2741
    %v2781 = vunpack.c.l.b16 %v2742
    %v2782 = vunpack.c.l.b16 %v2743
    %v2783 = vunpack.c.l.b16 %v2744
    %v2784 = vpack.c.b16 %v2769, %v2768
    %v2785 = vpack.c.b16 %v2771, %v2770
    %v2786 = vpack.c.b16 %v2773, %v2772
    %v2787 = vpack.c.b16 %v2775, %v2774
    %v2788 = vpack.c.b16 %v2777, %v2776
    %v2789 = vpack.c.b16 %v2779, %v2778
    %v2790 = vpack.c.b16 %v2781, %v2780
    %v2791 = vpack.c.b16 %v2783, %v2782
    %2800 = vmatprep.subr.bf16.mxu0 0
    %2801 = vmatpush1.bf16.msra.mxu0 %v2784
    %2802 = vmatprep.subr.bf16.mxu0 0
    %2803 = vmatpush1.bf16.msra.mxu0 %v2785
    %2804 = vmatprep.subr.bf16.mxu0 0
    %2805 = vmatpush1.bf16.msra.mxu0 %v2786
    %2806 = vmatprep.subr.bf16.mxu0 0
    %2807 = vmatpush1.bf16.msra.mxu0 %v2787
    %2808 = vmatprep.subr.bf16.mxu0 0
    %2809 = vmatpush1.bf16.msra.mxu0 %v2788
    %2810 = vmatprep.subr.bf16.mxu0 0
    %2811 = vmatpush1.bf16.msra.mxu0 %v2789
    %2812 = vmatprep.subr.bf16.mxu0 0
    %2813 = vmatpush1.bf16.msra.mxu0 %v2790
    %2814 = vmatprep.subr.bf16.mxu0 0
    %2815 = vmatpush1.bf16.msra.mxu0 %v2791
    %2816 = vmatprep.subr.bf16.mxu0 0
    %2817 = vmatpush1.bf16.msra.mxu0 0
    %2818 = vmatprep.subr.bf16.mxu0 0
    %2819 = vmatpush1.bf16.msra.mxu0 0
    %2820 = vmatprep.subr.bf16.mxu0 0
    %2821 = vmatpush1.bf16.msra.mxu0 0
    %2822 = vmatprep.subr.bf16.mxu0 0
    %2823 = vmatpush1.bf16.msra.mxu0 0
    %2824 = vmatprep.subr.bf16.mxu0 0
    %2825 = vmatpush1.bf16.msra.mxu0 0
    %2826 = vmatprep.subr.bf16.mxu0 0
    %2827 = vmatpush1.bf16.msra.mxu0 0
    %2828 = vmatprep.subr.bf16.mxu0 0
    %2829 = vmatpush1.bf16.msra.mxu0 0
    %2830 = vmatprep.subr.bf16.mxu0 0
    %2831 = vmatpush1.bf16.msra.mxu0 0
    %2832 = vmatprep.mubr.bf16.mxu0 0
    %2833 = vmatmul.mubr.bf16.gmra.mrb[0].mxu0 %v2728
    %v2834 = vpop.f32.mrb[0].mxu0
    %v2835 = vadd.f32 %v2750, %v2834
    %v2836 = vpop.f32.mrb[0].mxu0
    %v2837 = vpop.f32.mrb[0].mxu0
    %v2838 = vpop.f32.mrb[0].mxu0
    %2839 = vdwg.mxu0
    %v2840 = vxor.u32 %v2835, 2147483648
    %v2841 = vmul.f32 %v2840, 1.442695
    %v2842 = vpow.pop %v2841
    %v2843 = vadd.f32 %v2842, 1.0
    %v2844 = vrcp.pop %v2843
    %v2845 = vmul.f32 1.0, %v2844
    %v2846 = vpack.c.bf16 %v2845, %v2845
    %v2847 = vld [vmem:[#allocation13] sm:$0xff]
    %v2848 = vld [vmem:[#allocation13 + $0x8] sm:$0xff]
    %v2849 = vld [vmem:[#allocation13 + $0x10] sm:$0xff]
    %v2850 = vld [vmem:[#allocation13 + $0x18] sm:$0xff]
    %v2851 = vld [vmem:[#allocation13 + $0x20] sm:$0xff]
    %v2852 = vld [vmem:[#allocation13 + $0x28] sm:$0xff]
    %v2853 = vld [vmem:[#allocation13 + $0x30] sm:$0xff]
    %v2854 = vld [vmem:[#allocation13 + $0x38] sm:$0xff]
    %v2855 = vld [vmem:[#allocation13 + $0x40] sm:$0xff]
    %v2856 = vld [vmem:[#allocation13 + $0x48] sm:$0xff]
    %v2857 = vld [vmem:[#allocation13 + $0x50] sm:$0xff]
    %v2858 = vld [vmem:[#allocation13 + $0x58] sm:$0xff]
    %v2859 = vld [vmem:[#allocation13 + $0x60] sm:$0xff]
    %v2860 = vld [vmem:[#allocation13 + $0x68] sm:$0xff]
    %v2861 = vld [vmem:[#allocation13 + $0x70] sm:$0xff]
    %v2862 = vld [vmem:[#allocation13 + $0x78] sm:$0xff]
    %v2863 = vld [vmem:[#allocation13 + $0x80] sm:$0xff]
    %v2864 = vld [vmem:[#allocation13 + $0x88] sm:$0xff]
    %v2865 = vld [vmem:[#allocation13 + $0x90] sm:$0xff]
    %v2866 = vld [vmem:[#allocation13 + $0x98] sm:$0xff]
    %v2867 = vld [vmem:[#allocation13 + $0xa0] sm:$0xff]
    %v2868 = vld [vmem:[#allocation13 + $0xa8] sm:$0xff]
    %v2869 = vld [vmem:[#allocation13 + $0xb0] sm:$0xff]
    %v2870 = vld [vmem:[#allocation13 + $0xb8] sm:$0xff]
    %v2871 = vld [vmem:[#allocation13 + $0xc0] sm:$0xff]
    %v2872 = vld [vmem:[#allocation13 + $0xc8] sm:$0xff]
    %v2873 = vld [vmem:[#allocation13 + $0xd0] sm:$0xff]
    %v2874 = vld [vmem:[#allocation13 + $0xd8] sm:$0xff]
    %v2875 = vld [vmem:[#allocation13 + $0xe0] sm:$0xff]
    %v2876 = vld [vmem:[#allocation13 + $0xe8] sm:$0xff]
    %v2877 = vld [vmem:[#allocation13 + $0xf0] sm:$0xff]
    %v2878 = vld [vmem:[#allocation13 + $0xf8] sm:$0xff]
    %v2879 = vld [vmem:[%s10] sm:$0xf]
    %v2881 = vlaneseq
    %v2882 = vshrl.u32 %v2881, 7
    %v2883 = vsub.s32 0, %v2882
    %v2884 = vrot.slane %v2879, %v2883
    %v2885 = vlaneseq
    %v2886 = vshrl.u32 %v2885, 7
    %v2887 = vsub.s32 1, %v2886
    %v2888 = vrot.slane %v2879, %v2887
    %v2889 = vlaneseq
    %v2890 = vshrl.u32 %v2889, 7
    %v2891 = vsub.s32 2, %v2890
    %v2892 = vrot.slane %v2879, %v2891
    %v2893 = vlaneseq
    %v2894 = vshrl.u32 %v2893, 7
    %v2895 = vsub.s32 3, %v2894
    %v2896 = vrot.slane %v2879, %v2895
    %v2933 = vunpack.c.l.b16 %v2847
    %v2934 = vunpack.c.h.b16 %v2847
    %v2935 = vunpack.c.l.b16 %v2848
    %v2936 = vunpack.c.h.b16 %v2848
    %v2937 = vunpack.c.l.b16 %v2849
    %v2938 = vunpack.c.h.b16 %v2849
    %v2939 = vunpack.c.l.b16 %v2850
    %v2940 = vunpack.c.h.b16 %v2850
    %v2941 = vunpack.c.l.b16 %v2851
    %v2942 = vunpack.c.h.b16 %v2851
    %v2943 = vunpack.c.l.b16 %v2852
    %v2944 = vunpack.c.h.b16 %v2852
    %v2945 = vunpack.c.l.b16 %v2853
    %v2946 = vunpack.c.h.b16 %v2853
    %v2947 = vunpack.c.l.b16 %v2854
    %v2948 = vunpack.c.h.b16 %v2854
    %v2949 = vunpack.c.l.b16 %v2855
    %v2950 = vunpack.c.h.b16 %v2855
    %v2951 = vunpack.c.l.b16 %v2856
    %v2952 = vunpack.c.h.b16 %v2856
    %v2953 = vunpack.c.l.b16 %v2857
    %v2954 = vunpack.c.h.b16 %v2857
    %v2955 = vunpack.c.l.b16 %v2858
    %v2956 = vunpack.c.h.b16 %v2858
    %v2957 = vunpack.c.l.b16 %v2859
    %v2958 = vunpack.c.h.b16 %v2859
    %v2959 = vunpack.c.l.b16 %v2860
    %v2960 = vunpack.c.h.b16 %v2860
    %v2961 = vunpack.c.l.b16 %v2861
    %v2962 = vunpack.c.h.b16 %v2861
    %v2963 = vunpack.c.l.b16 %v2862
    %v2964 = vunpack.c.h.b16 %v2862
    %v2965 = vunpack.c.l.b16 %v2863
    %v2966 = vunpack.c.h.b16 %v2863
    %v2967 = vunpack.c.l.b16 %v2864
    %v2968 = vunpack.c.h.b16 %v2864
    %v2969 = vunpack.c.l.b16 %v2865
    %v2970 = vunpack.c.h.b16 %v2865
    %v2971 = vunpack.c.l.b16 %v2866
    %v2972 = vunpack.c.h.b16 %v2866
    %v2973 = vunpack.c.l.b16 %v2867
    %v2974 = vunpack.c.h.b16 %v2867
    %v2975 = vunpack.c.l.b16 %v2868
    %v2976 = vunpack.c.h.b16 %v2868
    %v2977 = vunpack.c.l.b16 %v2869
    %v2978 = vunpack.c.h.b16 %v2869
    %v2979 = vunpack.c.l.b16 %v2870
    %v2980 = vunpack.c.h.b16 %v2870
    %v2981 = vunpack.c.l.b16 %v2871
    %v2982 = vunpack.c.h.b16 %v2871
    %v2983 = vunpack.c.l.b16 %v2872
    %v2984 = vunpack.c.h.b16 %v2872
    %v2985 = vunpack.c.l.b16 %v2873
    %v2986 = vunpack.c.h.b16 %v2873
    %v2987 = vunpack.c.l.b16 %v2874
    %v2988 = vunpack.c.h.b16 %v2874
    %v2989 = vunpack.c.l.b16 %v2875
    %v2990 = vunpack.c.h.b16 %v2875
    %v2991 = vunpack.c.l.b16 %v2876
    %v2992 = vunpack.c.h.b16 %v2876
    %v2993 = vunpack.c.l.b16 %v2877
    %v2994 = vunpack.c.h.b16 %v2877
    %v2995 = vunpack.c.l.b16 %v2878
    %v2996 = vunpack.c.h.b16 %v2878
    %v2997 = vpack.c.b16 %v2937, %v2933
    %v2998 = vpack.c.b16 %v2938, %v2934
    %v2999 = vpack.c.b16 %v2939, %v2935
    %v3000 = vpack.c.b16 %v2940, %v2936
    %v3001 = vpack.c.b16 %v2945, %v2941
    %v3002 = vpack.c.b16 %v2946, %v2942
    %v3003 = vpack.c.b16 %v2947, %v2943
    %v3004 = vpack.c.b16 %v2948, %v2944
    %v3005 = vpack.c.b16 %v2953, %v2949
    %v3006 = vpack.c.b16 %v2954, %v2950
    %v3007 = vpack.c.b16 %v2955, %v2951
    %v3008 = vpack.c.b16 %v2956, %v2952
    %v3009 = vpack.c.b16 %v2961, %v2957
    %v3010 = vpack.c.b16 %v2962, %v2958
    %v3011 = vpack.c.b16 %v2963, %v2959
    %v3012 = vpack.c.b16 %v2964, %v2960
    %v3013 = vpack.c.b16 %v2969, %v2965
    %v3014 = vpack.c.b16 %v2970, %v2966
    %v3015 = vpack.c.b16 %v2971, %v2967
    %v3016 = vpack.c.b16 %v2972, %v2968
    %v3017 = vpack.c.b16 %v2977, %v2973
    %v3018 = vpack.c.b16 %v2978, %v2974
    %v3019 = vpack.c.b16 %v2979, %v2975
    %v3020 = vpack.c.b16 %v2980, %v2976
    %v3021 = vpack.c.b16 %v2985, %v2981
    %v3022 = vpack.c.b16 %v2986, %v2982
    %v3023 = vpack.c.b16 %v2987, %v2983
    %v3024 = vpack.c.b16 %v2988, %v2984
    %v3025 = vpack.c.b16 %v2993, %v2989
    %v3026 = vpack.c.b16 %v2994, %v2990
    %v3027 = vpack.c.b16 %v2995, %v2991
    %v3028 = vpack.c.b16 %v2996, %v2992
    %3061 = vmatprep.subr.bf16.mxu0 %v2998
    %3062 = vmatpush1.bf16.msra.mxu0 %v2997
    %3063 = vmatprep.subr.bf16.mxu0 %v3002
    %3064 = vmatpush1.bf16.msra.mxu0 %v3001
    %3065 = vmatprep.subr.bf16.mxu0 %v3006
    %3066 = vmatpush1.bf16.msra.mxu0 %v3005
    %3067 = vmatprep.subr.bf16.mxu0 %v3010
    %3068 = vmatpush1.bf16.msra.mxu0 %v3009
    %3069 = vmatprep.subr.bf16.mxu0 %v3014
    %3070 = vmatpush1.bf16.msra.mxu0 %v3013
    %3071 = vmatprep.subr.bf16.mxu0 %v3018
    %3072 = vmatpush1.bf16.msra.mxu0 %v3017
    %3073 = vmatprep.subr.bf16.mxu0 %v3022
    %3074 = vmatpush1.bf16.msra.mxu0 %v3021
    %3075 = vmatprep.subr.bf16.mxu0 %v3026
    %3076 = vmatpush1.bf16.msra.mxu0 %v3025
    %3077 = vmatprep.subr.bf16.mxu0 0
    %3078 = vmatpush1.bf16.msra.mxu0 0
    %3079 = vmatprep.subr.bf16.mxu0 0
    %3080 = vmatpush1.bf16.msra.mxu0 0
    %3081 = vmatprep.subr.bf16.mxu0 0
    %3082 = vmatpush1.bf16.msra.mxu0 0
    %3083 = vmatprep.subr.bf16.mxu0 0
    %3084 = vmatpush1.bf16.msra.mxu0 0
    %3085 = vmatprep.subr.bf16.mxu0 0
    %3086 = vmatpush1.bf16.msra.mxu0 0
    %3087 = vmatprep.subr.bf16.mxu0 0
    %3088 = vmatpush1.bf16.msra.mxu0 0
    %3089 = vmatprep.subr.bf16.mxu0 0
    %3090 = vmatpush1.bf16.msra.mxu0 0
    %3091 = vmatprep.subr.bf16.mxu0 0
    %3092 = vmatpush1.bf16.msra.mxu0 0
    %3093 = vmatprep.mubr.bf16.mxu0 0
    %3094 = vmatmul.mubr.bf16.gmra.mrb[0].mxu0 %v2846
    %v3095 = vpop.f32.mrb[0].mxu0
    %v3096 = vadd.f32 %v2884, %v3095
    %v3097 = vpop.f32.mrb[0].mxu0
    %v3098 = vadd.f32 %v2888, %v3097
    %v3099 = vpop.f32.mrb[0].mxu0
    %v3100 = vpop.f32.mrb[0].mxu0
    %3101 = vdwg.mxu0
    %3102 = vmatprep.subr.bf16.mxu0 %v3000
    %3103 = vmatpush1.bf16.msra.mxu0 %v2999
    %3104 = vmatprep.subr.bf16.mxu0 %v3004
    %3105 = vmatpush1.bf16.msra.mxu0 %v3003
    %3106 = vmatprep.subr.bf16.mxu0 %v3008
    %3107 = vmatpush1.bf16.msra.mxu0 %v3007
    %3108 = vmatprep.subr.bf16.mxu0 %v3012
    %3109 = vmatpush1.bf16.msra.mxu0 %v3011
    %3110 = vmatprep.subr.bf16.mxu0 %v3016
    %3111 = vmatpush1.bf16.msra.mxu0 %v3015
    %3112 = vmatprep.subr.bf16.mxu0 %v3020
    %3113 = vmatpush1.bf16.msra.mxu0 %v3019
    %3114 = vmatprep.subr.bf16.mxu0 %v3024
    %3115 = vmatpush1.bf16.msra.mxu0 %v3023
    %3116 = vmatprep.subr.bf16.mxu0 %v3028
    %3117 = vmatpush1.bf16.msra.mxu0 %v3027
    %3118 = vmatprep.subr.bf16.mxu0 0
    %3119 = vmatpush1.bf16.msra.mxu0 0
    %3120 = vmatprep.subr.bf16.mxu0 0
    %3121 = vmatpush1.bf16.msra.mxu0 0
    %3122 = vmatprep.subr.bf16.mxu0 0
    %3123 = vmatpush1.bf16.msra.mxu0 0
    %3124 = vmatprep.subr.bf16.mxu0 0
    %3125 = vmatpush1.bf16.msra.mxu0 0
    %3126 = vmatprep.subr.bf16.mxu0 0
    %3127 = vmatpush1.bf16.msra.mxu0 0
    %3128 = vmatprep.subr.bf16.mxu0 0
    %3129 = vmatpush1.bf16.msra.mxu0 0
    %3130 = vmatprep.subr.bf16.mxu0 0
    %3131 = vmatpush1.bf16.msra.mxu0 0
    %3132 = vmatprep.subr.bf16.mxu0 0
    %3133 = vmatpush1.bf16.msra.mxu0 0
    %3134 = vmatprep.mubr.bf16.mxu0 0
    %3135 = vmatmul.mubr.bf16.gmra.mrb[0].mxu0 %v2846
    %v3136 = vpop.f32.mrb[0].mxu0
    %v3137 = vadd.f32 %v2892, %v3136
    %v3138 = vpop.f32.mrb[0].mxu0
    %v3139 = vadd.f32 %v2896, %v3138
    %v3140 = vpop.f32.mrb[0].mxu0
    %v3141 = vpop.f32.mrb[0].mxu0
    %3142 = vdwg.mxu0
    %v3143 = vld [vmem:[#allocation15] sm:$0xff]
    %v3144 = vld [vmem:[#allocation15 + $0x8] sm:$0xff]
    %v3145 = vld [vmem:[#allocation15 + $0x10] sm:$0xff]
    %v3146 = vld [vmem:[#allocation15 + $0x18] sm:$0xff]
    %v3147 = vld [vmem:[#allocation15 + $0x20] sm:$0xff]
    %v3148 = vld [vmem:[#allocation15 + $0x28] sm:$0xff]
    %v3149 = vld [vmem:[#allocation15 + $0x30] sm:$0xff]
    %v3150 = vld [vmem:[#allocation15 + $0x38] sm:$0xff]
    %v3151 = vld [vmem:[#allocation15 + $0x40] sm:$0xff]
    %v3152 = vld [vmem:[#allocation15 + $0x48] sm:$0xff]
    %v3153 = vld [vmem:[#allocation15 + $0x50] sm:$0xff]
    %v3154 = vld [vmem:[#allocation15 + $0x58] sm:$0xff]
    %v3155 = vld [vmem:[#allocation15 + $0x60] sm:$0xff]
    %v3156 = vld [vmem:[#allocation15 + $0x68] sm:$0xff]
    %v3157 = vld [vmem:[#allocation15 + $0x70] sm:$0xff]
    %v3158 = vld [vmem:[#allocation15 + $0x78] sm:$0xff]
    %v3159 = vld [vmem:[#allocation15 + $0x80] sm:$0xff]
    %v3160 = vld [vmem:[#allocation15 + $0x88] sm:$0xff]
    %v3161 = vld [vmem:[#allocation15 + $0x90] sm:$0xff]
    %v3162 = vld [vmem:[#allocation15 + $0x98] sm:$0xff]
    %v3163 = vld [vmem:[#allocation15 + $0xa0] sm:$0xff]
    %v3164 = vld [vmem:[#allocation15 + $0xa8] sm:$0xff]
    %v3165 = vld [vmem:[#allocation15 + $0xb0] sm:$0xff]
    %v3166 = vld [vmem:[#allocation15 + $0xb8] sm:$0xff]
    %v3167 = vld [vmem:[#allocation15 + $0xc0] sm:$0xff]
    %v3168 = vld [vmem:[#allocation15 + $0xc8] sm:$0xff]
    %v3169 = vld [vmem:[#allocation15 + $0xd0] sm:$0xff]
    %v3170 = vld [vmem:[#allocation15 + $0xd8] sm:$0xff]
    %v3171 = vld [vmem:[#allocation15 + $0xe0] sm:$0xff]
    %v3172 = vld [vmem:[#allocation15 + $0xe8] sm:$0xff]
    %v3173 = vld [vmem:[#allocation15 + $0xf0] sm:$0xff]
    %v3174 = vld [vmem:[#allocation15 + $0xf8] sm:$0xff]
    %v3207 = vunpack.c.l.b16 %v3143
    %v3208 = vunpack.c.h.b16 %v3143
    %v3209 = vunpack.c.l.b16 %v3144
    %v3210 = vunpack.c.h.b16 %v3144
    %v3211 = vunpack.c.l.b16 %v3145
    %v3212 = vunpack.c.h.b16 %v3145
    %v3213 = vunpack.c.l.b16 %v3146
    %v3214 = vunpack.c.h.b16 %v3146
    %v3215 = vunpack.c.l.b16 %v3147
    %v3216 = vunpack.c.h.b16 %v3147
    %v3217 = vunpack.c.l.b16 %v3148
    %v3218 = vunpack.c.h.b16 %v3148
    %v3219 = vunpack.c.l.b16 %v3149
    %v3220 = vunpack.c.h.b16 %v3149
    %v3221 = vunpack.c.l.b16 %v3150
    %v3222 = vunpack.c.h.b16 %v3150
    %v3223 = vunpack.c.l.b16 %v3151
    %v3224 = vunpack.c.h.b16 %v3151
    %v3225 = vunpack.c.l.b16 %v3152
    %v3226 = vunpack.c.h.b16 %v3152
    %v3227 = vunpack.c.l.b16 %v3153
    %v3228 = vunpack.c.h.b16 %v3153
    %v3229 = vunpack.c.l.b16 %v3154
    %v3230 = vunpack.c.h.b16 %v3154
    %v3231 = vunpack.c.l.b16 %v3155
    %v3232 = vunpack.c.h.b16 %v3155
    %v3233 = vunpack.c.l.b16 %v3156
    %v3234 = vunpack.c.h.b16 %v3156
    %v3235 = vunpack.c.l.b16 %v3157
    %v3236 = vunpack.c.h.b16 %v3157
    %v3237 = vunpack.c.l.b16 %v3158
    %v3238 = vunpack.c.h.b16 %v3158
    %v3239 = vunpack.c.l.b16 %v3159
    %v3240 = vunpack.c.h.b16 %v3159
    %v3241 = vunpack.c.l.b16 %v3160
    %v3242 = vunpack.c.h.b16 %v3160
    %v3243 = vunpack.c.l.b16 %v3161
    %v3244 = vunpack.c.h.b16 %v3161
    %v3245 = vunpack.c.l.b16 %v3162
    %v3246 = vunpack.c.h.b16 %v3162
    %v3247 = vunpack.c.l.b16 %v3163
    %v3248 = vunpack.c.h.b16 %v3163
    %v3249 = vunpack.c.l.b16 %v3164
    %v3250 = vunpack.c.h.b16 %v3164
    %v3251 = vunpack.c.l.b16 %v3165
    %v3252 = vunpack.c.h.b16 %v3165
    %v3253 = vunpack.c.l.b16 %v3166
    %v3254 = vunpack.c.h.b16 %v3166
    %v3255 = vunpack.c.l.b16 %v3167
    %v3256 = vunpack.c.h.b16 %v3167
    %v3257 = vunpack.c.l.b16 %v3168
    %v3258 = vunpack.c.h.b16 %v3168
    %v3259 = vunpack.c.l.b16 %v3169
    %v3260 = vunpack.c.h.b16 %v3169
    %v3261 = vunpack.c.l.b16 %v3170
    %v3262 = vunpack.c.h.b16 %v3170
    %v3263 = vunpack.c.l.b16 %v3171
    %v3264 = vunpack.c.h.b16 %v3171
    %v3265 = vunpack.c.l.b16 %v3172
    %v3266 = vunpack.c.h.b16 %v3172
    %v3267 = vunpack.c.l.b16 %v3173
    %v3268 = vunpack.c.h.b16 %v3173
    %v3269 = vunpack.c.l.b16 %v3174
    %v3270 = vunpack.c.h.b16 %v3174
    %v3271 = vpack.c.b16 %v3211, %v3207
    %v3272 = vpack.c.b16 %v3212, %v3208
    %v3273 = vpack.c.b16 %v3213, %v3209
    %v3274 = vpack.c.b16 %v3214, %v3210
    %v3275 = vpack.c.b16 %v3219, %v3215
    %v3276 = vpack.c.b16 %v3220, %v3216
    %v3277 = vpack.c.b16 %v3221, %v3217
    %v3278 = vpack.c.b16 %v3222, %v3218
    %v3279 = vpack.c.b16 %v3227, %v3223
    %v3280 = vpack.c.b16 %v3228, %v3224
    %v3281 = vpack.c.b16 %v3229, %v3225
    %v3282 = vpack.c.b16 %v3230, %v3226
    %v3283 = vpack.c.b16 %v3235, %v3231
    %v3284 = vpack.c.b16 %v3236, %v3232
    %v3285 = vpack.c.b16 %v3237, %v3233
    %v3286 = vpack.c.b16 %v3238, %v3234
    %v3287 = vpack.c.b16 %v3243, %v3239
    %v3288 = vpack.c.b16 %v3244, %v3240
    %v3289 = vpack.c.b16 %v3245, %v3241
    %v3290 = vpack.c.b16 %v3246, %v3242
    %v3291 = vpack.c.b16 %v3251, %v3247
    %v3292 = vpack.c.b16 %v3252, %v3248
    %v3293 = vpack.c.b16 %v3253, %v3249
    %v3294 = vpack.c.b16 %v3254, %v3250
    %v3295 = vpack.c.b16 %v3259, %v3255
    %v3296 = vpack.c.b16 %v3260, %v3256
    %v3297 = vpack.c.b16 %v3261, %v3257
    %v3298 = vpack.c.b16 %v3262, %v3258
    %v3299 = vpack.c.b16 %v3267, %v3263
    %v3300 = vpack.c.b16 %v3268, %v3264
    %v3301 = vpack.c.b16 %v3269, %v3265
    %v3302 = vpack.c.b16 %v3270, %v3266
    %3335 = vmatprep.subr.bf16.mxu0 %v3272
    %3336 = vmatpush1.bf16.msra.mxu0 %v3271
    %3337 = vmatprep.subr.bf16.mxu0 %v3276
    %3338 = vmatpush1.bf16.msra.mxu0 %v3275
    %3339 = vmatprep.subr.bf16.mxu0 %v3280
    %3340 = vmatpush1.bf16.msra.mxu0 %v3279
    %3341 = vmatprep.subr.bf16.mxu0 %v3284
    %3342 = vmatpush1.bf16.msra.mxu0 %v3283
    %3343 = vmatprep.subr.bf16.mxu0 %v3288
    %3344 = vmatpush1.bf16.msra.mxu0 %v3287
    %3345 = vmatprep.subr.bf16.mxu0 %v3292
    %3346 = vmatpush1.bf16.msra.mxu0 %v3291
    %3347 = vmatprep.subr.bf16.mxu0 %v3296
    %3348 = vmatpush1.bf16.msra.mxu0 %v3295
    %3349 = vmatprep.subr.bf16.mxu0 %v3300
    %3350 = vmatpush1.bf16.msra.mxu0 %v3299
    %3351 = vmatprep.subr.bf16.mxu0 0
    %3352 = vmatpush1.bf16.msra.mxu0 0
    %3353 = vmatprep.subr.bf16.mxu0 0
    %3354 = vmatpush1.bf16.msra.mxu0 0
    %3355 = vmatprep.subr.bf16.mxu0 0
    %3356 = vmatpush1.bf16.msra.mxu0 0
    %3357 = vmatprep.subr.bf16.mxu0 0
    %3358 = vmatpush1.bf16.msra.mxu0 0
    %3359 = vmatprep.subr.bf16.mxu0 0
    %3360 = vmatpush1.bf16.msra.mxu0 0
    %3361 = vmatprep.subr.bf16.mxu0 0
    %3362 = vmatpush1.bf16.msra.mxu0 0
    %3363 = vmatprep.subr.bf16.mxu0 0
    %3364 = vmatpush1.bf16.msra.mxu0 0
    %3365 = vmatprep.subr.bf16.mxu0 0
    %3366 = vmatpush1.bf16.msra.mxu0 0
    %3367 = vmatprep.mubr.bf16.mxu0 0
    %3368 = vmatmul.mubr.bf16.gmra.mrb[0].mxu0 0
    %v3369 = vpop.f32.mrb[0].mxu0
    %v3370 = vadd.f32 0.0, %v3369
    %v3371 = vpop.f32.mrb[0].mxu0
    %v3372 = vadd.f32 0.0, %v3371
    %v3373 = vpop.f32.mrb[0].mxu0
    %v3374 = vpop.f32.mrb[0].mxu0
    %3375 = vdwg.mxu0
    %3376 = vmatprep.subr.bf16.mxu0 %v3274
    %3377 = vmatpush1.bf16.msra.mxu0 %v3273
    %3378 = vmatprep.subr.bf16.mxu0 %v3278
    %3379 = vmatpush1.bf16.msra.mxu0 %v3277
    %3380 = vmatprep.subr.bf16.mxu0 %v3282
    %3381 = vmatpush1.bf16.msra.mxu0 %v3281
    %3382 = vmatprep.subr.bf16.mxu0 %v3286
    %3383 = vmatpush1.bf16.msra.mxu0 %v3285
    %3384 = vmatprep.subr.bf16.mxu0 %v3290
    %3385 = vmatpush1.bf16.msra.mxu0 %v3289
    %3386 = vmatprep.subr.bf16.mxu0 %v3294
    %3387 = vmatpush1.bf16.msra.mxu0 %v3293
    %3388 = vmatprep.subr.bf16.mxu0 %v3298
    %3389 = vmatpush1.bf16.msra.mxu0 %v3297
    %3390 = vmatprep.subr.bf16.mxu0 %v3302
    %3391 = vmatpush1.bf16.msra.mxu0 %v3301
    %3392 = vmatprep.subr.bf16.mxu0 0
    %3393 = vmatpush1.bf16.msra.mxu0 0
    %3394 = vmatprep.subr.bf16.mxu0 0
    %3395 = vmatpush1.bf16.msra.mxu0 0
    %3396 = vmatprep.subr.bf16.mxu0 0
    %3397 = vmatpush1.bf16.msra.mxu0 0
    %3398 = vmatprep.subr.bf16.mxu0 0
    %3399 = vmatpush1.bf16.msra.mxu0 0
    %3400 = vmatprep.subr.bf16.mxu0 0
    %3401 = vmatpush1.bf16.msra.mxu0 0
    %3402 = vmatprep.subr.bf16.mxu0 0
    %3403 = vmatpush1.bf16.msra.mxu0 0
    %3404 = vmatprep.subr.bf16.mxu0 0
    %3405 = vmatpush1.bf16.msra.mxu0 0
    %3406 = vmatprep.subr.bf16.mxu0 0
    %3407 = vmatpush1.bf16.msra.mxu0 0
    %3408 = vmatprep.mubr.bf16.mxu0 0
    %3409 = vmatmul.mubr.bf16.gmra.mrb[0].mxu0 0
    %v3410 = vpop.f32.mrb[0].mxu0
    %v3411 = vadd.f32 0.0, %v3410
    %v3412 = vpop.f32.mrb[0].mxu0
    %v3413 = vadd.f32 0.0, %v3412
    %v3414 = vpop.f32.mrb[0].mxu0
    %v3415 = vpop.f32.mrb[0].mxu0
    %3416 = vdwg.mxu0
    %v3417 = vadd.f32 %v3096, %v3370
    %v3418 = vadd.f32 %v3098, %v3372
    %v3419 = vadd.f32 %v3137, %v3411
    %v3420 = vadd.f32 %v3139, %v3413
    %v3421 = vxor.u32 %v3417, 2147483648
    %v3422 = vmul.f32 %v3421, 1.442695
    %v3423 = vpow.pop %v3422
    %v3424 = vadd.f32 %v3423, 1.0
    %v3425 = vrcp.pop %v3424
    %v3426 = vmul.f32 1.0, %v3425
    %v3427 = vtanh.pop %v3419
    %v3428 = vmul.f32 %v3426, %v3427
    %v3429 = vxor.u32 %v3418, 2147483648
    %v3430 = vmul.f32 %v3429, 1.442695
    %v3431 = vpow.pop %v3430
    %v3432 = vadd.f32 %v3431, 1.0
    %v3433 = vrcp.pop %v3432
    %v3434 = vmul.f32 1.0, %v3433
    %v3435 = vmul.f32 %v3434, 0.0
    %v3436 = vadd.f32 %v3435, %v3428
    %v3437 = vxor.u32 %v3420, 2147483648
    %v3438 = vmul.f32 %v3437, 1.442695
    %v3439 = vpow.pop %v3438
    %v3440 = vadd.f32 %v3439, 1.0
    %v3441 = vrcp.pop %v3440
    %v3442 = vmul.f32 1.0, %v3441
    %v3443 = vtanh.pop %v3436
    %v3444 = vmul.f32 %v3442, %v3443
    %v3445 = vpack.c.bf16 %v3444, %v3444
    %3446 = vst [vmem:[#allocation3] sm:$0xf] %v3445
    %3447 = vmatprep.subr.bf16.mxu0 %v3272
    %3448 = vmatpush1.bf16.msra.mxu0 %v3271
    %3449 = vmatprep.subr.bf16.mxu0 %v3276
    %3450 = vmatpush1.bf16.msra.mxu0 %v3275
    %3451 = vmatprep.subr.bf16.mxu0 %v3280
    %3452 = vmatpush1.bf16.msra.mxu0 %v3279
    %3453 = vmatprep.subr.bf16.mxu0 %v3284
    %3454 = vmatpush1.bf16.msra.mxu0 %v3283
    %3455 = vmatprep.subr.bf16.mxu0 %v3288
    %3456 = vmatpush1.bf16.msra.mxu0 %v3287
    %3457 = vmatprep.subr.bf16.mxu0 %v3292
    %3458 = vmatpush1.bf16.msra.mxu0 %v3291
    %3459 = vmatprep.subr.bf16.mxu0 %v3296
    %3460 = vmatpush1.bf16.msra.mxu0 %v3295
    %3461 = vmatprep.subr.bf16.mxu0 %v3300
    %3462 = vmatpush1.bf16.msra.mxu0 %v3299
    %3463 = vmatprep.subr.bf16.mxu0 0
    %3464 = vmatpush1.bf16.msra.mxu0 0
    %3465 = vmatprep.subr.bf16.mxu0 0
    %3466 = vmatpush1.bf16.msra.mxu0 0
    %3467 = vmatprep.subr.bf16.mxu0 0
    %3468 = vmatpush1.bf16.msra.mxu0 0
    %3469 = vmatprep.subr.bf16.mxu0 0
    %3470 = vmatpush1.bf16.msra.mxu0 0
    %3471 = vmatprep.subr.bf16.mxu0 0
    %3472 = vmatpush1.bf16.msra.mxu0 0
    %3473 = vmatprep.subr.bf16.mxu0 0
    %3474 = vmatpush1.bf16.msra.mxu0 0
    %3475 = vmatprep.subr.bf16.mxu0 0
    %3476 = vmatpush1.bf16.msra.mxu0 0
    %3477 = vmatprep.subr.bf16.mxu0 0
    %3478 = vmatpush1.bf16.msra.mxu0 0
    %3479 = vmatprep.mubr.bf16.mxu0 0
    %3480 = vmatmul.mubr.bf16.gmra.mrb[0].mxu0 %v3445
    %v3481 = vpop.f32.mrb[0].mxu0
    %v3482 = vadd.f32 0.0, %v3481
    %v3483 = vpop.f32.mrb[0].mxu0
    %v3484 = vadd.f32 0.0, %v3483
    %v3485 = vpop.f32.mrb[0].mxu0
    %v3486 = vpop.f32.mrb[0].mxu0
    %3487 = vdwg.mxu0
    %3488 = vmatprep.subr.bf16.mxu0 %v3274
    %3489 = vmatpush1.bf16.msra.mxu0 %v3273
    %3490 = vmatprep.subr.bf16.mxu0 %v3278
    %3491 = vmatpush1.bf16.msra.mxu0 %v3277
    %3492 = vmatprep.subr.bf16.mxu0 %v3282
    %3493 = vmatpush1.bf16.msra.mxu0 %v3281
    %3494 = vmatprep.subr.bf16.mxu0 %v3286
    %3495 = vmatpush1.bf16.msra.mxu0 %v3285
    %3496 = vmatprep.subr.bf16.mxu0 %v3290
    %3497 = vmatpush1.bf16.msra.mxu0 %v3289
    %3498 = vmatprep.subr.bf16.mxu0 %v3294
    %3499 = vmatpush1.bf16.msra.mxu0 %v3293
    %3500 = vmatprep.subr.bf16.mxu0 %v3298
    %3501 = vmatpush1.bf16.msra.mxu0 %v3297
    %3502 = vmatprep.subr.bf16.mxu0 %v3302
    %3503 = vmatpush1.bf16.msra.mxu0 %v3301
    %3504 = vmatprep.subr.bf16.mxu0 0
    %3505 = vmatpush1.bf16.msra.mxu0 0
    %3506 = vmatprep.subr.bf16.mxu0 0
    %3507 = vmatpush1.bf16.msra.mxu0 0
    %3508 = vmatprep.subr.bf16.mxu0 0
    %3509 = vmatpush1.bf16.msra.mxu0 0
    %3510 = vmatprep.subr.bf16.mxu0 0
    %3511 = vmatpush1.bf16.msra.mxu0 0
    %3512 = vmatprep.subr.bf16.mxu0 0
    %3513 = vmatpush1.bf16.msra.mxu0 0
    %3514 = vmatprep.subr.bf16.mxu0 0
    %3515 = vmatpush1.bf16.msra.mxu0 0
    %3516 = vmatprep.subr.bf16.mxu0 0
    %3517 = vmatpush1.bf16.msra.mxu0 0
    %3518 = vmatprep.subr.bf16.mxu0 0
    %3519 = vmatpush1.bf16.msra.mxu0 0
    %3520 = vmatprep.mubr.bf16.mxu0 0
    %3521 = vmatmul.mubr.bf16.gmra.mrb[0].mxu0 %v3445
    %v3522 = vpop.f32.mrb[0].mxu0
    %v3523 = vadd.f32 0.0, %v3522
    %v3524 = vpop.f32.mrb[0].mxu0
    %v3525 = vadd.f32 0.0, %v3524
    %v3526 = vpop.f32.mrb[0].mxu0
    %v3527 = vpop.f32.mrb[0].mxu0
    %3528 = vdwg.mxu0
    %v3529 = vadd.f32 %v3096, %v3482
    %v3530 = vadd.f32 %v3098, %v3484
    %v3531 = vadd.f32 %v3137, %v3523
    %v3532 = vadd.f32 %v3139, %v3525
    %v3533 = vxor.u32 %v3529, 2147483648
    %v3534 = vmul.f32 %v3533, 1.442695
    %v3535 = vpow.pop %v3534
    %v3536 = vadd.f32 %v3535, 1.0
    %v3537 = vrcp.pop %v3536
    %v3538 = vmul.f32 1.0, %v3537
    %v3539 = vtanh.pop %v3531
    %v3540 = vmul.f32 %v3538, %v3539
    %v3541 = vxor.u32 %v3530, 2147483648
    %v3542 = vmul.f32 %v3541, 1.442695
    %v3543 = vpow.pop %v3542
    %v3544 = vadd.f32 %v3543, 1.0
    %v3545 = vrcp.pop %v3544
    %v3546 = vmul.f32 1.0, %v3545
    %v3547 = vmul.f32 %v3546, %v3436
    %v3548 = vadd.f32 %v3547, %v3540
    %v3549 = vxor.u32 %v3532, 2147483648
    %v3550 = vmul.f32 %v3549, 1.442695
    %v3551 = vpow.pop %v3550
    %v3552 = vadd.f32 %v3551, 1.0
    %v3553 = vrcp.pop %v3552
    %v3554 = vmul.f32 1.0, %v3553
    %v3555 = vtanh.pop %v3548
    %v3556 = vmul.f32 %v3554, %v3555
    %v3557 = vpack.c.bf16 %v3556, %v3556
    %s3558 = scalar_lea.vmem [#allocation3], 4
    %3559 = vst [vmem:[%s3558] sm:$0xf] %v3557
    %3560 = vmatprep.subr.bf16.mxu0 %v3272
    %3561 = vmatpush1.bf16.msra.mxu0 %v3271
    %3562 = vmatprep.subr.bf16.mxu0 %v3276
    %3563 = vmatpush1.bf16.msra.mxu0 %v3275
    %3564 = vmatprep.subr.bf16.mxu0 %v3280
    %3565 = vmatpush1.bf16.msra.mxu0 %v3279
    %3566 = vmatprep.subr.bf16.mxu0 %v3284
    %3567 = vmatpush1.bf16.msra.mxu0 %v3283
    %3568 = vmatprep.subr.bf16.mxu0 %v3288
    %3569 = vmatpush1.bf16.msra.mxu0 %v3287
    %3570 = vmatprep.subr.bf16.mxu0 %v3292
    %3571 = vmatpush1.bf16.msra.mxu0 %v3291
    %3572 = vmatprep.subr.bf16.mxu0 %v3296
    %3573 = vmatpush1.bf16.msra.mxu0 %v3295
    %3574 = vmatprep.subr.bf16.mxu0 %v3300
    %3575 = vmatpush1.bf16.msra.mxu0 %v3299
    %3576 = vmatprep.subr.bf16.mxu0 0
    %3577 = vmatpush1.bf16.msra.mxu0 0
    %3578 = vmatprep.subr.bf16.mxu0 0
    %3579 = vmatpush1.bf16.msra.mxu0 0
    %3580 = vmatprep.subr.bf16.mxu0 0
    %3581 = vmatpush1.bf16.msra.mxu0 0
    %3582 = vmatprep.subr.bf16.mxu0 0
    %3583 = vmatpush1.bf16.msra.mxu0 0
    %3584 = vmatprep.subr.bf16.mxu0 0
    %3585 = vmatpush1.bf16.msra.mxu0 0
    %3586 = vmatprep.subr.bf16.mxu0 0
    %3587 = vmatpush1.bf16.msra.mxu0 0
    %3588 = vmatprep.subr.bf16.mxu0 0
    %3589 = vmatpush1.bf16.msra.mxu0 0
    %3590 = vmatprep.subr.bf16.mxu0 0
    %3591 = vmatpush1.bf16.msra.mxu0 0
    %3592 = vmatprep.mubr.bf16.mxu0 0
    %3593 = vmatmul.mubr.bf16.gmra.mrb[0].mxu0 %v3557
    %v3594 = vpop.f32.mrb[0].mxu0
    %v3595 = vadd.f32 0.0, %v3594
    %v3596 = vpop.f32.mrb[0].mxu0
    %v3597 = vadd.f32 0.0, %v3596
    %v3598 = vpop.f32.mrb[0].mxu0
    %v3599 = vpop.f32.mrb[0].mxu0
    %3600 = vdwg.mxu0
    %3601 = vmatprep.subr.bf16.mxu0 %v3274
    %3602 = vmatpush1.bf16.msra.mxu0 %v3273
    %3603 = vmatprep.subr.bf16.mxu0 %v3278
    %3604 = vmatpush1.bf16.msra.mxu0 %v3277
    %3605 = vmatprep.subr.bf16.mxu0 %v3282
    %3606 = vmatpush1.bf16.msra.mxu0 %v3281
    %3607 = vmatprep.subr.bf16.mxu0 %v3286
    %3608 = vmatpush1.bf16.msra.mxu0 %v3285
    %3609 = vmatprep.subr.bf16.mxu0 %v3290
    %3610 = vmatpush1.bf16.msra.mxu0 %v3289
    %3611 = vmatprep.subr.bf16.mxu0 %v3294
    %3612 = vmatpush1.bf16.msra.mxu0 %v3293
    %3613 = vmatprep.subr.bf16.mxu0 %v3298
    %3614 = vmatpush1.bf16.msra.mxu0 %v3297
    %3615 = vmatprep.subr.bf16.mxu0 %v3302
    %3616 = vmatpush1.bf16.msra.mxu0 %v3301
    %3617 = vmatprep.subr.bf16.mxu0 0
    %3618 = vmatpush1.bf16.msra.mxu0 0
    %3619 = vmatprep.subr.bf16.mxu0 0
    %3620 = vmatpush1.bf16.msra.mxu0 0
    %3621 = vmatprep.subr.bf16.mxu0 0
    %3622 = vmatpush1.bf16.msra.mxu0 0
    %3623 = vmatprep.subr.bf16.mxu0 0
    %3624 = vmatpush1.bf16.msra.mxu0 0
    %3625 = vmatprep.subr.bf16.mxu0 0
    %3626 = vmatpush1.bf16.msra.mxu0 0
    %3627 = vmatprep.subr.bf16.mxu0 0
    %3628 = vmatpush1.bf16.msra.mxu0 0
    %3629 = vmatprep.subr.bf16.mxu0 0
    %3630 = vmatpush1.bf16.msra.mxu0 0
    %3631 = vmatprep.subr.bf16.mxu0 0
    %3632 = vmatpush1.bf16.msra.mxu0 0
    %3633 = vmatprep.mubr.bf16.mxu0 0
    %3634 = vmatmul.mubr.bf16.gmra.mrb[0].mxu0 %v3557
    %v3635 = vpop.f32.mrb[0].mxu0
    %v3636 = vadd.f32 0.0, %v3635
    %v3637 = vpop.f32.mrb[0].mxu0
    %v3638 = vadd.f32 0.0, %v3637
    %v3639 = vpop.f32.mrb[0].mxu0
    %v3640 = vpop.f32.mrb[0].mxu0
    %3641 = vdwg.mxu0
    %v3642 = vadd.f32 %v3096, %v3595
    %v3643 = vadd.f32 %v3098, %v3597
    %v3644 = vadd.f32 %v3137, %v3636
    %v3645 = vadd.f32 %v3139, %v3638
    %v3646 = vxor.u32 %v3642, 2147483648
    %v3647 = vmul.f32 %v3646, 1.442695
    %v3648 = vpow.pop %v3647
    %v3649 = vadd.f32 %v3648, 1.0
    %v3650 = vrcp.pop %v3649
    %v3651 = vmul.f32 1.0, %v3650
    %v3652 = vtanh.pop %v3644
    %v3653 = vmul.f32 %v3651, %v3652
    %v3654 = vxor.u32 %v3643, 2147483648
    %v3655 = vmul.f32 %v3654, 1.442695
    %v3656 = vpow.pop %v3655
    %v3657 = vadd.f32 %v3656, 1.0
    %v3658 = vrcp.pop %v3657
    %v3659 = vmul.f32 1.0, %v3658
    %v3660 = vmul.f32 %v3659, %v3548
    %v3661 = vadd.f32 %v3660, %v3653
    %v3662 = vxor.u32 %v3645, 2147483648
    %v3663 = vmul.f32 %v3662, 1.442695
    %v3664 = vpow.pop %v3663
    %v3665 = vadd.f32 %v3664, 1.0
    %v3666 = vrcp.pop %v3665
    %v3667 = vmul.f32 1.0, %v3666
    %v3668 = vtanh.pop %v3661
    %v3669 = vmul.f32 %v3667, %v3668
    %v3670 = vpack.c.bf16 %v3669, %v3669
    %s3671 = scalar_lea.vmem [#allocation3], 8
    %3672 = vst [vmem:[%s3671] sm:$0xf] %v3670
    %3673 = vmatprep.subr.bf16.mxu0 %v3272
    %3674 = vmatpush1.bf16.msra.mxu0 %v3271
    %3675 = vmatprep.subr.bf16.mxu0 %v3276
    %3676 = vmatpush1.bf16.msra.mxu0 %v3275
    %3677 = vmatprep.subr.bf16.mxu0 %v3280
    %3678 = vmatpush1.bf16.msra.mxu0 %v3279
    %3679 = vmatprep.subr.bf16.mxu0 %v3284
    %3680 = vmatpush1.bf16.msra.mxu0 %v3283
    %3681 = vmatprep.subr.bf16.mxu0 %v3288
    %3682 = vmatpush1.bf16.msra.mxu0 %v3287
    %3683 = vmatprep.subr.bf16.mxu0 %v3292
    %3684 = vmatpush1.bf16.msra.mxu0 %v3291
    %3685 = vmatprep.subr.bf16.mxu0 %v3296
    %3686 = vmatpush1.bf16.msra.mxu0 %v3295
    %3687 = vmatprep.subr.bf16.mxu0 %v3300
    %3688 = vmatpush1.bf16.msra.mxu0 %v3299
    %3689 = vmatprep.subr.bf16.mxu0 0
    %3690 = vmatpush1.bf16.msra.mxu0 0
    %3691 = vmatprep.subr.bf16.mxu0 0
    %3692 = vmatpush1.bf16.msra.mxu0 0
    %3693 = vmatprep.subr.bf16.mxu0 0
    %3694 = vmatpush1.bf16.msra.mxu0 0
    %3695 = vmatprep.subr.bf16.mxu0 0
    %3696 = vmatpush1.bf16.msra.mxu0 0
    %3697 = vmatprep.subr.bf16.mxu0 0
    %3698 = vmatpush1.bf16.msra.mxu0 0
    %3699 = vmatprep.subr.bf16.mxu0 0
    %3700 = vmatpush1.bf16.msra.mxu0 0
    %3701 = vmatprep.subr.bf16.mxu0 0
    %3702 = vmatpush1.bf16.msra.mxu0 0
    %3703 = vmatprep.subr.bf16.mxu0 0
    %3704 = vmatpush1.bf16.msra.mxu0 0
    %3705 = vmatprep.mubr.bf16.mxu0 0
    %3706 = vmatmul.mubr.bf16.gmra.mrb[0].mxu0 %v3670
    %v3707 = vpop.f32.mrb[0].mxu0
    %v3708 = vadd.f32 0.0, %v3707
    %v3709 = vpop.f32.mrb[0].mxu0
    %v3710 = vadd.f32 0.0, %v3709
    %v3711 = vpop.f32.mrb[0].mxu0
    %v3712 = vpop.f32.mrb[0].mxu0
    %3713 = vdwg.mxu0
    %3714 = vmatprep.subr.bf16.mxu0 %v3274
    %3715 = vmatpush1.bf16.msra.mxu0 %v3273
    %3716 = vmatprep.subr.bf16.mxu0 %v3278
    %3717 = vmatpush1.bf16.msra.mxu0 %v3277
    %3718 = vmatprep.subr.bf16.mxu0 %v3282
    %3719 = vmatpush1.bf16.msra.mxu0 %v3281
    %3720 = vmatprep.subr.bf16.mxu0 %v3286
    %3721 = vmatpush1.bf16.msra.mxu0 %v3285
    %3722 = vmatprep.subr.bf16.mxu0 %v3290
    %3723 = vmatpush1.bf16.msra.mxu0 %v3289
    %3724 = vmatprep.subr.bf16.mxu0 %v3294
    %3725 = vmatpush1.bf16.msra.mxu0 %v3293
    %3726 = vmatprep.subr.bf16.mxu0 %v3298
    %3727 = vmatpush1.bf16.msra.mxu0 %v3297
    %3728 = vmatprep.subr.bf16.mxu0 %v3302
    %3729 = vmatpush1.bf16.msra.mxu0 %v3301
    %3730 = vmatprep.subr.bf16.mxu0 0
    %3731 = vmatpush1.bf16.msra.mxu0 0
    %3732 = vmatprep.subr.bf16.mxu0 0
    %3733 = vmatpush1.bf16.msra.mxu0 0
    %3734 = vmatprep.subr.bf16.mxu0 0
    %3735 = vmatpush1.bf16.msra.mxu0 0
    %3736 = vmatprep.subr.bf16.mxu0 0
    %3737 = vmatpush1.bf16.msra.mxu0 0
    %3738 = vmatprep.subr.bf16.mxu0 0
    %3739 = vmatpush1.bf16.msra.mxu0 0
    %3740 = vmatprep.subr.bf16.mxu0 0
    %3741 = vmatpush1.bf16.msra.mxu0 0
    %3742 = vmatprep.subr.bf16.mxu0 0
    %3743 = vmatpush1.bf16.msra.mxu0 0
    %3744 = vmatprep.subr.bf16.mxu0 0
    %3745 = vmatpush1.bf16.msra.mxu0 0
    %3746 = vmatprep.mubr.bf16.mxu0 0
    %3747 = vmatmul.mubr.bf16.gmra.mrb[0].mxu0 %v3670
    %v3748 = vpop.f32.mrb[0].mxu0
    %v3749 = vadd.f32 0.0, %v3748
    %v3750 = vpop.f32.mrb[0].mxu0
    %v3751 = vadd.f32 0.0, %v3750
    %v3752 = vpop.f32.mrb[0].mxu0
    %v3753 = vpop.f32.mrb[0].mxu0
    %3754 = vdwg.mxu0
    %v3755 = vadd.f32 %v3096, %v3708
    %v3756 = vadd.f32 %v3098, %v3710
    %v3757 = vadd.f32 %v3137, %v3749
    %v3758 = vadd.f32 %v3139, %v3751
    %v3759 = vxor.u32 %v3755, 2147483648
    %v3760 = vmul.f32 %v3759, 1.442695
    %v3761 = vpow.pop %v3760
    %v3762 = vadd.f32 %v3761, 1.0
    %v3763 = vrcp.pop %v3762
    %v3764 = vmul.f32 1.0, %v3763
    %v3765 = vtanh.pop %v3757
    %v3766 = vmul.f32 %v3764, %v3765
    %v3767 = vxor.u32 %v3756, 2147483648
    %v3768 = vmul.f32 %v3767, 1.442695
    %v3769 = vpow.pop %v3768
    %v3770 = vadd.f32 %v3769, 1.0
    %v3771 = vrcp.pop %v3770
    %v3772 = vmul.f32 1.0, %v3771
    %v3773 = vmul.f32 %v3772, %v3661
    %v3774 = vadd.f32 %v3773, %v3766
    %v3775 = vxor.u32 %v3758, 2147483648
    %v3776 = vmul.f32 %v3775, 1.442695
    %v3777 = vpow.pop %v3776
    %v3778 = vadd.f32 %v3777, 1.0
    %v3779 = vrcp.pop %v3778
    %v3780 = vmul.f32 1.0, %v3779
    %v3781 = vtanh.pop %v3774
    %v3782 = vmul.f32 %v3780, %v3781
    %v3783 = vpack.c.bf16 %v3782, %v3782
    %s3784 = scalar_lea.vmem [#allocation3], 12
    %3785 = vst [vmem:[%s3784] sm:$0xf] %v3783
    %3786 = vmatprep.subr.bf16.mxu0 %v3272
    %3787 = vmatpush1.bf16.msra.mxu0 %v3271
    %3788 = vmatprep.subr.bf16.mxu0 %v3276
    %3789 = vmatpush1.bf16.msra.mxu0 %v3275
    %3790 = vmatprep.subr.bf16.mxu0 %v3280
    %3791 = vmatpush1.bf16.msra.mxu0 %v3279
    %3792 = vmatprep.subr.bf16.mxu0 %v3284
    %3793 = vmatpush1.bf16.msra.mxu0 %v3283
    %3794 = vmatprep.subr.bf16.mxu0 %v3288
    %3795 = vmatpush1.bf16.msra.mxu0 %v3287
    %3796 = vmatprep.subr.bf16.mxu0 %v3292
    %3797 = vmatpush1.bf16.msra.mxu0 %v3291
    %3798 = vmatprep.subr.bf16.mxu0 %v3296
    %3799 = vmatpush1.bf16.msra.mxu0 %v3295
    %3800 = vmatprep.subr.bf16.mxu0 %v3300
    %3801 = vmatpush1.bf16.msra.mxu0 %v3299
    %3802 = vmatprep.subr.bf16.mxu0 0
    %3803 = vmatpush1.bf16.msra.mxu0 0
    %3804 = vmatprep.subr.bf16.mxu0 0
    %3805 = vmatpush1.bf16.msra.mxu0 0
    %3806 = vmatprep.subr.bf16.mxu0 0
    %3807 = vmatpush1.bf16.msra.mxu0 0
    %3808 = vmatprep.subr.bf16.mxu0 0
    %3809 = vmatpush1.bf16.msra.mxu0 0
    %3810 = vmatprep.subr.bf16.mxu0 0
    %3811 = vmatpush1.bf16.msra.mxu0 0
    %3812 = vmatprep.subr.bf16.mxu0 0
    %3813 = vmatpush1.bf16.msra.mxu0 0
    %3814 = vmatprep.subr.bf16.mxu0 0
    %3815 = vmatpush1.bf16.msra.mxu0 0
    %3816 = vmatprep.subr.bf16.mxu0 0
    %3817 = vmatpush1.bf16.msra.mxu0 0
    %3818 = vmatprep.mubr.bf16.mxu0 0
    %3819 = vmatmul.mubr.bf16.gmra.mrb[0].mxu0 %v3783
    %v3820 = vpop.f32.mrb[0].mxu0
    %v3821 = vadd.f32 0.0, %v3820
    %v3822 = vpop.f32.mrb[0].mxu0
    %v3823 = vadd.f32 0.0, %v3822
    %v3824 = vpop.f32.mrb[0].mxu0
    %v3825 = vpop.f32.mrb[0].mxu0
    %3826 = vdwg.mxu0
    %3827 = vmatprep.subr.bf16.mxu0 %v3274
    %3828 = vmatpush1.bf16.msra.mxu0 %v3273
    %3829 = vmatprep.subr.bf16.mxu0 %v3278
    %3830 = vmatpush1.bf16.msra.mxu0 %v3277
    %3831 = vmatprep.subr.bf16.mxu0 %v3282
    %3832 = vmatpush1.bf16.msra.mxu0 %v3281
    %3833 = vmatprep.subr.bf16.mxu0 %v3286
    %3834 = vmatpush1.bf16.msra.mxu0 %v3285
    %3835 = vmatprep.subr.bf16.mxu0 %v3290
    %3836 = vmatpush1.bf16.msra.mxu0 %v3289
    %3837 = vmatprep.subr.bf16.mxu0 %v3294
    %3838 = vmatpush1.bf16.msra.mxu0 %v3293
    %3839 = vmatprep.subr.bf16.mxu0 %v3298
    %3840 = vmatpush1.bf16.msra.mxu0 %v3297
    %3841 = vmatprep.subr.bf16.mxu0 %v3302
    %3842 = vmatpush1.bf16.msra.mxu0 %v3301
    %3843 = vmatprep.subr.bf16.mxu0 0
    %3844 = vmatpush1.bf16.msra.mxu0 0
    %3845 = vmatprep.subr.bf16.mxu0 0
    %3846 = vmatpush1.bf16.msra.mxu0 0
    %3847 = vmatprep.subr.bf16.mxu0 0
    %3848 = vmatpush1.bf16.msra.mxu0 0
    %3849 = vmatprep.subr.bf16.mxu0 0
    %3850 = vmatpush1.bf16.msra.mxu0 0
    %3851 = vmatprep.subr.bf16.mxu0 0
    %3852 = vmatpush1.bf16.msra.mxu0 0
    %3853 = vmatprep.subr.bf16.mxu0 0
    %3854 = vmatpush1.bf16.msra.mxu0 0
    %3855 = vmatprep.subr.bf16.mxu0 0
    %3856 = vmatpush1.bf16.msra.mxu0 0
    %3857 = vmatprep.subr.bf16.mxu0 0
    %3858 = vmatpush1.bf16.msra.mxu0 0
    %3859 = vmatprep.mubr.bf16.mxu0 0
    %3860 = vmatmul.mubr.bf16.gmra.mrb[0].mxu0 %v3783
    %v3861 = vpop.f32.mrb[0].mxu0
    %v3862 = vadd.f32 0.0, %v3861
    %v3863 = vpop.f32.mrb[0].mxu0
    %v3864 = vadd.f32 0.0, %v3863
    %v3865 = vpop.f32.mrb[0].mxu0
    %v3866 = vpop.f32.mrb[0].mxu0
    %3867 = vdwg.mxu0
    %v3868 = vadd.f32 %v3096, %v3821
    %v3869 = vadd.f32 %v3098, %v3823
    %v3870 = vadd.f32 %v3137, %v3862
    %v3871 = vadd.f32 %v3139, %v3864
    %v3872 = vxor.u32 %v3868, 2147483648
    %v3873 = vmul.f32 %v3872, 1.442695
    %v3874 = vpow.pop %v3873
    %v3875 = vadd.f32 %v3874, 1.0
    %v3876 = vrcp.pop %v3875
    %v3877 = vmul.f32 1.0, %v3876
    %v3878 = vtanh.pop %v3870
    %v3879 = vmul.f32 %v3877, %v3878
    %v3880 = vxor.u32 %v3869, 2147483648
    %v3881 = vmul.f32 %v3880, 1.442695
    %v3882 = vpow.pop %v3881
    %v3883 = vadd.f32 %v3882, 1.0
    %v3884 = vrcp.pop %v3883
    %v3885 = vmul.f32 1.0, %v3884
    %v3886 = vmul.f32 %v3885, %v3774
    %v3887 = vadd.f32 %v3886, %v3879
    %v3888 = vxor.u32 %v3871, 2147483648
    %v3889 = vmul.f32 %v3888, 1.442695
    %v3890 = vpow.pop %v3889
    %v3891 = vadd.f32 %v3890, 1.0
    %v3892 = vrcp.pop %v3891
    %v3893 = vmul.f32 1.0, %v3892
    %v3894 = vtanh.pop %v3887
    %v3895 = vmul.f32 %v3893, %v3894
    %v3896 = vpack.c.bf16 %v3895, %v3895
    %s3897 = scalar_lea.vmem [#allocation3], 16
    %3898 = vst [vmem:[%s3897] sm:$0xf] %v3896
    %3899 = vmatprep.subr.bf16.mxu0 %v3272
    %3900 = vmatpush1.bf16.msra.mxu0 %v3271
    %3901 = vmatprep.subr.bf16.mxu0 %v3276
    %3902 = vmatpush1.bf16.msra.mxu0 %v3275
    %3903 = vmatprep.subr.bf16.mxu0 %v3280
    %3904 = vmatpush1.bf16.msra.mxu0 %v3279
    %3905 = vmatprep.subr.bf16.mxu0 %v3284
    %3906 = vmatpush1.bf16.msra.mxu0 %v3283
    %3907 = vmatprep.subr.bf16.mxu0 %v3288
    %3908 = vmatpush1.bf16.msra.mxu0 %v3287
    %3909 = vmatprep.subr.bf16.mxu0 %v3292
    %3910 = vmatpush1.bf16.msra.mxu0 %v3291
    %3911 = vmatprep.subr.bf16.mxu0 %v3296
    %3912 = vmatpush1.bf16.msra.mxu0 %v3295
    %3913 = vmatprep.subr.bf16.mxu0 %v3300
    %3914 = vmatpush1.bf16.msra.mxu0 %v3299
    %3915 = vmatprep.subr.bf16.mxu0 0
    %3916 = vmatpush1.bf16.msra.mxu0 0
    %3917 = vmatprep.subr.bf16.mxu0 0
    %3918 = vmatpush1.bf16.msra.mxu0 0
    %3919 = vmatprep.subr.bf16.mxu0 0
    %3920 = vmatpush1.bf16.msra.mxu0 0
    %3921 = vmatprep.subr.bf16.mxu0 0
    %3922 = vmatpush1.bf16.msra.mxu0 0
    %3923 = vmatprep.subr.bf16.mxu0 0
    %3924 = vmatpush1.bf16.msra.mxu0 0
    %3925 = vmatprep.subr.bf16.mxu0 0
    %3926 = vmatpush1.bf16.msra.mxu0 0
    %3927 = vmatprep.subr.bf16.mxu0 0
    %3928 = vmatpush1.bf16.msra.mxu0 0
    %3929 = vmatprep.subr.bf16.mxu0 0
    %3930 = vmatpush1.bf16.msra.mxu0 0
    %3931 = vmatprep.mubr.bf16.mxu0 0
    %3932 = vmatmul.mubr.bf16.gmra.mrb[0].mxu0 %v3896
    %v3933 = vpop.f32.mrb[0].mxu0
    %v3934 = vadd.f32 0.0, %v3933
    %v3935 = vpop.f32.mrb[0].mxu0
    %v3936 = vadd.f32 0.0, %v3935
    %v3937 = vpop.f32.mrb[0].mxu0
    %v3938 = vpop.f32.mrb[0].mxu0
    %3939 = vdwg.mxu0
    %3940 = vmatprep.subr.bf16.mxu0 %v3274
    %3941 = vmatpush1.bf16.msra.mxu0 %v3273
    %3942 = vmatprep.subr.bf16.mxu0 %v3278
    %3943 = vmatpush1.bf16.msra.mxu0 %v3277
    %3944 = vmatprep.subr.bf16.mxu0 %v3282
    %3945 = vmatpush1.bf16.msra.mxu0 %v3281
    %3946 = vmatprep.subr.bf16.mxu0 %v3286
    %3947 = vmatpush1.bf16.msra.mxu0 %v3285
    %3948 = vmatprep.subr.bf16.mxu0 %v3290
    %3949 = vmatpush1.bf16.msra.mxu0 %v3289
    %3950 = vmatprep.subr.bf16.mxu0 %v3294
    %3951 = vmatpush1.bf16.msra.mxu0 %v3293
    %3952 = vmatprep.subr.bf16.mxu0 %v3298
    %3953 = vmatpush1.bf16.msra.mxu0 %v3297
    %3954 = vmatprep.subr.bf16.mxu0 %v3302
    %3955 = vmatpush1.bf16.msra.mxu0 %v3301
    %3956 = vmatprep.subr.bf16.mxu0 0
    %3957 = vmatpush1.bf16.msra.mxu0 0
    %3958 = vmatprep.subr.bf16.mxu0 0
    %3959 = vmatpush1.bf16.msra.mxu0 0
    %3960 = vmatprep.subr.bf16.mxu0 0
    %3961 = vmatpush1.bf16.msra.mxu0 0
    %3962 = vmatprep.subr.bf16.mxu0 0
    %3963 = vmatpush1.bf16.msra.mxu0 0
    %3964 = vmatprep.subr.bf16.mxu0 0
    %3965 = vmatpush1.bf16.msra.mxu0 0
    %3966 = vmatprep.subr.bf16.mxu0 0
    %3967 = vmatpush1.bf16.msra.mxu0 0
    %3968 = vmatprep.subr.bf16.mxu0 0
    %3969 = vmatpush1.bf16.msra.mxu0 0
    %3970 = vmatprep.subr.bf16.mxu0 0
    %3971 = vmatpush1.bf16.msra.mxu0 0
    %3972 = vmatprep.mubr.bf16.mxu0 0
    %3973 = vmatmul.mubr.bf16.gmra.mrb[0].mxu0 %v3896
    %v3974 = vpop.f32.mrb[0].mxu0
    %v3975 = vadd.f32 0.0, %v3974
    %v3976 = vpop.f32.mrb[0].mxu0
    %v3977 = vadd.f32 0.0, %v3976
    %v3978 = vpop.f32.mrb[0].mxu0
    %v3979 = vpop.f32.mrb[0].mxu0
    %3980 = vdwg.mxu0
    %v3981 = vadd.f32 %v3096, %v3934
    %v3982 = vadd.f32 %v3098, %v3936
    %v3983 = vadd.f32 %v3137, %v3975
    %v3984 = vadd.f32 %v3139, %v3977
    %v3985 = vxor.u32 %v3981, 2147483648
    %v3986 = vmul.f32 %v3985, 1.442695
    %v3987 = vpow.pop %v3986
    %v3988 = vadd.f32 %v3987, 1.0
    %v3989 = vrcp.pop %v3988
    %v3990 = vmul.f32 1.0, %v3989
    %v3991 = vtanh.pop %v3983
    %v3992 = vmul.f32 %v3990, %v3991
    %v3993 = vxor.u32 %v3982, 2147483648
    %v3994 = vmul.f32 %v3993, 1.442695
    %v3995 = vpow.pop %v3994
    %v3996 = vadd.f32 %v3995, 1.0
    %v3997 = vrcp.pop %v3996
    %v3998 = vmul.f32 1.0, %v3997
    %v3999 = vmul.f32 %v3998, %v3887
    %v4000 = vadd.f32 %v3999, %v3992
    %v4001 = vxor.u32 %v3984, 2147483648
    %v4002 = vmul.f32 %v4001, 1.442695
    %v4003 = vpow.pop %v4002
    %v4004 = vadd.f32 %v4003, 1.0
    %v4005 = vrcp.pop %v4004
    %v4006 = vmul.f32 1.0, %v4005
    %v4007 = vtanh.pop %v4000
    %v4008 = vmul.f32 %v4006, %v4007
    %v4009 = vpack.c.bf16 %v4008, %v4008
    %s4010 = scalar_lea.vmem [#allocation3], 20
    %4011 = vst [vmem:[%s4010] sm:$0xf] %v4009
    %4012 = vmatprep.subr.bf16.mxu0 %v3272
    %4013 = vmatpush1.bf16.msra.mxu0 %v3271
    %4014 = vmatprep.subr.bf16.mxu0 %v3276
    %4015 = vmatpush1.bf16.msra.mxu0 %v3275
    %4016 = vmatprep.subr.bf16.mxu0 %v3280
    %4017 = vmatpush1.bf16.msra.mxu0 %v3279
    %4018 = vmatprep.subr.bf16.mxu0 %v3284
    %4019 = vmatpush1.bf16.msra.mxu0 %v3283
    %4020 = vmatprep.subr.bf16.mxu0 %v3288
    %4021 = vmatpush1.bf16.msra.mxu0 %v3287
    %4022 = vmatprep.subr.bf16.mxu0 %v3292
    %4023 = vmatpush1.bf16.msra.mxu0 %v3291
    %4024 = vmatprep.subr.bf16.mxu0 %v3296
    %4025 = vmatpush1.bf16.msra.mxu0 %v3295
    %4026 = vmatprep.subr.bf16.mxu0 %v3300
    %4027 = vmatpush1.bf16.msra.mxu0 %v3299
    %4028 = vmatprep.subr.bf16.mxu0 0
    %4029 = vmatpush1.bf16.msra.mxu0 0
    %4030 = vmatprep.subr.bf16.mxu0 0
    %4031 = vmatpush1.bf16.msra.mxu0 0
    %4032 = vmatprep.subr.bf16.mxu0 0
    %4033 = vmatpush1.bf16.msra.mxu0 0
    %4034 = vmatprep.subr.bf16.mxu0 0
    %4035 = vmatpush1.bf16.msra.mxu0 0
    %4036 = vmatprep.subr.bf16.mxu0 0
    %4037 = vmatpush1.bf16.msra.mxu0 0
    %4038 = vmatprep.subr.bf16.mxu0 0
    %4039 = vmatpush1.bf16.msra.mxu0 0
    %4040 = vmatprep.subr.bf16.mxu0 0
    %4041 = vmatpush1.bf16.msra.mxu0 0
    %4042 = vmatprep.subr.bf16.mxu0 0
    %4043 = vmatpush1.bf16.msra.mxu0 0
    %4044 = vmatprep.mubr.bf16.mxu0 0
    %4045 = vmatmul.mubr.bf16.gmra.mrb[0].mxu0 %v4009
    %v4046 = vpop.f32.mrb[0].mxu0
    %v4047 = vadd.f32 0.0, %v4046
    %v4048 = vpop.f32.mrb[0].mxu0
    %v4049 = vadd.f32 0.0, %v4048
    %v4050 = vpop.f32.mrb[0].mxu0
    %v4051 = vpop.f32.mrb[0].mxu0
    %4052 = vdwg.mxu0
    %4053 = vmatprep.subr.bf16.mxu0 %v3274
    %4054 = vmatpush1.bf16.msra.mxu0 %v3273
    %4055 = vmatprep.subr.bf16.mxu0 %v3278
    %4056 = vmatpush1.bf16.msra.mxu0 %v3277
    %4057 = vmatprep.subr.bf16.mxu0 %v3282
    %4058 = vmatpush1.bf16.msra.mxu0 %v3281
    %4059 = vmatprep.subr.bf16.mxu0 %v3286
    %4060 = vmatpush1.bf16.msra.mxu0 %v3285
    %4061 = vmatprep.subr.bf16.mxu0 %v3290
    %4062 = vmatpush1.bf16.msra.mxu0 %v3289
    %4063 = vmatprep.subr.bf16.mxu0 %v3294
    %4064 = vmatpush1.bf16.msra.mxu0 %v3293
    %4065 = vmatprep.subr.bf16.mxu0 %v3298
    %4066 = vmatpush1.bf16.msra.mxu0 %v3297
    %4067 = vmatprep.subr.bf16.mxu0 %v3302
    %4068 = vmatpush1.bf16.msra.mxu0 %v3301
    %4069 = vmatprep.subr.bf16.mxu0 0
    %4070 = vmatpush1.bf16.msra.mxu0 0
    %4071 = vmatprep.subr.bf16.mxu0 0
    %4072 = vmatpush1.bf16.msra.mxu0 0
    %4073 = vmatprep.subr.bf16.mxu0 0
    %4074 = vmatpush1.bf16.msra.mxu0 0
    %4075 = vmatprep.subr.bf16.mxu0 0
    %4076 = vmatpush1.bf16.msra.mxu0 0
    %4077 = vmatprep.subr.bf16.mxu0 0
    %4078 = vmatpush1.bf16.msra.mxu0 0
    %4079 = vmatprep.subr.bf16.mxu0 0
    %4080 = vmatpush1.bf16.msra.mxu0 0
    %4081 = vmatprep.subr.bf16.mxu0 0
    %4082 = vmatpush1.bf16.msra.mxu0 0
    %4083 = vmatprep.subr.bf16.mxu0 0
    %4084 = vmatpush1.bf16.msra.mxu0 0
    %4085 = vmatprep.mubr.bf16.mxu0 0
    %4086 = vmatmul.mubr.bf16.gmra.mrb[0].mxu0 %v4009
    %v4087 = vpop.f32.mrb[0].mxu0
    %v4088 = vadd.f32 0.0, %v4087
    %v4089 = vpop.f32.mrb[0].mxu0
    %v4090 = vadd.f32 0.0, %v4089
    %v4091 = vpop.f32.mrb[0].mxu0
    %v4092 = vpop.f32.mrb[0].mxu0
    %4093 = vdwg.mxu0
    %v4094 = vadd.f32 %v3096, %v4047
    %v4095 = vadd.f32 %v3098, %v4049
    %v4096 = vadd.f32 %v3137, %v4088
    %v4097 = vadd.f32 %v3139, %v4090
    %v4098 = vxor.u32 %v4094, 2147483648
    %v4099 = vmul.f32 %v4098, 1.442695
    %v4100 = vpow.pop %v4099
    %v4101 = vadd.f32 %v4100, 1.0
    %v4102 = vrcp.pop %v4101
    %v4103 = vmul.f32 1.0, %v4102
    %v4104 = vtanh.pop %v4096
    %v4105 = vmul.f32 %v4103, %v4104
    %v4106 = vxor.u32 %v4095, 2147483648
    %v4107 = vmul.f32 %v4106, 1.442695
    %v4108 = vpow.pop %v4107
    %v4109 = vadd.f32 %v4108, 1.0
    %v4110 = vrcp.pop %v4109
    %v4111 = vmul.f32 1.0, %v4110
    %v4112 = vmul.f32 %v4111, %v4000
    %v4113 = vadd.f32 %v4112, %v4105
    %v4114 = vxor.u32 %v4097, 2147483648
    %v4115 = vmul.f32 %v4114, 1.442695
    %v4116 = vpow.pop %v4115
    %v4117 = vadd.f32 %v4116, 1.0
    %v4118 = vrcp.pop %v4117
    %v4119 = vmul.f32 1.0, %v4118
    %v4120 = vtanh.pop %v4113
    %v4121 = vmul.f32 %v4119, %v4120
    %v4122 = vpack.c.bf16 %v4121, %v4121
    %s4123 = scalar_lea.vmem [#allocation3], 24
    %4124 = vst [vmem:[%s4123] sm:$0xf] %v4122
    %4125 = vmatprep.subr.bf16.mxu0 %v3272
    %4126 = vmatpush1.bf16.msra.mxu0 %v3271
    %4127 = vmatprep.subr.bf16.mxu0 %v3276
    %4128 = vmatpush1.bf16.msra.mxu0 %v3275
    %4129 = vmatprep.subr.bf16.mxu0 %v3280
    %4130 = vmatpush1.bf16.msra.mxu0 %v3279
    %4131 = vmatprep.subr.bf16.mxu0 %v3284
    %4132 = vmatpush1.bf16.msra.mxu0 %v3283
    %4133 = vmatprep.subr.bf16.mxu0 %v3288
    %4134 = vmatpush1.bf16.msra.mxu0 %v3287
    %4135 = vmatprep.subr.bf16.mxu0 %v3292
    %4136 = vmatpush1.bf16.msra.mxu0 %v3291
    %4137 = vmatprep.subr.bf16.mxu0 %v3296
    %4138 = vmatpush1.bf16.msra.mxu0 %v3295
    %4139 = vmatprep.subr.bf16.mxu0 %v3300
    %4140 = vmatpush1.bf16.msra.mxu0 %v3299
    %4141 = vmatprep.subr.bf16.mxu0 0
    %4142 = vmatpush1.bf16.msra.mxu0 0
    %4143 = vmatprep.subr.bf16.mxu0 0
    %4144 = vmatpush1.bf16.msra.mxu0 0
    %4145 = vmatprep.subr.bf16.mxu0 0
    %4146 = vmatpush1.bf16.msra.mxu0 0
    %4147 = vmatprep.subr.bf16.mxu0 0
    %4148 = vmatpush1.bf16.msra.mxu0 0
    %4149 = vmatprep.subr.bf16.mxu0 0
    %4150 = vmatpush1.bf16.msra.mxu0 0
    %4151 = vmatprep.subr.bf16.mxu0 0
    %4152 = vmatpush1.bf16.msra.mxu0 0
    %4153 = vmatprep.subr.bf16.mxu0 0
    %4154 = vmatpush1.bf16.msra.mxu0 0
    %4155 = vmatprep.subr.bf16.mxu0 0
    %4156 = vmatpush1.bf16.msra.mxu0 0
    %4157 = vmatprep.mubr.bf16.mxu0 0
    %4158 = vmatmul.mubr.bf16.gmra.mrb[0].mxu0 %v4122
    %v4159 = vpop.f32.mrb[0].mxu0
    %v4160 = vadd.f32 0.0, %v4159
    %v4161 = vpop.f32.mrb[0].mxu0
    %v4162 = vadd.f32 0.0, %v4161
    %v4163 = vpop.f32.mrb[0].mxu0
    %v4164 = vpop.f32.mrb[0].mxu0
    %4165 = vdwg.mxu0
    %4166 = vmatprep.subr.bf16.mxu0 %v3274
    %4167 = vmatpush1.bf16.msra.mxu0 %v3273
    %4168 = vmatprep.subr.bf16.mxu0 %v3278
    %4169 = vmatpush1.bf16.msra.mxu0 %v3277
    %4170 = vmatprep.subr.bf16.mxu0 %v3282
    %4171 = vmatpush1.bf16.msra.mxu0 %v3281
    %4172 = vmatprep.subr.bf16.mxu0 %v3286
    %4173 = vmatpush1.bf16.msra.mxu0 %v3285
    %4174 = vmatprep.subr.bf16.mxu0 %v3290
    %4175 = vmatpush1.bf16.msra.mxu0 %v3289
    %4176 = vmatprep.subr.bf16.mxu0 %v3294
    %4177 = vmatpush1.bf16.msra.mxu0 %v3293
    %4178 = vmatprep.subr.bf16.mxu0 %v3298
    %4179 = vmatpush1.bf16.msra.mxu0 %v3297
    %4180 = vmatprep.subr.bf16.mxu0 %v3302
    %4181 = vmatpush1.bf16.msra.mxu0 %v3301
    %4182 = vmatprep.subr.bf16.mxu0 0
    %4183 = vmatpush1.bf16.msra.mxu0 0
    %4184 = vmatprep.subr.bf16.mxu0 0
    %4185 = vmatpush1.bf16.msra.mxu0 0
    %4186 = vmatprep.subr.bf16.mxu0 0
    %4187 = vmatpush1.bf16.msra.mxu0 0
    %4188 = vmatprep.subr.bf16.mxu0 0
    %4189 = vmatpush1.bf16.msra.mxu0 0
    %4190 = vmatprep.subr.bf16.mxu0 0
    %4191 = vmatpush1.bf16.msra.mxu0 0
    %4192 = vmatprep.subr.bf16.mxu0 0
    %4193 = vmatpush1.bf16.msra.mxu0 0
    %4194 = vmatprep.subr.bf16.mxu0 0
    %4195 = vmatpush1.bf16.msra.mxu0 0
    %4196 = vmatprep.subr.bf16.mxu0 0
    %4197 = vmatpush1.bf16.msra.mxu0 0
    %4198 = vmatprep.mubr.bf16.mxu0 0
    %4199 = vmatmul.mubr.bf16.gmra.mrb[0].mxu0 %v4122
    %v4200 = vpop.f32.mrb[0].mxu0
    %v4201 = vadd.f32 0.0, %v4200
    %v4202 = vpop.f32.mrb[0].mxu0
    %v4203 = vadd.f32 0.0, %v4202
    %v4204 = vpop.f32.mrb[0].mxu0
    %v4205 = vpop.f32.mrb[0].mxu0
    %4206 = vdwg.mxu0
    %v4207 = vadd.f32 %v3096, %v4160
    %v4208 = vadd.f32 %v3098, %v4162
    %v4209 = vadd.f32 %v3137, %v4201
    %v4210 = vadd.f32 %v3139, %v4203
    %v4211 = vxor.u32 %v4207, 2147483648
    %v4212 = vmul.f32 %v4211, 1.442695
    %v4213 = vpow.pop %v4212
    %v4214 = vadd.f32 %v4213, 1.0
    %v4215 = vrcp.pop %v4214
    %v4216 = vmul.f32 1.0, %v4215
    %v4217 = vtanh.pop %v4209
    %v4218 = vmul.f32 %v4216, %v4217
    %v4219 = vxor.u32 %v4208, 2147483648
    %v4220 = vmul.f32 %v4219, 1.442695
    %v4221 = vpow.pop %v4220
    %v4222 = vadd.f32 %v4221, 1.0
    %v4223 = vrcp.pop %v4222
    %v4224 = vmul.f32 1.0, %v4223
    %v4225 = vmul.f32 %v4224, %v4113
    %v4226 = vadd.f32 %v4225, %v4218
    %v4227 = vxor.u32 %v4210, 2147483648
    %v4228 = vmul.f32 %v4227, 1.442695
    %v4229 = vpow.pop %v4228
    %v4230 = vadd.f32 %v4229, 1.0
    %v4231 = vrcp.pop %v4230
    %v4232 = vmul.f32 1.0, %v4231
    %v4233 = vtanh.pop %v4226
    %v4234 = vmul.f32 %v4232, %v4233
    %v4235 = vpack.c.bf16 %v4234, %v4234
    %s4236 = scalar_lea.vmem [#allocation3], 28
    %4237 = vst [vmem:[%s4236] sm:$0xf] %v4235
    %4238 = vmatprep.subr.bf16.mxu0 %v3272
    %4239 = vmatpush1.bf16.msra.mxu0 %v3271
    %4240 = vmatprep.subr.bf16.mxu0 %v3276
    %4241 = vmatpush1.bf16.msra.mxu0 %v3275
    %4242 = vmatprep.subr.bf16.mxu0 %v3280
    %4243 = vmatpush1.bf16.msra.mxu0 %v3279
    %4244 = vmatprep.subr.bf16.mxu0 %v3284
    %4245 = vmatpush1.bf16.msra.mxu0 %v3283
    %4246 = vmatprep.subr.bf16.mxu0 %v3288
    %4247 = vmatpush1.bf16.msra.mxu0 %v3287
    %4248 = vmatprep.subr.bf16.mxu0 %v3292
    %4249 = vmatpush1.bf16.msra.mxu0 %v3291
    %4250 = vmatprep.subr.bf16.mxu0 %v3296
    %4251 = vmatpush1.bf16.msra.mxu0 %v3295
    %4252 = vmatprep.subr.bf16.mxu0 %v3300
    %4253 = vmatpush1.bf16.msra.mxu0 %v3299
    %4254 = vmatprep.subr.bf16.mxu0 0
    %4255 = vmatpush1.bf16.msra.mxu0 0
    %4256 = vmatprep.subr.bf16.mxu0 0
    %4257 = vmatpush1.bf16.msra.mxu0 0
    %4258 = vmatprep.subr.bf16.mxu0 0
    %4259 = vmatpush1.bf16.msra.mxu0 0
    %4260 = vmatprep.subr.bf16.mxu0 0
    %4261 = vmatpush1.bf16.msra.mxu0 0
    %4262 = vmatprep.subr.bf16.mxu0 0
    %4263 = vmatpush1.bf16.msra.mxu0 0
    %4264 = vmatprep.subr.bf16.mxu0 0
    %4265 = vmatpush1.bf16.msra.mxu0 0
    %4266 = vmatprep.subr.bf16.mxu0 0
    %4267 = vmatpush1.bf16.msra.mxu0 0
    %4268 = vmatprep.subr.bf16.mxu0 0
    %4269 = vmatpush1.bf16.msra.mxu0 0
    %4270 = vmatprep.mubr.bf16.mxu0 0
    %4271 = vmatmul.mubr.bf16.gmra.mrb[0].mxu0 %v4235
    %v4272 = vpop.f32.mrb[0].mxu0
    %v4273 = vadd.f32 0.0, %v4272
    %v4274 = vpop.f32.mrb[0].mxu0
    %v4275 = vadd.f32 0.0, %v4274
    %v4276 = vpop.f32.mrb[0].mxu0
    %v4277 = vpop.f32.mrb[0].mxu0
    %4278 = vdwg.mxu0
    %4279 = vmatprep.subr.bf16.mxu0 %v3274
    %4280 = vmatpush1.bf16.msra.mxu0 %v3273
    %4281 = vmatprep.subr.bf16.mxu0 %v3278
    %4282 = vmatpush1.bf16.msra.mxu0 %v3277
    %4283 = vmatprep.subr.bf16.mxu0 %v3282
    %4284 = vmatpush1.bf16.msra.mxu0 %v3281
    %4285 = vmatprep.subr.bf16.mxu0 %v3286
    %4286 = vmatpush1.bf16.msra.mxu0 %v3285
    %4287 = vmatprep.subr.bf16.mxu0 %v3290
    %4288 = vmatpush1.bf16.msra.mxu0 %v3289
    %4289 = vmatprep.subr.bf16.mxu0 %v3294
    %4290 = vmatpush1.bf16.msra.mxu0 %v3293
    %4291 = vmatprep.subr.bf16.mxu0 %v3298
    %4292 = vmatpush1.bf16.msra.mxu0 %v3297
    %4293 = vmatprep.subr.bf16.mxu0 %v3302
    %4294 = vmatpush1.bf16.msra.mxu0 %v3301
    %4295 = vmatprep.subr.bf16.mxu0 0
    %4296 = vmatpush1.bf16.msra.mxu0 0
    %4297 = vmatprep.subr.bf16.mxu0 0
    %4298 = vmatpush1.bf16.msra.mxu0 0
    %4299 = vmatprep.subr.bf16.mxu0 0
    %4300 = vmatpush1.bf16.msra.mxu0 0
    %4301 = vmatprep.subr.bf16.mxu0 0
    %4302 = vmatpush1.bf16.msra.mxu0 0
    %4303 = vmatprep.subr.bf16.mxu0 0
    %4304 = vmatpush1.bf16.msra.mxu0 0
    %4305 = vmatprep.subr.bf16.mxu0 0
    %4306 = vmatpush1.bf16.msra.mxu0 0
    %4307 = vmatprep.subr.bf16.mxu0 0
    %4308 = vmatpush1.bf16.msra.mxu0 0
    %4309 = vmatprep.subr.bf16.mxu0 0
    %4310 = vmatpush1.bf16.msra.mxu0 0
    %4311 = vmatprep.mubr.bf16.mxu0 0
    %4312 = vmatmul.mubr.bf16.gmra.mrb[0].mxu0 %v4235
    %v4313 = vpop.f32.mrb[0].mxu0
    %v4314 = vadd.f32 0.0, %v4313
    %v4315 = vpop.f32.mrb[0].mxu0
    %v4316 = vadd.f32 0.0, %v4315
    %v4317 = vpop.f32.mrb[0].mxu0
    %v4318 = vpop.f32.mrb[0].mxu0
    %4319 = vdwg.mxu0
    %v4320 = vadd.f32 %v3096, %v4273
    %v4321 = vadd.f32 %v3098, %v4275
    %v4322 = vadd.f32 %v3137, %v4314
    %v4323 = vadd.f32 %v3139, %v4316
    %v4324 = vxor.u32 %v4320, 2147483648
    %v4325 = vmul.f32 %v4324, 1.442695
    %v4326 = vpow.pop %v4325
    %v4327 = vadd.f32 %v4326, 1.0
    %v4328 = vrcp.pop %v4327
    %v4329 = vmul.f32 1.0, %v4328
    %v4330 = vtanh.pop %v4322
    %v4331 = vmul.f32 %v4329, %v4330
    %v4332 = vxor.u32 %v4321, 2147483648
    %v4333 = vmul.f32 %v4332, 1.442695
    %v4334 = vpow.pop %v4333
    %v4335 = vadd.f32 %v4334, 1.0
    %v4336 = vrcp.pop %v4335
    %v4337 = vmul.f32 1.0, %v4336
    %v4338 = vmul.f32 %v4337, %v4226
    %v4339 = vadd.f32 %v4338, %v4331
    %v4340 = vxor.u32 %v4323, 2147483648
    %v4341 = vmul.f32 %v4340, 1.442695
    %v4342 = vpow.pop %v4341
    %v4343 = vadd.f32 %v4342, 1.0
    %v4344 = vrcp.pop %v4343
    %v4345 = vmul.f32 1.0, %v4344
    %v4346 = vtanh.pop %v4339
    %v4347 = vmul.f32 %v4345, %v4346
    %v4348 = vpack.c.bf16 %v4347, %v4347
    %s4349 = scalar_lea.vmem [#allocation3], 32
    %4350 = vst [vmem:[%s4349] sm:$0xf] %v4348
    %4351 = vmatprep.subr.bf16.mxu0 %v3272
    %4352 = vmatpush1.bf16.msra.mxu0 %v3271
    %4353 = vmatprep.subr.bf16.mxu0 %v3276
    %4354 = vmatpush1.bf16.msra.mxu0 %v3275
    %4355 = vmatprep.subr.bf16.mxu0 %v3280
    %4356 = vmatpush1.bf16.msra.mxu0 %v3279
    %4357 = vmatprep.subr.bf16.mxu0 %v3284
    %4358 = vmatpush1.bf16.msra.mxu0 %v3283
    %4359 = vmatprep.subr.bf16.mxu0 %v3288
    %4360 = vmatpush1.bf16.msra.mxu0 %v3287
    %4361 = vmatprep.subr.bf16.mxu0 %v3292
    %4362 = vmatpush1.bf16.msra.mxu0 %v3291
    %4363 = vmatprep.subr.bf16.mxu0 %v3296
    %4364 = vmatpush1.bf16.msra.mxu0 %v3295
    %4365 = vmatprep.subr.bf16.mxu0 %v3300
    %4366 = vmatpush1.bf16.msra.mxu0 %v3299
    %4367 = vmatprep.subr.bf16.mxu0 0
    %4368 = vmatpush1.bf16.msra.mxu0 0
    %4369 = vmatprep.subr.bf16.mxu0 0
    %4370 = vmatpush1.bf16.msra.mxu0 0
    %4371 = vmatprep.subr.bf16.mxu0 0
    %4372 = vmatpush1.bf16.msra.mxu0 0
    %4373 = vmatprep.subr.bf16.mxu0 0
    %4374 = vmatpush1.bf16.msra.mxu0 0
    %4375 = vmatprep.subr.bf16.mxu0 0
    %4376 = vmatpush1.bf16.msra.mxu0 0
    %4377 = vmatprep.subr.bf16.mxu0 0
    %4378 = vmatpush1.bf16.msra.mxu0 0
    %4379 = vmatprep.subr.bf16.mxu0 0
    %4380 = vmatpush1.bf16.msra.mxu0 0
    %4381 = vmatprep.subr.bf16.mxu0 0
    %4382 = vmatpush1.bf16.msra.mxu0 0
    %4383 = vmatprep.mubr.bf16.mxu0 0
    %4384 = vmatmul.mubr.bf16.gmra.mrb[0].mxu0 %v4348
    %v4385 = vpop.f32.mrb[0].mxu0
    %v4386 = vadd.f32 0.0, %v4385
    %v4387 = vpop.f32.mrb[0].mxu0
    %v4388 = vadd.f32 0.0, %v4387
    %v4389 = vpop.f32.mrb[0].mxu0
    %v4390 = vpop.f32.mrb[0].mxu0
    %4391 = vdwg.mxu0
    %4392 = vmatprep.subr.bf16.mxu0 %v3274
    %4393 = vmatpush1.bf16.msra.mxu0 %v3273
    %4394 = vmatprep.subr.bf16.mxu0 %v3278
    %4395 = vmatpush1.bf16.msra.mxu0 %v3277
    %4396 = vmatprep.subr.bf16.mxu0 %v3282
    %4397 = vmatpush1.bf16.msra.mxu0 %v3281
    %4398 = vmatprep.subr.bf16.mxu0 %v3286
    %4399 = vmatpush1.bf16.msra.mxu0 %v3285
    %4400 = vmatprep.subr.bf16.mxu0 %v3290
    %4401 = vmatpush1.bf16.msra.mxu0 %v3289
    %4402 = vmatprep.subr.bf16.mxu0 %v3294
    %4403 = vmatpush1.bf16.msra.mxu0 %v3293
    %4404 = vmatprep.subr.bf16.mxu0 %v3298
    %4405 = vmatpush1.bf16.msra.mxu0 %v3297
    %4406 = vmatprep.subr.bf16.mxu0 %v3302
    %4407 = vmatpush1.bf16.msra.mxu0 %v3301
    %4408 = vmatprep.subr.bf16.mxu0 0
    %4409 = vmatpush1.bf16.msra.mxu0 0
    %4410 = vmatprep.subr.bf16.mxu0 0
    %4411 = vmatpush1.bf16.msra.mxu0 0
    %4412 = vmatprep.subr.bf16.mxu0 0
    %4413 = vmatpush1.bf16.msra.mxu0 0
    %4414 = vmatprep.subr.bf16.mxu0 0
    %4415 = vmatpush1.bf16.msra.mxu0 0
    %4416 = vmatprep.subr.bf16.mxu0 0
    %4417 = vmatpush1.bf16.msra.mxu0 0
    %4418 = vmatprep.subr.bf16.mxu0 0
    %4419 = vmatpush1.bf16.msra.mxu0 0
    %4420 = vmatprep.subr.bf16.mxu0 0
    %4421 = vmatpush1.bf16.msra.mxu0 0
    %4422 = vmatprep.subr.bf16.mxu0 0
    %4423 = vmatpush1.bf16.msra.mxu0 0
    %4424 = vmatprep.mubr.bf16.mxu0 0
    %4425 = vmatmul.mubr.bf16.gmra.mrb[0].mxu0 %v4348
    %v4426 = vpop.f32.mrb[0].mxu0
    %v4427 = vadd.f32 0.0, %v4426
    %v4428 = vpop.f32.mrb[0].mxu0
    %v4429 = vadd.f32 0.0, %v4428
    %v4430 = vpop.f32.mrb[0].mxu0
    %v4431 = vpop.f32.mrb[0].mxu0
    %4432 = vdwg.mxu0
    %v4433 = vadd.f32 %v3096, %v4386
    %v4434 = vadd.f32 %v3098, %v4388
    %v4435 = vadd.f32 %v3137, %v4427
    %v4436 = vadd.f32 %v3139, %v4429
    %v4437 = vxor.u32 %v4433, 2147483648
    %v4438 = vmul.f32 %v4437, 1.442695
    %v4439 = vpow.pop %v4438
    %v4440 = vadd.f32 %v4439, 1.0
    %v4441 = vrcp.pop %v4440
    %v4442 = vmul.f32 1.0, %v4441
    %v4443 = vtanh.pop %v4435
    %v4444 = vmul.f32 %v4442, %v4443
    %v4445 = vxor.u32 %v4434, 2147483648
    %v4446 = vmul.f32 %v4445, 1.442695
    %v4447 = vpow.pop %v4446
    %v4448 = vadd.f32 %v4447, 1.0
    %v4449 = vrcp.pop %v4448
    %v4450 = vmul.f32 1.0, %v4449
    %v4451 = vmul.f32 %v4450, %v4339
    %v4452 = vadd.f32 %v4451, %v4444
    %v4453 = vxor.u32 %v4436, 2147483648
    %v4454 = vmul.f32 %v4453, 1.442695
    %v4455 = vpow.pop %v4454
    %v4456 = vadd.f32 %v4455, 1.0
    %v4457 = vrcp.pop %v4456
    %v4458 = vmul.f32 1.0, %v4457
    %v4459 = vtanh.pop %v4452
    %v4460 = vmul.f32 %v4458, %v4459
    %v4461 = vpack.c.bf16 %v4460, %v4460
    %s4462 = scalar_lea.vmem [#allocation3], 36
    %4463 = vst [vmem:[%s4462] sm:$0xf] %v4461
    %4464 = vmatprep.subr.bf16.mxu0 %v3272
    %4465 = vmatpush1.bf16.msra.mxu0 %v3271
    %4466 = vmatprep.subr.bf16.mxu0 %v3276
    %4467 = vmatpush1.bf16.msra.mxu0 %v3275
    %4468 = vmatprep.subr.bf16.mxu0 %v3280
    %4469 = vmatpush1.bf16.msra.mxu0 %v3279
    %4470 = vmatprep.subr.bf16.mxu0 %v3284
    %4471 = vmatpush1.bf16.msra.mxu0 %v3283
    %4472 = vmatprep.subr.bf16.mxu0 %v3288
    %4473 = vmatpush1.bf16.msra.mxu0 %v3287
    %4474 = vmatprep.subr.bf16.mxu0 %v3292
    %4475 = vmatpush1.bf16.msra.mxu0 %v3291
    %4476 = vmatprep.subr.bf16.mxu0 %v3296
    %4477 = vmatpush1.bf16.msra.mxu0 %v3295
    %4478 = vmatprep.subr.bf16.mxu0 %v3300
    %4479 = vmatpush1.bf16.msra.mxu0 %v3299
    %4480 = vmatprep.subr.bf16.mxu0 0
    %4481 = vmatpush1.bf16.msra.mxu0 0
    %4482 = vmatprep.subr.bf16.mxu0 0
    %4483 = vmatpush1.bf16.msra.mxu0 0
    %4484 = vmatprep.subr.bf16.mxu0 0
    %4485 = vmatpush1.bf16.msra.mxu0 0
    %4486 = vmatprep.subr.bf16.mxu0 0
    %4487 = vmatpush1.bf16.msra.mxu0 0
    %4488 = vmatprep.subr.bf16.mxu0 0
    %4489 = vmatpush1.bf16.msra.mxu0 0
    %4490 = vmatprep.subr.bf16.mxu0 0
    %4491 = vmatpush1.bf16.msra.mxu0 0
    %4492 = vmatprep.subr.bf16.mxu0 0
    %4493 = vmatpush1.bf16.msra.mxu0 0
    %4494 = vmatprep.subr.bf16.mxu0 0
    %4495 = vmatpush1.bf16.msra.mxu0 0
    %4496 = vmatprep.mubr.bf16.mxu0 0
    %4497 = vmatmul.mubr.bf16.gmra.mrb[0].mxu0 %v4461
    %v4498 = vpop.f32.mrb[0].mxu0
    %v4499 = vadd.f32 0.0, %v4498
    %v4500 = vpop.f32.mrb[0].mxu0
    %v4501 = vadd.f32 0.0, %v4500
    %v4502 = vpop.f32.mrb[0].mxu0
    %v4503 = vpop.f32.mrb[0].mxu0
    %4504 = vdwg.mxu0
    %4505 = vmatprep.subr.bf16.mxu0 %v3274
    %4506 = vmatpush1.bf16.msra.mxu0 %v3273
    %4507 = vmatprep.subr.bf16.mxu0 %v3278
    %4508 = vmatpush1.bf16.msra.mxu0 %v3277
    %4509 = vmatprep.subr.bf16.mxu0 %v3282
    %4510 = vmatpush1.bf16.msra.mxu0 %v3281
    %4511 = vmatprep.subr.bf16.mxu0 %v3286
    %4512 = vmatpush1.bf16.msra.mxu0 %v3285
    %4513 = vmatprep.subr.bf16.mxu0 %v3290
    %4514 = vmatpush1.bf16.msra.mxu0 %v3289
    %4515 = vmatprep.subr.bf16.mxu0 %v3294
    %4516 = vmatpush1.bf16.msra.mxu0 %v3293
    %4517 = vmatprep.subr.bf16.mxu0 %v3298
    %4518 = vmatpush1.bf16.msra.mxu0 %v3297
    %4519 = vmatprep.subr.bf16.mxu0 %v3302
    %4520 = vmatpush1.bf16.msra.mxu0 %v3301
    %4521 = vmatprep.subr.bf16.mxu0 0
    %4522 = vmatpush1.bf16.msra.mxu0 0
    %4523 = vmatprep.subr.bf16.mxu0 0
    %4524 = vmatpush1.bf16.msra.mxu0 0
    %4525 = vmatprep.subr.bf16.mxu0 0
    %4526 = vmatpush1.bf16.msra.mxu0 0
    %4527 = vmatprep.subr.bf16.mxu0 0
    %4528 = vmatpush1.bf16.msra.mxu0 0
    %4529 = vmatprep.subr.bf16.mxu0 0
    %4530 = vmatpush1.bf16.msra.mxu0 0
    %4531 = vmatprep.subr.bf16.mxu0 0
    %4532 = vmatpush1.bf16.msra.mxu0 0
    %4533 = vmatprep.subr.bf16.mxu0 0
    %4534 = vmatpush1.bf16.msra.mxu0 0
    %4535 = vmatprep.subr.bf16.mxu0 0
    %4536 = vmatpush1.bf16.msra.mxu0 0
    %4537 = vmatprep.mubr.bf16.mxu0 0
    %4538 = vmatmul.mubr.bf16.gmra.mrb[0].mxu0 %v4461
    %v4539 = vpop.f32.mrb[0].mxu0
    %v4540 = vadd.f32 0.0, %v4539
    %v4541 = vpop.f32.mrb[0].mxu0
    %v4542 = vadd.f32 0.0, %v4541
    %v4543 = vpop.f32.mrb[0].mxu0
    %v4544 = vpop.f32.mrb[0].mxu0
    %4545 = vdwg.mxu0
    %v4546 = vadd.f32 %v3096, %v4499
    %v4547 = vadd.f32 %v3098, %v4501
    %v4548 = vadd.f32 %v3137, %v4540
    %v4549 = vadd.f32 %v3139, %v4542
    %v4550 = vxor.u32 %v4546, 2147483648
    %v4551 = vmul.f32 %v4550, 1.442695
    %v4552 = vpow.pop %v4551
    %v4553 = vadd.f32 %v4552, 1.0
    %v4554 = vrcp.pop %v4553
    %v4555 = vmul.f32 1.0, %v4554
    %v4556 = vtanh.pop %v4548
    %v4557 = vmul.f32 %v4555, %v4556
    %v4558 = vxor.u32 %v4547, 2147483648
    %v4559 = vmul.f32 %v4558, 1.442695
    %v4560 = vpow.pop %v4559
    %v4561 = vadd.f32 %v4560, 1.0
    %v4562 = vrcp.pop %v4561
    %v4563 = vmul.f32 1.0, %v4562
    %v4564 = vmul.f32 %v4563, %v4452
    %v4565 = vadd.f32 %v4564, %v4557
    %v4566 = vxor.u32 %v4549, 2147483648
    %v4567 = vmul.f32 %v4566, 1.442695
    %v4568 = vpow.pop %v4567
    %v4569 = vadd.f32 %v4568, 1.0
    %v4570 = vrcp.pop %v4569
    %v4571 = vmul.f32 1.0, %v4570
    %v4572 = vtanh.pop %v4565
    %v4573 = vmul.f32 %v4571, %v4572
    %v4574 = vpack.c.bf16 %v4573, %v4573
    %s4575 = scalar_lea.vmem [#allocation3], 40
    %4576 = vst [vmem:[%s4575] sm:$0xf] %v4574
    %4577 = vmatprep.subr.bf16.mxu0 %v3272
    %4578 = vmatpush1.bf16.msra.mxu0 %v3271
    %4579 = vmatprep.subr.bf16.mxu0 %v3276
    %4580 = vmatpush1.bf16.msra.mxu0 %v3275
    %4581 = vmatprep.subr.bf16.mxu0 %v3280
    %4582 = vmatpush1.bf16.msra.mxu0 %v3279
    %4583 = vmatprep.subr.bf16.mxu0 %v3284
    %4584 = vmatpush1.bf16.msra.mxu0 %v3283
    %4585 = vmatprep.subr.bf16.mxu0 %v3288
    %4586 = vmatpush1.bf16.msra.mxu0 %v3287
    %4587 = vmatprep.subr.bf16.mxu0 %v3292
    %4588 = vmatpush1.bf16.msra.mxu0 %v3291
    %4589 = vmatprep.subr.bf16.mxu0 %v3296
    %4590 = vmatpush1.bf16.msra.mxu0 %v3295
    %4591 = vmatprep.subr.bf16.mxu0 %v3300
    %4592 = vmatpush1.bf16.msra.mxu0 %v3299
    %4593 = vmatprep.subr.bf16.mxu0 0
    %4594 = vmatpush1.bf16.msra.mxu0 0
    %4595 = vmatprep.subr.bf16.mxu0 0
    %4596 = vmatpush1.bf16.msra.mxu0 0
    %4597 = vmatprep.subr.bf16.mxu0 0
    %4598 = vmatpush1.bf16.msra.mxu0 0
    %4599 = vmatprep.subr.bf16.mxu0 0
    %4600 = vmatpush1.bf16.msra.mxu0 0
    %4601 = vmatprep.subr.bf16.mxu0 0
    %4602 = vmatpush1.bf16.msra.mxu0 0
    %4603 = vmatprep.subr.bf16.mxu0 0
    %4604 = vmatpush1.bf16.msra.mxu0 0
    %4605 = vmatprep.subr.bf16.mxu0 0
    %4606 = vmatpush1.bf16.msra.mxu0 0
    %4607 = vmatprep.subr.bf16.mxu0 0
    %4608 = vmatpush1.bf16.msra.mxu0 0
    %4609 = vmatprep.mubr.bf16.mxu0 0
    %4610 = vmatmul.mubr.bf16.gmra.mrb[0].mxu0 %v4574
    %v4611 = vpop.f32.mrb[0].mxu0
    %v4612 = vadd.f32 0.0, %v4611
    %v4613 = vpop.f32.mrb[0].mxu0
    %v4614 = vadd.f32 0.0, %v4613
    %v4615 = vpop.f32.mrb[0].mxu0
    %v4616 = vpop.f32.mrb[0].mxu0
    %4617 = vdwg.mxu0
    %4618 = vmatprep.subr.bf16.mxu0 %v3274
    %4619 = vmatpush1.bf16.msra.mxu0 %v3273
    %4620 = vmatprep.subr.bf16.mxu0 %v3278
    %4621 = vmatpush1.bf16.msra.mxu0 %v3277
    %4622 = vmatprep.subr.bf16.mxu0 %v3282
    %4623 = vmatpush1.bf16.msra.mxu0 %v3281
    %4624 = vmatprep.subr.bf16.mxu0 %v3286
    %4625 = vmatpush1.bf16.msra.mxu0 %v3285
    %4626 = vmatprep.subr.bf16.mxu0 %v3290
    %4627 = vmatpush1.bf16.msra.mxu0 %v3289
    %4628 = vmatprep.subr.bf16.mxu0 %v3294
    %4629 = vmatpush1.bf16.msra.mxu0 %v3293
    %4630 = vmatprep.subr.bf16.mxu0 %v3298
    %4631 = vmatpush1.bf16.msra.mxu0 %v3297
    %4632 = vmatprep.subr.bf16.mxu0 %v3302
    %4633 = vmatpush1.bf16.msra.mxu0 %v3301
    %4634 = vmatprep.subr.bf16.mxu0 0
    %4635 = vmatpush1.bf16.msra.mxu0 0
    %4636 = vmatprep.subr.bf16.mxu0 0
    %4637 = vmatpush1.bf16.msra.mxu0 0
    %4638 = vmatprep.subr.bf16.mxu0 0
    %4639 = vmatpush1.bf16.msra.mxu0 0
    %4640 = vmatprep.subr.bf16.mxu0 0
    %4641 = vmatpush1.bf16.msra.mxu0 0
    %4642 = vmatprep.subr.bf16.mxu0 0
    %4643 = vmatpush1.bf16.msra.mxu0 0
    %4644 = vmatprep.subr.bf16.mxu0 0
    %4645 = vmatpush1.bf16.msra.mxu0 0
    %4646 = vmatprep.subr.bf16.mxu0 0
    %4647 = vmatpush1.bf16.msra.mxu0 0
    %4648 = vmatprep.subr.bf16.mxu0 0
    %4649 = vmatpush1.bf16.msra.mxu0 0
    %4650 = vmatprep.mubr.bf16.mxu0 0
    %4651 = vmatmul.mubr.bf16.gmra.mrb[0].mxu0 %v4574
    %v4652 = vpop.f32.mrb[0].mxu0
    %v4653 = vadd.f32 0.0, %v4652
    %v4654 = vpop.f32.mrb[0].mxu0
    %v4655 = vadd.f32 0.0, %v4654
    %v4656 = vpop.f32.mrb[0].mxu0
    %v4657 = vpop.f32.mrb[0].mxu0
    %4658 = vdwg.mxu0
    %v4659 = vadd.f32 %v3096, %v4612
    %v4660 = vadd.f32 %v3098, %v4614
    %v4661 = vadd.f32 %v3137, %v4653
    %v4662 = vadd.f32 %v3139, %v4655
    %v4663 = vxor.u32 %v4659, 2147483648
    %v4664 = vmul.f32 %v4663, 1.442695
    %v4665 = vpow.pop %v4664
    %v4666 = vadd.f32 %v4665, 1.0
    %v4667 = vrcp.pop %v4666
    %v4668 = vmul.f32 1.0, %v4667
    %v4669 = vtanh.pop %v4661
    %v4670 = vmul.f32 %v4668, %v4669
    %v4671 = vxor.u32 %v4660, 2147483648
    %v4672 = vmul.f32 %v4671, 1.442695
    %v4673 = vpow.pop %v4672
    %v4674 = vadd.f32 %v4673, 1.0
    %v4675 = vrcp.pop %v4674
    %v4676 = vmul.f32 1.0, %v4675
    %v4677 = vmul.f32 %v4676, %v4565
    %v4678 = vadd.f32 %v4677, %v4670
    %v4679 = vxor.u32 %v4662, 2147483648
    %v4680 = vmul.f32 %v4679, 1.442695
    %v4681 = vpow.pop %v4680
    %v4682 = vadd.f32 %v4681, 1.0
    %v4683 = vrcp.pop %v4682
    %v4684 = vmul.f32 1.0, %v4683
    %v4685 = vtanh.pop %v4678
    %v4686 = vmul.f32 %v4684, %v4685
    %v4687 = vpack.c.bf16 %v4686, %v4686
    %s4688 = scalar_lea.vmem [#allocation3], 44
    %4689 = vst [vmem:[%s4688] sm:$0xf] %v4687
    %4690 = vmatprep.subr.bf16.mxu0 %v3272
    %4691 = vmatpush1.bf16.msra.mxu0 %v3271
    %4692 = vmatprep.subr.bf16.mxu0 %v3276
    %4693 = vmatpush1.bf16.msra.mxu0 %v3275
    %4694 = vmatprep.subr.bf16.mxu0 %v3280
    %4695 = vmatpush1.bf16.msra.mxu0 %v3279
    %4696 = vmatprep.subr.bf16.mxu0 %v3284
    %4697 = vmatpush1.bf16.msra.mxu0 %v3283
    %4698 = vmatprep.subr.bf16.mxu0 %v3288
    %4699 = vmatpush1.bf16.msra.mxu0 %v3287
    %4700 = vmatprep.subr.bf16.mxu0 %v3292
    %4701 = vmatpush1.bf16.msra.mxu0 %v3291
    %4702 = vmatprep.subr.bf16.mxu0 %v3296
    %4703 = vmatpush1.bf16.msra.mxu0 %v3295
    %4704 = vmatprep.subr.bf16.mxu0 %v3300
    %4705 = vmatpush1.bf16.msra.mxu0 %v3299
    %4706 = vmatprep.subr.bf16.mxu0 0
    %4707 = vmatpush1.bf16.msra.mxu0 0
    %4708 = vmatprep.subr.bf16.mxu0 0
    %4709 = vmatpush1.bf16.msra.mxu0 0
    %4710 = vmatprep.subr.bf16.mxu0 0
    %4711 = vmatpush1.bf16.msra.mxu0 0
    %4712 = vmatprep.subr.bf16.mxu0 0
    %4713 = vmatpush1.bf16.msra.mxu0 0
    %4714 = vmatprep.subr.bf16.mxu0 0
    %4715 = vmatpush1.bf16.msra.mxu0 0
    %4716 = vmatprep.subr.bf16.mxu0 0
    %4717 = vmatpush1.bf16.msra.mxu0 0
    %4718 = vmatprep.subr.bf16.mxu0 0
    %4719 = vmatpush1.bf16.msra.mxu0 0
    %4720 = vmatprep.subr.bf16.mxu0 0
    %4721 = vmatpush1.bf16.msra.mxu0 0
    %4722 = vmatprep.mubr.bf16.mxu0 0
    %4723 = vmatmul.mubr.bf16.gmra.mrb[0].mxu0 %v4687
    %v4724 = vpop.f32.mrb[0].mxu0
    %v4725 = vadd.f32 0.0, %v4724
    %v4726 = vpop.f32.mrb[0].mxu0
    %v4727 = vadd.f32 0.0, %v4726
    %v4728 = vpop.f32.mrb[0].mxu0
    %v4729 = vpop.f32.mrb[0].mxu0
    %4730 = vdwg.mxu0
    %4731 = vmatprep.subr.bf16.mxu0 %v3274
    %4732 = vmatpush1.bf16.msra.mxu0 %v3273
    %4733 = vmatprep.subr.bf16.mxu0 %v3278
    %4734 = vmatpush1.bf16.msra.mxu0 %v3277
    %4735 = vmatprep.subr.bf16.mxu0 %v3282
    %4736 = vmatpush1.bf16.msra.mxu0 %v3281
    %4737 = vmatprep.subr.bf16.mxu0 %v3286
    %4738 = vmatpush1.bf16.msra.mxu0 %v3285
    %4739 = vmatprep.subr.bf16.mxu0 %v3290
    %4740 = vmatpush1.bf16.msra.mxu0 %v3289
    %4741 = vmatprep.subr.bf16.mxu0 %v3294
    %4742 = vmatpush1.bf16.msra.mxu0 %v3293
    %4743 = vmatprep.subr.bf16.mxu0 %v3298
    %4744 = vmatpush1.bf16.msra.mxu0 %v3297
    %4745 = vmatprep.subr.bf16.mxu0 %v3302
    %4746 = vmatpush1.bf16.msra.mxu0 %v3301
    %4747 = vmatprep.subr.bf16.mxu0 0
    %4748 = vmatpush1.bf16.msra.mxu0 0
    %4749 = vmatprep.subr.bf16.mxu0 0
    %4750 = vmatpush1.bf16.msra.mxu0 0
    %4751 = vmatprep.subr.bf16.mxu0 0
    %4752 = vmatpush1.bf16.msra.mxu0 0
    %4753 = vmatprep.subr.bf16.mxu0 0
    %4754 = vmatpush1.bf16.msra.mxu0 0
    %4755 = vmatprep.subr.bf16.mxu0 0
    %4756 = vmatpush1.bf16.msra.mxu0 0
    %4757 = vmatprep.subr.bf16.mxu0 0
    %4758 = vmatpush1.bf16.msra.mxu0 0
    %4759 = vmatprep.subr.bf16.mxu0 0
    %4760 = vmatpush1.bf16.msra.mxu0 0
    %4761 = vmatprep.subr.bf16.mxu0 0
    %4762 = vmatpush1.bf16.msra.mxu0 0
    %4763 = vmatprep.mubr.bf16.mxu0 0
    %4764 = vmatmul.mubr.bf16.gmra.mrb[0].mxu0 %v4687
    %v4765 = vpop.f32.mrb[0].mxu0
    %v4766 = vadd.f32 0.0, %v4765
    %v4767 = vpop.f32.mrb[0].mxu0
    %v4768 = vadd.f32 0.0, %v4767
    %v4769 = vpop.f32.mrb[0].mxu0
    %v4770 = vpop.f32.mrb[0].mxu0
    %4771 = vdwg.mxu0
    %v4772 = vadd.f32 %v3096, %v4725
    %v4773 = vadd.f32 %v3098, %v4727
    %v4774 = vadd.f32 %v3137, %v4766
    %v4775 = vadd.f32 %v3139, %v4768
    %v4776 = vxor.u32 %v4772, 2147483648
    %v4777 = vmul.f32 %v4776, 1.442695
    %v4778 = vpow.pop %v4777
    %v4779 = vadd.f32 %v4778, 1.0
    %v4780 = vrcp.pop %v4779
    %v4781 = vmul.f32 1.0, %v4780
    %v4782 = vtanh.pop %v4774
    %v4783 = vmul.f32 %v4781, %v4782
    %v4784 = vxor.u32 %v4773, 2147483648
    %v4785 = vmul.f32 %v4784, 1.442695
    %v4786 = vpow.pop %v4785
    %v4787 = vadd.f32 %v4786, 1.0
    %v4788 = vrcp.pop %v4787
    %v4789 = vmul.f32 1.0, %v4788
    %v4790 = vmul.f32 %v4789, %v4678
    %v4791 = vadd.f32 %v4790, %v4783
    %v4792 = vxor.u32 %v4775, 2147483648
    %v4793 = vmul.f32 %v4792, 1.442695
    %v4794 = vpow.pop %v4793
    %v4795 = vadd.f32 %v4794, 1.0
    %v4796 = vrcp.pop %v4795
    %v4797 = vmul.f32 1.0, %v4796
    %v4798 = vtanh.pop %v4791
    %v4799 = vmul.f32 %v4797, %v4798
    %v4800 = vpack.c.bf16 %v4799, %v4799
    %s4801 = scalar_lea.vmem [#allocation3], 48
    %4802 = vst [vmem:[%s4801] sm:$0xf] %v4800
    %4803 = vmatprep.subr.bf16.mxu0 %v3272
    %4804 = vmatpush1.bf16.msra.mxu0 %v3271
    %4805 = vmatprep.subr.bf16.mxu0 %v3276
    %4806 = vmatpush1.bf16.msra.mxu0 %v3275
    %4807 = vmatprep.subr.bf16.mxu0 %v3280
    %4808 = vmatpush1.bf16.msra.mxu0 %v3279
    %4809 = vmatprep.subr.bf16.mxu0 %v3284
    %4810 = vmatpush1.bf16.msra.mxu0 %v3283
    %4811 = vmatprep.subr.bf16.mxu0 %v3288
    %4812 = vmatpush1.bf16.msra.mxu0 %v3287
    %4813 = vmatprep.subr.bf16.mxu0 %v3292
    %4814 = vmatpush1.bf16.msra.mxu0 %v3291
    %4815 = vmatprep.subr.bf16.mxu0 %v3296
    %4816 = vmatpush1.bf16.msra.mxu0 %v3295
    %4817 = vmatprep.subr.bf16.mxu0 %v3300
    %4818 = vmatpush1.bf16.msra.mxu0 %v3299
    %4819 = vmatprep.subr.bf16.mxu0 0
    %4820 = vmatpush1.bf16.msra.mxu0 0
    %4821 = vmatprep.subr.bf16.mxu0 0
    %4822 = vmatpush1.bf16.msra.mxu0 0
    %4823 = vmatprep.subr.bf16.mxu0 0
    %4824 = vmatpush1.bf16.msra.mxu0 0
    %4825 = vmatprep.subr.bf16.mxu0 0
    %4826 = vmatpush1.bf16.msra.mxu0 0
    %4827 = vmatprep.subr.bf16.mxu0 0
    %4828 = vmatpush1.bf16.msra.mxu0 0
    %4829 = vmatprep.subr.bf16.mxu0 0
    %4830 = vmatpush1.bf16.msra.mxu0 0
    %4831 = vmatprep.subr.bf16.mxu0 0
    %4832 = vmatpush1.bf16.msra.mxu0 0
    %4833 = vmatprep.subr.bf16.mxu0 0
    %4834 = vmatpush1.bf16.msra.mxu0 0
    %4835 = vmatprep.mubr.bf16.mxu0 0
    %4836 = vmatmul.mubr.bf16.gmra.mrb[0].mxu0 %v4800
    %v4837 = vpop.f32.mrb[0].mxu0
    %v4838 = vadd.f32 0.0, %v4837
    %v4839 = vpop.f32.mrb[0].mxu0
    %v4840 = vadd.f32 0.0, %v4839
    %v4841 = vpop.f32.mrb[0].mxu0
    %v4842 = vpop.f32.mrb[0].mxu0
    %4843 = vdwg.mxu0
    %4844 = vmatprep.subr.bf16.mxu0 %v3274
    %4845 = vmatpush1.bf16.msra.mxu0 %v3273
    %4846 = vmatprep.subr.bf16.mxu0 %v3278
    %4847 = vmatpush1.bf16.msra.mxu0 %v3277
    %4848 = vmatprep.subr.bf16.mxu0 %v3282
    %4849 = vmatpush1.bf16.msra.mxu0 %v3281
    %4850 = vmatprep.subr.bf16.mxu0 %v3286
    %4851 = vmatpush1.bf16.msra.mxu0 %v3285
    %4852 = vmatprep.subr.bf16.mxu0 %v3290
    %4853 = vmatpush1.bf16.msra.mxu0 %v3289
    %4854 = vmatprep.subr.bf16.mxu0 %v3294
    %4855 = vmatpush1.bf16.msra.mxu0 %v3293
    %4856 = vmatprep.subr.bf16.mxu0 %v3298
    %4857 = vmatpush1.bf16.msra.mxu0 %v3297
    %4858 = vmatprep.subr.bf16.mxu0 %v3302
    %4859 = vmatpush1.bf16.msra.mxu0 %v3301
    %4860 = vmatprep.subr.bf16.mxu0 0
    %4861 = vmatpush1.bf16.msra.mxu0 0
    %4862 = vmatprep.subr.bf16.mxu0 0
    %4863 = vmatpush1.bf16.msra.mxu0 0
    %4864 = vmatprep.subr.bf16.mxu0 0
    %4865 = vmatpush1.bf16.msra.mxu0 0
    %4866 = vmatprep.subr.bf16.mxu0 0
    %4867 = vmatpush1.bf16.msra.mxu0 0
    %4868 = vmatprep.subr.bf16.mxu0 0
    %4869 = vmatpush1.bf16.msra.mxu0 0
    %4870 = vmatprep.subr.bf16.mxu0 0
    %4871 = vmatpush1.bf16.msra.mxu0 0
    %4872 = vmatprep.subr.bf16.mxu0 0
    %4873 = vmatpush1.bf16.msra.mxu0 0
    %4874 = vmatprep.subr.bf16.mxu0 0
    %4875 = vmatpush1.bf16.msra.mxu0 0
    %4876 = vmatprep.mubr.bf16.mxu0 0
    %4877 = vmatmul.mubr.bf16.gmra.mrb[0].mxu0 %v4800
    %v4878 = vpop.f32.mrb[0].mxu0
    %v4879 = vadd.f32 0.0, %v4878
    %v4880 = vpop.f32.mrb[0].mxu0
    %v4881 = vadd.f32 0.0, %v4880
    %v4882 = vpop.f32.mrb[0].mxu0
    %v4883 = vpop.f32.mrb[0].mxu0
    %4884 = vdwg.mxu0
    %v4885 = vadd.f32 %v3096, %v4838
    %v4886 = vadd.f32 %v3098, %v4840
    %v4887 = vadd.f32 %v3137, %v4879
    %v4888 = vadd.f32 %v3139, %v4881
    %v4889 = vxor.u32 %v4885, 2147483648
    %v4890 = vmul.f32 %v4889, 1.442695
    %v4891 = vpow.pop %v4890
    %v4892 = vadd.f32 %v4891, 1.0
    %v4893 = vrcp.pop %v4892
    %v4894 = vmul.f32 1.0, %v4893
    %v4895 = vtanh.pop %v4887
    %v4896 = vmul.f32 %v4894, %v4895
    %v4897 = vxor.u32 %v4886, 2147483648
    %v4898 = vmul.f32 %v4897, 1.442695
    %v4899 = vpow.pop %v4898
    %v4900 = vadd.f32 %v4899, 1.0
    %v4901 = vrcp.pop %v4900
    %v4902 = vmul.f32 1.0, %v4901
    %v4903 = vmul.f32 %v4902, %v4791
    %v4904 = vadd.f32 %v4903, %v4896
    %v4905 = vxor.u32 %v4888, 2147483648
    %v4906 = vmul.f32 %v4905, 1.442695
    %v4907 = vpow.pop %v4906
    %v4908 = vadd.f32 %v4907, 1.0
    %v4909 = vrcp.pop %v4908
    %v4910 = vmul.f32 1.0, %v4909
    %v4911 = vtanh.pop %v4904
    %v4912 = vmul.f32 %v4910, %v4911
    %v4913 = vpack.c.bf16 %v4912, %v4912
    %s4914 = scalar_lea.vmem [#allocation3], 52
    %4915 = vst [vmem:[%s4914] sm:$0xf] %v4913
    %4916 = vmatprep.subr.bf16.mxu0 %v3272
    %4917 = vmatpush1.bf16.msra.mxu0 %v3271
    %4918 = vmatprep.subr.bf16.mxu0 %v3276
    %4919 = vmatpush1.bf16.msra.mxu0 %v3275
    %4920 = vmatprep.subr.bf16.mxu0 %v3280
    %4921 = vmatpush1.bf16.msra.mxu0 %v3279
    %4922 = vmatprep.subr.bf16.mxu0 %v3284
    %4923 = vmatpush1.bf16.msra.mxu0 %v3283
    %4924 = vmatprep.subr.bf16.mxu0 %v3288
    %4925 = vmatpush1.bf16.msra.mxu0 %v3287
    %4926 = vmatprep.subr.bf16.mxu0 %v3292
    %4927 = vmatpush1.bf16.msra.mxu0 %v3291
    %4928 = vmatprep.subr.bf16.mxu0 %v3296
    %4929 = vmatpush1.bf16.msra.mxu0 %v3295
    %4930 = vmatprep.subr.bf16.mxu0 %v3300
    %4931 = vmatpush1.bf16.msra.mxu0 %v3299
    %4932 = vmatprep.subr.bf16.mxu0 0
    %4933 = vmatpush1.bf16.msra.mxu0 0
    %4934 = vmatprep.subr.bf16.mxu0 0
    %4935 = vmatpush1.bf16.msra.mxu0 0
    %4936 = vmatprep.subr.bf16.mxu0 0
    %4937 = vmatpush1.bf16.msra.mxu0 0
    %4938 = vmatprep.subr.bf16.mxu0 0
    %4939 = vmatpush1.bf16.msra.mxu0 0
    %4940 = vmatprep.subr.bf16.mxu0 0
    %4941 = vmatpush1.bf16.msra.mxu0 0
    %4942 = vmatprep.subr.bf16.mxu0 0
    %4943 = vmatpush1.bf16.msra.mxu0 0
    %4944 = vmatprep.subr.bf16.mxu0 0
    %4945 = vmatpush1.bf16.msra.mxu0 0
    %4946 = vmatprep.subr.bf16.mxu0 0
    %4947 = vmatpush1.bf16.msra.mxu0 0
    %4948 = vmatprep.mubr.bf16.mxu0 0
    %4949 = vmatmul.mubr.bf16.gmra.mrb[0].mxu0 %v4913
    %v4950 = vpop.f32.mrb[0].mxu0
    %v4951 = vadd.f32 0.0, %v4950
    %v4952 = vpop.f32.mrb[0].mxu0
    %v4953 = vadd.f32 0.0, %v4952
    %v4954 = vpop.f32.mrb[0].mxu0
    %v4955 = vpop.f32.mrb[0].mxu0
    %4956 = vdwg.mxu0
    %4957 = vmatprep.subr.bf16.mxu0 %v3274
    %4958 = vmatpush1.bf16.msra.mxu0 %v3273
    %4959 = vmatprep.subr.bf16.mxu0 %v3278
    %4960 = vmatpush1.bf16.msra.mxu0 %v3277
    %4961 = vmatprep.subr.bf16.mxu0 %v3282
    %4962 = vmatpush1.bf16.msra.mxu0 %v3281
    %4963 = vmatprep.subr.bf16.mxu0 %v3286
    %4964 = vmatpush1.bf16.msra.mxu0 %v3285
    %4965 = vmatprep.subr.bf16.mxu0 %v3290
    %4966 = vmatpush1.bf16.msra.mxu0 %v3289
    %4967 = vmatprep.subr.bf16.mxu0 %v3294
    %4968 = vmatpush1.bf16.msra.mxu0 %v3293
    %4969 = vmatprep.subr.bf16.mxu0 %v3298
    %4970 = vmatpush1.bf16.msra.mxu0 %v3297
    %4971 = vmatprep.subr.bf16.mxu0 %v3302
    %4972 = vmatpush1.bf16.msra.mxu0 %v3301
    %4973 = vmatprep.subr.bf16.mxu0 0
    %4974 = vmatpush1.bf16.msra.mxu0 0
    %4975 = vmatprep.subr.bf16.mxu0 0
    %4976 = vmatpush1.bf16.msra.mxu0 0
    %4977 = vmatprep.subr.bf16.mxu0 0
    %4978 = vmatpush1.bf16.msra.mxu0 0
    %4979 = vmatprep.subr.bf16.mxu0 0
    %4980 = vmatpush1.bf16.msra.mxu0 0
    %4981 = vmatprep.subr.bf16.mxu0 0
    %4982 = vmatpush1.bf16.msra.mxu0 0
    %4983 = vmatprep.subr.bf16.mxu0 0
    %4984 = vmatpush1.bf16.msra.mxu0 0
    %4985 = vmatprep.subr.bf16.mxu0 0
    %4986 = vmatpush1.bf16.msra.mxu0 0
    %4987 = vmatprep.subr.bf16.mxu0 0
    %4988 = vmatpush1.bf16.msra.mxu0 0
    %4989 = vmatprep.mubr.bf16.mxu0 0
    %4990 = vmatmul.mubr.bf16.gmra.mrb[0].mxu0 %v4913
    %v4991 = vpop.f32.mrb[0].mxu0
    %v4992 = vadd.f32 0.0, %v4991
    %v4993 = vpop.f32.mrb[0].mxu0
    %v4994 = vadd.f32 0.0, %v4993
    %v4995 = vpop.f32.mrb[0].mxu0
    %v4996 = vpop.f32.mrb[0].mxu0
    %4997 = vdwg.mxu0
    %v4998 = vadd.f32 %v3096, %v4951
    %v4999 = vadd.f32 %v3098, %v4953
    %v5000 = vadd.f32 %v3137, %v4992
    %v5001 = vadd.f32 %v3139, %v4994
    %v5002 = vxor.u32 %v4998, 2147483648
    %v5003 = vmul.f32 %v5002, 1.442695
    %v5004 = vpow.pop %v5003
    %v5005 = vadd.f32 %v5004, 1.0
    %v5006 = vrcp.pop %v5005
    %v5007 = vmul.f32 1.0, %v5006
    %v5008 = vtanh.pop %v5000
    %v5009 = vmul.f32 %v5007, %v5008
    %v5010 = vxor.u32 %v4999, 2147483648
    %v5011 = vmul.f32 %v5010, 1.442695
    %v5012 = vpow.pop %v5011
    %v5013 = vadd.f32 %v5012, 1.0
    %v5014 = vrcp.pop %v5013
    %v5015 = vmul.f32 1.0, %v5014
    %v5016 = vmul.f32 %v5015, %v4904
    %v5017 = vadd.f32 %v5016, %v5009
    %v5018 = vxor.u32 %v5001, 2147483648
    %v5019 = vmul.f32 %v5018, 1.442695
    %v5020 = vpow.pop %v5019
    %v5021 = vadd.f32 %v5020, 1.0
    %v5022 = vrcp.pop %v5021
    %v5023 = vmul.f32 1.0, %v5022
    %v5024 = vtanh.pop %v5017
    %v5025 = vmul.f32 %v5023, %v5024
    %v5026 = vpack.c.bf16 %v5025, %v5025
    %s5027 = scalar_lea.vmem [#allocation3], 56
    %5028 = vst [vmem:[%s5027] sm:$0xf] %v5026
    %5029 = vmatprep.subr.bf16.mxu0 %v3272
    %5030 = vmatpush1.bf16.msra.mxu0 %v3271
    %5031 = vmatprep.subr.bf16.mxu0 %v3276
    %5032 = vmatpush1.bf16.msra.mxu0 %v3275
    %5033 = vmatprep.subr.bf16.mxu0 %v3280
    %5034 = vmatpush1.bf16.msra.mxu0 %v3279
    %5035 = vmatprep.subr.bf16.mxu0 %v3284
    %5036 = vmatpush1.bf16.msra.mxu0 %v3283
    %5037 = vmatprep.subr.bf16.mxu0 %v3288
    %5038 = vmatpush1.bf16.msra.mxu0 %v3287
    %5039 = vmatprep.subr.bf16.mxu0 %v3292
    %5040 = vmatpush1.bf16.msra.mxu0 %v3291
    %5041 = vmatprep.subr.bf16.mxu0 %v3296
    %5042 = vmatpush1.bf16.msra.mxu0 %v3295
    %5043 = vmatprep.subr.bf16.mxu0 %v3300
    %5044 = vmatpush1.bf16.msra.mxu0 %v3299
    %5045 = vmatprep.subr.bf16.mxu0 0
    %5046 = vmatpush1.bf16.msra.mxu0 0
    %5047 = vmatprep.subr.bf16.mxu0 0
    %5048 = vmatpush1.bf16.msra.mxu0 0
    %5049 = vmatprep.subr.bf16.mxu0 0
    %5050 = vmatpush1.bf16.msra.mxu0 0
    %5051 = vmatprep.subr.bf16.mxu0 0
    %5052 = vmatpush1.bf16.msra.mxu0 0
    %5053 = vmatprep.subr.bf16.mxu0 0
    %5054 = vmatpush1.bf16.msra.mxu0 0
    %5055 = vmatprep.subr.bf16.mxu0 0
    %5056 = vmatpush1.bf16.msra.mxu0 0
    %5057 = vmatprep.subr.bf16.mxu0 0
    %5058 = vmatpush1.bf16.msra.mxu0 0
    %5059 = vmatprep.subr.bf16.mxu0 0
    %5060 = vmatpush1.bf16.msra.mxu0 0
    %5061 = vmatprep.mubr.bf16.mxu0 0
    %5062 = vmatmul.mubr.bf16.gmra.mrb[0].mxu0 %v5026
    %v5063 = vpop.f32.mrb[0].mxu0
    %v5064 = vadd.f32 0.0, %v5063
    %v5065 = vpop.f32.mrb[0].mxu0
    %v5066 = vadd.f32 0.0, %v5065
    %v5067 = vpop.f32.mrb[0].mxu0
    %v5068 = vpop.f32.mrb[0].mxu0
    %5069 = vdwg.mxu0
    %5070 = vmatprep.subr.bf16.mxu0 %v3274
    %5071 = vmatpush1.bf16.msra.mxu0 %v3273
    %5072 = vmatprep.subr.bf16.mxu0 %v3278
    %5073 = vmatpush1.bf16.msra.mxu0 %v3277
    %5074 = vmatprep.subr.bf16.mxu0 %v3282
    %5075 = vmatpush1.bf16.msra.mxu0 %v3281
    %5076 = vmatprep.subr.bf16.mxu0 %v3286
    %5077 = vmatpush1.bf16.msra.mxu0 %v3285
    %5078 = vmatprep.subr.bf16.mxu0 %v3290
    %5079 = vmatpush1.bf16.msra.mxu0 %v3289
    %5080 = vmatprep.subr.bf16.mxu0 %v3294
    %5081 = vmatpush1.bf16.msra.mxu0 %v3293
    %5082 = vmatprep.subr.bf16.mxu0 %v3298
    %5083 = vmatpush1.bf16.msra.mxu0 %v3297
    %5084 = vmatprep.subr.bf16.mxu0 %v3302
    %5085 = vmatpush1.bf16.msra.mxu0 %v3301
    %5086 = vmatprep.subr.bf16.mxu0 0
    %5087 = vmatpush1.bf16.msra.mxu0 0
    %5088 = vmatprep.subr.bf16.mxu0 0
    %5089 = vmatpush1.bf16.msra.mxu0 0
    %5090 = vmatprep.subr.bf16.mxu0 0
    %5091 = vmatpush1.bf16.msra.mxu0 0
    %5092 = vmatprep.subr.bf16.mxu0 0
    %5093 = vmatpush1.bf16.msra.mxu0 0
    %5094 = vmatprep.subr.bf16.mxu0 0
    %5095 = vmatpush1.bf16.msra.mxu0 0
    %5096 = vmatprep.subr.bf16.mxu0 0
    %5097 = vmatpush1.bf16.msra.mxu0 0
    %5098 = vmatprep.subr.bf16.mxu0 0
    %5099 = vmatpush1.bf16.msra.mxu0 0
    %5100 = vmatprep.subr.bf16.mxu0 0
    %5101 = vmatpush1.bf16.msra.mxu0 0
    %5102 = vmatprep.mubr.bf16.mxu0 0
    %5103 = vmatmul.mubr.bf16.gmra.mrb[0].mxu0 %v5026
    %v5104 = vpop.f32.mrb[0].mxu0
    %v5105 = vadd.f32 0.0, %v5104
    %v5106 = vpop.f32.mrb[0].mxu0
    %v5107 = vadd.f32 0.0, %v5106
    %v5108 = vpop.f32.mrb[0].mxu0
    %v5109 = vpop.f32.mrb[0].mxu0
    %5110 = vdwg.mxu0
    %v5111 = vadd.f32 %v3096, %v5064
    %v5112 = vadd.f32 %v3098, %v5066
    %v5113 = vadd.f32 %v3137, %v5105
    %v5114 = vadd.f32 %v3139, %v5107
    %v5115 = vxor.u32 %v5111, 2147483648
    %v5116 = vmul.f32 %v5115, 1.442695
    %v5117 = vpow.pop %v5116
    %v5118 = vadd.f32 %v5117, 1.0
    %v5119 = vrcp.pop %v5118
    %v5120 = vmul.f32 1.0, %v5119
    %v5121 = vtanh.pop %v5113
    %v5122 = vmul.f32 %v5120, %v5121
    %v5123 = vxor.u32 %v5112, 2147483648
    %v5124 = vmul.f32 %v5123, 1.442695
    %v5125 = vpow.pop %v5124
    %v5126 = vadd.f32 %v5125, 1.0
    %v5127 = vrcp.pop %v5126
    %v5128 = vmul.f32 1.0, %v5127
    %v5129 = vmul.f32 %v5128, %v5017
    %v5130 = vadd.f32 %v5129, %v5122
    %v5131 = vxor.u32 %v5114, 2147483648
    %v5132 = vmul.f32 %v5131, 1.442695
    %v5133 = vpow.pop %v5132
    %v5134 = vadd.f32 %v5133, 1.0
    %v5135 = vrcp.pop %v5134
    %v5136 = vmul.f32 1.0, %v5135
    %v5137 = vtanh.pop %v5130
    %v5138 = vmul.f32 %v5136, %v5137
    %v5139 = vpack.c.bf16 %v5138, %v5138
    %s5140 = scalar_lea.vmem [#allocation3], 60
    %5141 = vst [vmem:[%s5140] sm:$0xf] %v5139
    %v5142 = vld [vmem:[#allocation3] sm:$0xf]
    %v5143 = vld [vmem:[#allocation3 + $0x4] sm:$0xf]
    %v5144 = vld [vmem:[#allocation3 + $0x8] sm:$0xf]
    %v5145 = vld [vmem:[#allocation3 + $0xc] sm:$0xf]
    %v5146 = vld [vmem:[#allocation3 + $0x10] sm:$0xf]
    %v5147 = vld [vmem:[#allocation3 + $0x14] sm:$0xf]
    %v5148 = vld [vmem:[#allocation3 + $0x18] sm:$0xf]
    %v5149 = vld [vmem:[#allocation3 + $0x1c] sm:$0xf]
    %v5150 = vld [vmem:[#allocation3 + $0x20] sm:$0xf]
    %v5151 = vld [vmem:[#allocation3 + $0x24] sm:$0xf]
    %v5152 = vld [vmem:[#allocation3 + $0x28] sm:$0xf]
    %v5153 = vld [vmem:[#allocation3 + $0x2c] sm:$0xf]
    %v5154 = vld [vmem:[#allocation3 + $0x30] sm:$0xf]
    %v5155 = vld [vmem:[#allocation3 + $0x34] sm:$0xf]
    %v5156 = vld [vmem:[#allocation3 + $0x38] sm:$0xf]
    %v5157 = vld [vmem:[#allocation3 + $0x3c] sm:$0xf]
    %v5158 = vld [vmem:[#allocation16] sm:$0xf]
    %v5159 = vld [vmem:[#allocation16 + $0x4] sm:$0xf]
    %v5160 = vld [vmem:[#allocation16 + $0x8] sm:$0xf]
    %v5161 = vld [vmem:[#allocation16 + $0xc] sm:$0xf]
    %v5162 = vld [vmem:[#allocation16 + $0x10] sm:$0xf]
    %v5163 = vld [vmem:[#allocation16 + $0x14] sm:$0xf]
    %v5164 = vld [vmem:[#allocation16 + $0x18] sm:$0xf]
    %v5165 = vld [vmem:[#allocation16 + $0x1c] sm:$0xf]
    %v5166 = vld [vmem:[#allocation16 + $0x20] sm:$0xf]
    %v5167 = vld [vmem:[#allocation16 + $0x24] sm:$0xf]
    %v5168 = vld [vmem:[#allocation16 + $0x28] sm:$0xf]
    %v5169 = vld [vmem:[#allocation16 + $0x2c] sm:$0xf]
    %v5170 = vld [vmem:[#allocation16 + $0x30] sm:$0xf]
    %v5171 = vld [vmem:[#allocation16 + $0x34] sm:$0xf]
    %v5172 = vld [vmem:[#allocation16 + $0x38] sm:$0xf]
    %v5173 = vld [vmem:[#allocation16 + $0x3c] sm:$0xf]
    %v5174 = vld [vmem:[%s12] sm:$0x1]
    %v5176 = vlaneseq
    %v5177 = vshrl.u32 %v5176, 7
    %v5178 = vsub.s32 0, %v5177
    %v5179 = vrot.slane %v5174, %v5178
    %v5197 = vunpack.c.l.b16 %v5142
    %v5198 = vunpack.c.l.b16 %v5143
    %v5199 = vunpack.c.l.b16 %v5144
    %v5200 = vunpack.c.l.b16 %v5145
    %v5201 = vunpack.c.l.b16 %v5146
    %v5202 = vunpack.c.l.b16 %v5147
    %v5203 = vunpack.c.l.b16 %v5148
    %v5204 = vunpack.c.l.b16 %v5149
    %v5205 = vunpack.c.l.b16 %v5150
    %v5206 = vunpack.c.l.b16 %v5151
    %v5207 = vunpack.c.l.b16 %v5152
    %v5208 = vunpack.c.l.b16 %v5153
    %v5209 = vunpack.c.l.b16 %v5154
    %v5210 = vunpack.c.l.b16 %v5155
    %v5211 = vunpack.c.l.b16 %v5156
    %v5212 = vunpack.c.l.b16 %v5157
    %v5213 = vpack.c.b16 %v5198, %v5197
    %v5214 = vpack.c.b16 %v5200, %v5199
    %v5215 = vpack.c.b16 %v5202, %v5201
    %v5216 = vpack.c.b16 %v5204, %v5203
    %v5217 = vpack.c.b16 %v5206, %v5205
    %v5218 = vpack.c.b16 %v5208, %v5207
    %v5219 = vpack.c.b16 %v5210, %v5209
    %v5220 = vpack.c.b16 %v5212, %v5211
    %v5245 = vunpack.c.l.b16 %v5158
    %v5246 = vunpack.c.l.b16 %v5159
    %v5247 = vunpack.c.l.b16 %v5160
    %v5248 = vunpack.c.l.b16 %v5161
    %v5249 = vunpack.c.l.b16 %v5162
    %v5250 = vunpack.c.l.b16 %v5163
    %v5251 = vunpack.c.l.b16 %v5164
    %v5252 = vunpack.c.l.b16 %v5165
    %v5253 = vunpack.c.l.b16 %v5166
    %v5254 = vunpack.c.l.b16 %v5167
    %v5255 = vunpack.c.l.b16 %v5168
    %v5256 = vunpack.c.l.b16 %v5169
    %v5257 = vunpack.c.l.b16 %v5170
    %v5258 = vunpack.c.l.b16 %v5171
    %v5259 = vunpack.c.l.b16 %v5172
    %v5260 = vunpack.c.l.b16 %v5173
    %v5261 = vpack.c.b16 %v5246, %v5245
    %v5262 = vpack.c.b16 %v5248, %v5247
    %v5263 = vpack.c.b16 %v5250, %v5249
    %v5264 = vpack.c.b16 %v5252, %v5251
    %v5265 = vpack.c.b16 %v5254, %v5253
    %v5266 = vpack.c.b16 %v5256, %v5255
    %v5267 = vpack.c.b16 %v5258, %v5257
    %v5268 = vpack.c.b16 %v5260, %v5259
    %5277 = vmatprep.subr.bf16.mxu0 0
    %5278 = vmatpush1.bf16.msra.mxu0 %v5261
    %5279 = vmatprep.subr.bf16.mxu0 0
    %5280 = vmatpush1.bf16.msra.mxu0 %v5262
    %5281 = vmatprep.subr.bf16.mxu0 0
    %5282 = vmatpush1.bf16.msra.mxu0 %v5263
    %5283 = vmatprep.subr.bf16.mxu0 0
    %5284 = vmatpush1.bf16.msra.mxu0 %v5264
    %5285 = vmatprep.subr.bf16.mxu0 0
    %5286 = vmatpush1.bf16.msra.mxu0 %v5265
    %5287 = vmatprep.subr.bf16.mxu0 0
    %5288 = vmatpush1.bf16.msra.mxu0 %v5266
    %5289 = vmatprep.subr.bf16.mxu0 0
    %5290 = vmatpush1.bf16.msra.mxu0 %v5267
    %5291 = vmatprep.subr.bf16.mxu0 0
    %5292 = vmatpush1.bf16.msra.mxu0 %v5268
    %5293 = vmatprep.subr.bf16.mxu0 0
    %5294 = vmatpush1.bf16.msra.mxu0 0
    %5295 = vmatprep.subr.bf16.mxu0 0
    %5296 = vmatpush1.bf16.msra.mxu0 0
    %5297 = vmatprep.subr.bf16.mxu0 0
    %5298 = vmatpush1.bf16.msra.mxu0 0
    %5299 = vmatprep.subr.bf16.mxu0 0
    %5300 = vmatpush1.bf16.msra.mxu0 0
    %5301 = vmatprep.subr.bf16.mxu0 0
    %5302 = vmatpush1.bf16.msra.mxu0 0
    %5303 = vmatprep.subr.bf16.mxu0 0
    %5304 = vmatpush1.bf16.msra.mxu0 0
    %5305 = vmatprep.subr.bf16.mxu0 0
    %5306 = vmatpush1.bf16.msra.mxu0 0
    %5307 = vmatprep.subr.bf16.mxu0 0
    %5308 = vmatpush1.bf16.msra.mxu0 0
    %5309 = vmatprep.mubr.bf16.mxu0 0
    %5310 = vmatmul.mubr.bf16.gmra.mrb[0].mxu0 %v5213
    %v5311 = vpop.f32.mrb[0].mxu0
    %v5312 = vadd.f32 %v5179, %v5311
    %v5313 = vpop.f32.mrb[0].mxu0
    %v5314 = vpop.f32.mrb[0].mxu0
    %v5315 = vadd.f32 %v5179, %v5314
    %v5316 = vpop.f32.mrb[0].mxu0
    %5317 = vmatprep.mubr.bf16.mxu0 0
    %5318 = vmatmul.mubr.bf16.gmra.mrb[0].mxu0 %v5214
    %v5319 = vpop.f32.mrb[0].mxu0
    %v5320 = vadd.f32 %v5179, %v5319
    %v5321 = vpop.f32.mrb[0].mxu0
    %v5322 = vpop.f32.mrb[0].mxu0
    %v5323 = vadd.f32 %v5179, %v5322
    %v5324 = vpop.f32.mrb[0].mxu0
    %5325 = vmatprep.mubr.bf16.mxu0 0
    %5326 = vmatmul.mubr.bf16.gmra.mrb[0].mxu0 %v5215
    %v5327 = vpop.f32.mrb[0].mxu0
    %v5328 = vadd.f32 %v5179, %v5327
    %v5329 = vpop.f32.mrb[0].mxu0
    %v5330 = vpop.f32.mrb[0].mxu0
    %v5331 = vadd.f32 %v5179, %v5330
    %v5332 = vpop.f32.mrb[0].mxu0
    %5333 = vmatprep.mubr.bf16.mxu0 0
    %5334 = vmatmul.mubr.bf16.gmra.mrb[0].mxu0 %v5216
    %v5335 = vpop.f32.mrb[0].mxu0
    %v5336 = vadd.f32 %v5179, %v5335
    %v5337 = vpop.f32.mrb[0].mxu0
    %v5338 = vpop.f32.mrb[0].mxu0
    %v5339 = vadd.f32 %v5179, %v5338
    %v5340 = vpop.f32.mrb[0].mxu0
    %5341 = vmatprep.mubr.bf16.mxu0 0
    %5342 = vmatmul.mubr.bf16.gmra.mrb[0].mxu0 %v5217
    %v5343 = vpop.f32.mrb[0].mxu0
    %v5344 = vadd.f32 %v5179, %v5343
    %v5345 = vpop.f32.mrb[0].mxu0
    %v5346 = vpop.f32.mrb[0].mxu0
    %v5347 = vadd.f32 %v5179, %v5346
    %v5348 = vpop.f32.mrb[0].mxu0
    %5349 = vmatprep.mubr.bf16.mxu0 0
    %5350 = vmatmul.mubr.bf16.gmra.mrb[0].mxu0 %v5218
    %v5351 = vpop.f32.mrb[0].mxu0
    %v5352 = vadd.f32 %v5179, %v5351
    %v5353 = vpop.f32.mrb[0].mxu0
    %v5354 = vpop.f32.mrb[0].mxu0
    %v5355 = vadd.f32 %v5179, %v5354
    %v5356 = vpop.f32.mrb[0].mxu0
    %5357 = vmatprep.mubr.bf16.mxu0 0
    %5358 = vmatmul.mubr.bf16.gmra.mrb[0].mxu0 %v5219
    %v5359 = vpop.f32.mrb[0].mxu0
    %v5360 = vadd.f32 %v5179, %v5359
    %v5361 = vpop.f32.mrb[0].mxu0
    %v5362 = vpop.f32.mrb[0].mxu0
    %v5363 = vadd.f32 %v5179, %v5362
    %v5364 = vpop.f32.mrb[0].mxu0
    %5365 = vmatprep.mubr.bf16.mxu0 0
    %5366 = vmatmul.mubr.bf16.gmra.mrb[0].mxu0 %v5220
    %v5367 = vpop.f32.mrb[0].mxu0
    %v5368 = vadd.f32 %v5179, %v5367
    %v5369 = vpop.f32.mrb[0].mxu0
    %v5370 = vpop.f32.mrb[0].mxu0
    %v5371 = vadd.f32 %v5179, %v5370
    %v5372 = vpop.f32.mrb[0].mxu0
    %5373 = vdwg.mxu0
    %v5374 = vxor.u32 %v5312, 2147483648
    %v5375 = vxor.u32 %v5315, 2147483648
    %v5376 = vxor.u32 %v5320, 2147483648
    %v5377 = vxor.u32 %v5323, 2147483648
    %v5378 = vxor.u32 %v5328, 2147483648
    %v5379 = vxor.u32 %v5331, 2147483648
    %v5380 = vxor.u32 %v5336, 2147483648
    %v5381 = vxor.u32 %v5339, 2147483648
    %v5382 = vxor.u32 %v5344, 2147483648
    %v5383 = vxor.u32 %v5347, 2147483648
    %v5384 = vxor.u32 %v5352, 2147483648
    %v5385 = vxor.u32 %v5355, 2147483648
    %v5386 = vxor.u32 %v5360, 2147483648
    %v5387 = vxor.u32 %v5363, 2147483648
    %v5388 = vxor.u32 %v5368, 2147483648
    %v5389 = vxor.u32 %v5371, 2147483648
    %v5390 = vmul.f32 %v5374, 1.442695
    %v5391 = vpow.pop %v5390
    %v5392 = vmul.f32 %v5375, 1.442695
    %v5393 = vpow.pop %v5392
    %v5394 = vmul.f32 %v5376, 1.442695
    %v5395 = vpow.pop %v5394
    %v5396 = vmul.f32 %v5377, 1.442695
    %v5397 = vpow.pop %v5396
    %v5398 = vmul.f32 %v5378, 1.442695
    %v5399 = vpow.pop %v5398
    %v5400 = vmul.f32 %v5379, 1.442695
    %v5401 = vpow.pop %v5400
    %v5402 = vmul.f32 %v5380, 1.442695
    %v5403 = vpow.pop %v5402
    %v5404 = vmul.f32 %v5381, 1.442695
    %v5405 = vpow.pop %v5404
    %v5406 = vmul.f32 %v5382, 1.442695
    %v5407 = vpow.pop %v5406
    %v5408 = vmul.f32 %v5383, 1.442695
    %v5409 = vpow.pop %v5408
    %v5410 = vmul.f32 %v5384, 1.442695
    %v5411 = vpow.pop %v5410
    %v5412 = vmul.f32 %v5385, 1.442695
    %v5413 = vpow.pop %v5412
    %v5414 = vmul.f32 %v5386, 1.442695
    %v5415 = vpow.pop %v5414
    %v5416 = vmul.f32 %v5387, 1.442695
    %v5417 = vpow.pop %v5416
    %v5418 = vmul.f32 %v5388, 1.442695
    %v5419 = vpow.pop %v5418
    %v5420 = vmul.f32 %v5389, 1.442695
    %v5421 = vpow.pop %v5420
    %v5422 = vadd.f32 %v5391, 1.0
    %v5423 = vadd.f32 %v5393, 1.0
    %v5424 = vadd.f32 %v5395, 1.0
    %v5425 = vadd.f32 %v5397, 1.0
    %v5426 = vadd.f32 %v5399, 1.0
    %v5427 = vadd.f32 %v5401, 1.0
    %v5428 = vadd.f32 %v5403, 1.0
    %v5429 = vadd.f32 %v5405, 1.0
    %v5430 = vadd.f32 %v5407, 1.0
    %v5431 = vadd.f32 %v5409, 1.0
    %v5432 = vadd.f32 %v5411, 1.0
    %v5433 = vadd.f32 %v5413, 1.0
    %v5434 = vadd.f32 %v5415, 1.0
    %v5435 = vadd.f32 %v5417, 1.0
    %v5436 = vadd.f32 %v5419, 1.0
    %v5437 = vadd.f32 %v5421, 1.0
    %v5438 = vrcp.pop %v5422
    %v5439 = vmul.f32 1.0, %v5438
    %v5440 = vrcp.pop %v5423
    %v5441 = vmul.f32 1.0, %v5440
    %v5442 = vrcp.pop %v5424
    %v5443 = vmul.f32 1.0, %v5442
    %v5444 = vrcp.pop %v5425
    %v5445 = vmul.f32 1.0, %v5444
    %v5446 = vrcp.pop %v5426
    %v5447 = vmul.f32 1.0, %v5446
    %v5448 = vrcp.pop %v5427
    %v5449 = vmul.f32 1.0, %v5448
    %v5450 = vrcp.pop %v5428
    %v5451 = vmul.f32 1.0, %v5450
    %v5452 = vrcp.pop %v5429
    %v5453 = vmul.f32 1.0, %v5452
    %v5454 = vrcp.pop %v5430
    %v5455 = vmul.f32 1.0, %v5454
    %v5456 = vrcp.pop %v5431
    %v5457 = vmul.f32 1.0, %v5456
    %v5458 = vrcp.pop %v5432
    %v5459 = vmul.f32 1.0, %v5458
    %v5460 = vrcp.pop %v5433
    %v5461 = vmul.f32 1.0, %v5460
    %v5462 = vrcp.pop %v5434
    %v5463 = vmul.f32 1.0, %v5462
    %v5464 = vrcp.pop %v5435
    %v5465 = vmul.f32 1.0, %v5464
    %v5466 = vrcp.pop %v5436
    %v5467 = vmul.f32 1.0, %v5466
    %v5468 = vrcp.pop %v5437
    %v5469 = vmul.f32 1.0, %v5468
    %5470 = vst [vmem:[#allocation18] sm:$0xff] %v5439
    %5471 = vst [vmem:[#allocation18 + $0x8] sm:$0xff] %v5441
    %5472 = vst [vmem:[#allocation18 + $0x10] sm:$0xff] %v5443
    %5473 = vst [vmem:[#allocation18 + $0x18] sm:$0xff] %v5445
    %5474 = vst [vmem:[#allocation18 + $0x20] sm:$0xff] %v5447
    %5475 = vst [vmem:[#allocation18 + $0x28] sm:$0xff] %v5449
    %5476 = vst [vmem:[#allocation18 + $0x30] sm:$0xff] %v5451
    %5477 = vst [vmem:[#allocation18 + $0x38] sm:$0xff] %v5453
    %5478 = vst [vmem:[#allocation18 + $0x40] sm:$0xff] %v5455
    %5479 = vst [vmem:[#allocation18 + $0x48] sm:$0xff] %v5457
    %5480 = vst [vmem:[#allocation18 + $0x50] sm:$0xff] %v5459
    %5481 = vst [vmem:[#allocation18 + $0x58] sm:$0xff] %v5461
    %5482 = vst [vmem:[#allocation18 + $0x60] sm:$0xff] %v5463
    %5483 = vst [vmem:[#allocation18 + $0x68] sm:$0xff] %v5465
    %5484 = vst [vmem:[#allocation18 + $0x70] sm:$0xff] %v5467
    %5485 = vst [vmem:[#allocation18 + $0x78] sm:$0xff] %v5469
    // Predicated region
    $region86: #{tpu_custom_call.1} parent=1 // pred_check
      _
    $region87: #{tpu_custom_call.1} parent=1 // pred_check_branch
      %5487 = sbr.rel (0) target = $region89
    $region88: #{tpu_custom_call.1} parent=1 // pred_region
      %s5489 = ssub.s32 2048, 2048
      %5490 = vsyncadd [#allocation6], %s5489
      %s5492 = sshll.u32 [#allocation18], 4
      %s5493 = int_to_ptr.vmem [resolvable:$true] %s5492
      %5495 = dma.vmem_to_hbm [thread:$0]  %s5493, 2048, %s13, [#allocation6]
    $region89: #{tpu_custom_call.1} parent=1 // pred_fallthru
      _
    // Predicated region
    $region90: #{tpu_custom_call.1} parent=1 // pred_check
      _
    $region91: #{tpu_custom_call.1} parent=1 // pred_check_branch
      %5497 = sbr.rel (0) target = $region93
    $region92: #{tpu_custom_call.1} parent=1 // pred_region
      %5498 = dma.done [#allocation6], 2048
    $region93: #{tpu_custom_call.1} parent=1 // pred_fallthru
      _
    %5499 = vsyncpa [#allocation5], 1
    %5500 = vsyncpa [#allocation8], 1
    %5501 = vsyncpa [#allocation11], 1
    %5502 = vsyncpa [#allocation14], 1
    %5503 = vsyncpa [#allocation17], 1
    %5504 = vsyncpa [#allocation6], 1

</llo_original>
